<compile_context>
chip_gen: v7x
topology: tpu7x:2x2x1
jax: 0.10.0
libtpu: 0.0.40
codegen_flags: <defaults>
</compile_context>

<pallas_src>
import functools

import numpy as np
import jax
import jax.numpy as jnp
from jax import lax
from jax.experimental import pallas as pl
from jax.experimental.pallas import tpu as pltpu

# ----------------------- small, TPU-friendly hyperparams -----------------------
VOCAB_SIZE = 65          # char-level vocab from the tutorial text
VOCAB_PAD = 128          # lane-padded vocab (lm_head / tok_emb storage)
N_EMBED = 128            # scaled-down n_embed (lane-aligned)
N_HEAD = 4
HEAD_SIZE = N_EMBED // N_HEAD
N_LAYER = 2
BLOCK_SIZE = 32          # max context
BATCH = 2
SEQ = 16                 # T <= BLOCK_SIZE, multiple of 8 (sublane)
EPS = 1e-5               # nn.LayerNorm default


def _layernorm(x, g, b, eps=EPS):
    mu = jnp.mean(x, axis=-1, keepdims=True)
    var = jnp.mean(jnp.square(x - mu), axis=-1, keepdims=True)
    return (x - mu) * lax.rsqrt(var + eps) * g + b


# ------------------------------ fused Pallas kernel -----------------------------
def _gpt_kernel(idx_ref, bias_ref, pos_ref, tok_ref,
                ln1g_ref, ln1b_ref, wqkv_ref, wo_ref, bo_ref,
                ln2g_ref, ln2b_ref, w1_ref, b1_ref, w2_ref, b2_ref,
                lnfg_ref, lnfb_ref, lmw_ref, lmb_ref,
                o_ref, *, n_layer, n_head, head_size):
    f32 = jnp.float32
    bf16 = jnp.bfloat16
    BT = idx_ref.shape[0]            # flattened B*T rows
    VP, C = tok_ref.shape            # padded vocab, embed dim
    H = n_head

    # ---- fused token + position embedding (one-hot gather on the MXU) ----------
    ids = idx_ref[...]                                           # (BT, 1) int32
    iota = lax.broadcasted_iota(jnp.int32, (BT, VP), 1)
    onehot = jnp.where(ids == iota, 1.0, 0.0).astype(bf16)       # exact 0/1
    x = jnp.dot(onehot, tok_ref[...], preferred_element_type=f32)  # exact row pick
    x = x + pos_ref[...].astype(f32)                             # (BT, C) f32

    attn_bias = bias_ref[...]                                    # (BT, BT) f32 constant

    scale = head_size ** -0.5
    for l in range(n_layer):                                     # static unroll
        # -------------------- multi-head causal self-attention ------------------
        xn = _layernorm(x, ln1g_ref[l], ln1b_ref[l]).astype(bf16)   # (BT, C)
        xh = jnp.broadcast_to(xn[None], (3 * H, BT, C))             # (3H, BT, C)
        # single fused QKV projection: (3H, BT, C) x (3H, C, D) -> (3H, BT, D)
        qkv = jnp.einsum("hbc,hcd->hbd", xh, wqkv_ref[l],
                         preferred_element_type=f32)
        q, k, v = qkv[:H], qkv[H:2 * H], qkv[2 * H:]                # (H, BT, D) each

        s = jnp.einsum("hqd,hkd->hqk", q.astype(bf16), k.astype(bf16),
                       preferred_element_type=f32) * scale          # (H, BT, BT)
        s = s + attn_bias[None]                                     # block-causal mask
        m = jnp.max(s, axis=-1, keepdims=True)
        p = jnp.exp(s - m)
        p = p * pl.reciprocal(jnp.sum(p, axis=-1, keepdims=True), approx=True)

        o = jnp.einsum("hqk,hkd->hqd", p.astype(bf16), v.astype(bf16),
                       preferred_element_type=f32)                  # (H, BT, D)
        sa = jnp.sum(jnp.einsum("hqd,hdc->hqc", o.astype(bf16), wo_ref[l],
                                preferred_element_type=f32), axis=0)  # (BT, C)
        x = x + sa + bo_ref[l]                                      # residual 1

        # ------------------------------ feed-forward -----------------------------
        xn2 = _layernorm(x, ln2g_ref[l], ln2b_ref[l]).astype(bf16)
        h1 = jnp.dot(xn2, w1_ref[l], preferred_element_type=f32) + b1_ref[l]
        h1 = jnp.maximum(h1, 0.0).astype(bf16)                      # ReLU
        ff = jnp.dot(h1, w2_ref[l], preferred_element_type=f32) + b2_ref[l]
        x = x + ff                                                  # residual 2

    # ---------------- final LayerNorm + lm_head (lane-dense, V padded) ----------
    xf = _layernorm(x, lnfg_ref[0], lnfb_ref[0]).astype(bf16)
    logits = jnp.dot(xf, lmw_ref[...], preferred_element_type=f32) + lmb_ref[0]
    o_ref[...] = logits.astype(o_ref.dtype)                         # (BT, VP)


# ------------------------------ Pallas wrapper ----------------------------------
@jax.jit
def gpt_forward(idx, params):
    """idx: (B, T) int32 -> logits (B, T, vocab_size). Dropout = identity (eval)."""
    B, T = idx.shape
    BT = B * T

    idx_flat = idx.reshape(BT, 1).astype(jnp.int32)
    pos = jnp.tile(params["pos_emb"][:T], (B, 1))                  # (BT, C) bf16 glue

    # Block-diagonal causal additive mask over the flattened (B*T) rows.
    # Pure numpy at trace time -> baked compile-time constant (no device ops).
    r = np.arange(BT)
    same_batch = (r[:, None] // T) == (r[None, :] // T)
    causal = r[:, None] >= r[None, :]
    attn_bias = jnp.asarray(np.where(same_batch & causal, 0.0, -1e30),
                            dtype=jnp.float32)                     # (BT, BT)

    # (L, 3, H, C, D) -> (L, 3H, C, D): contiguous leading-dim reshape (free).
    wqkv = params["wqkv"].reshape(N_LAYER, 3 * N_HEAD, N_EMBED, HEAD_SIZE)

    kernel = functools.partial(_gpt_kernel, n_layer=N_LAYER, n_head=N_HEAD,
                               head_size=HEAD_SIZE)

    args = (idx_flat, attn_bias, pos, params["tok_emb"],
            params["ln1_g"], params["ln1_b"], wqkv, params["wo"], params["bo"],
            params["ln2_g"], params["ln2_b"], params["w1"], params["b1"],
            params["w2"], params["b2"],
            params["lnf_g"], params["lnf_b"], params["lm_w"], params["lm_b"])

    vmem = pl.BlockSpec(memory_space=pltpu.MemorySpace.VMEM)
    logits = pl.pallas_call(
        kernel,
        out_shape=jax.ShapeDtypeStruct((BT, VOCAB_PAD), jnp.float32),
        in_specs=[vmem] * len(args),
        out_specs=vmem,
        compiler_params=pltpu.CompilerParams(vmem_limit_bytes=32 * 1024 * 1024),
    )(*args)

    return logits.reshape(B, T, VOCAB_PAD)[:, :, :VOCAB_SIZE]


# ------------------------------ parameter init ----------------------------------
def init_params(key):
    """Mirrors _init_weights: Linear/Embedding ~ N(0, 0.02), biases zero,
    LayerNorm gamma=1 beta=0. Matmul weights stored bf16, head-stacked;
    Q/K/V stacked along a size-3 axis for the fused projection."""
    C, H, D, L = N_EMBED, N_HEAD, HEAD_SIZE, N_LAYER
    F = 4 * C
    VP = VOCAB_PAD
    keys = iter(jax.random.split(key, 8))
    nrm = lambda k, s: (0.02 * jax.random.normal(k, s, jnp.float32)).astype(jnp.bfloat16)

    return {
        "tok_emb": nrm(next(keys), (VP, C)),          # rows >= vocab are never used
        "pos_emb": nrm(next(keys), (BLOCK_SIZE, C)),
        "ln1_g": jnp.ones((L, C), jnp.float32), "ln1_b": jnp.zeros((L, C), jnp.float32),
        "ln2_g": jnp.ones((L, C), jnp.float32), "ln2_b": jnp.zeros((L, C), jnp.float32),
        "wqkv": nrm(next(keys), (L, 3, H, C, D)),     # [q, k, v] stacked on axis 1
        "wo": nrm(next(keys), (L, H, D, C)),
        "bo": jnp.zeros((L, C), jnp.float32),
        "w1": nrm(next(keys), (L, C, F)), "b1": jnp.zeros((L, F), jnp.float32),
        "w2": nrm(next(keys), (L, F, C)), "b2": jnp.zeros((L, C), jnp.float32),
        "lnf_g": jnp.ones((1, C), jnp.float32), "lnf_b": jnp.zeros((1, C), jnp.float32),
        "lm_w": nrm(next(keys), (C, VP)), "lm_b": jnp.zeros((1, VP), jnp.float32),
    }


# ------------------------------ pure-JAX reference -------------------------------
def _ref_forward(idx, params):
    """Reference with the same bf16 matmul-operand rounding points as the kernel."""
    B, T = idx.shape
    bf, f32 = jnp.bfloat16, jnp.float32
    D = HEAD_SIZE

    x = jnp.take(params["tok_emb"], idx, axis=0).astype(f32) \
        + params["pos_emb"][:T].astype(f32)[None]
    mask = jnp.tril(jnp.ones((T, T), bool))

    for l in range(N_LAYER):
        wq, wk, wv = (params["wqkv"][l, 0], params["wqkv"][l, 1], params["wqkv"][l, 2])
        xn = _layernorm(x, params["ln1_g"][l], params["ln1_b"][l]).astype(bf)
        q = jnp.einsum("btc,hcd->bhtd", xn, wq, preferred_element_type=f32)
        k = jnp.einsum("btc,hcd->bhtd", xn, wk, preferred_element_type=f32)
        v = jnp.einsum("btc,hcd->bhtd", xn, wv, preferred_element_type=f32)
        s = jnp.einsum("bhqd,bhkd->bhqk", q.astype(bf), k.astype(bf),
                       preferred_element_type=f32) * D ** -0.5
        s = jnp.where(mask[None, None], s, -1e30)
        p = jnp.exp(s - jnp.max(s, axis=-1, keepdims=True))
        p = p / jnp.sum(p, axis=-1, keepdims=True)
        o = jnp.einsum("bhqk,bhkd->bhqd", p.astype(bf), v.astype(bf),
                       preferred_element_type=f32)
        sa = jnp.einsum("bhqd,hdc->bqc", o.astype(bf), params["wo"][l],
                        preferred_element_type=f32) + params["bo"][l]
        x = x + sa
        xn2 = _layernorm(x, params["ln2_g"][l], params["ln2_b"][l]).astype(bf)
        h1 = jax.nn.relu(jnp.einsum("btc,cf->btf", xn2, params["w1"][l],
                                    preferred_element_type=f32) + params["b1"][l])
        ff = jnp.einsum("btf,fc->btc", h1.astype(bf), params["w2"][l],
                        preferred_element_type=f32) + params["b2"][l]
        x = x + ff

    xf = _layernorm(x, params["lnf_g"][0], params["lnf_b"][0]).astype(bf)
    logits = jnp.einsum("btc,cv->btv", xf, params["lm_w"],
                        preferred_element_type=f32) + params["lm_b"][0]
    return logits[:, :, :VOCAB_SIZE]


# ------------------------------------ main ----------------------------------------
if __name__ == "__main__":
    key = jax.random.PRNGKey(0)
    pkey, ikey = jax.random.split(key)
    params = init_params(pkey)
    idx = jax.random.randint(ikey, (BATCH, SEQ), 0, VOCAB_SIZE, dtype=jnp.int32)

    logits = jax.block_until_ready(gpt_forward(idx, params))
    assert logits.shape == (BATCH, SEQ, VOCAB_SIZE), logits.shape

    ref = jax.block_until_ready(_ref_forward(idx, params))
    max_err = float(jnp.max(jnp.abs(logits - ref)))
    assert jnp.allclose(logits, ref, rtol=2e-2, atol=5e-3), max_err

    print("KERNEL_OK")
</pallas_src>

<mosaic_0001>
module attributes {stable_mosaic.version = 11 : i64} {
  func.func @_gpt_kernel(%arg0: memref<32x1xi32, #tpu.memory_space<vmem>>, %arg1: memref<32x32xf32, #tpu.memory_space<vmem>>, %arg2: memref<32x128xbf16, #tpu.memory_space<vmem>>, %arg3: memref<128x128xbf16, #tpu.memory_space<vmem>>, %arg4: memref<2x128xf32, #tpu.memory_space<vmem>>, %arg5: memref<2x128xf32, #tpu.memory_space<vmem>>, %arg6: memref<2x12x128x32xbf16, #tpu.memory_space<vmem>>, %arg7: memref<2x4x32x128xbf16, #tpu.memory_space<vmem>>, %arg8: memref<2x128xf32, #tpu.memory_space<vmem>>, %arg9: memref<2x128xf32, #tpu.memory_space<vmem>>, %arg10: memref<2x128xf32, #tpu.memory_space<vmem>>, %arg11: memref<2x128x512xbf16, #tpu.memory_space<vmem>>, %arg12: memref<2x512xf32, #tpu.memory_space<vmem>>, %arg13: memref<2x512x128xbf16, #tpu.memory_space<vmem>>, %arg14: memref<2x128xf32, #tpu.memory_space<vmem>>, %arg15: memref<1x128xf32, #tpu.memory_space<vmem>>, %arg16: memref<1x128xf32, #tpu.memory_space<vmem>>, %arg17: memref<128x128xbf16, #tpu.memory_space<vmem>>, %arg18: memref<1x128xf32, #tpu.memory_space<vmem>>, %arg19: memref<32x128xf32, #tpu.memory_space<vmem>>) attributes {dimension_semantics = [], scalar_prefetch = 0 : i64, scratch_operands = 0 : i64, tpu.core_type = #tpu.core_type<tc>} {
    %c0 = arith.constant 0 : index
    %c0_0 = arith.constant 0 : index
    %0 = vector.load %arg0[%c0, %c0_0] : memref<32x1xi32, #tpu.memory_space<vmem>>, vector<32x1xi32>
    %1 = tpu.iota {dimensions = array<i32: 1>} : vector<32x128xi32>
    %2 = vector.broadcast %0 : vector<32x1xi32> to vector<32x128xi32>
    %3 = arith.cmpi eq, %2, %1 : vector<32x128xi32>
    %cst = arith.constant 1.000000e+00 : f32
    %cst_1 = arith.constant 0.000000e+00 : f32
    %4 = vector.broadcast %cst : f32 to vector<32x128xf32>
    %5 = vector.broadcast %cst_1 : f32 to vector<32x128xf32>
    %6 = arith.select %3, %4, %5 : vector<32x128xi1>, vector<32x128xf32>
    %7 = arith.truncf %6 : vector<32x128xf32> to vector<32x128xbf16>
    %c0_2 = arith.constant 0 : index
    %c0_3 = arith.constant 0 : index
    %8 = vector.load %arg3[%c0_2, %c0_3] : memref<128x128xbf16, #tpu.memory_space<vmem>>, vector<128x128xbf16>
    %cst_4 = arith.constant dense<0.000000e+00> : vector<32x128xf32>
    %9 = tpu.matmul %7, %8, %cst_4 {dimension_numbers = #tpu.dot_dimension_numbers<[1], [0], [0], [1], [0, 0, 1, 1], [], []>} : vector<32x128xbf16>, vector<128x128xbf16>, vector<32x128xf32> -> vector<32x128xf32>
    %c0_5 = arith.constant 0 : index
    %c0_6 = arith.constant 0 : index
    %10 = vector.load %arg2[%c0_5, %c0_6] : memref<32x128xbf16, #tpu.memory_space<vmem>>, vector<32x128xbf16>
    %11 = arith.extf %10 : vector<32x128xbf16> to vector<32x128xf32>
    %12 = arith.addf %9, %11 : vector<32x128xf32>
    %c0_7 = arith.constant 0 : index
    %c0_8 = arith.constant 0 : index
    %13 = vector.load %arg1[%c0_7, %c0_8] : memref<32x32xf32, #tpu.memory_space<vmem>>, vector<32x32xf32>
    %c0_9 = arith.constant 0 : index
    %c0_10 = arith.constant 0 : index
    %14 = vector.load %arg4[%c0_9, %c0_10] : memref<2x128xf32, #tpu.memory_space<vmem>>, vector<1x128xf32>
    %15 = vector.shape_cast %14 : vector<1x128xf32> to vector<128xf32>
    %c0_11 = arith.constant 0 : index
    %c0_12 = arith.constant 0 : index
    %16 = vector.load %arg5[%c0_11, %c0_12] : memref<2x128xf32, #tpu.memory_space<vmem>>, vector<1x128xf32>
    %17 = vector.shape_cast %16 : vector<1x128xf32> to vector<128xf32>
    %cst_13 = arith.constant dense<0.000000e+00> : vector<32xf32>
    %18 = vector.multi_reduction <add>, %12, %cst_13 [1] : vector<32x128xf32> to vector<32xf32>
    %19 = vector.shape_cast %18 : vector<32xf32> to vector<32x1xf32>
    %cst_14 = arith.constant 1.280000e+02 : f32
    %20 = vector.broadcast %cst_14 : f32 to vector<32x1xf32>
    %21 = arith.divf %19, %20 : vector<32x1xf32>
    %22 = vector.broadcast %21 : vector<32x1xf32> to vector<32x128xf32>
    %23 = arith.subf %12, %22 : vector<32x128xf32>
    %24 = arith.mulf %23, %23 : vector<32x128xf32>
    %cst_15 = arith.constant dense<0.000000e+00> : vector<32xf32>
    %25 = vector.multi_reduction <add>, %24, %cst_15 [1] : vector<32x128xf32> to vector<32xf32>
    %26 = vector.shape_cast %25 : vector<32xf32> to vector<32x1xf32>
    %cst_16 = arith.constant 1.280000e+02 : f32
    %27 = vector.broadcast %cst_16 : f32 to vector<32x1xf32>
    %28 = arith.divf %26, %27 : vector<32x1xf32>
    %29 = vector.broadcast %21 : vector<32x1xf32> to vector<32x128xf32>
    %30 = arith.subf %12, %29 : vector<32x128xf32>
    %cst_17 = arith.constant 9.99999974E-6 : f32
    %31 = vector.broadcast %cst_17 : f32 to vector<32x1xf32>
    %32 = arith.addf %28, %31 : vector<32x1xf32>
    %33 = math.rsqrt %32 : vector<32x1xf32>
    %34 = vector.broadcast %33 : vector<32x1xf32> to vector<32x128xf32>
    %35 = arith.mulf %30, %34 : vector<32x128xf32>
    %36 = vector.shape_cast %15 : vector<128xf32> to vector<1x128xf32>
    %37 = vector.broadcast %36 : vector<1x128xf32> to vector<32x128xf32>
    %38 = arith.mulf %35, %37 : vector<32x128xf32>
    %39 = vector.shape_cast %17 : vector<128xf32> to vector<1x128xf32>
    %40 = vector.broadcast %39 : vector<1x128xf32> to vector<32x128xf32>
    %41 = arith.addf %38, %40 : vector<32x128xf32>
    %42 = arith.truncf %41 : vector<32x128xf32> to vector<32x128xbf16>
    %43 = vector.shape_cast %42 : vector<32x128xbf16> to vector<1x32x128xbf16>
    %44 = vector.shape_cast %43 : vector<1x32x128xbf16> to vector<1x32x128xbf16>
    %45 = vector.broadcast %44 : vector<1x32x128xbf16> to vector<12x32x128xbf16>
    %c0_18 = arith.constant 0 : index
    %c0_19 = arith.constant 0 : index
    %c0_20 = arith.constant 0 : index
    %c0_21 = arith.constant 0 : index
    %46 = vector.load %arg6[%c0_18, %c0_19, %c0_20, %c0_21] : memref<2x12x128x32xbf16, #tpu.memory_space<vmem>>, vector<1x12x128x32xbf16>
    %47 = vector.shape_cast %46 : vector<1x12x128x32xbf16> to vector<12x128x32xbf16>
    "tpu.trace_start"() <{level = 10 : i32, message = "hbc,hcd->hbd"}> : () -> ()
    %cst_22 = arith.constant dense<0.000000e+00> : vector<12x32x32xf32>
    %48 = tpu.matmul %45, %47, %cst_22 {dimension_numbers = #tpu.dot_dimension_numbers<[2], [1], [1], [2], [0, 0, 0, 1, 1, 2], [0], [0]>} : vector<12x32x128xbf16>, vector<12x128x32xbf16>, vector<12x32x32xf32> -> vector<12x32x32xf32>
    "tpu.trace_stop"() : () -> ()
    %49 = vector.extract_strided_slice %48 {offsets = [0, 0, 0], sizes = [4, 32, 32], strides = [1, 1, 1]} : vector<12x32x32xf32> to vector<4x32x32xf32>
    %50 = vector.extract_strided_slice %48 {offsets = [4, 0, 0], sizes = [4, 32, 32], strides = [1, 1, 1]} : vector<12x32x32xf32> to vector<4x32x32xf32>
    %51 = vector.extract_strided_slice %48 {offsets = [8, 0, 0], sizes = [4, 32, 32], strides = [1, 1, 1]} : vector<12x32x32xf32> to vector<4x32x32xf32>
    %52 = arith.truncf %49 : vector<4x32x32xf32> to vector<4x32x32xbf16>
    %53 = arith.truncf %50 : vector<4x32x32xf32> to vector<4x32x32xbf16>
    "tpu.trace_start"() <{level = 10 : i32, message = "hqd,hkd->hqk"}> : () -> ()
    %cst_23 = arith.constant dense<0.000000e+00> : vector<4x32x32xf32>
    %54 = tpu.matmul %52, %53, %cst_23 {dimension_numbers = #tpu.dot_dimension_numbers<[2], [2], [1], [1], [0, 0, 0, 1, 1, 1], [0], [0]>} : vector<4x32x32xbf16>, vector<4x32x32xbf16>, vector<4x32x32xf32> -> vector<4x32x32xf32>
    "tpu.trace_stop"() : () -> ()
    %cst_24 = arith.constant 0.176776692 : f32
    %55 = vector.broadcast %cst_24 : f32 to vector<4x32x32xf32>
    %56 = arith.mulf %54, %55 : vector<4x32x32xf32>
    %57 = vector.shape_cast %13 : vector<32x32xf32> to vector<1x32x32xf32>
    %58 = vector.broadcast %57 : vector<1x32x32xf32> to vector<4x32x32xf32>
    %59 = arith.addf %56, %58 : vector<4x32x32xf32>
    %cst_25 = arith.constant dense<0xFF800000> : vector<4x32xf32>
    %60 = vector.multi_reduction <maximumf>, %59, %cst_25 [2] : vector<4x32x32xf32> to vector<4x32xf32>
    %61 = vector.shape_cast %60 : vector<4x32xf32> to vector<4x32x1xf32>
    %62 = vector.broadcast %61 : vector<4x32x1xf32> to vector<4x32x32xf32>
    %63 = arith.subf %59, %62 : vector<4x32x32xf32>
    %64 = math.exp %63 : vector<4x32x32xf32>
    %cst_26 = arith.constant dense<0.000000e+00> : vector<4x32xf32>
    %65 = vector.multi_reduction <add>, %64, %cst_26 [2] : vector<4x32x32xf32> to vector<4x32xf32>
    %66 = vector.shape_cast %65 : vector<4x32xf32> to vector<4x32x1xf32>
    %67 = tpu.reciprocal %66 {approx = true} : vector<4x32x1xf32> -> vector<4x32x1xf32>
    %68 = vector.broadcast %67 : vector<4x32x1xf32> to vector<4x32x32xf32>
    %69 = arith.mulf %64, %68 : vector<4x32x32xf32>
    %70 = arith.truncf %69 : vector<4x32x32xf32> to vector<4x32x32xbf16>
    %71 = arith.truncf %51 : vector<4x32x32xf32> to vector<4x32x32xbf16>
    "tpu.trace_start"() <{level = 10 : i32, message = "hqk,hkd->hqd"}> : () -> ()
    %cst_27 = arith.constant dense<0.000000e+00> : vector<4x32x32xf32>
    %72 = tpu.matmul %70, %71, %cst_27 {dimension_numbers = #tpu.dot_dimension_numbers<[2], [1], [1], [2], [0, 0, 0, 1, 1, 2], [0], [0]>} : vector<4x32x32xbf16>, vector<4x32x32xbf16>, vector<4x32x32xf32> -> vector<4x32x32xf32>
    "tpu.trace_stop"() : () -> ()
    %73 = arith.truncf %72 : vector<4x32x32xf32> to vector<4x32x32xbf16>
    %c0_28 = arith.constant 0 : index
    %c0_29 = arith.constant 0 : index
    %c0_30 = arith.constant 0 : index
    %c0_31 = arith.constant 0 : index
    %74 = vector.load %arg7[%c0_28, %c0_29, %c0_30, %c0_31] : memref<2x4x32x128xbf16, #tpu.memory_space<vmem>>, vector<1x4x32x128xbf16>
    %75 = vector.shape_cast %74 : vector<1x4x32x128xbf16> to vector<4x32x128xbf16>
    "tpu.trace_start"() <{level = 10 : i32, message = "hqd,hdc->hqc"}> : () -> ()
    %cst_32 = arith.constant dense<0.000000e+00> : vector<4x32x128xf32>
    %76 = tpu.matmul %73, %75, %cst_32 {dimension_numbers = #tpu.dot_dimension_numbers<[2], [1], [1], [2], [0, 0, 0, 1, 1, 2], [0], [0]>} : vector<4x32x32xbf16>, vector<4x32x128xbf16>, vector<4x32x128xf32> -> vector<4x32x128xf32>
    "tpu.trace_stop"() : () -> ()
    %cst_33 = arith.constant dense<0.000000e+00> : vector<32x128xf32>
    %77 = vector.multi_reduction <add>, %76, %cst_33 [0] : vector<4x32x128xf32> to vector<32x128xf32>
    %78 = arith.addf %12, %77 : vector<32x128xf32>
    %c0_34 = arith.constant 0 : index
    %c0_35 = arith.constant 0 : index
    %79 = vector.load %arg8[%c0_34, %c0_35] : memref<2x128xf32, #tpu.memory_space<vmem>>, vector<1x128xf32>
    %80 = vector.shape_cast %79 : vector<1x128xf32> to vector<128xf32>
    %81 = vector.shape_cast %80 : vector<128xf32> to vector<1x128xf32>
    %82 = vector.broadcast %81 : vector<1x128xf32> to vector<32x128xf32>
    %83 = arith.addf %78, %82 : vector<32x128xf32>
    %c0_36 = arith.constant 0 : index
    %c0_37 = arith.constant 0 : index
    %84 = vector.load %arg9[%c0_36, %c0_37] : memref<2x128xf32, #tpu.memory_space<vmem>>, vector<1x128xf32>
    %85 = vector.shape_cast %84 : vector<1x128xf32> to vector<128xf32>
    %c0_38 = arith.constant 0 : index
    %c0_39 = arith.constant 0 : index
    %86 = vector.load %arg10[%c0_38, %c0_39] : memref<2x128xf32, #tpu.memory_space<vmem>>, vector<1x128xf32>
    %87 = vector.shape_cast %86 : vector<1x128xf32> to vector<128xf32>
    %cst_40 = arith.constant dense<0.000000e+00> : vector<32xf32>
    %88 = vector.multi_reduction <add>, %83, %cst_40 [1] : vector<32x128xf32> to vector<32xf32>
    %89 = vector.shape_cast %88 : vector<32xf32> to vector<32x1xf32>
    %cst_41 = arith.constant 1.280000e+02 : f32
    %90 = vector.broadcast %cst_41 : f32 to vector<32x1xf32>
    %91 = arith.divf %89, %90 : vector<32x1xf32>
    %92 = vector.broadcast %91 : vector<32x1xf32> to vector<32x128xf32>
    %93 = arith.subf %83, %92 : vector<32x128xf32>
    %94 = arith.mulf %93, %93 : vector<32x128xf32>
    %cst_42 = arith.constant dense<0.000000e+00> : vector<32xf32>
    %95 = vector.multi_reduction <add>, %94, %cst_42 [1] : vector<32x128xf32> to vector<32xf32>
    %96 = vector.shape_cast %95 : vector<32xf32> to vector<32x1xf32>
    %cst_43 = arith.constant 1.280000e+02 : f32
    %97 = vector.broadcast %cst_43 : f32 to vector<32x1xf32>
    %98 = arith.divf %96, %97 : vector<32x1xf32>
    %99 = vector.broadcast %91 : vector<32x1xf32> to vector<32x128xf32>
    %100 = arith.subf %83, %99 : vector<32x128xf32>
    %cst_44 = arith.constant 9.99999974E-6 : f32
    %101 = vector.broadcast %cst_44 : f32 to vector<32x1xf32>
    %102 = arith.addf %98, %101 : vector<32x1xf32>
    %103 = math.rsqrt %102 : vector<32x1xf32>
    %104 = vector.broadcast %103 : vector<32x1xf32> to vector<32x128xf32>
    %105 = arith.mulf %100, %104 : vector<32x128xf32>
    %106 = vector.shape_cast %85 : vector<128xf32> to vector<1x128xf32>
    %107 = vector.broadcast %106 : vector<1x128xf32> to vector<32x128xf32>
    %108 = arith.mulf %105, %107 : vector<32x128xf32>
    %109 = vector.shape_cast %87 : vector<128xf32> to vector<1x128xf32>
    %110 = vector.broadcast %109 : vector<1x128xf32> to vector<32x128xf32>
    %111 = arith.addf %108, %110 : vector<32x128xf32>
    %112 = arith.truncf %111 : vector<32x128xf32> to vector<32x128xbf16>
    %c0_45 = arith.constant 0 : index
    %c0_46 = arith.constant 0 : index
    %c0_47 = arith.constant 0 : index
    %113 = vector.load %arg11[%c0_45, %c0_46, %c0_47] : memref<2x128x512xbf16, #tpu.memory_space<vmem>>, vector<1x128x512xbf16>
    %114 = vector.shape_cast %113 : vector<1x128x512xbf16> to vector<128x512xbf16>
    %cst_48 = arith.constant dense<0.000000e+00> : vector<32x512xf32>
    %115 = tpu.matmul %112, %114, %cst_48 {dimension_numbers = #tpu.dot_dimension_numbers<[1], [0], [0], [1], [0, 0, 1, 1], [], []>} : vector<32x128xbf16>, vector<128x512xbf16>, vector<32x512xf32> -> vector<32x512xf32>
    %c0_49 = arith.constant 0 : index
    %c0_50 = arith.constant 0 : index
    %116 = vector.load %arg12[%c0_49, %c0_50] : memref<2x512xf32, #tpu.memory_space<vmem>>, vector<1x512xf32>
    %117 = vector.shape_cast %116 : vector<1x512xf32> to vector<512xf32>
    %118 = vector.shape_cast %117 : vector<512xf32> to vector<1x512xf32>
    %119 = vector.broadcast %118 : vector<1x512xf32> to vector<32x512xf32>
    %120 = arith.addf %115, %119 : vector<32x512xf32>
    %cst_51 = arith.constant 0.000000e+00 : f32
    %121 = vector.broadcast %cst_51 : f32 to vector<32x512xf32>
    %122 = arith.maximumf %120, %121 : vector<32x512xf32>
    %123 = arith.truncf %122 : vector<32x512xf32> to vector<32x512xbf16>
    %c0_52 = arith.constant 0 : index
    %c0_53 = arith.constant 0 : index
    %c0_54 = arith.constant 0 : index
    %124 = vector.load %arg13[%c0_52, %c0_53, %c0_54] : memref<2x512x128xbf16, #tpu.memory_space<vmem>>, vector<1x512x128xbf16>
    %125 = vector.shape_cast %124 : vector<1x512x128xbf16> to vector<512x128xbf16>
    %cst_55 = arith.constant dense<0.000000e+00> : vector<32x128xf32>
    %126 = tpu.matmul %123, %125, %cst_55 {dimension_numbers = #tpu.dot_dimension_numbers<[1], [0], [0], [1], [0, 0, 1, 1], [], []>} : vector<32x512xbf16>, vector<512x128xbf16>, vector<32x128xf32> -> vector<32x128xf32>
    %c0_56 = arith.constant 0 : index
    %c0_57 = arith.constant 0 : index
    %127 = vector.load %arg14[%c0_56, %c0_57] : memref<2x128xf32, #tpu.memory_space<vmem>>, vector<1x128xf32>
    %128 = vector.shape_cast %127 : vector<1x128xf32> to vector<128xf32>
    %129 = vector.shape_cast %128 : vector<128xf32> to vector<1x128xf32>
    %130 = vector.broadcast %129 : vector<1x128xf32> to vector<32x128xf32>
    %131 = arith.addf %126, %130 : vector<32x128xf32>
    %132 = arith.addf %83, %131 : vector<32x128xf32>
    %c1 = arith.constant 1 : index
    %c0_58 = arith.constant 0 : index
    %133 = vector.load %arg4[%c1, %c0_58] : memref<2x128xf32, #tpu.memory_space<vmem>>, vector<1x128xf32>
    %134 = vector.shape_cast %133 : vector<1x128xf32> to vector<128xf32>
    %c1_59 = arith.constant 1 : index
    %c0_60 = arith.constant 0 : index
    %135 = vector.load %arg5[%c1_59, %c0_60] : memref<2x128xf32, #tpu.memory_space<vmem>>, vector<1x128xf32>
    %136 = vector.shape_cast %135 : vector<1x128xf32> to vector<128xf32>
    %cst_61 = arith.constant dense<0.000000e+00> : vector<32xf32>
    %137 = vector.multi_reduction <add>, %132, %cst_61 [1] : vector<32x128xf32> to vector<32xf32>
    %138 = vector.shape_cast %137 : vector<32xf32> to vector<32x1xf32>
    %cst_62 = arith.constant 1.280000e+02 : f32
    %139 = vector.broadcast %cst_62 : f32 to vector<32x1xf32>
    %140 = arith.divf %138, %139 : vector<32x1xf32>
    %141 = vector.broadcast %140 : vector<32x1xf32> to vector<32x128xf32>
    %142 = arith.subf %132, %141 : vector<32x128xf32>
    %143 = arith.mulf %142, %142 : vector<32x128xf32>
    %cst_63 = arith.constant dense<0.000000e+00> : vector<32xf32>
    %144 = vector.multi_reduction <add>, %143, %cst_63 [1] : vector<32x128xf32> to vector<32xf32>
    %145 = vector.shape_cast %144 : vector<32xf32> to vector<32x1xf32>
    %cst_64 = arith.constant 1.280000e+02 : f32
    %146 = vector.broadcast %cst_64 : f32 to vector<32x1xf32>
    %147 = arith.divf %145, %146 : vector<32x1xf32>
    %148 = vector.broadcast %140 : vector<32x1xf32> to vector<32x128xf32>
    %149 = arith.subf %132, %148 : vector<32x128xf32>
    %cst_65 = arith.constant 9.99999974E-6 : f32
    %150 = vector.broadcast %cst_65 : f32 to vector<32x1xf32>
    %151 = arith.addf %147, %150 : vector<32x1xf32>
    %152 = math.rsqrt %151 : vector<32x1xf32>
    %153 = vector.broadcast %152 : vector<32x1xf32> to vector<32x128xf32>
    %154 = arith.mulf %149, %153 : vector<32x128xf32>
    %155 = vector.shape_cast %134 : vector<128xf32> to vector<1x128xf32>
    %156 = vector.broadcast %155 : vector<1x128xf32> to vector<32x128xf32>
    %157 = arith.mulf %154, %156 : vector<32x128xf32>
    %158 = vector.shape_cast %136 : vector<128xf32> to vector<1x128xf32>
    %159 = vector.broadcast %158 : vector<1x128xf32> to vector<32x128xf32>
    %160 = arith.addf %157, %159 : vector<32x128xf32>
    %161 = arith.truncf %160 : vector<32x128xf32> to vector<32x128xbf16>
    %162 = vector.shape_cast %161 : vector<32x128xbf16> to vector<1x32x128xbf16>
    %163 = vector.shape_cast %162 : vector<1x32x128xbf16> to vector<1x32x128xbf16>
    %164 = vector.broadcast %163 : vector<1x32x128xbf16> to vector<12x32x128xbf16>
    %c1_66 = arith.constant 1 : index
    %c0_67 = arith.constant 0 : index
    %c0_68 = arith.constant 0 : index
    %c0_69 = arith.constant 0 : index
    %165 = vector.load %arg6[%c1_66, %c0_67, %c0_68, %c0_69] : memref<2x12x128x32xbf16, #tpu.memory_space<vmem>>, vector<1x12x128x32xbf16>
    %166 = vector.shape_cast %165 : vector<1x12x128x32xbf16> to vector<12x128x32xbf16>
    "tpu.trace_start"() <{level = 10 : i32, message = "hbc,hcd->hbd"}> : () -> ()
    %cst_70 = arith.constant dense<0.000000e+00> : vector<12x32x32xf32>
    %167 = tpu.matmul %164, %166, %cst_70 {dimension_numbers = #tpu.dot_dimension_numbers<[2], [1], [1], [2], [0, 0, 0, 1, 1, 2], [0], [0]>} : vector<12x32x128xbf16>, vector<12x128x32xbf16>, vector<12x32x32xf32> -> vector<12x32x32xf32>
    "tpu.trace_stop"() : () -> ()
    %168 = vector.extract_strided_slice %167 {offsets = [0, 0, 0], sizes = [4, 32, 32], strides = [1, 1, 1]} : vector<12x32x32xf32> to vector<4x32x32xf32>
    %169 = vector.extract_strided_slice %167 {offsets = [4, 0, 0], sizes = [4, 32, 32], strides = [1, 1, 1]} : vector<12x32x32xf32> to vector<4x32x32xf32>
    %170 = vector.extract_strided_slice %167 {offsets = [8, 0, 0], sizes = [4, 32, 32], strides = [1, 1, 1]} : vector<12x32x32xf32> to vector<4x32x32xf32>
    %171 = arith.truncf %168 : vector<4x32x32xf32> to vector<4x32x32xbf16>
    %172 = arith.truncf %169 : vector<4x32x32xf32> to vector<4x32x32xbf16>
    "tpu.trace_start"() <{level = 10 : i32, message = "hqd,hkd->hqk"}> : () -> ()
    %cst_71 = arith.constant dense<0.000000e+00> : vector<4x32x32xf32>
    %173 = tpu.matmul %171, %172, %cst_71 {dimension_numbers = #tpu.dot_dimension_numbers<[2], [2], [1], [1], [0, 0, 0, 1, 1, 1], [0], [0]>} : vector<4x32x32xbf16>, vector<4x32x32xbf16>, vector<4x32x32xf32> -> vector<4x32x32xf32>
    "tpu.trace_stop"() : () -> ()
    %cst_72 = arith.constant 0.176776692 : f32
    %174 = vector.broadcast %cst_72 : f32 to vector<4x32x32xf32>
    %175 = arith.mulf %173, %174 : vector<4x32x32xf32>
    %176 = vector.shape_cast %13 : vector<32x32xf32> to vector<1x32x32xf32>
    %177 = vector.broadcast %176 : vector<1x32x32xf32> to vector<4x32x32xf32>
    %178 = arith.addf %175, %177 : vector<4x32x32xf32>
    %cst_73 = arith.constant dense<0xFF800000> : vector<4x32xf32>
    %179 = vector.multi_reduction <maximumf>, %178, %cst_73 [2] : vector<4x32x32xf32> to vector<4x32xf32>
    %180 = vector.shape_cast %179 : vector<4x32xf32> to vector<4x32x1xf32>
    %181 = vector.broadcast %180 : vector<4x32x1xf32> to vector<4x32x32xf32>
    %182 = arith.subf %178, %181 : vector<4x32x32xf32>
    %183 = math.exp %182 : vector<4x32x32xf32>
    %cst_74 = arith.constant dense<0.000000e+00> : vector<4x32xf32>
    %184 = vector.multi_reduction <add>, %183, %cst_74 [2] : vector<4x32x32xf32> to vector<4x32xf32>
    %185 = vector.shape_cast %184 : vector<4x32xf32> to vector<4x32x1xf32>
    %186 = tpu.reciprocal %185 {approx = true} : vector<4x32x1xf32> -> vector<4x32x1xf32>
    %187 = vector.broadcast %186 : vector<4x32x1xf32> to vector<4x32x32xf32>
    %188 = arith.mulf %183, %187 : vector<4x32x32xf32>
    %189 = arith.truncf %188 : vector<4x32x32xf32> to vector<4x32x32xbf16>
    %190 = arith.truncf %170 : vector<4x32x32xf32> to vector<4x32x32xbf16>
    "tpu.trace_start"() <{level = 10 : i32, message = "hqk,hkd->hqd"}> : () -> ()
    %cst_75 = arith.constant dense<0.000000e+00> : vector<4x32x32xf32>
    %191 = tpu.matmul %189, %190, %cst_75 {dimension_numbers = #tpu.dot_dimension_numbers<[2], [1], [1], [2], [0, 0, 0, 1, 1, 2], [0], [0]>} : vector<4x32x32xbf16>, vector<4x32x32xbf16>, vector<4x32x32xf32> -> vector<4x32x32xf32>
    "tpu.trace_stop"() : () -> ()
    %192 = arith.truncf %191 : vector<4x32x32xf32> to vector<4x32x32xbf16>
    %c1_76 = arith.constant 1 : index
    %c0_77 = arith.constant 0 : index
    %c0_78 = arith.constant 0 : index
    %c0_79 = arith.constant 0 : index
    %193 = vector.load %arg7[%c1_76, %c0_77, %c0_78, %c0_79] : memref<2x4x32x128xbf16, #tpu.memory_space<vmem>>, vector<1x4x32x128xbf16>
    %194 = vector.shape_cast %193 : vector<1x4x32x128xbf16> to vector<4x32x128xbf16>
    "tpu.trace_start"() <{level = 10 : i32, message = "hqd,hdc->hqc"}> : () -> ()
    %cst_80 = arith.constant dense<0.000000e+00> : vector<4x32x128xf32>
    %195 = tpu.matmul %192, %194, %cst_80 {dimension_numbers = #tpu.dot_dimension_numbers<[2], [1], [1], [2], [0, 0, 0, 1, 1, 2], [0], [0]>} : vector<4x32x32xbf16>, vector<4x32x128xbf16>, vector<4x32x128xf32> -> vector<4x32x128xf32>
    "tpu.trace_stop"() : () -> ()
    %cst_81 = arith.constant dense<0.000000e+00> : vector<32x128xf32>
    %196 = vector.multi_reduction <add>, %195, %cst_81 [0] : vector<4x32x128xf32> to vector<32x128xf32>
    %197 = arith.addf %132, %196 : vector<32x128xf32>
    %c1_82 = arith.constant 1 : index
    %c0_83 = arith.constant 0 : index
    %198 = vector.load %arg8[%c1_82, %c0_83] : memref<2x128xf32, #tpu.memory_space<vmem>>, vector<1x128xf32>
    %199 = vector.shape_cast %198 : vector<1x128xf32> to vector<128xf32>
    %200 = vector.shape_cast %199 : vector<128xf32> to vector<1x128xf32>
    %201 = vector.broadcast %200 : vector<1x128xf32> to vector<32x128xf32>
    %202 = arith.addf %197, %201 : vector<32x128xf32>
    %c1_84 = arith.constant 1 : index
    %c0_85 = arith.constant 0 : index
    %203 = vector.load %arg9[%c1_84, %c0_85] : memref<2x128xf32, #tpu.memory_space<vmem>>, vector<1x128xf32>
    %204 = vector.shape_cast %203 : vector<1x128xf32> to vector<128xf32>
    %c1_86 = arith.constant 1 : index
    %c0_87 = arith.constant 0 : index
    %205 = vector.load %arg10[%c1_86, %c0_87] : memref<2x128xf32, #tpu.memory_space<vmem>>, vector<1x128xf32>
    %206 = vector.shape_cast %205 : vector<1x128xf32> to vector<128xf32>
    %cst_88 = arith.constant dense<0.000000e+00> : vector<32xf32>
    %207 = vector.multi_reduction <add>, %202, %cst_88 [1] : vector<32x128xf32> to vector<32xf32>
    %208 = vector.shape_cast %207 : vector<32xf32> to vector<32x1xf32>
    %cst_89 = arith.constant 1.280000e+02 : f32
    %209 = vector.broadcast %cst_89 : f32 to vector<32x1xf32>
    %210 = arith.divf %208, %209 : vector<32x1xf32>
    %211 = vector.broadcast %210 : vector<32x1xf32> to vector<32x128xf32>
    %212 = arith.subf %202, %211 : vector<32x128xf32>
    %213 = arith.mulf %212, %212 : vector<32x128xf32>
    %cst_90 = arith.constant dense<0.000000e+00> : vector<32xf32>
    %214 = vector.multi_reduction <add>, %213, %cst_90 [1] : vector<32x128xf32> to vector<32xf32>
    %215 = vector.shape_cast %214 : vector<32xf32> to vector<32x1xf32>
    %cst_91 = arith.constant 1.280000e+02 : f32
    %216 = vector.broadcast %cst_91 : f32 to vector<32x1xf32>
    %217 = arith.divf %215, %216 : vector<32x1xf32>
    %218 = vector.broadcast %210 : vector<32x1xf32> to vector<32x128xf32>
    %219 = arith.subf %202, %218 : vector<32x128xf32>
    %cst_92 = arith.constant 9.99999974E-6 : f32
    %220 = vector.broadcast %cst_92 : f32 to vector<32x1xf32>
    %221 = arith.addf %217, %220 : vector<32x1xf32>
    %222 = math.rsqrt %221 : vector<32x1xf32>
    %223 = vector.broadcast %222 : vector<32x1xf32> to vector<32x128xf32>
    %224 = arith.mulf %219, %223 : vector<32x128xf32>
    %225 = vector.shape_cast %204 : vector<128xf32> to vector<1x128xf32>
    %226 = vector.broadcast %225 : vector<1x128xf32> to vector<32x128xf32>
    %227 = arith.mulf %224, %226 : vector<32x128xf32>
    %228 = vector.shape_cast %206 : vector<128xf32> to vector<1x128xf32>
    %229 = vector.broadcast %228 : vector<1x128xf32> to vector<32x128xf32>
    %230 = arith.addf %227, %229 : vector<32x128xf32>
    %231 = arith.truncf %230 : vector<32x128xf32> to vector<32x128xbf16>
    %c1_93 = arith.constant 1 : index
    %c0_94 = arith.constant 0 : index
    %c0_95 = arith.constant 0 : index
    %232 = vector.load %arg11[%c1_93, %c0_94, %c0_95] : memref<2x128x512xbf16, #tpu.memory_space<vmem>>, vector<1x128x512xbf16>
    %233 = vector.shape_cast %232 : vector<1x128x512xbf16> to vector<128x512xbf16>
    %cst_96 = arith.constant dense<0.000000e+00> : vector<32x512xf32>
    %234 = tpu.matmul %231, %233, %cst_96 {dimension_numbers = #tpu.dot_dimension_numbers<[1], [0], [0], [1], [0, 0, 1, 1], [], []>} : vector<32x128xbf16>, vector<128x512xbf16>, vector<32x512xf32> -> vector<32x512xf32>
    %c1_97 = arith.constant 1 : index
    %c0_98 = arith.constant 0 : index
    %235 = vector.load %arg12[%c1_97, %c0_98] : memref<2x512xf32, #tpu.memory_space<vmem>>, vector<1x512xf32>
    %236 = vector.shape_cast %235 : vector<1x512xf32> to vector<512xf32>
    %237 = vector.shape_cast %236 : vector<512xf32> to vector<1x512xf32>
    %238 = vector.broadcast %237 : vector<1x512xf32> to vector<32x512xf32>
    %239 = arith.addf %234, %238 : vector<32x512xf32>
    %cst_99 = arith.constant 0.000000e+00 : f32
    %240 = vector.broadcast %cst_99 : f32 to vector<32x512xf32>
    %241 = arith.maximumf %239, %240 : vector<32x512xf32>
    %242 = arith.truncf %241 : vector<32x512xf32> to vector<32x512xbf16>
    %c1_100 = arith.constant 1 : index
    %c0_101 = arith.constant 0 : index
    %c0_102 = arith.constant 0 : index
    %243 = vector.load %arg13[%c1_100, %c0_101, %c0_102] : memref<2x512x128xbf16, #tpu.memory_space<vmem>>, vector<1x512x128xbf16>
    %244 = vector.shape_cast %243 : vector<1x512x128xbf16> to vector<512x128xbf16>
    %cst_103 = arith.constant dense<0.000000e+00> : vector<32x128xf32>
    %245 = tpu.matmul %242, %244, %cst_103 {dimension_numbers = #tpu.dot_dimension_numbers<[1], [0], [0], [1], [0, 0, 1, 1], [], []>} : vector<32x512xbf16>, vector<512x128xbf16>, vector<32x128xf32> -> vector<32x128xf32>
    %c1_104 = arith.constant 1 : index
    %c0_105 = arith.constant 0 : index
    %246 = vector.load %arg14[%c1_104, %c0_105] : memref<2x128xf32, #tpu.memory_space<vmem>>, vector<1x128xf32>
    %247 = vector.shape_cast %246 : vector<1x128xf32> to vector<128xf32>
    %248 = vector.shape_cast %247 : vector<128xf32> to vector<1x128xf32>
    %249 = vector.broadcast %248 : vector<1x128xf32> to vector<32x128xf32>
    %250 = arith.addf %245, %249 : vector<32x128xf32>
    %251 = arith.addf %202, %250 : vector<32x128xf32>
    %c0_106 = arith.constant 0 : index
    %c0_107 = arith.constant 0 : index
    %252 = vector.load %arg15[%c0_106, %c0_107] : memref<1x128xf32, #tpu.memory_space<vmem>>, vector<1x128xf32>
    %253 = vector.shape_cast %252 : vector<1x128xf32> to vector<128xf32>
    %c0_108 = arith.constant 0 : index
    %c0_109 = arith.constant 0 : index
    %254 = vector.load %arg16[%c0_108, %c0_109] : memref<1x128xf32, #tpu.memory_space<vmem>>, vector<1x128xf32>
    %255 = vector.shape_cast %254 : vector<1x128xf32> to vector<128xf32>
    %cst_110 = arith.constant dense<0.000000e+00> : vector<32xf32>
    %256 = vector.multi_reduction <add>, %251, %cst_110 [1] : vector<32x128xf32> to vector<32xf32>
    %257 = vector.shape_cast %256 : vector<32xf32> to vector<32x1xf32>
    %cst_111 = arith.constant 1.280000e+02 : f32
    %258 = vector.broadcast %cst_111 : f32 to vector<32x1xf32>
    %259 = arith.divf %257, %258 : vector<32x1xf32>
    %260 = vector.broadcast %259 : vector<32x1xf32> to vector<32x128xf32>
    %261 = arith.subf %251, %260 : vector<32x128xf32>
    %262 = arith.mulf %261, %261 : vector<32x128xf32>
    %cst_112 = arith.constant dense<0.000000e+00> : vector<32xf32>
    %263 = vector.multi_reduction <add>, %262, %cst_112 [1] : vector<32x128xf32> to vector<32xf32>
    %264 = vector.shape_cast %263 : vector<32xf32> to vector<32x1xf32>
    %cst_113 = arith.constant 1.280000e+02 : f32
    %265 = vector.broadcast %cst_113 : f32 to vector<32x1xf32>
    %266 = arith.divf %264, %265 : vector<32x1xf32>
    %267 = vector.broadcast %259 : vector<32x1xf32> to vector<32x128xf32>
    %268 = arith.subf %251, %267 : vector<32x128xf32>
    %cst_114 = arith.constant 9.99999974E-6 : f32
    %269 = vector.broadcast %cst_114 : f32 to vector<32x1xf32>
    %270 = arith.addf %266, %269 : vector<32x1xf32>
    %271 = math.rsqrt %270 : vector<32x1xf32>
    %272 = vector.broadcast %271 : vector<32x1xf32> to vector<32x128xf32>
    %273 = arith.mulf %268, %272 : vector<32x128xf32>
    %274 = vector.shape_cast %253 : vector<128xf32> to vector<1x128xf32>
    %275 = vector.broadcast %274 : vector<1x128xf32> to vector<32x128xf32>
    %276 = arith.mulf %273, %275 : vector<32x128xf32>
    %277 = vector.shape_cast %255 : vector<128xf32> to vector<1x128xf32>
    %278 = vector.broadcast %277 : vector<1x128xf32> to vector<32x128xf32>
    %279 = arith.addf %276, %278 : vector<32x128xf32>
    %280 = arith.truncf %279 : vector<32x128xf32> to vector<32x128xbf16>
    %c0_115 = arith.constant 0 : index
    %c0_116 = arith.constant 0 : index
    %281 = vector.load %arg17[%c0_115, %c0_116] : memref<128x128xbf16, #tpu.memory_space<vmem>>, vector<128x128xbf16>
    %cst_117 = arith.constant dense<0.000000e+00> : vector<32x128xf32>
    %282 = tpu.matmul %280, %281, %cst_117 {dimension_numbers = #tpu.dot_dimension_numbers<[1], [0], [0], [1], [0, 0, 1, 1], [], []>} : vector<32x128xbf16>, vector<128x128xbf16>, vector<32x128xf32> -> vector<32x128xf32>
    %c0_118 = arith.constant 0 : index
    %c0_119 = arith.constant 0 : index
    %283 = vector.load %arg18[%c0_118, %c0_119] : memref<1x128xf32, #tpu.memory_space<vmem>>, vector<1x128xf32>
    %284 = vector.shape_cast %283 : vector<1x128xf32> to vector<128xf32>
    %285 = vector.shape_cast %284 : vector<128xf32> to vector<1x128xf32>
    %286 = vector.broadcast %285 : vector<1x128xf32> to vector<32x128xf32>
    %287 = arith.addf %282, %286 : vector<32x128xf32>
    %c0_120 = arith.constant 0 : index
    %c0_121 = arith.constant 0 : index
    %288 = vector.load %arg19[%c0_120, %c0_121] : memref<32x128xf32, #tpu.memory_space<vmem>>, vector<32x128xf32>
    tpu.vector_store %arg19[%c0_120, %c0_121], %287 {strides = array<i32>} : memref<32x128xf32, #tpu.memory_space<vmem>>, vector<32x128xf32>,
    return
  }
}

</mosaic_0001>

<llo_original>
// kernel: gpt_forward.1
$region0: #{gpt_forward.1}
  #allocation0 [shape = 'u32[]', space=smem, size = 0x4, offset = 0x4, fixed_abs, tag = 'smem constant byte address 0x4 - core index']
  #allocation1 [shape = 'u32[144,128]{1,0:T(1,128)}', space=vmem, size = 0x12000, scoped, tag = 'internal scratch']
  %s0 = inlined_call_operand.vmem [shape: s32[32,1], index: 0, kind: input, shape index: {}]
  %s1 = inlined_call_operand.vmem [shape: f32[32,32], index: 1, kind: input, shape index: {}]
  %s2 = inlined_call_operand.vmem [shape: bf16[32,128], index: 2, kind: input, shape index: {}]
  %s3 = inlined_call_operand.vmem [shape: bf16[128,128], index: 3, kind: input, shape index: {}]
  %s4 = inlined_call_operand.vmem [shape: f32[2,128], index: 4, kind: input, shape index: {}]
  %s5 = inlined_call_operand.vmem [shape: f32[2,128], index: 5, kind: input, shape index: {}]
  %s6 = inlined_call_operand.vmem [shape: bf16[2,12,128,32], index: 6, kind: input, shape index: {}]
  %s7 = inlined_call_operand.vmem [shape: bf16[2,4,32,128], index: 7, kind: input, shape index: {}]
  %s8 = inlined_call_operand.vmem [shape: f32[2,128], index: 8, kind: input, shape index: {}]
  %s9 = inlined_call_operand.vmem [shape: f32[2,128], index: 9, kind: input, shape index: {}]
  %s10 = inlined_call_operand.vmem [shape: f32[2,128], index: 10, kind: input, shape index: {}]
  %s11 = inlined_call_operand.vmem [shape: bf16[2,128,512], index: 11, kind: input, shape index: {}]
  %s12 = inlined_call_operand.vmem [shape: f32[2,512], index: 12, kind: input, shape index: {}]
  %s13 = inlined_call_operand.vmem [shape: bf16[2,512,128], index: 13, kind: input, shape index: {}]
  %s14 = inlined_call_operand.vmem [shape: f32[2,128], index: 14, kind: input, shape index: {}]
  %s15 = inlined_call_operand.vmem [shape: f32[1,128], index: 15, kind: input, shape index: {}]
  %s16 = inlined_call_operand.vmem [shape: f32[1,128], index: 16, kind: input, shape index: {}]
  %s17 = inlined_call_operand.vmem [shape: bf16[128,128], index: 17, kind: input, shape index: {}]
  %s18 = inlined_call_operand.vmem [shape: f32[1,128], index: 18, kind: input, shape index: {}]
  %s19 = inlined_call_operand.hbm [shape: f32[32,128], index: 19, kind: output, shape index: {}]
  %s20 = sld [smem:[#allocation0]]
  $region86: #{gpt_forward.1} parent=0
    _
  %s22 = ssub.s32 1, %s20
  %s23 = scalar_select 0, %s22, %s20
  $region1: #{gpt_forward.1} parent=0
    #allocation2 [shape = 'u8[16384]{0}', space=vmem, size = 0x4000, scoped, tag = 'output window, operand 0, single buffered']
    #allocation3 [shape = 's32[1]{0}', space=sflag, size = 0x4, scoped, tag = 'scoped memory for gpt_forward.1']
    %24 = vsyncpa [#allocation3], 0
    // Predicated region
    $region2: #{gpt_forward.1} parent=1 // pred_check
      _
    $region3: #{gpt_forward.1} parent=1 // pred_check_branch
      %26 = sbr.rel (0) target = $region5
    $region4: #{gpt_forward.1} parent=1 // pred_region
      _
    $region5: #{gpt_forward.1} parent=1 // pred_fallthru
      _
    // Predicated region
    $region6: #{gpt_forward.1} parent=1 // pred_check
      _
    $region7: #{gpt_forward.1} parent=1 // pred_check_branch
      %28 = sbr.rel (0) target = $region9
    $region8: #{gpt_forward.1} parent=1 // pred_region
      _
    $region9: #{gpt_forward.1} parent=1 // pred_fallthru
      _
    // Predicated region
    $region10: #{gpt_forward.1} parent=1 // pred_check
      _
    $region11: #{gpt_forward.1} parent=1 // pred_check_branch
      %30 = sbr.rel (0) target = $region13
    $region12: #{gpt_forward.1} parent=1 // pred_region
      _
    $region13: #{gpt_forward.1} parent=1 // pred_fallthru
      _
    // Predicated region
    $region14: #{gpt_forward.1} parent=1 // pred_check
      _
    $region15: #{gpt_forward.1} parent=1 // pred_check_branch
      %32 = sbr.rel (0) target = $region17
    $region16: #{gpt_forward.1} parent=1 // pred_region
      _
    $region17: #{gpt_forward.1} parent=1 // pred_fallthru
      _
    // Predicated region
    $region18: #{gpt_forward.1} parent=1 // pred_check
      _
    $region19: #{gpt_forward.1} parent=1 // pred_check_branch
      %34 = sbr.rel (0) target = $region21
    $region20: #{gpt_forward.1} parent=1 // pred_region
      _
    $region21: #{gpt_forward.1} parent=1 // pred_fallthru
      _
    // Predicated region
    $region22: #{gpt_forward.1} parent=1 // pred_check
      _
    $region23: #{gpt_forward.1} parent=1 // pred_check_branch
      %36 = sbr.rel (0) target = $region25
    $region24: #{gpt_forward.1} parent=1 // pred_region
      _
    $region25: #{gpt_forward.1} parent=1 // pred_fallthru
      _
    // Predicated region
    $region26: #{gpt_forward.1} parent=1 // pred_check
      _
    $region27: #{gpt_forward.1} parent=1 // pred_check_branch
      %38 = sbr.rel (0) target = $region29
    $region28: #{gpt_forward.1} parent=1 // pred_region
      _
    $region29: #{gpt_forward.1} parent=1 // pred_fallthru
      _
    // Predicated region
    $region30: #{gpt_forward.1} parent=1 // pred_check
      _
    $region31: #{gpt_forward.1} parent=1 // pred_check_branch
      %40 = sbr.rel (0) target = $region33
    $region32: #{gpt_forward.1} parent=1 // pred_region
      _
    $region33: #{gpt_forward.1} parent=1 // pred_fallthru
      _
    // Predicated region
    $region34: #{gpt_forward.1} parent=1 // pred_check
      _
    $region35: #{gpt_forward.1} parent=1 // pred_check_branch
      %42 = sbr.rel (0) target = $region37
    $region36: #{gpt_forward.1} parent=1 // pred_region
      _
    $region37: #{gpt_forward.1} parent=1 // pred_fallthru
      _
    // Predicated region
    $region38: #{gpt_forward.1} parent=1 // pred_check
      _
    $region39: #{gpt_forward.1} parent=1 // pred_check_branch
      %44 = sbr.rel (0) target = $region41
    $region40: #{gpt_forward.1} parent=1 // pred_region
      _
    $region41: #{gpt_forward.1} parent=1 // pred_fallthru
      _
    // Predicated region
    $region42: #{gpt_forward.1} parent=1 // pred_check
      _
    $region43: #{gpt_forward.1} parent=1 // pred_check_branch
      %46 = sbr.rel (0) target = $region45
    $region44: #{gpt_forward.1} parent=1 // pred_region
      _
    $region45: #{gpt_forward.1} parent=1 // pred_fallthru
      _
    // Predicated region
    $region46: #{gpt_forward.1} parent=1 // pred_check
      _
    $region47: #{gpt_forward.1} parent=1 // pred_check_branch
      %48 = sbr.rel (0) target = $region49
    $region48: #{gpt_forward.1} parent=1 // pred_region
      _
    $region49: #{gpt_forward.1} parent=1 // pred_fallthru
      _
    // Predicated region
    $region50: #{gpt_forward.1} parent=1 // pred_check
      _
    $region51: #{gpt_forward.1} parent=1 // pred_check_branch
      %50 = sbr.rel (0) target = $region53
    $region52: #{gpt_forward.1} parent=1 // pred_region
      _
    $region53: #{gpt_forward.1} parent=1 // pred_fallthru
      _
    // Predicated region
    $region54: #{gpt_forward.1} parent=1 // pred_check
      _
    $region55: #{gpt_forward.1} parent=1 // pred_check_branch
      %52 = sbr.rel (0) target = $region57
    $region56: #{gpt_forward.1} parent=1 // pred_region
      _
    $region57: #{gpt_forward.1} parent=1 // pred_fallthru
      _
    // Predicated region
    $region58: #{gpt_forward.1} parent=1 // pred_check
      _
    $region59: #{gpt_forward.1} parent=1 // pred_check_branch
      %54 = sbr.rel (0) target = $region61
    $region60: #{gpt_forward.1} parent=1 // pred_region
      _
    $region61: #{gpt_forward.1} parent=1 // pred_fallthru
      _
    // Predicated region
    $region62: #{gpt_forward.1} parent=1 // pred_check
      _
    $region63: #{gpt_forward.1} parent=1 // pred_check_branch
      %56 = sbr.rel (0) target = $region65
    $region64: #{gpt_forward.1} parent=1 // pred_region
      _
    $region65: #{gpt_forward.1} parent=1 // pred_fallthru
      _
    // Predicated region
    $region66: #{gpt_forward.1} parent=1 // pred_check
      _
    $region67: #{gpt_forward.1} parent=1 // pred_check_branch
      %58 = sbr.rel (0) target = $region69
    $region68: #{gpt_forward.1} parent=1 // pred_region
      _
    $region69: #{gpt_forward.1} parent=1 // pred_fallthru
      _
    // Predicated region
    $region70: #{gpt_forward.1} parent=1 // pred_check
      _
    $region71: #{gpt_forward.1} parent=1 // pred_check_branch
      %60 = sbr.rel (0) target = $region73
    $region72: #{gpt_forward.1} parent=1 // pred_region
      _
    $region73: #{gpt_forward.1} parent=1 // pred_fallthru
      _
    // Predicated region
    $region74: #{gpt_forward.1} parent=1 // pred_check
      _
    $region75: #{gpt_forward.1} parent=1 // pred_check_branch
      %62 = sbr.rel (0) target = $region77
    $region76: #{gpt_forward.1} parent=1 // pred_region
      _
    $region77: #{gpt_forward.1} parent=1 // pred_fallthru
      _
    %v64 = vld [vmem:[%s0] sm:$0xff]
    %v65 = vld [vmem:[%s0 + $0x8] sm:$0xff]
    %v66 = vld [vmem:[%s0 + $0x10] sm:$0xff]
    %v67 = vld [vmem:[%s0 + $0x18] sm:$0xff]
    %v68 = vlaneseq
    %v69 = vand.u32 %v68, 127
    %70 = vset.pattern.permute.xlu0 0
    %71 = vperm.xlu0 %70, %v64
    %v72 = vpop.permute.xlu0 %71
    %73 = vset.pattern.permute.xlu0 0
    %74 = vperm.xlu0 %73, %v65
    %v75 = vpop.permute.xlu0 %74
    %76 = vset.pattern.permute.xlu0 0
    %77 = vperm.xlu0 %76, %v66
    %v78 = vpop.permute.xlu0 %77
    %79 = vset.pattern.permute.xlu0 0
    %80 = vperm.xlu0 %79, %v67
    %v81 = vpop.permute.xlu0 %80
    %vm82 = vcmp.eq.s32.totalorder %v72, %v69
    %vm83 = vcmp.eq.s32.totalorder %v75, %v69
    %vm84 = vcmp.eq.s32.totalorder %v78, %v69
    %vm85 = vcmp.eq.s32.totalorder %v81, %v69
    %v86 = vsel %vm82, 1.0, 0.0
    %v87 = vsel %vm83, 1.0, 0.0
    %v88 = vsel %vm84, 1.0, 0.0
    %v89 = vsel %vm85, 1.0, 0.0
    %v90 = vpack.c.bf16 %v87, %v86
    %v91 = vpack.c.bf16 %v89, %v88
    %v92 = vld [vmem:[%s3] sm:$0xf]
    %v93 = vld [vmem:[%s3 + $0x4] sm:$0xf]
    %v94 = vld [vmem:[%s3 + $0x8] sm:$0xf]
    %v95 = vld [vmem:[%s3 + $0xc] sm:$0xf]
    %v96 = vld [vmem:[%s3 + $0x10] sm:$0xf]
    %v97 = vld [vmem:[%s3 + $0x14] sm:$0xf]
    %v98 = vld [vmem:[%s3 + $0x18] sm:$0xf]
    %v99 = vld [vmem:[%s3 + $0x1c] sm:$0xf]
    %v100 = vld [vmem:[%s3 + $0x20] sm:$0xf]
    %v101 = vld [vmem:[%s3 + $0x24] sm:$0xf]
    %v102 = vld [vmem:[%s3 + $0x28] sm:$0xf]
    %v103 = vld [vmem:[%s3 + $0x2c] sm:$0xf]
    %v104 = vld [vmem:[%s3 + $0x30] sm:$0xf]
    %v105 = vld [vmem:[%s3 + $0x34] sm:$0xf]
    %v106 = vld [vmem:[%s3 + $0x38] sm:$0xf]
    %v107 = vld [vmem:[%s3 + $0x3c] sm:$0xf]
    %v108 = vld [vmem:[%s2] sm:$0xf]
    %v109 = vld [vmem:[%s2 + $0x4] sm:$0xf]
    %v110 = vld [vmem:[%s2 + $0x8] sm:$0xf]
    %v111 = vld [vmem:[%s2 + $0xc] sm:$0xf]
    %v112 = vunpack.c.l.bf16 %v108
    %v113 = vunpack.c.l.bf16 %v109
    %v114 = vunpack.c.l.bf16 %v110
    %v115 = vunpack.c.l.bf16 %v111
    %v132 = vunpack.c.l.b16 %v92
    %v133 = vunpack.c.l.b16 %v93
    %v134 = vunpack.c.l.b16 %v94
    %v135 = vunpack.c.l.b16 %v95
    %v136 = vunpack.c.l.b16 %v96
    %v137 = vunpack.c.l.b16 %v97
    %v138 = vunpack.c.l.b16 %v98
    %v139 = vunpack.c.l.b16 %v99
    %v140 = vunpack.c.l.b16 %v100
    %v141 = vunpack.c.l.b16 %v101
    %v142 = vunpack.c.l.b16 %v102
    %v143 = vunpack.c.l.b16 %v103
    %v144 = vunpack.c.l.b16 %v104
    %v145 = vunpack.c.l.b16 %v105
    %v146 = vunpack.c.l.b16 %v106
    %v147 = vunpack.c.l.b16 %v107
    %v148 = vpack.c.b16 %v133, %v132
    %v149 = vpack.c.b16 %v135, %v134
    %v150 = vpack.c.b16 %v137, %v136
    %v151 = vpack.c.b16 %v139, %v138
    %v152 = vpack.c.b16 %v141, %v140
    %v153 = vpack.c.b16 %v143, %v142
    %v154 = vpack.c.b16 %v145, %v144
    %v155 = vpack.c.b16 %v147, %v146
    %164 = vmatprep.subr.bf16.mxu0 0
    %165 = vmatpush1.bf16.msra.mxu0 %v148
    %166 = vmatprep.subr.bf16.mxu0 0
    %167 = vmatpush1.bf16.msra.mxu0 %v149
    %168 = vmatprep.subr.bf16.mxu0 0
    %169 = vmatpush1.bf16.msra.mxu0 %v150
    %170 = vmatprep.subr.bf16.mxu0 0
    %171 = vmatpush1.bf16.msra.mxu0 %v151
    %172 = vmatprep.subr.bf16.mxu0 0
    %173 = vmatpush1.bf16.msra.mxu0 %v152
    %174 = vmatprep.subr.bf16.mxu0 0
    %175 = vmatpush1.bf16.msra.mxu0 %v153
    %176 = vmatprep.subr.bf16.mxu0 0
    %177 = vmatpush1.bf16.msra.mxu0 %v154
    %178 = vmatprep.subr.bf16.mxu0 0
    %179 = vmatpush1.bf16.msra.mxu0 %v155
    %180 = vmatprep.subr.bf16.mxu0 0
    %181 = vmatpush1.bf16.msra.mxu0 0
    %182 = vmatprep.subr.bf16.mxu0 0
    %183 = vmatpush1.bf16.msra.mxu0 0
    %184 = vmatprep.subr.bf16.mxu0 0
    %185 = vmatpush1.bf16.msra.mxu0 0
    %186 = vmatprep.subr.bf16.mxu0 0
    %187 = vmatpush1.bf16.msra.mxu0 0
    %188 = vmatprep.subr.bf16.mxu0 0
    %189 = vmatpush1.bf16.msra.mxu0 0
    %190 = vmatprep.subr.bf16.mxu0 0
    %191 = vmatpush1.bf16.msra.mxu0 0
    %192 = vmatprep.subr.bf16.mxu0 0
    %193 = vmatpush1.bf16.msra.mxu0 0
    %194 = vmatprep.subr.bf16.mxu0 0
    %195 = vmatpush1.bf16.msra.mxu0 0
    %196 = vmatprep.mubr.bf16.mxu0 0
    %197 = vmatmul.mubr.bf16.gmra.mrb[0].mxu0 %v90
    %v198 = vpop.f32.mrb[0].mxu0
    %v199 = vadd.f32 %v112, %v198
    %v200 = vpop.f32.mrb[0].mxu0
    %v201 = vpop.f32.mrb[0].mxu0
    %v202 = vadd.f32 %v113, %v201
    %v203 = vpop.f32.mrb[0].mxu0
    %204 = vmatprep.mubr.bf16.mxu0 0
    %205 = vmatmul.mubr.bf16.gmra.mrb[0].mxu0 %v91
    %v206 = vpop.f32.mrb[0].mxu0
    %v207 = vadd.f32 %v114, %v206
    %v208 = vpop.f32.mrb[0].mxu0
    %v209 = vpop.f32.mrb[0].mxu0
    %v210 = vadd.f32 %v115, %v209
    %v211 = vpop.f32.mrb[0].mxu0
    %212 = vdwg.mxu0
    %v213 = vld [vmem:[%s1] sm:$0xff]
    %v214 = vld [vmem:[%s1 + $0x8] sm:$0xff]
    %v215 = vld [vmem:[%s1 + $0x10] sm:$0xff]
    %v216 = vld [vmem:[%s1 + $0x18] sm:$0xff]
    %v217 = vld [vmem:[%s4] sm:$0x1]
    %v218 = vld [vmem:[%s5] sm:$0x1]
    %219 = vadd.xlane.f32.xlu0 %v199
    %v220 = vpop.xlane.xlu0 %219
    %221 = vadd.xlane.f32.xlu0 %v202
    %v222 = vpop.xlane.xlu0 %221
    %223 = vadd.xlane.f32.xlu0 %v207
    %v224 = vpop.xlane.xlu0 %223
    %225 = vadd.xlane.f32.xlu0 %v210
    %v226 = vpop.xlane.xlu0 %225
    %v227 = vrcp.pop 128.0
    %v228 = vmul.f32 %v220, %v227
    %v229 = vmul.f32 %v222, %v227
    %v230 = vmul.f32 %v224, %v227
    %v231 = vmul.f32 %v226, %v227
    %v232 = vsub.f32 %v199, %v228
    %v233 = vsub.f32 %v202, %v229
    %v234 = vsub.f32 %v207, %v230
    %v235 = vsub.f32 %v210, %v231
    %v236 = vmul.f32 %v232, %v232
    %v237 = vmul.f32 %v233, %v233
    %v238 = vmul.f32 %v234, %v234
    %v239 = vmul.f32 %v235, %v235
    %240 = vadd.xlane.f32.xlu0 %v236
    %v241 = vpop.xlane.xlu0 %240
    %242 = vadd.xlane.f32.xlu0 %v237
    %v243 = vpop.xlane.xlu0 %242
    %244 = vadd.xlane.f32.xlu0 %v238
    %v245 = vpop.xlane.xlu0 %244
    %246 = vadd.xlane.f32.xlu0 %v239
    %v247 = vpop.xlane.xlu0 %246
    %v248 = vmul.f32 %v241, %v227
    %v249 = vmul.f32 %v243, %v227
    %v250 = vmul.f32 %v245, %v227
    %v251 = vmul.f32 %v247, %v227
    %v252 = vadd.f32 %v248, 1e-05
    %v253 = vadd.f32 %v249, 1e-05
    %v254 = vadd.f32 %v250, 1e-05
    %v255 = vadd.f32 %v251, 1e-05
    %v256 = vrsqrt.pop %v252
    %v257 = vrsqrt.pop %v253
    %v258 = vrsqrt.pop %v254
    %v259 = vrsqrt.pop %v255
    %v260 = vmul.f32 %v232, %v256
    %v261 = vmul.f32 %v233, %v257
    %v262 = vmul.f32 %v234, %v258
    %v263 = vmul.f32 %v235, %v259
    %v264 = vlaneseq
    %v265 = vshrl.u32 %v264, 7
    %v266 = vsub.s32 0, %v265
    %v267 = vrot.slane %v217, %v266
    %v268 = vmul.f32 %v260, %v267
    %v269 = vmul.f32 %v261, %v267
    %v270 = vmul.f32 %v262, %v267
    %v271 = vmul.f32 %v263, %v267
    %v272 = vlaneseq
    %v273 = vshrl.u32 %v272, 7
    %v274 = vsub.s32 0, %v273
    %v275 = vrot.slane %v218, %v274
    %v276 = vadd.f32 %v268, %v275
    %v277 = vadd.f32 %v269, %v275
    %v278 = vadd.f32 %v270, %v275
    %v279 = vadd.f32 %v271, %v275
    %v280 = vpack.c.bf16 %v277, %v276
    %v281 = vpack.c.bf16 %v279, %v278
    %v282 = vld [vmem:[%s6] sm:$0xf]
    %v283 = vld [vmem:[%s6 + $0x4] sm:$0xf]
    %v284 = vld [vmem:[%s6 + $0x8] sm:$0xf]
    %v285 = vld [vmem:[%s6 + $0xc] sm:$0xf]
    %v286 = vld [vmem:[%s6 + $0x10] sm:$0xf]
    %v287 = vld [vmem:[%s6 + $0x14] sm:$0xf]
    %v288 = vld [vmem:[%s6 + $0x18] sm:$0xf]
    %v289 = vld [vmem:[%s6 + $0x1c] sm:$0xf]
    %v290 = vld [vmem:[%s6 + $0x20] sm:$0xf]
    %v291 = vld [vmem:[%s6 + $0x24] sm:$0xf]
    %v292 = vld [vmem:[%s6 + $0x28] sm:$0xf]
    %v293 = vld [vmem:[%s6 + $0x2c] sm:$0xf]
    %v294 = vld [vmem:[%s6 + $0x30] sm:$0xf]
    %v295 = vld [vmem:[%s6 + $0x34] sm:$0xf]
    %v296 = vld [vmem:[%s6 + $0x38] sm:$0xf]
    %v297 = vld [vmem:[%s6 + $0x3c] sm:$0xf]
    %v298 = vld [vmem:[%s6 + $0x40] sm:$0xf]
    %v299 = vld [vmem:[%s6 + $0x44] sm:$0xf]
    %v300 = vld [vmem:[%s6 + $0x48] sm:$0xf]
    %v301 = vld [vmem:[%s6 + $0x4c] sm:$0xf]
    %v302 = vld [vmem:[%s6 + $0x50] sm:$0xf]
    %v303 = vld [vmem:[%s6 + $0x54] sm:$0xf]
    %v304 = vld [vmem:[%s6 + $0x58] sm:$0xf]
    %v305 = vld [vmem:[%s6 + $0x5c] sm:$0xf]
    %v306 = vld [vmem:[%s6 + $0x60] sm:$0xf]
    %v307 = vld [vmem:[%s6 + $0x64] sm:$0xf]
    %v308 = vld [vmem:[%s6 + $0x68] sm:$0xf]
    %v309 = vld [vmem:[%s6 + $0x6c] sm:$0xf]
    %v310 = vld [vmem:[%s6 + $0x70] sm:$0xf]
    %v311 = vld [vmem:[%s6 + $0x74] sm:$0xf]
    %v312 = vld [vmem:[%s6 + $0x78] sm:$0xf]
    %v313 = vld [vmem:[%s6 + $0x7c] sm:$0xf]
    %v314 = vld [vmem:[%s6 + $0x80] sm:$0xf]
    %v315 = vld [vmem:[%s6 + $0x84] sm:$0xf]
    %v316 = vld [vmem:[%s6 + $0x88] sm:$0xf]
    %v317 = vld [vmem:[%s6 + $0x8c] sm:$0xf]
    %v318 = vld [vmem:[%s6 + $0x90] sm:$0xf]
    %v319 = vld [vmem:[%s6 + $0x94] sm:$0xf]
    %v320 = vld [vmem:[%s6 + $0x98] sm:$0xf]
    %v321 = vld [vmem:[%s6 + $0x9c] sm:$0xf]
    %v322 = vld [vmem:[%s6 + $0xa0] sm:$0xf]
    %v323 = vld [vmem:[%s6 + $0xa4] sm:$0xf]
    %v324 = vld [vmem:[%s6 + $0xa8] sm:$0xf]
    %v325 = vld [vmem:[%s6 + $0xac] sm:$0xf]
    %v326 = vld [vmem:[%s6 + $0xb0] sm:$0xf]
    %v327 = vld [vmem:[%s6 + $0xb4] sm:$0xf]
    %v328 = vld [vmem:[%s6 + $0xb8] sm:$0xf]
    %v329 = vld [vmem:[%s6 + $0xbc] sm:$0xf]
    %v330 = vld [vmem:[%s6 + $0xc0] sm:$0xf]
    %v331 = vld [vmem:[%s6 + $0xc4] sm:$0xf]
    %v332 = vld [vmem:[%s6 + $0xc8] sm:$0xf]
    %v333 = vld [vmem:[%s6 + $0xcc] sm:$0xf]
    %v334 = vld [vmem:[%s6 + $0xd0] sm:$0xf]
    %v335 = vld [vmem:[%s6 + $0xd4] sm:$0xf]
    %v336 = vld [vmem:[%s6 + $0xd8] sm:$0xf]
    %v337 = vld [vmem:[%s6 + $0xdc] sm:$0xf]
    %v338 = vld [vmem:[%s6 + $0xe0] sm:$0xf]
    %v339 = vld [vmem:[%s6 + $0xe4] sm:$0xf]
    %v340 = vld [vmem:[%s6 + $0xe8] sm:$0xf]
    %v341 = vld [vmem:[%s6 + $0xec] sm:$0xf]
    %v342 = vld [vmem:[%s6 + $0xf0] sm:$0xf]
    %v343 = vld [vmem:[%s6 + $0xf4] sm:$0xf]
    %v344 = vld [vmem:[%s6 + $0xf8] sm:$0xf]
    %v345 = vld [vmem:[%s6 + $0xfc] sm:$0xf]
    %v346 = vld [vmem:[%s6 + $0x100] sm:$0xf]
    %v347 = vld [vmem:[%s6 + $0x104] sm:$0xf]
    %v348 = vld [vmem:[%s6 + $0x108] sm:$0xf]
    %v349 = vld [vmem:[%s6 + $0x10c] sm:$0xf]
    %v350 = vld [vmem:[%s6 + $0x110] sm:$0xf]
    %v351 = vld [vmem:[%s6 + $0x114] sm:$0xf]
    %v352 = vld [vmem:[%s6 + $0x118] sm:$0xf]
    %v353 = vld [vmem:[%s6 + $0x11c] sm:$0xf]
    %v354 = vld [vmem:[%s6 + $0x120] sm:$0xf]
    %v355 = vld [vmem:[%s6 + $0x124] sm:$0xf]
    %v356 = vld [vmem:[%s6 + $0x128] sm:$0xf]
    %v357 = vld [vmem:[%s6 + $0x12c] sm:$0xf]
    %v358 = vld [vmem:[%s6 + $0x130] sm:$0xf]
    %v359 = vld [vmem:[%s6 + $0x134] sm:$0xf]
    %v360 = vld [vmem:[%s6 + $0x138] sm:$0xf]
    %v361 = vld [vmem:[%s6 + $0x13c] sm:$0xf]
    %v362 = vld [vmem:[%s6 + $0x140] sm:$0xf]
    %v363 = vld [vmem:[%s6 + $0x144] sm:$0xf]
    %v364 = vld [vmem:[%s6 + $0x148] sm:$0xf]
    %v365 = vld [vmem:[%s6 + $0x14c] sm:$0xf]
    %v366 = vld [vmem:[%s6 + $0x150] sm:$0xf]
    %v367 = vld [vmem:[%s6 + $0x154] sm:$0xf]
    %v368 = vld [vmem:[%s6 + $0x158] sm:$0xf]
    %v369 = vld [vmem:[%s6 + $0x15c] sm:$0xf]
    %v370 = vld [vmem:[%s6 + $0x160] sm:$0xf]
    %v371 = vld [vmem:[%s6 + $0x164] sm:$0xf]
    %v372 = vld [vmem:[%s6 + $0x168] sm:$0xf]
    %v373 = vld [vmem:[%s6 + $0x16c] sm:$0xf]
    %v374 = vld [vmem:[%s6 + $0x170] sm:$0xf]
    %v375 = vld [vmem:[%s6 + $0x174] sm:$0xf]
    %v376 = vld [vmem:[%s6 + $0x178] sm:$0xf]
    %v377 = vld [vmem:[%s6 + $0x17c] sm:$0xf]
    %v378 = vld [vmem:[%s6 + $0x180] sm:$0xf]
    %v379 = vld [vmem:[%s6 + $0x184] sm:$0xf]
    %v380 = vld [vmem:[%s6 + $0x188] sm:$0xf]
    %v381 = vld [vmem:[%s6 + $0x18c] sm:$0xf]
    %v382 = vld [vmem:[%s6 + $0x190] sm:$0xf]
    %v383 = vld [vmem:[%s6 + $0x194] sm:$0xf]
    %v384 = vld [vmem:[%s6 + $0x198] sm:$0xf]
    %v385 = vld [vmem:[%s6 + $0x19c] sm:$0xf]
    %v386 = vld [vmem:[%s6 + $0x1a0] sm:$0xf]
    %v387 = vld [vmem:[%s6 + $0x1a4] sm:$0xf]
    %v388 = vld [vmem:[%s6 + $0x1a8] sm:$0xf]
    %v389 = vld [vmem:[%s6 + $0x1ac] sm:$0xf]
    %v390 = vld [vmem:[%s6 + $0x1b0] sm:$0xf]
    %v391 = vld [vmem:[%s6 + $0x1b4] sm:$0xf]
    %v392 = vld [vmem:[%s6 + $0x1b8] sm:$0xf]
    %v393 = vld [vmem:[%s6 + $0x1bc] sm:$0xf]
    %v394 = vld [vmem:[%s6 + $0x1c0] sm:$0xf]
    %v395 = vld [vmem:[%s6 + $0x1c4] sm:$0xf]
    %v396 = vld [vmem:[%s6 + $0x1c8] sm:$0xf]
    %v397 = vld [vmem:[%s6 + $0x1cc] sm:$0xf]
    %v398 = vld [vmem:[%s6 + $0x1d0] sm:$0xf]
    %v399 = vld [vmem:[%s6 + $0x1d4] sm:$0xf]
    %v400 = vld [vmem:[%s6 + $0x1d8] sm:$0xf]
    %v401 = vld [vmem:[%s6 + $0x1dc] sm:$0xf]
    %v402 = vld [vmem:[%s6 + $0x1e0] sm:$0xf]
    %v403 = vld [vmem:[%s6 + $0x1e4] sm:$0xf]
    %v404 = vld [vmem:[%s6 + $0x1e8] sm:$0xf]
    %v405 = vld [vmem:[%s6 + $0x1ec] sm:$0xf]
    %v406 = vld [vmem:[%s6 + $0x1f0] sm:$0xf]
    %v407 = vld [vmem:[%s6 + $0x1f4] sm:$0xf]
    %v408 = vld [vmem:[%s6 + $0x1f8] sm:$0xf]
    %v409 = vld [vmem:[%s6 + $0x1fc] sm:$0xf]
    %v410 = vld [vmem:[%s6 + $0x200] sm:$0xf]
    %v411 = vld [vmem:[%s6 + $0x204] sm:$0xf]
    %v412 = vld [vmem:[%s6 + $0x208] sm:$0xf]
    %v413 = vld [vmem:[%s6 + $0x20c] sm:$0xf]
    %v414 = vld [vmem:[%s6 + $0x210] sm:$0xf]
    %v415 = vld [vmem:[%s6 + $0x214] sm:$0xf]
    %v416 = vld [vmem:[%s6 + $0x218] sm:$0xf]
    %v417 = vld [vmem:[%s6 + $0x21c] sm:$0xf]
    %v418 = vld [vmem:[%s6 + $0x220] sm:$0xf]
    %v419 = vld [vmem:[%s6 + $0x224] sm:$0xf]
    %v420 = vld [vmem:[%s6 + $0x228] sm:$0xf]
    %v421 = vld [vmem:[%s6 + $0x22c] sm:$0xf]
    %v422 = vld [vmem:[%s6 + $0x230] sm:$0xf]
    %v423 = vld [vmem:[%s6 + $0x234] sm:$0xf]
    %v424 = vld [vmem:[%s6 + $0x238] sm:$0xf]
    %v425 = vld [vmem:[%s6 + $0x23c] sm:$0xf]
    %v426 = vld [vmem:[%s6 + $0x240] sm:$0xf]
    %v427 = vld [vmem:[%s6 + $0x244] sm:$0xf]
    %v428 = vld [vmem:[%s6 + $0x248] sm:$0xf]
    %v429 = vld [vmem:[%s6 + $0x24c] sm:$0xf]
    %v430 = vld [vmem:[%s6 + $0x250] sm:$0xf]
    %v431 = vld [vmem:[%s6 + $0x254] sm:$0xf]
    %v432 = vld [vmem:[%s6 + $0x258] sm:$0xf]
    %v433 = vld [vmem:[%s6 + $0x25c] sm:$0xf]
    %v434 = vld [vmem:[%s6 + $0x260] sm:$0xf]
    %v435 = vld [vmem:[%s6 + $0x264] sm:$0xf]
    %v436 = vld [vmem:[%s6 + $0x268] sm:$0xf]
    %v437 = vld [vmem:[%s6 + $0x26c] sm:$0xf]
    %v438 = vld [vmem:[%s6 + $0x270] sm:$0xf]
    %v439 = vld [vmem:[%s6 + $0x274] sm:$0xf]
    %v440 = vld [vmem:[%s6 + $0x278] sm:$0xf]
    %v441 = vld [vmem:[%s6 + $0x27c] sm:$0xf]
    %v442 = vld [vmem:[%s6 + $0x280] sm:$0xf]
    %v443 = vld [vmem:[%s6 + $0x284] sm:$0xf]
    %v444 = vld [vmem:[%s6 + $0x288] sm:$0xf]
    %v445 = vld [vmem:[%s6 + $0x28c] sm:$0xf]
    %v446 = vld [vmem:[%s6 + $0x290] sm:$0xf]
    %v447 = vld [vmem:[%s6 + $0x294] sm:$0xf]
    %v448 = vld [vmem:[%s6 + $0x298] sm:$0xf]
    %v449 = vld [vmem:[%s6 + $0x29c] sm:$0xf]
    %v450 = vld [vmem:[%s6 + $0x2a0] sm:$0xf]
    %v451 = vld [vmem:[%s6 + $0x2a4] sm:$0xf]
    %v452 = vld [vmem:[%s6 + $0x2a8] sm:$0xf]
    %v453 = vld [vmem:[%s6 + $0x2ac] sm:$0xf]
    %v454 = vld [vmem:[%s6 + $0x2b0] sm:$0xf]
    %v455 = vld [vmem:[%s6 + $0x2b4] sm:$0xf]
    %v456 = vld [vmem:[%s6 + $0x2b8] sm:$0xf]
    %v457 = vld [vmem:[%s6 + $0x2bc] sm:$0xf]
    %v458 = vld [vmem:[%s6 + $0x2c0] sm:$0xf]
    %v459 = vld [vmem:[%s6 + $0x2c4] sm:$0xf]
    %v460 = vld [vmem:[%s6 + $0x2c8] sm:$0xf]
    %v461 = vld [vmem:[%s6 + $0x2cc] sm:$0xf]
    %v462 = vld [vmem:[%s6 + $0x2d0] sm:$0xf]
    %v463 = vld [vmem:[%s6 + $0x2d4] sm:$0xf]
    %v464 = vld [vmem:[%s6 + $0x2d8] sm:$0xf]
    %v465 = vld [vmem:[%s6 + $0x2dc] sm:$0xf]
    %v466 = vld [vmem:[%s6 + $0x2e0] sm:$0xf]
    %v467 = vld [vmem:[%s6 + $0x2e4] sm:$0xf]
    %v468 = vld [vmem:[%s6 + $0x2e8] sm:$0xf]
    %v469 = vld [vmem:[%s6 + $0x2ec] sm:$0xf]
    %v470 = vld [vmem:[%s6 + $0x2f0] sm:$0xf]
    %v471 = vld [vmem:[%s6 + $0x2f4] sm:$0xf]
    %v472 = vld [vmem:[%s6 + $0x2f8] sm:$0xf]
    %v473 = vld [vmem:[%s6 + $0x2fc] sm:$0xf]
    %v490 = vunpack.c.l.b16 %v282
    %v491 = vunpack.c.l.b16 %v283
    %v492 = vunpack.c.l.b16 %v284
    %v493 = vunpack.c.l.b16 %v285
    %v494 = vunpack.c.l.b16 %v286
    %v495 = vunpack.c.l.b16 %v287
    %v496 = vunpack.c.l.b16 %v288
    %v497 = vunpack.c.l.b16 %v289
    %v498 = vunpack.c.l.b16 %v290
    %v499 = vunpack.c.l.b16 %v291
    %v500 = vunpack.c.l.b16 %v292
    %v501 = vunpack.c.l.b16 %v293
    %v502 = vunpack.c.l.b16 %v294
    %v503 = vunpack.c.l.b16 %v295
    %v504 = vunpack.c.l.b16 %v296
    %v505 = vunpack.c.l.b16 %v297
    %v506 = vpack.c.b16 %v491, %v490
    %v507 = vpack.c.b16 %v493, %v492
    %v508 = vpack.c.b16 %v495, %v494
    %v509 = vpack.c.b16 %v497, %v496
    %v510 = vpack.c.b16 %v499, %v498
    %v511 = vpack.c.b16 %v501, %v500
    %v512 = vpack.c.b16 %v503, %v502
    %v513 = vpack.c.b16 %v505, %v504
    %522 = vmatprep.subr.bf16.mxu0 0
    %523 = vmatpush1.bf16.msra.mxu0 %v506
    %524 = vmatprep.subr.bf16.mxu0 0
    %525 = vmatpush1.bf16.msra.mxu0 %v507
    %526 = vmatprep.subr.bf16.mxu0 0
    %527 = vmatpush1.bf16.msra.mxu0 %v508
    %528 = vmatprep.subr.bf16.mxu0 0
    %529 = vmatpush1.bf16.msra.mxu0 %v509
    %530 = vmatprep.subr.bf16.mxu0 0
    %531 = vmatpush1.bf16.msra.mxu0 %v510
    %532 = vmatprep.subr.bf16.mxu0 0
    %533 = vmatpush1.bf16.msra.mxu0 %v511
    %534 = vmatprep.subr.bf16.mxu0 0
    %535 = vmatpush1.bf16.msra.mxu0 %v512
    %536 = vmatprep.subr.bf16.mxu0 0
    %537 = vmatpush1.bf16.msra.mxu0 %v513
    %538 = vmatprep.subr.bf16.mxu0 0
    %539 = vmatpush1.bf16.msra.mxu0 0
    %540 = vmatprep.subr.bf16.mxu0 0
    %541 = vmatpush1.bf16.msra.mxu0 0
    %542 = vmatprep.subr.bf16.mxu0 0
    %543 = vmatpush1.bf16.msra.mxu0 0
    %544 = vmatprep.subr.bf16.mxu0 0
    %545 = vmatpush1.bf16.msra.mxu0 0
    %546 = vmatprep.subr.bf16.mxu0 0
    %547 = vmatpush1.bf16.msra.mxu0 0
    %548 = vmatprep.subr.bf16.mxu0 0
    %549 = vmatpush1.bf16.msra.mxu0 0
    %550 = vmatprep.subr.bf16.mxu0 0
    %551 = vmatpush1.bf16.msra.mxu0 0
    %552 = vmatprep.subr.bf16.mxu0 0
    %553 = vmatpush1.bf16.msra.mxu0 0
    %554 = vmatprep.mubr.bf16.mxu0 0
    %555 = vmatmul.mubr.bf16.gmra.mrb[0].mxu0 %v280
    %v556 = vpop.f32.mrb[0].mxu0
    %v557 = vadd.f32 0.0, %v556
    %v558 = vpop.f32.mrb[0].mxu0
    %v559 = vpop.f32.mrb[0].mxu0
    %v560 = vadd.f32 0.0, %v559
    %v561 = vpop.f32.mrb[0].mxu0
    %562 = vmatprep.mubr.bf16.mxu0 0
    %563 = vmatmul.mubr.bf16.gmra.mrb[0].mxu0 %v281
    %v564 = vpop.f32.mrb[0].mxu0
    %v565 = vadd.f32 0.0, %v564
    %v566 = vpop.f32.mrb[0].mxu0
    %v567 = vpop.f32.mrb[0].mxu0
    %v568 = vadd.f32 0.0, %v567
    %v569 = vpop.f32.mrb[0].mxu0
    %570 = vdwg.mxu0
    %v587 = vunpack.c.l.b16 %v298
    %v588 = vunpack.c.l.b16 %v299
    %v589 = vunpack.c.l.b16 %v300
    %v590 = vunpack.c.l.b16 %v301
    %v591 = vunpack.c.l.b16 %v302
    %v592 = vunpack.c.l.b16 %v303
    %v593 = vunpack.c.l.b16 %v304
    %v594 = vunpack.c.l.b16 %v305
    %v595 = vunpack.c.l.b16 %v306
    %v596 = vunpack.c.l.b16 %v307
    %v597 = vunpack.c.l.b16 %v308
    %v598 = vunpack.c.l.b16 %v309
    %v599 = vunpack.c.l.b16 %v310
    %v600 = vunpack.c.l.b16 %v311
    %v601 = vunpack.c.l.b16 %v312
    %v602 = vunpack.c.l.b16 %v313
    %v603 = vpack.c.b16 %v588, %v587
    %v604 = vpack.c.b16 %v590, %v589
    %v605 = vpack.c.b16 %v592, %v591
    %v606 = vpack.c.b16 %v594, %v593
    %v607 = vpack.c.b16 %v596, %v595
    %v608 = vpack.c.b16 %v598, %v597
    %v609 = vpack.c.b16 %v600, %v599
    %v610 = vpack.c.b16 %v602, %v601
    %619 = vmatprep.subr.bf16.mxu0 0
    %620 = vmatpush1.bf16.msra.mxu0 %v603
    %621 = vmatprep.subr.bf16.mxu0 0
    %622 = vmatpush1.bf16.msra.mxu0 %v604
    %623 = vmatprep.subr.bf16.mxu0 0
    %624 = vmatpush1.bf16.msra.mxu0 %v605
    %625 = vmatprep.subr.bf16.mxu0 0
    %626 = vmatpush1.bf16.msra.mxu0 %v606
    %627 = vmatprep.subr.bf16.mxu0 0
    %628 = vmatpush1.bf16.msra.mxu0 %v607
    %629 = vmatprep.subr.bf16.mxu0 0
    %630 = vmatpush1.bf16.msra.mxu0 %v608
    %631 = vmatprep.subr.bf16.mxu0 0
    %632 = vmatpush1.bf16.msra.mxu0 %v609
    %633 = vmatprep.subr.bf16.mxu0 0
    %634 = vmatpush1.bf16.msra.mxu0 %v610
    %635 = vmatprep.subr.bf16.mxu0 0
    %636 = vmatpush1.bf16.msra.mxu0 0
    %637 = vmatprep.subr.bf16.mxu0 0
    %638 = vmatpush1.bf16.msra.mxu0 0
    %639 = vmatprep.subr.bf16.mxu0 0
    %640 = vmatpush1.bf16.msra.mxu0 0
    %641 = vmatprep.subr.bf16.mxu0 0
    %642 = vmatpush1.bf16.msra.mxu0 0
    %643 = vmatprep.subr.bf16.mxu0 0
    %644 = vmatpush1.bf16.msra.mxu0 0
    %645 = vmatprep.subr.bf16.mxu0 0
    %646 = vmatpush1.bf16.msra.mxu0 0
    %647 = vmatprep.subr.bf16.mxu0 0
    %648 = vmatpush1.bf16.msra.mxu0 0
    %649 = vmatprep.subr.bf16.mxu0 0
    %650 = vmatpush1.bf16.msra.mxu0 0
    %651 = vmatprep.mubr.bf16.mxu0 0
    %652 = vmatmul.mubr.bf16.gmra.mrb[0].mxu0 %v280
    %v653 = vpop.f32.mrb[0].mxu0
    %v654 = vadd.f32 0.0, %v653
    %v655 = vpop.f32.mrb[0].mxu0
    %v656 = vpop.f32.mrb[0].mxu0
    %v657 = vadd.f32 0.0, %v656
    %v658 = vpop.f32.mrb[0].mxu0
    %659 = vmatprep.mubr.bf16.mxu0 0
    %660 = vmatmul.mubr.bf16.gmra.mrb[0].mxu0 %v281
    %v661 = vpop.f32.mrb[0].mxu0
    %v662 = vadd.f32 0.0, %v661
    %v663 = vpop.f32.mrb[0].mxu0
    %v664 = vpop.f32.mrb[0].mxu0
    %v665 = vadd.f32 0.0, %v664
    %v666 = vpop.f32.mrb[0].mxu0
    %667 = vdwg.mxu0
    %v684 = vunpack.c.l.b16 %v314
    %v685 = vunpack.c.l.b16 %v315
    %v686 = vunpack.c.l.b16 %v316
    %v687 = vunpack.c.l.b16 %v317
    %v688 = vunpack.c.l.b16 %v318
    %v689 = vunpack.c.l.b16 %v319
    %v690 = vunpack.c.l.b16 %v320
    %v691 = vunpack.c.l.b16 %v321
    %v692 = vunpack.c.l.b16 %v322
    %v693 = vunpack.c.l.b16 %v323
    %v694 = vunpack.c.l.b16 %v324
    %v695 = vunpack.c.l.b16 %v325
    %v696 = vunpack.c.l.b16 %v326
    %v697 = vunpack.c.l.b16 %v327
    %v698 = vunpack.c.l.b16 %v328
    %v699 = vunpack.c.l.b16 %v329
    %v700 = vpack.c.b16 %v685, %v684
    %v701 = vpack.c.b16 %v687, %v686
    %v702 = vpack.c.b16 %v689, %v688
    %v703 = vpack.c.b16 %v691, %v690
    %v704 = vpack.c.b16 %v693, %v692
    %v705 = vpack.c.b16 %v695, %v694
    %v706 = vpack.c.b16 %v697, %v696
    %v707 = vpack.c.b16 %v699, %v698
    %716 = vmatprep.subr.bf16.mxu0 0
    %717 = vmatpush1.bf16.msra.mxu0 %v700
    %718 = vmatprep.subr.bf16.mxu0 0
    %719 = vmatpush1.bf16.msra.mxu0 %v701
    %720 = vmatprep.subr.bf16.mxu0 0
    %721 = vmatpush1.bf16.msra.mxu0 %v702
    %722 = vmatprep.subr.bf16.mxu0 0
    %723 = vmatpush1.bf16.msra.mxu0 %v703
    %724 = vmatprep.subr.bf16.mxu0 0
    %725 = vmatpush1.bf16.msra.mxu0 %v704
    %726 = vmatprep.subr.bf16.mxu0 0
    %727 = vmatpush1.bf16.msra.mxu0 %v705
    %728 = vmatprep.subr.bf16.mxu0 0
    %729 = vmatpush1.bf16.msra.mxu0 %v706
    %730 = vmatprep.subr.bf16.mxu0 0
    %731 = vmatpush1.bf16.msra.mxu0 %v707
    %732 = vmatprep.subr.bf16.mxu0 0
    %733 = vmatpush1.bf16.msra.mxu0 0
    %734 = vmatprep.subr.bf16.mxu0 0
    %735 = vmatpush1.bf16.msra.mxu0 0
    %736 = vmatprep.subr.bf16.mxu0 0
    %737 = vmatpush1.bf16.msra.mxu0 0
    %738 = vmatprep.subr.bf16.mxu0 0
    %739 = vmatpush1.bf16.msra.mxu0 0
    %740 = vmatprep.subr.bf16.mxu0 0
    %741 = vmatpush1.bf16.msra.mxu0 0
    %742 = vmatprep.subr.bf16.mxu0 0
    %743 = vmatpush1.bf16.msra.mxu0 0
    %744 = vmatprep.subr.bf16.mxu0 0
    %745 = vmatpush1.bf16.msra.mxu0 0
    %746 = vmatprep.subr.bf16.mxu0 0
    %747 = vmatpush1.bf16.msra.mxu0 0
    %748 = vmatprep.mubr.bf16.mxu0 0
    %749 = vmatmul.mubr.bf16.gmra.mrb[0].mxu0 %v280
    %v750 = vpop.f32.mrb[0].mxu0
    %v751 = vadd.f32 0.0, %v750
    %v752 = vpop.f32.mrb[0].mxu0
    %v753 = vpop.f32.mrb[0].mxu0
    %v754 = vadd.f32 0.0, %v753
    %v755 = vpop.f32.mrb[0].mxu0
    %756 = vmatprep.mubr.bf16.mxu0 0
    %757 = vmatmul.mubr.bf16.gmra.mrb[0].mxu0 %v281
    %v758 = vpop.f32.mrb[0].mxu0
    %v759 = vadd.f32 0.0, %v758
    %v760 = vpop.f32.mrb[0].mxu0
    %v761 = vpop.f32.mrb[0].mxu0
    %v762 = vadd.f32 0.0, %v761
    %v763 = vpop.f32.mrb[0].mxu0
    %764 = vdwg.mxu0
    %v781 = vunpack.c.l.b16 %v330
    %v782 = vunpack.c.l.b16 %v331
    %v783 = vunpack.c.l.b16 %v332
    %v784 = vunpack.c.l.b16 %v333
    %v785 = vunpack.c.l.b16 %v334
    %v786 = vunpack.c.l.b16 %v335
    %v787 = vunpack.c.l.b16 %v336
    %v788 = vunpack.c.l.b16 %v337
    %v789 = vunpack.c.l.b16 %v338
    %v790 = vunpack.c.l.b16 %v339
    %v791 = vunpack.c.l.b16 %v340
    %v792 = vunpack.c.l.b16 %v341
    %v793 = vunpack.c.l.b16 %v342
    %v794 = vunpack.c.l.b16 %v343
    %v795 = vunpack.c.l.b16 %v344
    %v796 = vunpack.c.l.b16 %v345
    %v797 = vpack.c.b16 %v782, %v781
    %v798 = vpack.c.b16 %v784, %v783
    %v799 = vpack.c.b16 %v786, %v785
    %v800 = vpack.c.b16 %v788, %v787
    %v801 = vpack.c.b16 %v790, %v789
    %v802 = vpack.c.b16 %v792, %v791
    %v803 = vpack.c.b16 %v794, %v793
    %v804 = vpack.c.b16 %v796, %v795
    %813 = vmatprep.subr.bf16.mxu0 0
    %814 = vmatpush1.bf16.msra.mxu0 %v797
    %815 = vmatprep.subr.bf16.mxu0 0
    %816 = vmatpush1.bf16.msra.mxu0 %v798
    %817 = vmatprep.subr.bf16.mxu0 0
    %818 = vmatpush1.bf16.msra.mxu0 %v799
    %819 = vmatprep.subr.bf16.mxu0 0
    %820 = vmatpush1.bf16.msra.mxu0 %v800
    %821 = vmatprep.subr.bf16.mxu0 0
    %822 = vmatpush1.bf16.msra.mxu0 %v801
    %823 = vmatprep.subr.bf16.mxu0 0
    %824 = vmatpush1.bf16.msra.mxu0 %v802
    %825 = vmatprep.subr.bf16.mxu0 0
    %826 = vmatpush1.bf16.msra.mxu0 %v803
    %827 = vmatprep.subr.bf16.mxu0 0
    %828 = vmatpush1.bf16.msra.mxu0 %v804
    %829 = vmatprep.subr.bf16.mxu0 0
    %830 = vmatpush1.bf16.msra.mxu0 0
    %831 = vmatprep.subr.bf16.mxu0 0
    %832 = vmatpush1.bf16.msra.mxu0 0
    %833 = vmatprep.subr.bf16.mxu0 0
    %834 = vmatpush1.bf16.msra.mxu0 0
    %835 = vmatprep.subr.bf16.mxu0 0
    %836 = vmatpush1.bf16.msra.mxu0 0
    %837 = vmatprep.subr.bf16.mxu0 0
    %838 = vmatpush1.bf16.msra.mxu0 0
    %839 = vmatprep.subr.bf16.mxu0 0
    %840 = vmatpush1.bf16.msra.mxu0 0
    %841 = vmatprep.subr.bf16.mxu0 0
    %842 = vmatpush1.bf16.msra.mxu0 0
    %843 = vmatprep.subr.bf16.mxu0 0
    %844 = vmatpush1.bf16.msra.mxu0 0
    %845 = vmatprep.mubr.bf16.mxu0 0
    %846 = vmatmul.mubr.bf16.gmra.mrb[0].mxu0 %v280
    %v847 = vpop.f32.mrb[0].mxu0
    %v848 = vadd.f32 0.0, %v847
    %v849 = vpop.f32.mrb[0].mxu0
    %v850 = vpop.f32.mrb[0].mxu0
    %v851 = vadd.f32 0.0, %v850
    %v852 = vpop.f32.mrb[0].mxu0
    %853 = vmatprep.mubr.bf16.mxu0 0
    %854 = vmatmul.mubr.bf16.gmra.mrb[0].mxu0 %v281
    %v855 = vpop.f32.mrb[0].mxu0
    %v856 = vadd.f32 0.0, %v855
    %v857 = vpop.f32.mrb[0].mxu0
    %v858 = vpop.f32.mrb[0].mxu0
    %v859 = vadd.f32 0.0, %v858
    %v860 = vpop.f32.mrb[0].mxu0
    %861 = vdwg.mxu0
    %v878 = vunpack.c.l.b16 %v346
    %v879 = vunpack.c.l.b16 %v347
    %v880 = vunpack.c.l.b16 %v348
    %v881 = vunpack.c.l.b16 %v349
    %v882 = vunpack.c.l.b16 %v350
    %v883 = vunpack.c.l.b16 %v351
    %v884 = vunpack.c.l.b16 %v352
    %v885 = vunpack.c.l.b16 %v353
    %v886 = vunpack.c.l.b16 %v354
    %v887 = vunpack.c.l.b16 %v355
    %v888 = vunpack.c.l.b16 %v356
    %v889 = vunpack.c.l.b16 %v357
    %v890 = vunpack.c.l.b16 %v358
    %v891 = vunpack.c.l.b16 %v359
    %v892 = vunpack.c.l.b16 %v360
    %v893 = vunpack.c.l.b16 %v361
    %v894 = vpack.c.b16 %v879, %v878
    %v895 = vpack.c.b16 %v881, %v880
    %v896 = vpack.c.b16 %v883, %v882
    %v897 = vpack.c.b16 %v885, %v884
    %v898 = vpack.c.b16 %v887, %v886
    %v899 = vpack.c.b16 %v889, %v888
    %v900 = vpack.c.b16 %v891, %v890
    %v901 = vpack.c.b16 %v893, %v892
    %910 = vmatprep.subr.bf16.mxu0 0
    %911 = vmatpush1.bf16.msra.mxu0 %v894
    %912 = vmatprep.subr.bf16.mxu0 0
    %913 = vmatpush1.bf16.msra.mxu0 %v895
    %914 = vmatprep.subr.bf16.mxu0 0
    %915 = vmatpush1.bf16.msra.mxu0 %v896
    %916 = vmatprep.subr.bf16.mxu0 0
    %917 = vmatpush1.bf16.msra.mxu0 %v897
    %918 = vmatprep.subr.bf16.mxu0 0
    %919 = vmatpush1.bf16.msra.mxu0 %v898
    %920 = vmatprep.subr.bf16.mxu0 0
    %921 = vmatpush1.bf16.msra.mxu0 %v899
    %922 = vmatprep.subr.bf16.mxu0 0
    %923 = vmatpush1.bf16.msra.mxu0 %v900
    %924 = vmatprep.subr.bf16.mxu0 0
    %925 = vmatpush1.bf16.msra.mxu0 %v901
    %926 = vmatprep.subr.bf16.mxu0 0
    %927 = vmatpush1.bf16.msra.mxu0 0
    %928 = vmatprep.subr.bf16.mxu0 0
    %929 = vmatpush1.bf16.msra.mxu0 0
    %930 = vmatprep.subr.bf16.mxu0 0
    %931 = vmatpush1.bf16.msra.mxu0 0
    %932 = vmatprep.subr.bf16.mxu0 0
    %933 = vmatpush1.bf16.msra.mxu0 0
    %934 = vmatprep.subr.bf16.mxu0 0
    %935 = vmatpush1.bf16.msra.mxu0 0
    %936 = vmatprep.subr.bf16.mxu0 0
    %937 = vmatpush1.bf16.msra.mxu0 0
    %938 = vmatprep.subr.bf16.mxu0 0
    %939 = vmatpush1.bf16.msra.mxu0 0
    %940 = vmatprep.subr.bf16.mxu0 0
    %941 = vmatpush1.bf16.msra.mxu0 0
    %942 = vmatprep.mubr.bf16.mxu0 0
    %943 = vmatmul.mubr.bf16.gmra.mrb[0].mxu0 %v280
    %v944 = vpop.f32.mrb[0].mxu0
    %v945 = vadd.f32 0.0, %v944
    %v946 = vpop.f32.mrb[0].mxu0
    %v947 = vpop.f32.mrb[0].mxu0
    %v948 = vadd.f32 0.0, %v947
    %v949 = vpop.f32.mrb[0].mxu0
    %950 = vmatprep.mubr.bf16.mxu0 0
    %951 = vmatmul.mubr.bf16.gmra.mrb[0].mxu0 %v281
    %v952 = vpop.f32.mrb[0].mxu0
    %v953 = vadd.f32 0.0, %v952
    %v954 = vpop.f32.mrb[0].mxu0
    %v955 = vpop.f32.mrb[0].mxu0
    %v956 = vadd.f32 0.0, %v955
    %v957 = vpop.f32.mrb[0].mxu0
    %958 = vdwg.mxu0
    %v975 = vunpack.c.l.b16 %v362
    %v976 = vunpack.c.l.b16 %v363
    %v977 = vunpack.c.l.b16 %v364
    %v978 = vunpack.c.l.b16 %v365
    %v979 = vunpack.c.l.b16 %v366
    %v980 = vunpack.c.l.b16 %v367
    %v981 = vunpack.c.l.b16 %v368
    %v982 = vunpack.c.l.b16 %v369
    %v983 = vunpack.c.l.b16 %v370
    %v984 = vunpack.c.l.b16 %v371
    %v985 = vunpack.c.l.b16 %v372
    %v986 = vunpack.c.l.b16 %v373
    %v987 = vunpack.c.l.b16 %v374
    %v988 = vunpack.c.l.b16 %v375
    %v989 = vunpack.c.l.b16 %v376
    %v990 = vunpack.c.l.b16 %v377
    %v991 = vpack.c.b16 %v976, %v975
    %v992 = vpack.c.b16 %v978, %v977
    %v993 = vpack.c.b16 %v980, %v979
    %v994 = vpack.c.b16 %v982, %v981
    %v995 = vpack.c.b16 %v984, %v983
    %v996 = vpack.c.b16 %v986, %v985
    %v997 = vpack.c.b16 %v988, %v987
    %v998 = vpack.c.b16 %v990, %v989
    %1007 = vmatprep.subr.bf16.mxu0 0
    %1008 = vmatpush1.bf16.msra.mxu0 %v991
    %1009 = vmatprep.subr.bf16.mxu0 0
    %1010 = vmatpush1.bf16.msra.mxu0 %v992
    %1011 = vmatprep.subr.bf16.mxu0 0
    %1012 = vmatpush1.bf16.msra.mxu0 %v993
    %1013 = vmatprep.subr.bf16.mxu0 0
    %1014 = vmatpush1.bf16.msra.mxu0 %v994
    %1015 = vmatprep.subr.bf16.mxu0 0
    %1016 = vmatpush1.bf16.msra.mxu0 %v995
    %1017 = vmatprep.subr.bf16.mxu0 0
    %1018 = vmatpush1.bf16.msra.mxu0 %v996
    %1019 = vmatprep.subr.bf16.mxu0 0
    %1020 = vmatpush1.bf16.msra.mxu0 %v997
    %1021 = vmatprep.subr.bf16.mxu0 0
    %1022 = vmatpush1.bf16.msra.mxu0 %v998
    %1023 = vmatprep.subr.bf16.mxu0 0
    %1024 = vmatpush1.bf16.msra.mxu0 0
    %1025 = vmatprep.subr.bf16.mxu0 0
    %1026 = vmatpush1.bf16.msra.mxu0 0
    %1027 = vmatprep.subr.bf16.mxu0 0
    %1028 = vmatpush1.bf16.msra.mxu0 0
    %1029 = vmatprep.subr.bf16.mxu0 0
    %1030 = vmatpush1.bf16.msra.mxu0 0
    %1031 = vmatprep.subr.bf16.mxu0 0
    %1032 = vmatpush1.bf16.msra.mxu0 0
    %1033 = vmatprep.subr.bf16.mxu0 0
    %1034 = vmatpush1.bf16.msra.mxu0 0
    %1035 = vmatprep.subr.bf16.mxu0 0
    %1036 = vmatpush1.bf16.msra.mxu0 0
    %1037 = vmatprep.subr.bf16.mxu0 0
    %1038 = vmatpush1.bf16.msra.mxu0 0
    %1039 = vmatprep.mubr.bf16.mxu0 0
    %1040 = vmatmul.mubr.bf16.gmra.mrb[0].mxu0 %v280
    %v1041 = vpop.f32.mrb[0].mxu0
    %v1042 = vadd.f32 0.0, %v1041
    %v1043 = vpop.f32.mrb[0].mxu0
    %v1044 = vpop.f32.mrb[0].mxu0
    %v1045 = vadd.f32 0.0, %v1044
    %v1046 = vpop.f32.mrb[0].mxu0
    %1047 = vmatprep.mubr.bf16.mxu0 0
    %1048 = vmatmul.mubr.bf16.gmra.mrb[0].mxu0 %v281
    %v1049 = vpop.f32.mrb[0].mxu0
    %v1050 = vadd.f32 0.0, %v1049
    %v1051 = vpop.f32.mrb[0].mxu0
    %v1052 = vpop.f32.mrb[0].mxu0
    %v1053 = vadd.f32 0.0, %v1052
    %v1054 = vpop.f32.mrb[0].mxu0
    %1055 = vdwg.mxu0
    %v1072 = vunpack.c.l.b16 %v378
    %v1073 = vunpack.c.l.b16 %v379
    %v1074 = vunpack.c.l.b16 %v380
    %v1075 = vunpack.c.l.b16 %v381
    %v1076 = vunpack.c.l.b16 %v382
    %v1077 = vunpack.c.l.b16 %v383
    %v1078 = vunpack.c.l.b16 %v384
    %v1079 = vunpack.c.l.b16 %v385
    %v1080 = vunpack.c.l.b16 %v386
    %v1081 = vunpack.c.l.b16 %v387
    %v1082 = vunpack.c.l.b16 %v388
    %v1083 = vunpack.c.l.b16 %v389
    %v1084 = vunpack.c.l.b16 %v390
    %v1085 = vunpack.c.l.b16 %v391
    %v1086 = vunpack.c.l.b16 %v392
    %v1087 = vunpack.c.l.b16 %v393
    %v1088 = vpack.c.b16 %v1073, %v1072
    %v1089 = vpack.c.b16 %v1075, %v1074
    %v1090 = vpack.c.b16 %v1077, %v1076
    %v1091 = vpack.c.b16 %v1079, %v1078
    %v1092 = vpack.c.b16 %v1081, %v1080
    %v1093 = vpack.c.b16 %v1083, %v1082
    %v1094 = vpack.c.b16 %v1085, %v1084
    %v1095 = vpack.c.b16 %v1087, %v1086
    %1104 = vmatprep.subr.bf16.mxu0 0
    %1105 = vmatpush1.bf16.msra.mxu0 %v1088
    %1106 = vmatprep.subr.bf16.mxu0 0
    %1107 = vmatpush1.bf16.msra.mxu0 %v1089
    %1108 = vmatprep.subr.bf16.mxu0 0
    %1109 = vmatpush1.bf16.msra.mxu0 %v1090
    %1110 = vmatprep.subr.bf16.mxu0 0
    %1111 = vmatpush1.bf16.msra.mxu0 %v1091
    %1112 = vmatprep.subr.bf16.mxu0 0
    %1113 = vmatpush1.bf16.msra.mxu0 %v1092
    %1114 = vmatprep.subr.bf16.mxu0 0
    %1115 = vmatpush1.bf16.msra.mxu0 %v1093
    %1116 = vmatprep.subr.bf16.mxu0 0
    %1117 = vmatpush1.bf16.msra.mxu0 %v1094
    %1118 = vmatprep.subr.bf16.mxu0 0
    %1119 = vmatpush1.bf16.msra.mxu0 %v1095
    %1120 = vmatprep.subr.bf16.mxu0 0
    %1121 = vmatpush1.bf16.msra.mxu0 0
    %1122 = vmatprep.subr.bf16.mxu0 0
    %1123 = vmatpush1.bf16.msra.mxu0 0
    %1124 = vmatprep.subr.bf16.mxu0 0
    %1125 = vmatpush1.bf16.msra.mxu0 0
    %1126 = vmatprep.subr.bf16.mxu0 0
    %1127 = vmatpush1.bf16.msra.mxu0 0
    %1128 = vmatprep.subr.bf16.mxu0 0
    %1129 = vmatpush1.bf16.msra.mxu0 0
    %1130 = vmatprep.subr.bf16.mxu0 0
    %1131 = vmatpush1.bf16.msra.mxu0 0
    %1132 = vmatprep.subr.bf16.mxu0 0
    %1133 = vmatpush1.bf16.msra.mxu0 0
    %1134 = vmatprep.subr.bf16.mxu0 0
    %1135 = vmatpush1.bf16.msra.mxu0 0
    %1136 = vmatprep.mubr.bf16.mxu0 0
    %1137 = vmatmul.mubr.bf16.gmra.mrb[0].mxu0 %v280
    %v1138 = vpop.f32.mrb[0].mxu0
    %v1139 = vadd.f32 0.0, %v1138
    %v1140 = vpop.f32.mrb[0].mxu0
    %v1141 = vpop.f32.mrb[0].mxu0
    %v1142 = vadd.f32 0.0, %v1141
    %v1143 = vpop.f32.mrb[0].mxu0
    %1144 = vmatprep.mubr.bf16.mxu0 0
    %1145 = vmatmul.mubr.bf16.gmra.mrb[0].mxu0 %v281
    %v1146 = vpop.f32.mrb[0].mxu0
    %v1147 = vadd.f32 0.0, %v1146
    %v1148 = vpop.f32.mrb[0].mxu0
    %v1149 = vpop.f32.mrb[0].mxu0
    %v1150 = vadd.f32 0.0, %v1149
    %v1151 = vpop.f32.mrb[0].mxu0
    %1152 = vdwg.mxu0
    %v1169 = vunpack.c.l.b16 %v394
    %v1170 = vunpack.c.l.b16 %v395
    %v1171 = vunpack.c.l.b16 %v396
    %v1172 = vunpack.c.l.b16 %v397
    %v1173 = vunpack.c.l.b16 %v398
    %v1174 = vunpack.c.l.b16 %v399
    %v1175 = vunpack.c.l.b16 %v400
    %v1176 = vunpack.c.l.b16 %v401
    %v1177 = vunpack.c.l.b16 %v402
    %v1178 = vunpack.c.l.b16 %v403
    %v1179 = vunpack.c.l.b16 %v404
    %v1180 = vunpack.c.l.b16 %v405
    %v1181 = vunpack.c.l.b16 %v406
    %v1182 = vunpack.c.l.b16 %v407
    %v1183 = vunpack.c.l.b16 %v408
    %v1184 = vunpack.c.l.b16 %v409
    %v1185 = vpack.c.b16 %v1170, %v1169
    %v1186 = vpack.c.b16 %v1172, %v1171
    %v1187 = vpack.c.b16 %v1174, %v1173
    %v1188 = vpack.c.b16 %v1176, %v1175
    %v1189 = vpack.c.b16 %v1178, %v1177
    %v1190 = vpack.c.b16 %v1180, %v1179
    %v1191 = vpack.c.b16 %v1182, %v1181
    %v1192 = vpack.c.b16 %v1184, %v1183
    %1201 = vmatprep.subr.bf16.mxu0 0
    %1202 = vmatpush1.bf16.msra.mxu0 %v1185
    %1203 = vmatprep.subr.bf16.mxu0 0
    %1204 = vmatpush1.bf16.msra.mxu0 %v1186
    %1205 = vmatprep.subr.bf16.mxu0 0
    %1206 = vmatpush1.bf16.msra.mxu0 %v1187
    %1207 = vmatprep.subr.bf16.mxu0 0
    %1208 = vmatpush1.bf16.msra.mxu0 %v1188
    %1209 = vmatprep.subr.bf16.mxu0 0
    %1210 = vmatpush1.bf16.msra.mxu0 %v1189
    %1211 = vmatprep.subr.bf16.mxu0 0
    %1212 = vmatpush1.bf16.msra.mxu0 %v1190
    %1213 = vmatprep.subr.bf16.mxu0 0
    %1214 = vmatpush1.bf16.msra.mxu0 %v1191
    %1215 = vmatprep.subr.bf16.mxu0 0
    %1216 = vmatpush1.bf16.msra.mxu0 %v1192
    %1217 = vmatprep.subr.bf16.mxu0 0
    %1218 = vmatpush1.bf16.msra.mxu0 0
    %1219 = vmatprep.subr.bf16.mxu0 0
    %1220 = vmatpush1.bf16.msra.mxu0 0
    %1221 = vmatprep.subr.bf16.mxu0 0
    %1222 = vmatpush1.bf16.msra.mxu0 0
    %1223 = vmatprep.subr.bf16.mxu0 0
    %1224 = vmatpush1.bf16.msra.mxu0 0
    %1225 = vmatprep.subr.bf16.mxu0 0
    %1226 = vmatpush1.bf16.msra.mxu0 0
    %1227 = vmatprep.subr.bf16.mxu0 0
    %1228 = vmatpush1.bf16.msra.mxu0 0
    %1229 = vmatprep.subr.bf16.mxu0 0
    %1230 = vmatpush1.bf16.msra.mxu0 0
    %1231 = vmatprep.subr.bf16.mxu0 0
    %1232 = vmatpush1.bf16.msra.mxu0 0
    %1233 = vmatprep.mubr.bf16.mxu0 0
    %1234 = vmatmul.mubr.bf16.gmra.mrb[0].mxu0 %v280
    %v1235 = vpop.f32.mrb[0].mxu0
    %v1236 = vadd.f32 0.0, %v1235
    %v1237 = vpop.f32.mrb[0].mxu0
    %v1238 = vpop.f32.mrb[0].mxu0
    %v1239 = vadd.f32 0.0, %v1238
    %v1240 = vpop.f32.mrb[0].mxu0
    %1241 = vmatprep.mubr.bf16.mxu0 0
    %1242 = vmatmul.mubr.bf16.gmra.mrb[0].mxu0 %v281
    %v1243 = vpop.f32.mrb[0].mxu0
    %v1244 = vadd.f32 0.0, %v1243
    %v1245 = vpop.f32.mrb[0].mxu0
    %v1246 = vpop.f32.mrb[0].mxu0
    %v1247 = vadd.f32 0.0, %v1246
    %v1248 = vpop.f32.mrb[0].mxu0
    %1249 = vdwg.mxu0
    %v1266 = vunpack.c.l.b16 %v410
    %v1267 = vunpack.c.l.b16 %v411
    %v1268 = vunpack.c.l.b16 %v412
    %v1269 = vunpack.c.l.b16 %v413
    %v1270 = vunpack.c.l.b16 %v414
    %v1271 = vunpack.c.l.b16 %v415
    %v1272 = vunpack.c.l.b16 %v416
    %v1273 = vunpack.c.l.b16 %v417
    %v1274 = vunpack.c.l.b16 %v418
    %v1275 = vunpack.c.l.b16 %v419
    %v1276 = vunpack.c.l.b16 %v420
    %v1277 = vunpack.c.l.b16 %v421
    %v1278 = vunpack.c.l.b16 %v422
    %v1279 = vunpack.c.l.b16 %v423
    %v1280 = vunpack.c.l.b16 %v424
    %v1281 = vunpack.c.l.b16 %v425
    %v1282 = vpack.c.b16 %v1267, %v1266
    %v1283 = vpack.c.b16 %v1269, %v1268
    %v1284 = vpack.c.b16 %v1271, %v1270
    %v1285 = vpack.c.b16 %v1273, %v1272
    %v1286 = vpack.c.b16 %v1275, %v1274
    %v1287 = vpack.c.b16 %v1277, %v1276
    %v1288 = vpack.c.b16 %v1279, %v1278
    %v1289 = vpack.c.b16 %v1281, %v1280
    %1298 = vmatprep.subr.bf16.mxu0 0
    %1299 = vmatpush1.bf16.msra.mxu0 %v1282
    %1300 = vmatprep.subr.bf16.mxu0 0
    %1301 = vmatpush1.bf16.msra.mxu0 %v1283
    %1302 = vmatprep.subr.bf16.mxu0 0
    %1303 = vmatpush1.bf16.msra.mxu0 %v1284
    %1304 = vmatprep.subr.bf16.mxu0 0
    %1305 = vmatpush1.bf16.msra.mxu0 %v1285
    %1306 = vmatprep.subr.bf16.mxu0 0
    %1307 = vmatpush1.bf16.msra.mxu0 %v1286
    %1308 = vmatprep.subr.bf16.mxu0 0
    %1309 = vmatpush1.bf16.msra.mxu0 %v1287
    %1310 = vmatprep.subr.bf16.mxu0 0
    %1311 = vmatpush1.bf16.msra.mxu0 %v1288
    %1312 = vmatprep.subr.bf16.mxu0 0
    %1313 = vmatpush1.bf16.msra.mxu0 %v1289
    %1314 = vmatprep.subr.bf16.mxu0 0
    %1315 = vmatpush1.bf16.msra.mxu0 0
    %1316 = vmatprep.subr.bf16.mxu0 0
    %1317 = vmatpush1.bf16.msra.mxu0 0
    %1318 = vmatprep.subr.bf16.mxu0 0
    %1319 = vmatpush1.bf16.msra.mxu0 0
    %1320 = vmatprep.subr.bf16.mxu0 0
    %1321 = vmatpush1.bf16.msra.mxu0 0
    %1322 = vmatprep.subr.bf16.mxu0 0
    %1323 = vmatpush1.bf16.msra.mxu0 0
    %1324 = vmatprep.subr.bf16.mxu0 0
    %1325 = vmatpush1.bf16.msra.mxu0 0
    %1326 = vmatprep.subr.bf16.mxu0 0
    %1327 = vmatpush1.bf16.msra.mxu0 0
    %1328 = vmatprep.subr.bf16.mxu0 0
    %1329 = vmatpush1.bf16.msra.mxu0 0
    %1330 = vmatprep.mubr.bf16.mxu0 0
    %1331 = vmatmul.mubr.bf16.gmra.mrb[0].mxu0 %v280
    %v1332 = vpop.f32.mrb[0].mxu0
    %v1333 = vadd.f32 0.0, %v1332
    %v1334 = vpop.f32.mrb[0].mxu0
    %v1335 = vpop.f32.mrb[0].mxu0
    %v1336 = vadd.f32 0.0, %v1335
    %v1337 = vpop.f32.mrb[0].mxu0
    %1338 = vmatprep.mubr.bf16.mxu0 0
    %1339 = vmatmul.mubr.bf16.gmra.mrb[0].mxu0 %v281
    %v1340 = vpop.f32.mrb[0].mxu0
    %v1341 = vadd.f32 0.0, %v1340
    %v1342 = vpop.f32.mrb[0].mxu0
    %v1343 = vpop.f32.mrb[0].mxu0
    %v1344 = vadd.f32 0.0, %v1343
    %v1345 = vpop.f32.mrb[0].mxu0
    %1346 = vdwg.mxu0
    %v1363 = vunpack.c.l.b16 %v426
    %v1364 = vunpack.c.l.b16 %v427
    %v1365 = vunpack.c.l.b16 %v428
    %v1366 = vunpack.c.l.b16 %v429
    %v1367 = vunpack.c.l.b16 %v430
    %v1368 = vunpack.c.l.b16 %v431
    %v1369 = vunpack.c.l.b16 %v432
    %v1370 = vunpack.c.l.b16 %v433
    %v1371 = vunpack.c.l.b16 %v434
    %v1372 = vunpack.c.l.b16 %v435
    %v1373 = vunpack.c.l.b16 %v436
    %v1374 = vunpack.c.l.b16 %v437
    %v1375 = vunpack.c.l.b16 %v438
    %v1376 = vunpack.c.l.b16 %v439
    %v1377 = vunpack.c.l.b16 %v440
    %v1378 = vunpack.c.l.b16 %v441
    %v1379 = vpack.c.b16 %v1364, %v1363
    %v1380 = vpack.c.b16 %v1366, %v1365
    %v1381 = vpack.c.b16 %v1368, %v1367
    %v1382 = vpack.c.b16 %v1370, %v1369
    %v1383 = vpack.c.b16 %v1372, %v1371
    %v1384 = vpack.c.b16 %v1374, %v1373
    %v1385 = vpack.c.b16 %v1376, %v1375
    %v1386 = vpack.c.b16 %v1378, %v1377
    %1395 = vmatprep.subr.bf16.mxu0 0
    %1396 = vmatpush1.bf16.msra.mxu0 %v1379
    %1397 = vmatprep.subr.bf16.mxu0 0
    %1398 = vmatpush1.bf16.msra.mxu0 %v1380
    %1399 = vmatprep.subr.bf16.mxu0 0
    %1400 = vmatpush1.bf16.msra.mxu0 %v1381
    %1401 = vmatprep.subr.bf16.mxu0 0
    %1402 = vmatpush1.bf16.msra.mxu0 %v1382
    %1403 = vmatprep.subr.bf16.mxu0 0
    %1404 = vmatpush1.bf16.msra.mxu0 %v1383
    %1405 = vmatprep.subr.bf16.mxu0 0
    %1406 = vmatpush1.bf16.msra.mxu0 %v1384
    %1407 = vmatprep.subr.bf16.mxu0 0
    %1408 = vmatpush1.bf16.msra.mxu0 %v1385
    %1409 = vmatprep.subr.bf16.mxu0 0
    %1410 = vmatpush1.bf16.msra.mxu0 %v1386
    %1411 = vmatprep.subr.bf16.mxu0 0
    %1412 = vmatpush1.bf16.msra.mxu0 0
    %1413 = vmatprep.subr.bf16.mxu0 0
    %1414 = vmatpush1.bf16.msra.mxu0 0
    %1415 = vmatprep.subr.bf16.mxu0 0
    %1416 = vmatpush1.bf16.msra.mxu0 0
    %1417 = vmatprep.subr.bf16.mxu0 0
    %1418 = vmatpush1.bf16.msra.mxu0 0
    %1419 = vmatprep.subr.bf16.mxu0 0
    %1420 = vmatpush1.bf16.msra.mxu0 0
    %1421 = vmatprep.subr.bf16.mxu0 0
    %1422 = vmatpush1.bf16.msra.mxu0 0
    %1423 = vmatprep.subr.bf16.mxu0 0
    %1424 = vmatpush1.bf16.msra.mxu0 0
    %1425 = vmatprep.subr.bf16.mxu0 0
    %1426 = vmatpush1.bf16.msra.mxu0 0
    %1427 = vmatprep.mubr.bf16.mxu0 0
    %1428 = vmatmul.mubr.bf16.gmra.mrb[0].mxu0 %v280
    %v1429 = vpop.f32.mrb[0].mxu0
    %v1430 = vadd.f32 0.0, %v1429
    %v1431 = vpop.f32.mrb[0].mxu0
    %v1432 = vpop.f32.mrb[0].mxu0
    %v1433 = vadd.f32 0.0, %v1432
    %v1434 = vpop.f32.mrb[0].mxu0
    %1435 = vmatprep.mubr.bf16.mxu0 0
    %1436 = vmatmul.mubr.bf16.gmra.mrb[0].mxu0 %v281
    %v1437 = vpop.f32.mrb[0].mxu0
    %v1438 = vadd.f32 0.0, %v1437
    %v1439 = vpop.f32.mrb[0].mxu0
    %v1440 = vpop.f32.mrb[0].mxu0
    %v1441 = vadd.f32 0.0, %v1440
    %v1442 = vpop.f32.mrb[0].mxu0
    %1443 = vdwg.mxu0
    %v1460 = vunpack.c.l.b16 %v442
    %v1461 = vunpack.c.l.b16 %v443
    %v1462 = vunpack.c.l.b16 %v444
    %v1463 = vunpack.c.l.b16 %v445
    %v1464 = vunpack.c.l.b16 %v446
    %v1465 = vunpack.c.l.b16 %v447
    %v1466 = vunpack.c.l.b16 %v448
    %v1467 = vunpack.c.l.b16 %v449
    %v1468 = vunpack.c.l.b16 %v450
    %v1469 = vunpack.c.l.b16 %v451
    %v1470 = vunpack.c.l.b16 %v452
    %v1471 = vunpack.c.l.b16 %v453
    %v1472 = vunpack.c.l.b16 %v454
    %v1473 = vunpack.c.l.b16 %v455
    %v1474 = vunpack.c.l.b16 %v456
    %v1475 = vunpack.c.l.b16 %v457
    %v1476 = vpack.c.b16 %v1461, %v1460
    %v1477 = vpack.c.b16 %v1463, %v1462
    %v1478 = vpack.c.b16 %v1465, %v1464
    %v1479 = vpack.c.b16 %v1467, %v1466
    %v1480 = vpack.c.b16 %v1469, %v1468
    %v1481 = vpack.c.b16 %v1471, %v1470
    %v1482 = vpack.c.b16 %v1473, %v1472
    %v1483 = vpack.c.b16 %v1475, %v1474
    %1492 = vmatprep.subr.bf16.mxu0 0
    %1493 = vmatpush1.bf16.msra.mxu0 %v1476
    %1494 = vmatprep.subr.bf16.mxu0 0
    %1495 = vmatpush1.bf16.msra.mxu0 %v1477
    %1496 = vmatprep.subr.bf16.mxu0 0
    %1497 = vmatpush1.bf16.msra.mxu0 %v1478
    %1498 = vmatprep.subr.bf16.mxu0 0
    %1499 = vmatpush1.bf16.msra.mxu0 %v1479
    %1500 = vmatprep.subr.bf16.mxu0 0
    %1501 = vmatpush1.bf16.msra.mxu0 %v1480
    %1502 = vmatprep.subr.bf16.mxu0 0
    %1503 = vmatpush1.bf16.msra.mxu0 %v1481
    %1504 = vmatprep.subr.bf16.mxu0 0
    %1505 = vmatpush1.bf16.msra.mxu0 %v1482
    %1506 = vmatprep.subr.bf16.mxu0 0
    %1507 = vmatpush1.bf16.msra.mxu0 %v1483
    %1508 = vmatprep.subr.bf16.mxu0 0
    %1509 = vmatpush1.bf16.msra.mxu0 0
    %1510 = vmatprep.subr.bf16.mxu0 0
    %1511 = vmatpush1.bf16.msra.mxu0 0
    %1512 = vmatprep.subr.bf16.mxu0 0
    %1513 = vmatpush1.bf16.msra.mxu0 0
    %1514 = vmatprep.subr.bf16.mxu0 0
    %1515 = vmatpush1.bf16.msra.mxu0 0
    %1516 = vmatprep.subr.bf16.mxu0 0
    %1517 = vmatpush1.bf16.msra.mxu0 0
    %1518 = vmatprep.subr.bf16.mxu0 0
    %1519 = vmatpush1.bf16.msra.mxu0 0
    %1520 = vmatprep.subr.bf16.mxu0 0
    %1521 = vmatpush1.bf16.msra.mxu0 0
    %1522 = vmatprep.subr.bf16.mxu0 0
    %1523 = vmatpush1.bf16.msra.mxu0 0
    %1524 = vmatprep.mubr.bf16.mxu0 0
    %1525 = vmatmul.mubr.bf16.gmra.mrb[0].mxu0 %v280
    %v1526 = vpop.f32.mrb[0].mxu0
    %v1527 = vadd.f32 0.0, %v1526
    %v1528 = vpop.f32.mrb[0].mxu0
    %v1529 = vpop.f32.mrb[0].mxu0
    %v1530 = vadd.f32 0.0, %v1529
    %v1531 = vpop.f32.mrb[0].mxu0
    %1532 = vmatprep.mubr.bf16.mxu0 0
    %1533 = vmatmul.mubr.bf16.gmra.mrb[0].mxu0 %v281
    %v1534 = vpop.f32.mrb[0].mxu0
    %v1535 = vadd.f32 0.0, %v1534
    %v1536 = vpop.f32.mrb[0].mxu0
    %v1537 = vpop.f32.mrb[0].mxu0
    %v1538 = vadd.f32 0.0, %v1537
    %v1539 = vpop.f32.mrb[0].mxu0
    %1540 = vdwg.mxu0
    %v1557 = vunpack.c.l.b16 %v458
    %v1558 = vunpack.c.l.b16 %v459
    %v1559 = vunpack.c.l.b16 %v460
    %v1560 = vunpack.c.l.b16 %v461
    %v1561 = vunpack.c.l.b16 %v462
    %v1562 = vunpack.c.l.b16 %v463
    %v1563 = vunpack.c.l.b16 %v464
    %v1564 = vunpack.c.l.b16 %v465
    %v1565 = vunpack.c.l.b16 %v466
    %v1566 = vunpack.c.l.b16 %v467
    %v1567 = vunpack.c.l.b16 %v468
    %v1568 = vunpack.c.l.b16 %v469
    %v1569 = vunpack.c.l.b16 %v470
    %v1570 = vunpack.c.l.b16 %v471
    %v1571 = vunpack.c.l.b16 %v472
    %v1572 = vunpack.c.l.b16 %v473
    %v1573 = vpack.c.b16 %v1558, %v1557
    %v1574 = vpack.c.b16 %v1560, %v1559
    %v1575 = vpack.c.b16 %v1562, %v1561
    %v1576 = vpack.c.b16 %v1564, %v1563
    %v1577 = vpack.c.b16 %v1566, %v1565
    %v1578 = vpack.c.b16 %v1568, %v1567
    %v1579 = vpack.c.b16 %v1570, %v1569
    %v1580 = vpack.c.b16 %v1572, %v1571
    %1589 = vmatprep.subr.bf16.mxu0 0
    %1590 = vmatpush1.bf16.msra.mxu0 %v1573
    %1591 = vmatprep.subr.bf16.mxu0 0
    %1592 = vmatpush1.bf16.msra.mxu0 %v1574
    %1593 = vmatprep.subr.bf16.mxu0 0
    %1594 = vmatpush1.bf16.msra.mxu0 %v1575
    %1595 = vmatprep.subr.bf16.mxu0 0
    %1596 = vmatpush1.bf16.msra.mxu0 %v1576
    %1597 = vmatprep.subr.bf16.mxu0 0
    %1598 = vmatpush1.bf16.msra.mxu0 %v1577
    %1599 = vmatprep.subr.bf16.mxu0 0
    %1600 = vmatpush1.bf16.msra.mxu0 %v1578
    %1601 = vmatprep.subr.bf16.mxu0 0
    %1602 = vmatpush1.bf16.msra.mxu0 %v1579
    %1603 = vmatprep.subr.bf16.mxu0 0
    %1604 = vmatpush1.bf16.msra.mxu0 %v1580
    %1605 = vmatprep.subr.bf16.mxu0 0
    %1606 = vmatpush1.bf16.msra.mxu0 0
    %1607 = vmatprep.subr.bf16.mxu0 0
    %1608 = vmatpush1.bf16.msra.mxu0 0
    %1609 = vmatprep.subr.bf16.mxu0 0
    %1610 = vmatpush1.bf16.msra.mxu0 0
    %1611 = vmatprep.subr.bf16.mxu0 0
    %1612 = vmatpush1.bf16.msra.mxu0 0
    %1613 = vmatprep.subr.bf16.mxu0 0
    %1614 = vmatpush1.bf16.msra.mxu0 0
    %1615 = vmatprep.subr.bf16.mxu0 0
    %1616 = vmatpush1.bf16.msra.mxu0 0
    %1617 = vmatprep.subr.bf16.mxu0 0
    %1618 = vmatpush1.bf16.msra.mxu0 0
    %1619 = vmatprep.subr.bf16.mxu0 0
    %1620 = vmatpush1.bf16.msra.mxu0 0
    %1621 = vmatprep.mubr.bf16.mxu0 0
    %1622 = vmatmul.mubr.bf16.gmra.mrb[0].mxu0 %v280
    %v1623 = vpop.f32.mrb[0].mxu0
    %v1624 = vadd.f32 0.0, %v1623
    %v1625 = vpop.f32.mrb[0].mxu0
    %v1626 = vpop.f32.mrb[0].mxu0
    %v1627 = vadd.f32 0.0, %v1626
    %v1628 = vpop.f32.mrb[0].mxu0
    %1629 = vmatprep.mubr.bf16.mxu0 0
    %1630 = vmatmul.mubr.bf16.gmra.mrb[0].mxu0 %v281
    %v1631 = vpop.f32.mrb[0].mxu0
    %v1632 = vadd.f32 0.0, %v1631
    %v1633 = vpop.f32.mrb[0].mxu0
    %v1634 = vpop.f32.mrb[0].mxu0
    %v1635 = vadd.f32 0.0, %v1634
    %v1636 = vpop.f32.mrb[0].mxu0
    %1637 = vdwg.mxu0
    %v1638 = vpack.c.bf16 %v560, %v557
    %v1639 = vpack.c.bf16 %v568, %v565
    %v1640 = vpack.c.bf16 %v657, %v654
    %v1641 = vpack.c.bf16 %v665, %v662
    %v1642 = vpack.c.bf16 %v754, %v751
    %v1643 = vpack.c.bf16 %v762, %v759
    %v1644 = vpack.c.bf16 %v851, %v848
    %v1645 = vpack.c.bf16 %v859, %v856
    %v1646 = vpack.c.bf16 %v948, %v945
    %v1647 = vpack.c.bf16 %v956, %v953
    %v1648 = vpack.c.bf16 %v1045, %v1042
    %v1649 = vpack.c.bf16 %v1053, %v1050
    %v1650 = vpack.c.bf16 %v1142, %v1139
    %v1651 = vpack.c.bf16 %v1150, %v1147
    %v1652 = vpack.c.bf16 %v1239, %v1236
    %v1653 = vpack.c.bf16 %v1247, %v1244
    %vm1654 = vcmask 261120
    %v1656 = vsel %vm1654, %v1638, 0
    %v1659 = vsel %vm1654, %v1639, 0
    %v1662 = vsel %vm1654, %v1646, 0
    %v1665 = vsel %vm1654, %v1647, 0
    %1667 = vmatprep.subr.bf16.mxu0 0
    %1668 = vmatpush1.bf16.xpose.msra.mxu0 %v1662
    %1669 = vmatprep.subr.bf16.mxu0 0
    %1670 = vmatpush1.bf16.xpose.msra.mxu0 %v1665
    %1671 = vmatprep.subr.bf16.mxu0 0
    %1672 = vmatpush1.bf16.xpose.msra.mxu0 0
    %1673 = vmatprep.subr.bf16.mxu0 0
    %1674 = vmatpush1.bf16.xpose.msra.mxu0 0
    %1675 = vmatprep.subr.bf16.mxu0 0
    %1676 = vmatpush1.bf16.xpose.msra.mxu0 0
    %1677 = vmatprep.subr.bf16.mxu0 0
    %1678 = vmatpush1.bf16.xpose.msra.mxu0 0
    %1679 = vmatprep.subr.bf16.mxu0 0
    %1680 = vmatpush1.bf16.xpose.msra.mxu0 0
    %1681 = vmatprep.subr.bf16.mxu0 0
    %1682 = vmatpush1.bf16.xpose.msra.mxu0 0
    %1683 = vmatprep.subr.bf16.mxu0 0
    %1684 = vmatpush1.bf16.xpose.msra.mxu0 0
    %1685 = vmatprep.subr.bf16.mxu0 0
    %1686 = vmatpush1.bf16.xpose.msra.mxu0 0
    %1687 = vmatprep.subr.bf16.mxu0 0
    %1688 = vmatpush1.bf16.xpose.msra.mxu0 0
    %1689 = vmatprep.subr.bf16.mxu0 0
    %1690 = vmatpush1.bf16.xpose.msra.mxu0 0
    %1691 = vmatprep.subr.bf16.mxu0 0
    %1692 = vmatpush1.bf16.xpose.msra.mxu0 0
    %1693 = vmatprep.subr.bf16.mxu0 0
    %1694 = vmatpush1.bf16.xpose.msra.mxu0 0
    %1695 = vmatprep.subr.bf16.mxu0 0
    %1696 = vmatpush1.bf16.xpose.msra.mxu0 0
    %1697 = vmatprep.subr.bf16.mxu0 0
    %1698 = vmatpush1.bf16.xpose.msra.mxu0 0
    %1699 = vmatprep.mubr.bf16.mxu0 0
    %1700 = vmatmul.mubr.bf16.gmra.mrb[0].mxu0 %v1656
    %v1701 = vpop.f32.mrb[0].mxu0
    %v1702 = vadd.f32 0.0, %v1701
    %v1703 = vpop.f32.mrb[0].mxu0
    %v1704 = vpop.f32.mrb[0].mxu0
    %v1705 = vadd.f32 0.0, %v1704
    %v1706 = vpop.f32.mrb[0].mxu0
    %1707 = vmatprep.mubr.bf16.mxu0 0
    %1708 = vmatmul.mubr.bf16.gmra.mrb[0].mxu0 %v1659
    %v1709 = vpop.f32.mrb[0].mxu0
    %v1710 = vadd.f32 0.0, %v1709
    %v1711 = vpop.f32.mrb[0].mxu0
    %v1712 = vpop.f32.mrb[0].mxu0
    %v1713 = vadd.f32 0.0, %v1712
    %v1714 = vpop.f32.mrb[0].mxu0
    %1715 = vdwg.mxu0
    %v1717 = vsel %vm1654, %v1640, 0
    %v1720 = vsel %vm1654, %v1641, 0
    %v1723 = vsel %vm1654, %v1648, 0
    %v1726 = vsel %vm1654, %v1649, 0
    %1728 = vmatprep.subr.bf16.mxu0 0
    %1729 = vmatpush1.bf16.xpose.msra.mxu0 %v1723
    %1730 = vmatprep.subr.bf16.mxu0 0
    %1731 = vmatpush1.bf16.xpose.msra.mxu0 %v1726
    %1732 = vmatprep.subr.bf16.mxu0 0
    %1733 = vmatpush1.bf16.xpose.msra.mxu0 0
    %1734 = vmatprep.subr.bf16.mxu0 0
    %1735 = vmatpush1.bf16.xpose.msra.mxu0 0
    %1736 = vmatprep.subr.bf16.mxu0 0
    %1737 = vmatpush1.bf16.xpose.msra.mxu0 0
    %1738 = vmatprep.subr.bf16.mxu0 0
    %1739 = vmatpush1.bf16.xpose.msra.mxu0 0
    %1740 = vmatprep.subr.bf16.mxu0 0
    %1741 = vmatpush1.bf16.xpose.msra.mxu0 0
    %1742 = vmatprep.subr.bf16.mxu0 0
    %1743 = vmatpush1.bf16.xpose.msra.mxu0 0
    %1744 = vmatprep.subr.bf16.mxu0 0
    %1745 = vmatpush1.bf16.xpose.msra.mxu0 0
    %1746 = vmatprep.subr.bf16.mxu0 0
    %1747 = vmatpush1.bf16.xpose.msra.mxu0 0
    %1748 = vmatprep.subr.bf16.mxu0 0
    %1749 = vmatpush1.bf16.xpose.msra.mxu0 0
    %1750 = vmatprep.subr.bf16.mxu0 0
    %1751 = vmatpush1.bf16.xpose.msra.mxu0 0
    %1752 = vmatprep.subr.bf16.mxu0 0
    %1753 = vmatpush1.bf16.xpose.msra.mxu0 0
    %1754 = vmatprep.subr.bf16.mxu0 0
    %1755 = vmatpush1.bf16.xpose.msra.mxu0 0
    %1756 = vmatprep.subr.bf16.mxu0 0
    %1757 = vmatpush1.bf16.xpose.msra.mxu0 0
    %1758 = vmatprep.subr.bf16.mxu0 0
    %1759 = vmatpush1.bf16.xpose.msra.mxu0 0
    %1760 = vmatprep.mubr.bf16.mxu0 0
    %1761 = vmatmul.mubr.bf16.gmra.mrb[0].mxu0 %v1717
    %v1762 = vpop.f32.mrb[0].mxu0
    %v1763 = vadd.f32 0.0, %v1762
    %v1764 = vpop.f32.mrb[0].mxu0
    %v1765 = vpop.f32.mrb[0].mxu0
    %v1766 = vadd.f32 0.0, %v1765
    %v1767 = vpop.f32.mrb[0].mxu0
    %1768 = vmatprep.mubr.bf16.mxu0 0
    %1769 = vmatmul.mubr.bf16.gmra.mrb[0].mxu0 %v1720
    %v1770 = vpop.f32.mrb[0].mxu0
    %v1771 = vadd.f32 0.0, %v1770
    %v1772 = vpop.f32.mrb[0].mxu0
    %v1773 = vpop.f32.mrb[0].mxu0
    %v1774 = vadd.f32 0.0, %v1773
    %v1775 = vpop.f32.mrb[0].mxu0
    %1776 = vdwg.mxu0
    %v1778 = vsel %vm1654, %v1642, 0
    %v1781 = vsel %vm1654, %v1643, 0
    %v1784 = vsel %vm1654, %v1650, 0
    %v1787 = vsel %vm1654, %v1651, 0
    %1789 = vmatprep.subr.bf16.mxu0 0
    %1790 = vmatpush1.bf16.xpose.msra.mxu0 %v1784
    %1791 = vmatprep.subr.bf16.mxu0 0
    %1792 = vmatpush1.bf16.xpose.msra.mxu0 %v1787
    %1793 = vmatprep.subr.bf16.mxu0 0
    %1794 = vmatpush1.bf16.xpose.msra.mxu0 0
    %1795 = vmatprep.subr.bf16.mxu0 0
    %1796 = vmatpush1.bf16.xpose.msra.mxu0 0
    %1797 = vmatprep.subr.bf16.mxu0 0
    %1798 = vmatpush1.bf16.xpose.msra.mxu0 0
    %1799 = vmatprep.subr.bf16.mxu0 0
    %1800 = vmatpush1.bf16.xpose.msra.mxu0 0
    %1801 = vmatprep.subr.bf16.mxu0 0
    %1802 = vmatpush1.bf16.xpose.msra.mxu0 0
    %1803 = vmatprep.subr.bf16.mxu0 0
    %1804 = vmatpush1.bf16.xpose.msra.mxu0 0
    %1805 = vmatprep.subr.bf16.mxu0 0
    %1806 = vmatpush1.bf16.xpose.msra.mxu0 0
    %1807 = vmatprep.subr.bf16.mxu0 0
    %1808 = vmatpush1.bf16.xpose.msra.mxu0 0
    %1809 = vmatprep.subr.bf16.mxu0 0
    %1810 = vmatpush1.bf16.xpose.msra.mxu0 0
    %1811 = vmatprep.subr.bf16.mxu0 0
    %1812 = vmatpush1.bf16.xpose.msra.mxu0 0
    %1813 = vmatprep.subr.bf16.mxu0 0
    %1814 = vmatpush1.bf16.xpose.msra.mxu0 0
    %1815 = vmatprep.subr.bf16.mxu0 0
    %1816 = vmatpush1.bf16.xpose.msra.mxu0 0
    %1817 = vmatprep.subr.bf16.mxu0 0
    %1818 = vmatpush1.bf16.xpose.msra.mxu0 0
    %1819 = vmatprep.subr.bf16.mxu0 0
    %1820 = vmatpush1.bf16.xpose.msra.mxu0 0
    %1821 = vmatprep.mubr.bf16.mxu0 0
    %1822 = vmatmul.mubr.bf16.gmra.mrb[0].mxu0 %v1778
    %v1823 = vpop.f32.mrb[0].mxu0
    %v1824 = vadd.f32 0.0, %v1823
    %v1825 = vpop.f32.mrb[0].mxu0
    %v1826 = vpop.f32.mrb[0].mxu0
    %v1827 = vadd.f32 0.0, %v1826
    %v1828 = vpop.f32.mrb[0].mxu0
    %1829 = vmatprep.mubr.bf16.mxu0 0
    %1830 = vmatmul.mubr.bf16.gmra.mrb[0].mxu0 %v1781
    %v1831 = vpop.f32.mrb[0].mxu0
    %v1832 = vadd.f32 0.0, %v1831
    %v1833 = vpop.f32.mrb[0].mxu0
    %v1834 = vpop.f32.mrb[0].mxu0
    %v1835 = vadd.f32 0.0, %v1834
    %v1836 = vpop.f32.mrb[0].mxu0
    %1837 = vdwg.mxu0
    %v1839 = vsel %vm1654, %v1644, 0
    %v1842 = vsel %vm1654, %v1645, 0
    %v1845 = vsel %vm1654, %v1652, 0
    %v1848 = vsel %vm1654, %v1653, 0
    %1850 = vmatprep.subr.bf16.mxu0 0
    %1851 = vmatpush1.bf16.xpose.msra.mxu0 %v1845
    %1852 = vmatprep.subr.bf16.mxu0 0
    %1853 = vmatpush1.bf16.xpose.msra.mxu0 %v1848
    %1854 = vmatprep.subr.bf16.mxu0 0
    %1855 = vmatpush1.bf16.xpose.msra.mxu0 0
    %1856 = vmatprep.subr.bf16.mxu0 0
    %1857 = vmatpush1.bf16.xpose.msra.mxu0 0
    %1858 = vmatprep.subr.bf16.mxu0 0
    %1859 = vmatpush1.bf16.xpose.msra.mxu0 0
    %1860 = vmatprep.subr.bf16.mxu0 0
    %1861 = vmatpush1.bf16.xpose.msra.mxu0 0
    %1862 = vmatprep.subr.bf16.mxu0 0
    %1863 = vmatpush1.bf16.xpose.msra.mxu0 0
    %1864 = vmatprep.subr.bf16.mxu0 0
    %1865 = vmatpush1.bf16.xpose.msra.mxu0 0
    %1866 = vmatprep.subr.bf16.mxu0 0
    %1867 = vmatpush1.bf16.xpose.msra.mxu0 0
    %1868 = vmatprep.subr.bf16.mxu0 0
    %1869 = vmatpush1.bf16.xpose.msra.mxu0 0
    %1870 = vmatprep.subr.bf16.mxu0 0
    %1871 = vmatpush1.bf16.xpose.msra.mxu0 0
    %1872 = vmatprep.subr.bf16.mxu0 0
    %1873 = vmatpush1.bf16.xpose.msra.mxu0 0
    %1874 = vmatprep.subr.bf16.mxu0 0
    %1875 = vmatpush1.bf16.xpose.msra.mxu0 0
    %1876 = vmatprep.subr.bf16.mxu0 0
    %1877 = vmatpush1.bf16.xpose.msra.mxu0 0
    %1878 = vmatprep.subr.bf16.mxu0 0
    %1879 = vmatpush1.bf16.xpose.msra.mxu0 0
    %1880 = vmatprep.subr.bf16.mxu0 0
    %1881 = vmatpush1.bf16.xpose.msra.mxu0 0
    %1882 = vmatprep.mubr.bf16.mxu0 0
    %1883 = vmatmul.mubr.bf16.gmra.mrb[0].mxu0 %v1839
    %v1884 = vpop.f32.mrb[0].mxu0
    %v1885 = vadd.f32 0.0, %v1884
    %v1886 = vpop.f32.mrb[0].mxu0
    %v1887 = vpop.f32.mrb[0].mxu0
    %v1888 = vadd.f32 0.0, %v1887
    %v1889 = vpop.f32.mrb[0].mxu0
    %1890 = vmatprep.mubr.bf16.mxu0 0
    %1891 = vmatmul.mubr.bf16.gmra.mrb[0].mxu0 %v1842
    %v1892 = vpop.f32.mrb[0].mxu0
    %v1893 = vadd.f32 0.0, %v1892
    %v1894 = vpop.f32.mrb[0].mxu0
    %v1895 = vpop.f32.mrb[0].mxu0
    %v1896 = vadd.f32 0.0, %v1895
    %v1897 = vpop.f32.mrb[0].mxu0
    %1898 = vdwg.mxu0
    %v1899 = vmul.f32 %v1702, 0.17677669
    %v1900 = vmul.f32 %v1705, 0.17677669
    %v1901 = vmul.f32 %v1710, 0.17677669
    %v1902 = vmul.f32 %v1713, 0.17677669
    %v1903 = vmul.f32 %v1763, 0.17677669
    %v1904 = vmul.f32 %v1766, 0.17677669
    %v1905 = vmul.f32 %v1771, 0.17677669
    %v1906 = vmul.f32 %v1774, 0.17677669
    %v1907 = vmul.f32 %v1824, 0.17677669
    %v1908 = vmul.f32 %v1827, 0.17677669
    %v1909 = vmul.f32 %v1832, 0.17677669
    %v1910 = vmul.f32 %v1835, 0.17677669
    %v1911 = vmul.f32 %v1885, 0.17677669
    %v1912 = vmul.f32 %v1888, 0.17677669
    %v1913 = vmul.f32 %v1893, 0.17677669
    %v1914 = vmul.f32 %v1896, 0.17677669
    %v1915 = vadd.f32 %v1899, %v213
    %v1916 = vadd.f32 %v1900, %v214
    %v1917 = vadd.f32 %v1901, %v215
    %v1918 = vadd.f32 %v1902, %v216
    %v1919 = vadd.f32 %v1903, %v213
    %v1920 = vadd.f32 %v1904, %v214
    %v1921 = vadd.f32 %v1905, %v215
    %v1922 = vadd.f32 %v1906, %v216
    %v1923 = vadd.f32 %v1907, %v213
    %v1924 = vadd.f32 %v1908, %v214
    %v1925 = vadd.f32 %v1909, %v215
    %v1926 = vadd.f32 %v1910, %v216
    %v1927 = vadd.f32 %v1911, %v213
    %v1928 = vadd.f32 %v1912, %v214
    %v1929 = vadd.f32 %v1913, %v215
    %v1930 = vadd.f32 %v1914, %v216
    %v1931 = vsel %vm1654, %v1915, -inf
    %1932 = vmax.xlane.f32.xlu0 %v1931
    %v1933 = vpop.xlane.xlu0 %1932
    %v1934 = vsel %vm1654, %v1916, -inf
    %1935 = vmax.xlane.f32.xlu0 %v1934
    %v1936 = vpop.xlane.xlu0 %1935
    %v1937 = vsel %vm1654, %v1917, -inf
    %1938 = vmax.xlane.f32.xlu0 %v1937
    %v1939 = vpop.xlane.xlu0 %1938
    %v1940 = vsel %vm1654, %v1918, -inf
    %1941 = vmax.xlane.f32.xlu0 %v1940
    %v1942 = vpop.xlane.xlu0 %1941
    %v1943 = vsel %vm1654, %v1919, -inf
    %1944 = vmax.xlane.f32.xlu0 %v1943
    %v1945 = vpop.xlane.xlu0 %1944
    %v1946 = vsel %vm1654, %v1920, -inf
    %1947 = vmax.xlane.f32.xlu0 %v1946
    %v1948 = vpop.xlane.xlu0 %1947
    %v1949 = vsel %vm1654, %v1921, -inf
    %1950 = vmax.xlane.f32.xlu0 %v1949
    %v1951 = vpop.xlane.xlu0 %1950
    %v1952 = vsel %vm1654, %v1922, -inf
    %1953 = vmax.xlane.f32.xlu0 %v1952
    %v1954 = vpop.xlane.xlu0 %1953
    %v1955 = vsel %vm1654, %v1923, -inf
    %1956 = vmax.xlane.f32.xlu0 %v1955
    %v1957 = vpop.xlane.xlu0 %1956
    %v1958 = vsel %vm1654, %v1924, -inf
    %1959 = vmax.xlane.f32.xlu0 %v1958
    %v1960 = vpop.xlane.xlu0 %1959
    %v1961 = vsel %vm1654, %v1925, -inf
    %1962 = vmax.xlane.f32.xlu0 %v1961
    %v1963 = vpop.xlane.xlu0 %1962
    %v1964 = vsel %vm1654, %v1926, -inf
    %1965 = vmax.xlane.f32.xlu0 %v1964
    %v1966 = vpop.xlane.xlu0 %1965
    %v1967 = vsel %vm1654, %v1927, -inf
    %1968 = vmax.xlane.f32.xlu0 %v1967
    %v1969 = vpop.xlane.xlu0 %1968
    %v1970 = vsel %vm1654, %v1928, -inf
    %1971 = vmax.xlane.f32.xlu0 %v1970
    %v1972 = vpop.xlane.xlu0 %1971
    %v1973 = vsel %vm1654, %v1929, -inf
    %1974 = vmax.xlane.f32.xlu0 %v1973
    %v1975 = vpop.xlane.xlu0 %1974
    %v1976 = vsel %vm1654, %v1930, -inf
    %1977 = vmax.xlane.f32.xlu0 %v1976
    %v1978 = vpop.xlane.xlu0 %1977
    %v1979 = vsub.f32 %v1915, %v1933
    %v1980 = vsub.f32 %v1916, %v1936
    %v1981 = vsub.f32 %v1917, %v1939
    %v1982 = vsub.f32 %v1918, %v1942
    %v1983 = vsub.f32 %v1919, %v1945
    %v1984 = vsub.f32 %v1920, %v1948
    %v1985 = vsub.f32 %v1921, %v1951
    %v1986 = vsub.f32 %v1922, %v1954
    %v1987 = vsub.f32 %v1923, %v1957
    %v1988 = vsub.f32 %v1924, %v1960
    %v1989 = vsub.f32 %v1925, %v1963
    %v1990 = vsub.f32 %v1926, %v1966
    %v1991 = vsub.f32 %v1927, %v1969
    %v1992 = vsub.f32 %v1928, %v1972
    %v1993 = vsub.f32 %v1929, %v1975
    %v1994 = vsub.f32 %v1930, %v1978
    %v1995 = vmul.f32 %v1979, 1.442695
    %v1996 = vpow.pop %v1995
    %v1997 = vmul.f32 %v1980, 1.442695
    %v1998 = vpow.pop %v1997
    %v1999 = vmul.f32 %v1981, 1.442695
    %v2000 = vpow.pop %v1999
    %v2001 = vmul.f32 %v1982, 1.442695
    %v2002 = vpow.pop %v2001
    %v2003 = vmul.f32 %v1983, 1.442695
    %v2004 = vpow.pop %v2003
    %v2005 = vmul.f32 %v1984, 1.442695
    %v2006 = vpow.pop %v2005
    %v2007 = vmul.f32 %v1985, 1.442695
    %v2008 = vpow.pop %v2007
    %v2009 = vmul.f32 %v1986, 1.442695
    %v2010 = vpow.pop %v2009
    %v2011 = vmul.f32 %v1987, 1.442695
    %v2012 = vpow.pop %v2011
    %v2013 = vmul.f32 %v1988, 1.442695
    %v2014 = vpow.pop %v2013
    %v2015 = vmul.f32 %v1989, 1.442695
    %v2016 = vpow.pop %v2015
    %v2017 = vmul.f32 %v1990, 1.442695
    %v2018 = vpow.pop %v2017
    %v2019 = vmul.f32 %v1991, 1.442695
    %v2020 = vpow.pop %v2019
    %v2021 = vmul.f32 %v1992, 1.442695
    %v2022 = vpow.pop %v2021
    %v2023 = vmul.f32 %v1993, 1.442695
    %v2024 = vpow.pop %v2023
    %v2025 = vmul.f32 %v1994, 1.442695
    %v2026 = vpow.pop %v2025
    %v2027 = vsel %vm1654, %v1996, 0.0
    %2028 = vadd.xlane.f32.xlu0 %v2027
    %v2029 = vpop.xlane.xlu0 %2028
    %v2030 = vsel %vm1654, %v1998, 0.0
    %2031 = vadd.xlane.f32.xlu0 %v2030
    %v2032 = vpop.xlane.xlu0 %2031
    %v2033 = vsel %vm1654, %v2000, 0.0
    %2034 = vadd.xlane.f32.xlu0 %v2033
    %v2035 = vpop.xlane.xlu0 %2034
    %v2036 = vsel %vm1654, %v2002, 0.0
    %2037 = vadd.xlane.f32.xlu0 %v2036
    %v2038 = vpop.xlane.xlu0 %2037
    %v2039 = vsel %vm1654, %v2004, 0.0
    %2040 = vadd.xlane.f32.xlu0 %v2039
    %v2041 = vpop.xlane.xlu0 %2040
    %v2042 = vsel %vm1654, %v2006, 0.0
    %2043 = vadd.xlane.f32.xlu0 %v2042
    %v2044 = vpop.xlane.xlu0 %2043
    %v2045 = vsel %vm1654, %v2008, 0.0
    %2046 = vadd.xlane.f32.xlu0 %v2045
    %v2047 = vpop.xlane.xlu0 %2046
    %v2048 = vsel %vm1654, %v2010, 0.0
    %2049 = vadd.xlane.f32.xlu0 %v2048
    %v2050 = vpop.xlane.xlu0 %2049
    %v2051 = vsel %vm1654, %v2012, 0.0
    %2052 = vadd.xlane.f32.xlu0 %v2051
    %v2053 = vpop.xlane.xlu0 %2052
    %v2054 = vsel %vm1654, %v2014, 0.0
    %2055 = vadd.xlane.f32.xlu0 %v2054
    %v2056 = vpop.xlane.xlu0 %2055
    %v2057 = vsel %vm1654, %v2016, 0.0
    %2058 = vadd.xlane.f32.xlu0 %v2057
    %v2059 = vpop.xlane.xlu0 %2058
    %v2060 = vsel %vm1654, %v2018, 0.0
    %2061 = vadd.xlane.f32.xlu0 %v2060
    %v2062 = vpop.xlane.xlu0 %2061
    %v2063 = vsel %vm1654, %v2020, 0.0
    %2064 = vadd.xlane.f32.xlu0 %v2063
    %v2065 = vpop.xlane.xlu0 %2064
    %v2066 = vsel %vm1654, %v2022, 0.0
    %2067 = vadd.xlane.f32.xlu0 %v2066
    %v2068 = vpop.xlane.xlu0 %2067
    %v2069 = vsel %vm1654, %v2024, 0.0
    %2070 = vadd.xlane.f32.xlu0 %v2069
    %v2071 = vpop.xlane.xlu0 %2070
    %v2072 = vsel %vm1654, %v2026, 0.0
    %2073 = vadd.xlane.f32.xlu0 %v2072
    %v2074 = vpop.xlane.xlu0 %2073
    %v2075 = vrcp.pop %v2029
    %v2076 = vrcp.pop %v2032
    %v2077 = vrcp.pop %v2035
    %v2078 = vrcp.pop %v2038
    %v2079 = vrcp.pop %v2041
    %v2080 = vrcp.pop %v2044
    %v2081 = vrcp.pop %v2047
    %v2082 = vrcp.pop %v2050
    %v2083 = vrcp.pop %v2053
    %v2084 = vrcp.pop %v2056
    %v2085 = vrcp.pop %v2059
    %v2086 = vrcp.pop %v2062
    %v2087 = vrcp.pop %v2065
    %v2088 = vrcp.pop %v2068
    %v2089 = vrcp.pop %v2071
    %v2090 = vrcp.pop %v2074
    %v2091 = vmul.f32 %v1996, %v2075
    %v2092 = vmul.f32 %v1998, %v2076
    %v2093 = vmul.f32 %v2000, %v2077
    %v2094 = vmul.f32 %v2002, %v2078
    %v2095 = vmul.f32 %v2004, %v2079
    %v2096 = vmul.f32 %v2006, %v2080
    %v2097 = vmul.f32 %v2008, %v2081
    %v2098 = vmul.f32 %v2010, %v2082
    %v2099 = vmul.f32 %v2012, %v2083
    %v2100 = vmul.f32 %v2014, %v2084
    %v2101 = vmul.f32 %v2016, %v2085
    %v2102 = vmul.f32 %v2018, %v2086
    %v2103 = vmul.f32 %v2020, %v2087
    %v2104 = vmul.f32 %v2022, %v2088
    %v2105 = vmul.f32 %v2024, %v2089
    %v2106 = vmul.f32 %v2026, %v2090
    %v2107 = vpack.c.bf16 %v2092, %v2091
    %v2108 = vpack.c.bf16 %v2094, %v2093
    %v2109 = vpack.c.bf16 %v2096, %v2095
    %v2110 = vpack.c.bf16 %v2098, %v2097
    %v2111 = vpack.c.bf16 %v2100, %v2099
    %v2112 = vpack.c.bf16 %v2102, %v2101
    %v2113 = vpack.c.bf16 %v2104, %v2103
    %v2114 = vpack.c.bf16 %v2106, %v2105
    %v2115 = vpack.c.bf16 %v1336, %v1333
    %v2116 = vpack.c.bf16 %v1344, %v1341
    %v2117 = vpack.c.bf16 %v1433, %v1430
    %v2118 = vpack.c.bf16 %v1441, %v1438
    %v2119 = vpack.c.bf16 %v1530, %v1527
    %v2120 = vpack.c.bf16 %v1538, %v1535
    %v2121 = vpack.c.bf16 %v1627, %v1624
    %v2122 = vpack.c.bf16 %v1635, %v1632
    %v2124 = vsel %vm1654, %v2107, 0
    %v2127 = vsel %vm1654, %v2108, 0
    %2129 = vmatprep.subr.bf16.mxu0 0
    %2130 = vmatpush1.bf16.msra.mxu0 %v2115
    %2131 = vmatprep.subr.bf16.mxu0 0
    %2132 = vmatpush1.bf16.msra.mxu0 %v2116
    %2133 = vmatprep.subr.bf16.mxu0 0
    %2134 = vmatpush1.bf16.msra.mxu0 0
    %2135 = vmatprep.subr.bf16.mxu0 0
    %2136 = vmatpush1.bf16.msra.mxu0 0
    %2137 = vmatprep.subr.bf16.mxu0 0
    %2138 = vmatpush1.bf16.msra.mxu0 0
    %2139 = vmatprep.subr.bf16.mxu0 0
    %2140 = vmatpush1.bf16.msra.mxu0 0
    %2141 = vmatprep.subr.bf16.mxu0 0
    %2142 = vmatpush1.bf16.msra.mxu0 0
    %2143 = vmatprep.subr.bf16.mxu0 0
    %2144 = vmatpush1.bf16.msra.mxu0 0
    %2145 = vmatprep.subr.bf16.mxu0 0
    %2146 = vmatpush1.bf16.msra.mxu0 0
    %2147 = vmatprep.subr.bf16.mxu0 0
    %2148 = vmatpush1.bf16.msra.mxu0 0
    %2149 = vmatprep.subr.bf16.mxu0 0
    %2150 = vmatpush1.bf16.msra.mxu0 0
    %2151 = vmatprep.subr.bf16.mxu0 0
    %2152 = vmatpush1.bf16.msra.mxu0 0
    %2153 = vmatprep.subr.bf16.mxu0 0
    %2154 = vmatpush1.bf16.msra.mxu0 0
    %2155 = vmatprep.subr.bf16.mxu0 0
    %2156 = vmatpush1.bf16.msra.mxu0 0
    %2157 = vmatprep.subr.bf16.mxu0 0
    %2158 = vmatpush1.bf16.msra.mxu0 0
    %2159 = vmatprep.subr.bf16.mxu0 0
    %2160 = vmatpush1.bf16.msra.mxu0 0
    %2161 = vmatprep.mubr.bf16.mxu0 0
    %2162 = vmatmul.mubr.bf16.gmra.mrb[0].mxu0 %v2124
    %v2163 = vpop.f32.mrb[0].mxu0
    %v2164 = vadd.f32 0.0, %v2163
    %v2165 = vpop.f32.mrb[0].mxu0
    %v2166 = vpop.f32.mrb[0].mxu0
    %v2167 = vadd.f32 0.0, %v2166
    %v2168 = vpop.f32.mrb[0].mxu0
    %2169 = vmatprep.mubr.bf16.mxu0 0
    %2170 = vmatmul.mubr.bf16.gmra.mrb[0].mxu0 %v2127
    %v2171 = vpop.f32.mrb[0].mxu0
    %v2172 = vadd.f32 0.0, %v2171
    %v2173 = vpop.f32.mrb[0].mxu0
    %v2174 = vpop.f32.mrb[0].mxu0
    %v2175 = vadd.f32 0.0, %v2174
    %v2176 = vpop.f32.mrb[0].mxu0
    %2177 = vdwg.mxu0
    %v2179 = vsel %vm1654, %v2109, 0
    %v2182 = vsel %vm1654, %v2110, 0
    %2184 = vmatprep.subr.bf16.mxu0 0
    %2185 = vmatpush1.bf16.msra.mxu0 %v2117
    %2186 = vmatprep.subr.bf16.mxu0 0
    %2187 = vmatpush1.bf16.msra.mxu0 %v2118
    %2188 = vmatprep.subr.bf16.mxu0 0
    %2189 = vmatpush1.bf16.msra.mxu0 0
    %2190 = vmatprep.subr.bf16.mxu0 0
    %2191 = vmatpush1.bf16.msra.mxu0 0
    %2192 = vmatprep.subr.bf16.mxu0 0
    %2193 = vmatpush1.bf16.msra.mxu0 0
    %2194 = vmatprep.subr.bf16.mxu0 0
    %2195 = vmatpush1.bf16.msra.mxu0 0
    %2196 = vmatprep.subr.bf16.mxu0 0
    %2197 = vmatpush1.bf16.msra.mxu0 0
    %2198 = vmatprep.subr.bf16.mxu0 0
    %2199 = vmatpush1.bf16.msra.mxu0 0
    %2200 = vmatprep.subr.bf16.mxu0 0
    %2201 = vmatpush1.bf16.msra.mxu0 0
    %2202 = vmatprep.subr.bf16.mxu0 0
    %2203 = vmatpush1.bf16.msra.mxu0 0
    %2204 = vmatprep.subr.bf16.mxu0 0
    %2205 = vmatpush1.bf16.msra.mxu0 0
    %2206 = vmatprep.subr.bf16.mxu0 0
    %2207 = vmatpush1.bf16.msra.mxu0 0
    %2208 = vmatprep.subr.bf16.mxu0 0
    %2209 = vmatpush1.bf16.msra.mxu0 0
    %2210 = vmatprep.subr.bf16.mxu0 0
    %2211 = vmatpush1.bf16.msra.mxu0 0
    %2212 = vmatprep.subr.bf16.mxu0 0
    %2213 = vmatpush1.bf16.msra.mxu0 0
    %2214 = vmatprep.subr.bf16.mxu0 0
    %2215 = vmatpush1.bf16.msra.mxu0 0
    %2216 = vmatprep.mubr.bf16.mxu0 0
    %2217 = vmatmul.mubr.bf16.gmra.mrb[0].mxu0 %v2179
    %v2218 = vpop.f32.mrb[0].mxu0
    %v2219 = vadd.f32 0.0, %v2218
    %v2220 = vpop.f32.mrb[0].mxu0
    %v2221 = vpop.f32.mrb[0].mxu0
    %v2222 = vadd.f32 0.0, %v2221
    %v2223 = vpop.f32.mrb[0].mxu0
    %2224 = vmatprep.mubr.bf16.mxu0 0
    %2225 = vmatmul.mubr.bf16.gmra.mrb[0].mxu0 %v2182
    %v2226 = vpop.f32.mrb[0].mxu0
    %v2227 = vadd.f32 0.0, %v2226
    %v2228 = vpop.f32.mrb[0].mxu0
    %v2229 = vpop.f32.mrb[0].mxu0
    %v2230 = vadd.f32 0.0, %v2229
    %v2231 = vpop.f32.mrb[0].mxu0
    %2232 = vdwg.mxu0
    %v2234 = vsel %vm1654, %v2111, 0
    %v2237 = vsel %vm1654, %v2112, 0
    %2239 = vmatprep.subr.bf16.mxu0 0
    %2240 = vmatpush1.bf16.msra.mxu0 %v2119
    %2241 = vmatprep.subr.bf16.mxu0 0
    %2242 = vmatpush1.bf16.msra.mxu0 %v2120
    %2243 = vmatprep.subr.bf16.mxu0 0
    %2244 = vmatpush1.bf16.msra.mxu0 0
    %2245 = vmatprep.subr.bf16.mxu0 0
    %2246 = vmatpush1.bf16.msra.mxu0 0
    %2247 = vmatprep.subr.bf16.mxu0 0
    %2248 = vmatpush1.bf16.msra.mxu0 0
    %2249 = vmatprep.subr.bf16.mxu0 0
    %2250 = vmatpush1.bf16.msra.mxu0 0
    %2251 = vmatprep.subr.bf16.mxu0 0
    %2252 = vmatpush1.bf16.msra.mxu0 0
    %2253 = vmatprep.subr.bf16.mxu0 0
    %2254 = vmatpush1.bf16.msra.mxu0 0
    %2255 = vmatprep.subr.bf16.mxu0 0
    %2256 = vmatpush1.bf16.msra.mxu0 0
    %2257 = vmatprep.subr.bf16.mxu0 0
    %2258 = vmatpush1.bf16.msra.mxu0 0
    %2259 = vmatprep.subr.bf16.mxu0 0
    %2260 = vmatpush1.bf16.msra.mxu0 0
    %2261 = vmatprep.subr.bf16.mxu0 0
    %2262 = vmatpush1.bf16.msra.mxu0 0
    %2263 = vmatprep.subr.bf16.mxu0 0
    %2264 = vmatpush1.bf16.msra.mxu0 0
    %2265 = vmatprep.subr.bf16.mxu0 0
    %2266 = vmatpush1.bf16.msra.mxu0 0
    %2267 = vmatprep.subr.bf16.mxu0 0
    %2268 = vmatpush1.bf16.msra.mxu0 0
    %2269 = vmatprep.subr.bf16.mxu0 0
    %2270 = vmatpush1.bf16.msra.mxu0 0
    %2271 = vmatprep.mubr.bf16.mxu0 0
    %2272 = vmatmul.mubr.bf16.gmra.mrb[0].mxu0 %v2234
    %v2273 = vpop.f32.mrb[0].mxu0
    %v2274 = vadd.f32 0.0, %v2273
    %v2275 = vpop.f32.mrb[0].mxu0
    %v2276 = vpop.f32.mrb[0].mxu0
    %v2277 = vadd.f32 0.0, %v2276
    %v2278 = vpop.f32.mrb[0].mxu0
    %2279 = vmatprep.mubr.bf16.mxu0 0
    %2280 = vmatmul.mubr.bf16.gmra.mrb[0].mxu0 %v2237
    %v2281 = vpop.f32.mrb[0].mxu0
    %v2282 = vadd.f32 0.0, %v2281
    %v2283 = vpop.f32.mrb[0].mxu0
    %v2284 = vpop.f32.mrb[0].mxu0
    %v2285 = vadd.f32 0.0, %v2284
    %v2286 = vpop.f32.mrb[0].mxu0
    %2287 = vdwg.mxu0
    %v2289 = vsel %vm1654, %v2113, 0
    %v2292 = vsel %vm1654, %v2114, 0
    %2294 = vmatprep.subr.bf16.mxu0 0
    %2295 = vmatpush1.bf16.msra.mxu0 %v2121
    %2296 = vmatprep.subr.bf16.mxu0 0
    %2297 = vmatpush1.bf16.msra.mxu0 %v2122
    %2298 = vmatprep.subr.bf16.mxu0 0
    %2299 = vmatpush1.bf16.msra.mxu0 0
    %2300 = vmatprep.subr.bf16.mxu0 0
    %2301 = vmatpush1.bf16.msra.mxu0 0
    %2302 = vmatprep.subr.bf16.mxu0 0
    %2303 = vmatpush1.bf16.msra.mxu0 0
    %2304 = vmatprep.subr.bf16.mxu0 0
    %2305 = vmatpush1.bf16.msra.mxu0 0
    %2306 = vmatprep.subr.bf16.mxu0 0
    %2307 = vmatpush1.bf16.msra.mxu0 0
    %2308 = vmatprep.subr.bf16.mxu0 0
    %2309 = vmatpush1.bf16.msra.mxu0 0
    %2310 = vmatprep.subr.bf16.mxu0 0
    %2311 = vmatpush1.bf16.msra.mxu0 0
    %2312 = vmatprep.subr.bf16.mxu0 0
    %2313 = vmatpush1.bf16.msra.mxu0 0
    %2314 = vmatprep.subr.bf16.mxu0 0
    %2315 = vmatpush1.bf16.msra.mxu0 0
    %2316 = vmatprep.subr.bf16.mxu0 0
    %2317 = vmatpush1.bf16.msra.mxu0 0
    %2318 = vmatprep.subr.bf16.mxu0 0
    %2319 = vmatpush1.bf16.msra.mxu0 0
    %2320 = vmatprep.subr.bf16.mxu0 0
    %2321 = vmatpush1.bf16.msra.mxu0 0
    %2322 = vmatprep.subr.bf16.mxu0 0
    %2323 = vmatpush1.bf16.msra.mxu0 0
    %2324 = vmatprep.subr.bf16.mxu0 0
    %2325 = vmatpush1.bf16.msra.mxu0 0
    %2326 = vmatprep.mubr.bf16.mxu0 0
    %2327 = vmatmul.mubr.bf16.gmra.mrb[0].mxu0 %v2289
    %v2328 = vpop.f32.mrb[0].mxu0
    %v2329 = vadd.f32 0.0, %v2328
    %v2330 = vpop.f32.mrb[0].mxu0
    %v2331 = vpop.f32.mrb[0].mxu0
    %v2332 = vadd.f32 0.0, %v2331
    %v2333 = vpop.f32.mrb[0].mxu0
    %2334 = vmatprep.mubr.bf16.mxu0 0
    %2335 = vmatmul.mubr.bf16.gmra.mrb[0].mxu0 %v2292
    %v2336 = vpop.f32.mrb[0].mxu0
    %v2337 = vadd.f32 0.0, %v2336
    %v2338 = vpop.f32.mrb[0].mxu0
    %v2339 = vpop.f32.mrb[0].mxu0
    %v2340 = vadd.f32 0.0, %v2339
    %v2341 = vpop.f32.mrb[0].mxu0
    %2342 = vdwg.mxu0
    %v2343 = vpack.c.bf16 %v2167, %v2164
    %v2344 = vpack.c.bf16 %v2175, %v2172
    %v2345 = vpack.c.bf16 %v2222, %v2219
    %v2346 = vpack.c.bf16 %v2230, %v2227
    %v2347 = vpack.c.bf16 %v2277, %v2274
    %v2348 = vpack.c.bf16 %v2285, %v2282
    %v2349 = vpack.c.bf16 %v2332, %v2329
    %v2350 = vpack.c.bf16 %v2340, %v2337
    %v2351 = vld [vmem:[%s7] sm:$0xf]
    %v2352 = vld [vmem:[%s7 + $0x4] sm:$0xf]
    %v2353 = vld [vmem:[%s7 + $0x8] sm:$0xf]
    %v2354 = vld [vmem:[%s7 + $0xc] sm:$0xf]
    %v2355 = vld [vmem:[%s7 + $0x10] sm:$0xf]
    %v2356 = vld [vmem:[%s7 + $0x14] sm:$0xf]
    %v2357 = vld [vmem:[%s7 + $0x18] sm:$0xf]
    %v2358 = vld [vmem:[%s7 + $0x1c] sm:$0xf]
    %v2359 = vld [vmem:[%s7 + $0x20] sm:$0xf]
    %v2360 = vld [vmem:[%s7 + $0x24] sm:$0xf]
    %v2361 = vld [vmem:[%s7 + $0x28] sm:$0xf]
    %v2362 = vld [vmem:[%s7 + $0x2c] sm:$0xf]
    %v2363 = vld [vmem:[%s7 + $0x30] sm:$0xf]
    %v2364 = vld [vmem:[%s7 + $0x34] sm:$0xf]
    %v2365 = vld [vmem:[%s7 + $0x38] sm:$0xf]
    %v2366 = vld [vmem:[%s7 + $0x3c] sm:$0xf]
    %v2371 = vunpack.c.l.b16 %v2351
    %v2372 = vunpack.c.l.b16 %v2352
    %v2373 = vunpack.c.l.b16 %v2353
    %v2374 = vunpack.c.l.b16 %v2354
    %v2375 = vpack.c.b16 %v2372, %v2371
    %v2376 = vpack.c.b16 %v2374, %v2373
    %v2380 = vsel %vm1654, %v2343, 0
    %v2383 = vsel %vm1654, %v2344, 0
    %2385 = vmatprep.subr.bf16.mxu0 0
    %2386 = vmatpush1.bf16.msra.mxu0 %v2375
    %2387 = vmatprep.subr.bf16.mxu0 0
    %2388 = vmatpush1.bf16.msra.mxu0 %v2376
    %2389 = vmatprep.subr.bf16.mxu0 0
    %2390 = vmatpush1.bf16.msra.mxu0 0
    %2391 = vmatprep.subr.bf16.mxu0 0
    %2392 = vmatpush1.bf16.msra.mxu0 0
    %2393 = vmatprep.subr.bf16.mxu0 0
    %2394 = vmatpush1.bf16.msra.mxu0 0
    %2395 = vmatprep.subr.bf16.mxu0 0
    %2396 = vmatpush1.bf16.msra.mxu0 0
    %2397 = vmatprep.subr.bf16.mxu0 0
    %2398 = vmatpush1.bf16.msra.mxu0 0
    %2399 = vmatprep.subr.bf16.mxu0 0
    %2400 = vmatpush1.bf16.msra.mxu0 0
    %2401 = vmatprep.subr.bf16.mxu0 0
    %2402 = vmatpush1.bf16.msra.mxu0 0
    %2403 = vmatprep.subr.bf16.mxu0 0
    %2404 = vmatpush1.bf16.msra.mxu0 0
    %2405 = vmatprep.subr.bf16.mxu0 0
    %2406 = vmatpush1.bf16.msra.mxu0 0
    %2407 = vmatprep.subr.bf16.mxu0 0
    %2408 = vmatpush1.bf16.msra.mxu0 0
    %2409 = vmatprep.subr.bf16.mxu0 0
    %2410 = vmatpush1.bf16.msra.mxu0 0
    %2411 = vmatprep.subr.bf16.mxu0 0
    %2412 = vmatpush1.bf16.msra.mxu0 0
    %2413 = vmatprep.subr.bf16.mxu0 0
    %2414 = vmatpush1.bf16.msra.mxu0 0
    %2415 = vmatprep.subr.bf16.mxu0 0
    %2416 = vmatpush1.bf16.msra.mxu0 0
    %2417 = vmatprep.mubr.bf16.mxu0 0
    %2418 = vmatmul.mubr.bf16.gmra.mrb[0].mxu0 %v2380
    %v2419 = vpop.f32.mrb[0].mxu0
    %v2420 = vadd.f32 0.0, %v2419
    %v2421 = vpop.f32.mrb[0].mxu0
    %v2422 = vpop.f32.mrb[0].mxu0
    %v2423 = vadd.f32 0.0, %v2422
    %v2424 = vpop.f32.mrb[0].mxu0
    %2425 = vmatprep.mubr.bf16.mxu0 0
    %2426 = vmatmul.mubr.bf16.gmra.mrb[0].mxu0 %v2383
    %v2427 = vpop.f32.mrb[0].mxu0
    %v2428 = vadd.f32 0.0, %v2427
    %v2429 = vpop.f32.mrb[0].mxu0
    %v2430 = vpop.f32.mrb[0].mxu0
    %v2431 = vadd.f32 0.0, %v2430
    %v2432 = vpop.f32.mrb[0].mxu0
    %2433 = vdwg.mxu0
    %v2438 = vunpack.c.l.b16 %v2355
    %v2439 = vunpack.c.l.b16 %v2356
    %v2440 = vunpack.c.l.b16 %v2357
    %v2441 = vunpack.c.l.b16 %v2358
    %v2442 = vpack.c.b16 %v2439, %v2438
    %v2443 = vpack.c.b16 %v2441, %v2440
    %v2447 = vsel %vm1654, %v2345, 0
    %v2450 = vsel %vm1654, %v2346, 0
    %2452 = vmatprep.subr.bf16.mxu0 0
    %2453 = vmatpush1.bf16.msra.mxu0 %v2442
    %2454 = vmatprep.subr.bf16.mxu0 0
    %2455 = vmatpush1.bf16.msra.mxu0 %v2443
    %2456 = vmatprep.subr.bf16.mxu0 0
    %2457 = vmatpush1.bf16.msra.mxu0 0
    %2458 = vmatprep.subr.bf16.mxu0 0
    %2459 = vmatpush1.bf16.msra.mxu0 0
    %2460 = vmatprep.subr.bf16.mxu0 0
    %2461 = vmatpush1.bf16.msra.mxu0 0
    %2462 = vmatprep.subr.bf16.mxu0 0
    %2463 = vmatpush1.bf16.msra.mxu0 0
    %2464 = vmatprep.subr.bf16.mxu0 0
    %2465 = vmatpush1.bf16.msra.mxu0 0
    %2466 = vmatprep.subr.bf16.mxu0 0
    %2467 = vmatpush1.bf16.msra.mxu0 0
    %2468 = vmatprep.subr.bf16.mxu0 0
    %2469 = vmatpush1.bf16.msra.mxu0 0
    %2470 = vmatprep.subr.bf16.mxu0 0
    %2471 = vmatpush1.bf16.msra.mxu0 0
    %2472 = vmatprep.subr.bf16.mxu0 0
    %2473 = vmatpush1.bf16.msra.mxu0 0
    %2474 = vmatprep.subr.bf16.mxu0 0
    %2475 = vmatpush1.bf16.msra.mxu0 0
    %2476 = vmatprep.subr.bf16.mxu0 0
    %2477 = vmatpush1.bf16.msra.mxu0 0
    %2478 = vmatprep.subr.bf16.mxu0 0
    %2479 = vmatpush1.bf16.msra.mxu0 0
    %2480 = vmatprep.subr.bf16.mxu0 0
    %2481 = vmatpush1.bf16.msra.mxu0 0
    %2482 = vmatprep.subr.bf16.mxu0 0
    %2483 = vmatpush1.bf16.msra.mxu0 0
    %2484 = vmatprep.mubr.bf16.mxu0 0
    %2485 = vmatmul.mubr.bf16.gmra.mrb[0].mxu0 %v2447
    %v2486 = vpop.f32.mrb[0].mxu0
    %v2487 = vadd.f32 0.0, %v2486
    %v2488 = vpop.f32.mrb[0].mxu0
    %v2489 = vpop.f32.mrb[0].mxu0
    %v2490 = vadd.f32 0.0, %v2489
    %v2491 = vpop.f32.mrb[0].mxu0
    %2492 = vmatprep.mubr.bf16.mxu0 0
    %2493 = vmatmul.mubr.bf16.gmra.mrb[0].mxu0 %v2450
    %v2494 = vpop.f32.mrb[0].mxu0
    %v2495 = vadd.f32 0.0, %v2494
    %v2496 = vpop.f32.mrb[0].mxu0
    %v2497 = vpop.f32.mrb[0].mxu0
    %v2498 = vadd.f32 0.0, %v2497
    %v2499 = vpop.f32.mrb[0].mxu0
    %2500 = vdwg.mxu0
    %v2505 = vunpack.c.l.b16 %v2359
    %v2506 = vunpack.c.l.b16 %v2360
    %v2507 = vunpack.c.l.b16 %v2361
    %v2508 = vunpack.c.l.b16 %v2362
    %v2509 = vpack.c.b16 %v2506, %v2505
    %v2510 = vpack.c.b16 %v2508, %v2507
    %v2514 = vsel %vm1654, %v2347, 0
    %v2517 = vsel %vm1654, %v2348, 0
    %2519 = vmatprep.subr.bf16.mxu0 0
    %2520 = vmatpush1.bf16.msra.mxu0 %v2509
    %2521 = vmatprep.subr.bf16.mxu0 0
    %2522 = vmatpush1.bf16.msra.mxu0 %v2510
    %2523 = vmatprep.subr.bf16.mxu0 0
    %2524 = vmatpush1.bf16.msra.mxu0 0
    %2525 = vmatprep.subr.bf16.mxu0 0
    %2526 = vmatpush1.bf16.msra.mxu0 0
    %2527 = vmatprep.subr.bf16.mxu0 0
    %2528 = vmatpush1.bf16.msra.mxu0 0
    %2529 = vmatprep.subr.bf16.mxu0 0
    %2530 = vmatpush1.bf16.msra.mxu0 0
    %2531 = vmatprep.subr.bf16.mxu0 0
    %2532 = vmatpush1.bf16.msra.mxu0 0
    %2533 = vmatprep.subr.bf16.mxu0 0
    %2534 = vmatpush1.bf16.msra.mxu0 0
    %2535 = vmatprep.subr.bf16.mxu0 0
    %2536 = vmatpush1.bf16.msra.mxu0 0
    %2537 = vmatprep.subr.bf16.mxu0 0
    %2538 = vmatpush1.bf16.msra.mxu0 0
    %2539 = vmatprep.subr.bf16.mxu0 0
    %2540 = vmatpush1.bf16.msra.mxu0 0
    %2541 = vmatprep.subr.bf16.mxu0 0
    %2542 = vmatpush1.bf16.msra.mxu0 0
    %2543 = vmatprep.subr.bf16.mxu0 0
    %2544 = vmatpush1.bf16.msra.mxu0 0
    %2545 = vmatprep.subr.bf16.mxu0 0
    %2546 = vmatpush1.bf16.msra.mxu0 0
    %2547 = vmatprep.subr.bf16.mxu0 0
    %2548 = vmatpush1.bf16.msra.mxu0 0
    %2549 = vmatprep.subr.bf16.mxu0 0
    %2550 = vmatpush1.bf16.msra.mxu0 0
    %2551 = vmatprep.mubr.bf16.mxu0 0
    %2552 = vmatmul.mubr.bf16.gmra.mrb[0].mxu0 %v2514
    %v2553 = vpop.f32.mrb[0].mxu0
    %v2554 = vadd.f32 0.0, %v2553
    %v2555 = vpop.f32.mrb[0].mxu0
    %v2556 = vpop.f32.mrb[0].mxu0
    %v2557 = vadd.f32 0.0, %v2556
    %v2558 = vpop.f32.mrb[0].mxu0
    %2559 = vmatprep.mubr.bf16.mxu0 0
    %2560 = vmatmul.mubr.bf16.gmra.mrb[0].mxu0 %v2517
    %v2561 = vpop.f32.mrb[0].mxu0
    %v2562 = vadd.f32 0.0, %v2561
    %v2563 = vpop.f32.mrb[0].mxu0
    %v2564 = vpop.f32.mrb[0].mxu0
    %v2565 = vadd.f32 0.0, %v2564
    %v2566 = vpop.f32.mrb[0].mxu0
    %2567 = vdwg.mxu0
    %v2572 = vunpack.c.l.b16 %v2363
    %v2573 = vunpack.c.l.b16 %v2364
    %v2574 = vunpack.c.l.b16 %v2365
    %v2575 = vunpack.c.l.b16 %v2366
    %v2576 = vpack.c.b16 %v2573, %v2572
    %v2577 = vpack.c.b16 %v2575, %v2574
    %v2581 = vsel %vm1654, %v2349, 0
    %v2584 = vsel %vm1654, %v2350, 0
    %2586 = vmatprep.subr.bf16.mxu0 0
    %2587 = vmatpush1.bf16.msra.mxu0 %v2576
    %2588 = vmatprep.subr.bf16.mxu0 0
    %2589 = vmatpush1.bf16.msra.mxu0 %v2577
    %2590 = vmatprep.subr.bf16.mxu0 0
    %2591 = vmatpush1.bf16.msra.mxu0 0
    %2592 = vmatprep.subr.bf16.mxu0 0
    %2593 = vmatpush1.bf16.msra.mxu0 0
    %2594 = vmatprep.subr.bf16.mxu0 0
    %2595 = vmatpush1.bf16.msra.mxu0 0
    %2596 = vmatprep.subr.bf16.mxu0 0
    %2597 = vmatpush1.bf16.msra.mxu0 0
    %2598 = vmatprep.subr.bf16.mxu0 0
    %2599 = vmatpush1.bf16.msra.mxu0 0
    %2600 = vmatprep.subr.bf16.mxu0 0
    %2601 = vmatpush1.bf16.msra.mxu0 0
    %2602 = vmatprep.subr.bf16.mxu0 0
    %2603 = vmatpush1.bf16.msra.mxu0 0
    %2604 = vmatprep.subr.bf16.mxu0 0
    %2605 = vmatpush1.bf16.msra.mxu0 0
    %2606 = vmatprep.subr.bf16.mxu0 0
    %2607 = vmatpush1.bf16.msra.mxu0 0
    %2608 = vmatprep.subr.bf16.mxu0 0
    %2609 = vmatpush1.bf16.msra.mxu0 0
    %2610 = vmatprep.subr.bf16.mxu0 0
    %2611 = vmatpush1.bf16.msra.mxu0 0
    %2612 = vmatprep.subr.bf16.mxu0 0
    %2613 = vmatpush1.bf16.msra.mxu0 0
    %2614 = vmatprep.subr.bf16.mxu0 0
    %2615 = vmatpush1.bf16.msra.mxu0 0
    %2616 = vmatprep.subr.bf16.mxu0 0
    %2617 = vmatpush1.bf16.msra.mxu0 0
    %2618 = vmatprep.mubr.bf16.mxu0 0
    %2619 = vmatmul.mubr.bf16.gmra.mrb[0].mxu0 %v2581
    %v2620 = vpop.f32.mrb[0].mxu0
    %v2621 = vadd.f32 0.0, %v2620
    %v2622 = vpop.f32.mrb[0].mxu0
    %v2623 = vpop.f32.mrb[0].mxu0
    %v2624 = vadd.f32 0.0, %v2623
    %v2625 = vpop.f32.mrb[0].mxu0
    %2626 = vmatprep.mubr.bf16.mxu0 0
    %2627 = vmatmul.mubr.bf16.gmra.mrb[0].mxu0 %v2584
    %v2628 = vpop.f32.mrb[0].mxu0
    %v2629 = vadd.f32 0.0, %v2628
    %v2630 = vpop.f32.mrb[0].mxu0
    %v2631 = vpop.f32.mrb[0].mxu0
    %v2632 = vadd.f32 0.0, %v2631
    %v2633 = vpop.f32.mrb[0].mxu0
    %2634 = vdwg.mxu0
    %v2635 = vadd.f32 %v2420, %v2487
    %v2636 = vadd.f32 %v2635, %v2554
    %v2637 = vadd.f32 %v2636, %v2621
    %v2638 = vadd.f32 %v2423, %v2490
    %v2639 = vadd.f32 %v2638, %v2557
    %v2640 = vadd.f32 %v2639, %v2624
    %v2641 = vadd.f32 %v2428, %v2495
    %v2642 = vadd.f32 %v2641, %v2562
    %v2643 = vadd.f32 %v2642, %v2629
    %v2644 = vadd.f32 %v2431, %v2498
    %v2645 = vadd.f32 %v2644, %v2565
    %v2646 = vadd.f32 %v2645, %v2632
    %v2647 = vadd.f32 %v199, %v2637
    %v2648 = vadd.f32 %v202, %v2640
    %v2649 = vadd.f32 %v207, %v2643
    %v2650 = vadd.f32 %v210, %v2646
    %v2651 = vld [vmem:[%s8] sm:$0x1]
    %v2652 = vlaneseq
    %v2653 = vshrl.u32 %v2652, 7
    %v2654 = vsub.s32 0, %v2653
    %v2655 = vrot.slane %v2651, %v2654
    %v2656 = vadd.f32 %v2647, %v2655
    %v2657 = vadd.f32 %v2648, %v2655
    %v2658 = vadd.f32 %v2649, %v2655
    %v2659 = vadd.f32 %v2650, %v2655
    %v2660 = vld [vmem:[%s9] sm:$0x1]
    %v2661 = vld [vmem:[%s10] sm:$0x1]
    %2662 = vadd.xlane.f32.xlu0 %v2656
    %v2663 = vpop.xlane.xlu0 %2662
    %2664 = vadd.xlane.f32.xlu0 %v2657
    %v2665 = vpop.xlane.xlu0 %2664
    %2666 = vadd.xlane.f32.xlu0 %v2658
    %v2667 = vpop.xlane.xlu0 %2666
    %2668 = vadd.xlane.f32.xlu0 %v2659
    %v2669 = vpop.xlane.xlu0 %2668
    %v2670 = vmul.f32 %v2663, %v227
    %v2671 = vmul.f32 %v2665, %v227
    %v2672 = vmul.f32 %v2667, %v227
    %v2673 = vmul.f32 %v2669, %v227
    %v2674 = vsub.f32 %v2656, %v2670
    %v2675 = vsub.f32 %v2657, %v2671
    %v2676 = vsub.f32 %v2658, %v2672
    %v2677 = vsub.f32 %v2659, %v2673
    %v2678 = vmul.f32 %v2674, %v2674
    %v2679 = vmul.f32 %v2675, %v2675
    %v2680 = vmul.f32 %v2676, %v2676
    %v2681 = vmul.f32 %v2677, %v2677
    %2682 = vadd.xlane.f32.xlu0 %v2678
    %v2683 = vpop.xlane.xlu0 %2682
    %2684 = vadd.xlane.f32.xlu0 %v2679
    %v2685 = vpop.xlane.xlu0 %2684
    %2686 = vadd.xlane.f32.xlu0 %v2680
    %v2687 = vpop.xlane.xlu0 %2686
    %2688 = vadd.xlane.f32.xlu0 %v2681
    %v2689 = vpop.xlane.xlu0 %2688
    %v2690 = vmul.f32 %v2683, %v227
    %v2691 = vmul.f32 %v2685, %v227
    %v2692 = vmul.f32 %v2687, %v227
    %v2693 = vmul.f32 %v2689, %v227
    %v2694 = vadd.f32 %v2690, 1e-05
    %v2695 = vadd.f32 %v2691, 1e-05
    %v2696 = vadd.f32 %v2692, 1e-05
    %v2697 = vadd.f32 %v2693, 1e-05
    %v2698 = vrsqrt.pop %v2694
    %v2699 = vrsqrt.pop %v2695
    %v2700 = vrsqrt.pop %v2696
    %v2701 = vrsqrt.pop %v2697
    %v2702 = vmul.f32 %v2674, %v2698
    %v2703 = vmul.f32 %v2675, %v2699
    %v2704 = vmul.f32 %v2676, %v2700
    %v2705 = vmul.f32 %v2677, %v2701
    %v2706 = vlaneseq
    %v2707 = vshrl.u32 %v2706, 7
    %v2708 = vsub.s32 0, %v2707
    %v2709 = vrot.slane %v2660, %v2708
    %v2710 = vmul.f32 %v2702, %v2709
    %v2711 = vmul.f32 %v2703, %v2709
    %v2712 = vmul.f32 %v2704, %v2709
    %v2713 = vmul.f32 %v2705, %v2709
    %v2714 = vlaneseq
    %v2715 = vshrl.u32 %v2714, 7
    %v2716 = vsub.s32 0, %v2715
    %v2717 = vrot.slane %v2661, %v2716
    %v2718 = vadd.f32 %v2710, %v2717
    %v2719 = vadd.f32 %v2711, %v2717
    %v2720 = vadd.f32 %v2712, %v2717
    %v2721 = vadd.f32 %v2713, %v2717
    %v2722 = vpack.c.bf16 %v2719, %v2718
    %v2723 = vpack.c.bf16 %v2721, %v2720
    %v2724 = vld [vmem:[%s11] sm:$0xff]
    %v2725 = vld [vmem:[%s11 + $0x8] sm:$0xff]
    %v2726 = vld [vmem:[%s11 + $0x10] sm:$0xff]
    %v2727 = vld [vmem:[%s11 + $0x18] sm:$0xff]
    %v2728 = vld [vmem:[%s11 + $0x20] sm:$0xff]
    %v2729 = vld [vmem:[%s11 + $0x28] sm:$0xff]
    %v2730 = vld [vmem:[%s11 + $0x30] sm:$0xff]
    %v2731 = vld [vmem:[%s11 + $0x38] sm:$0xff]
    %v2732 = vld [vmem:[%s11 + $0x40] sm:$0xff]
    %v2733 = vld [vmem:[%s11 + $0x48] sm:$0xff]
    %v2734 = vld [vmem:[%s11 + $0x50] sm:$0xff]
    %v2735 = vld [vmem:[%s11 + $0x58] sm:$0xff]
    %v2736 = vld [vmem:[%s11 + $0x60] sm:$0xff]
    %v2737 = vld [vmem:[%s11 + $0x68] sm:$0xff]
    %v2738 = vld [vmem:[%s11 + $0x70] sm:$0xff]
    %v2739 = vld [vmem:[%s11 + $0x78] sm:$0xff]
    %v2740 = vld [vmem:[%s11 + $0x80] sm:$0xff]
    %v2741 = vld [vmem:[%s11 + $0x88] sm:$0xff]
    %v2742 = vld [vmem:[%s11 + $0x90] sm:$0xff]
    %v2743 = vld [vmem:[%s11 + $0x98] sm:$0xff]
    %v2744 = vld [vmem:[%s11 + $0xa0] sm:$0xff]
    %v2745 = vld [vmem:[%s11 + $0xa8] sm:$0xff]
    %v2746 = vld [vmem:[%s11 + $0xb0] sm:$0xff]
    %v2747 = vld [vmem:[%s11 + $0xb8] sm:$0xff]
    %v2748 = vld [vmem:[%s11 + $0xc0] sm:$0xff]
    %v2749 = vld [vmem:[%s11 + $0xc8] sm:$0xff]
    %v2750 = vld [vmem:[%s11 + $0xd0] sm:$0xff]
    %v2751 = vld [vmem:[%s11 + $0xd8] sm:$0xff]
    %v2752 = vld [vmem:[%s11 + $0xe0] sm:$0xff]
    %v2753 = vld [vmem:[%s11 + $0xe8] sm:$0xff]
    %v2754 = vld [vmem:[%s11 + $0xf0] sm:$0xff]
    %v2755 = vld [vmem:[%s11 + $0xf8] sm:$0xff]
    %v2756 = vld [vmem:[%s12] ss:$2 sm:$0xf]
    %v2758 = vlaneseq
    %v2759 = vshrl.u32 %v2758, 7
    %v2760 = vsub.s32 0, %v2759
    %v2761 = vrot.slane %v2756, %v2760
    %v2762 = vlaneseq
    %v2763 = vshrl.u32 %v2762, 7
    %v2764 = vsub.s32 1, %v2763
    %v2765 = vrot.slane %v2756, %v2764
    %v2766 = vlaneseq
    %v2767 = vshrl.u32 %v2766, 7
    %v2768 = vsub.s32 2, %v2767
    %v2769 = vrot.slane %v2756, %v2768
    %v2770 = vlaneseq
    %v2771 = vshrl.u32 %v2770, 7
    %v2772 = vsub.s32 3, %v2771
    %v2773 = vrot.slane %v2756, %v2772
    %v2810 = vunpack.c.l.b16 %v2724
    %v2811 = vunpack.c.h.b16 %v2724
    %v2812 = vunpack.c.l.b16 %v2725
    %v2813 = vunpack.c.h.b16 %v2725
    %v2814 = vunpack.c.l.b16 %v2726
    %v2815 = vunpack.c.h.b16 %v2726
    %v2816 = vunpack.c.l.b16 %v2727
    %v2817 = vunpack.c.h.b16 %v2727
    %v2818 = vunpack.c.l.b16 %v2728
    %v2819 = vunpack.c.h.b16 %v2728
    %v2820 = vunpack.c.l.b16 %v2729
    %v2821 = vunpack.c.h.b16 %v2729
    %v2822 = vunpack.c.l.b16 %v2730
    %v2823 = vunpack.c.h.b16 %v2730
    %v2824 = vunpack.c.l.b16 %v2731
    %v2825 = vunpack.c.h.b16 %v2731
    %v2826 = vunpack.c.l.b16 %v2732
    %v2827 = vunpack.c.h.b16 %v2732
    %v2828 = vunpack.c.l.b16 %v2733
    %v2829 = vunpack.c.h.b16 %v2733
    %v2830 = vunpack.c.l.b16 %v2734
    %v2831 = vunpack.c.h.b16 %v2734
    %v2832 = vunpack.c.l.b16 %v2735
    %v2833 = vunpack.c.h.b16 %v2735
    %v2834 = vunpack.c.l.b16 %v2736
    %v2835 = vunpack.c.h.b16 %v2736
    %v2836 = vunpack.c.l.b16 %v2737
    %v2837 = vunpack.c.h.b16 %v2737
    %v2838 = vunpack.c.l.b16 %v2738
    %v2839 = vunpack.c.h.b16 %v2738
    %v2840 = vunpack.c.l.b16 %v2739
    %v2841 = vunpack.c.h.b16 %v2739
    %v2842 = vunpack.c.l.b16 %v2740
    %v2843 = vunpack.c.h.b16 %v2740
    %v2844 = vunpack.c.l.b16 %v2741
    %v2845 = vunpack.c.h.b16 %v2741
    %v2846 = vunpack.c.l.b16 %v2742
    %v2847 = vunpack.c.h.b16 %v2742
    %v2848 = vunpack.c.l.b16 %v2743
    %v2849 = vunpack.c.h.b16 %v2743
    %v2850 = vunpack.c.l.b16 %v2744
    %v2851 = vunpack.c.h.b16 %v2744
    %v2852 = vunpack.c.l.b16 %v2745
    %v2853 = vunpack.c.h.b16 %v2745
    %v2854 = vunpack.c.l.b16 %v2746
    %v2855 = vunpack.c.h.b16 %v2746
    %v2856 = vunpack.c.l.b16 %v2747
    %v2857 = vunpack.c.h.b16 %v2747
    %v2858 = vunpack.c.l.b16 %v2748
    %v2859 = vunpack.c.h.b16 %v2748
    %v2860 = vunpack.c.l.b16 %v2749
    %v2861 = vunpack.c.h.b16 %v2749
    %v2862 = vunpack.c.l.b16 %v2750
    %v2863 = vunpack.c.h.b16 %v2750
    %v2864 = vunpack.c.l.b16 %v2751
    %v2865 = vunpack.c.h.b16 %v2751
    %v2866 = vunpack.c.l.b16 %v2752
    %v2867 = vunpack.c.h.b16 %v2752
    %v2868 = vunpack.c.l.b16 %v2753
    %v2869 = vunpack.c.h.b16 %v2753
    %v2870 = vunpack.c.l.b16 %v2754
    %v2871 = vunpack.c.h.b16 %v2754
    %v2872 = vunpack.c.l.b16 %v2755
    %v2873 = vunpack.c.h.b16 %v2755
    %v2874 = vpack.c.b16 %v2814, %v2810
    %v2875 = vpack.c.b16 %v2815, %v2811
    %v2876 = vpack.c.b16 %v2816, %v2812
    %v2877 = vpack.c.b16 %v2817, %v2813
    %v2878 = vpack.c.b16 %v2822, %v2818
    %v2879 = vpack.c.b16 %v2823, %v2819
    %v2880 = vpack.c.b16 %v2824, %v2820
    %v2881 = vpack.c.b16 %v2825, %v2821
    %v2882 = vpack.c.b16 %v2830, %v2826
    %v2883 = vpack.c.b16 %v2831, %v2827
    %v2884 = vpack.c.b16 %v2832, %v2828
    %v2885 = vpack.c.b16 %v2833, %v2829
    %v2886 = vpack.c.b16 %v2838, %v2834
    %v2887 = vpack.c.b16 %v2839, %v2835
    %v2888 = vpack.c.b16 %v2840, %v2836
    %v2889 = vpack.c.b16 %v2841, %v2837
    %v2890 = vpack.c.b16 %v2846, %v2842
    %v2891 = vpack.c.b16 %v2847, %v2843
    %v2892 = vpack.c.b16 %v2848, %v2844
    %v2893 = vpack.c.b16 %v2849, %v2845
    %v2894 = vpack.c.b16 %v2854, %v2850
    %v2895 = vpack.c.b16 %v2855, %v2851
    %v2896 = vpack.c.b16 %v2856, %v2852
    %v2897 = vpack.c.b16 %v2857, %v2853
    %v2898 = vpack.c.b16 %v2862, %v2858
    %v2899 = vpack.c.b16 %v2863, %v2859
    %v2900 = vpack.c.b16 %v2864, %v2860
    %v2901 = vpack.c.b16 %v2865, %v2861
    %v2902 = vpack.c.b16 %v2870, %v2866
    %v2903 = vpack.c.b16 %v2871, %v2867
    %v2904 = vpack.c.b16 %v2872, %v2868
    %v2905 = vpack.c.b16 %v2873, %v2869
    %2938 = vmatprep.subr.bf16.mxu0 %v2875
    %2939 = vmatpush1.bf16.msra.mxu0 %v2874
    %2940 = vmatprep.subr.bf16.mxu0 %v2879
    %2941 = vmatpush1.bf16.msra.mxu0 %v2878
    %2942 = vmatprep.subr.bf16.mxu0 %v2883
    %2943 = vmatpush1.bf16.msra.mxu0 %v2882
    %2944 = vmatprep.subr.bf16.mxu0 %v2887
    %2945 = vmatpush1.bf16.msra.mxu0 %v2886
    %2946 = vmatprep.subr.bf16.mxu0 %v2891
    %2947 = vmatpush1.bf16.msra.mxu0 %v2890
    %2948 = vmatprep.subr.bf16.mxu0 %v2895
    %2949 = vmatpush1.bf16.msra.mxu0 %v2894
    %2950 = vmatprep.subr.bf16.mxu0 %v2899
    %2951 = vmatpush1.bf16.msra.mxu0 %v2898
    %2952 = vmatprep.subr.bf16.mxu0 %v2903
    %2953 = vmatpush1.bf16.msra.mxu0 %v2902
    %2954 = vmatprep.subr.bf16.mxu0 0
    %2955 = vmatpush1.bf16.msra.mxu0 0
    %2956 = vmatprep.subr.bf16.mxu0 0
    %2957 = vmatpush1.bf16.msra.mxu0 0
    %2958 = vmatprep.subr.bf16.mxu0 0
    %2959 = vmatpush1.bf16.msra.mxu0 0
    %2960 = vmatprep.subr.bf16.mxu0 0
    %2961 = vmatpush1.bf16.msra.mxu0 0
    %2962 = vmatprep.subr.bf16.mxu0 0
    %2963 = vmatpush1.bf16.msra.mxu0 0
    %2964 = vmatprep.subr.bf16.mxu0 0
    %2965 = vmatpush1.bf16.msra.mxu0 0
    %2966 = vmatprep.subr.bf16.mxu0 0
    %2967 = vmatpush1.bf16.msra.mxu0 0
    %2968 = vmatprep.subr.bf16.mxu0 0
    %2969 = vmatpush1.bf16.msra.mxu0 0
    %2970 = vmatprep.mubr.bf16.mxu0 0
    %2971 = vmatmul.mubr.bf16.gmra.mrb[0].mxu0 %v2722
    %v2972 = vpop.f32.mrb[0].mxu0
    %v2973 = vadd.f32 %v2761, %v2972
    %v2974 = vpop.f32.mrb[0].mxu0
    %v2975 = vadd.f32 %v2765, %v2974
    %v2976 = vpop.f32.mrb[0].mxu0
    %v2977 = vadd.f32 %v2761, %v2976
    %v2978 = vpop.f32.mrb[0].mxu0
    %v2979 = vadd.f32 %v2765, %v2978
    %2980 = vmatprep.mubr.bf16.mxu0 0
    %2981 = vmatmul.mubr.bf16.gmra.mrb[0].mxu0 %v2723
    %v2982 = vpop.f32.mrb[0].mxu0
    %v2983 = vadd.f32 %v2761, %v2982
    %v2984 = vpop.f32.mrb[0].mxu0
    %v2985 = vadd.f32 %v2765, %v2984
    %v2986 = vpop.f32.mrb[0].mxu0
    %v2987 = vadd.f32 %v2761, %v2986
    %v2988 = vpop.f32.mrb[0].mxu0
    %v2989 = vadd.f32 %v2765, %v2988
    %2990 = vdwg.mxu0
    %2991 = vmatprep.subr.bf16.mxu0 %v2877
    %2992 = vmatpush1.bf16.msra.mxu0 %v2876
    %2993 = vmatprep.subr.bf16.mxu0 %v2881
    %2994 = vmatpush1.bf16.msra.mxu0 %v2880
    %2995 = vmatprep.subr.bf16.mxu0 %v2885
    %2996 = vmatpush1.bf16.msra.mxu0 %v2884
    %2997 = vmatprep.subr.bf16.mxu0 %v2889
    %2998 = vmatpush1.bf16.msra.mxu0 %v2888
    %2999 = vmatprep.subr.bf16.mxu0 %v2893
    %3000 = vmatpush1.bf16.msra.mxu0 %v2892
    %3001 = vmatprep.subr.bf16.mxu0 %v2897
    %3002 = vmatpush1.bf16.msra.mxu0 %v2896
    %3003 = vmatprep.subr.bf16.mxu0 %v2901
    %3004 = vmatpush1.bf16.msra.mxu0 %v2900
    %3005 = vmatprep.subr.bf16.mxu0 %v2905
    %3006 = vmatpush1.bf16.msra.mxu0 %v2904
    %3007 = vmatprep.subr.bf16.mxu0 0
    %3008 = vmatpush1.bf16.msra.mxu0 0
    %3009 = vmatprep.subr.bf16.mxu0 0
    %3010 = vmatpush1.bf16.msra.mxu0 0
    %3011 = vmatprep.subr.bf16.mxu0 0
    %3012 = vmatpush1.bf16.msra.mxu0 0
    %3013 = vmatprep.subr.bf16.mxu0 0
    %3014 = vmatpush1.bf16.msra.mxu0 0
    %3015 = vmatprep.subr.bf16.mxu0 0
    %3016 = vmatpush1.bf16.msra.mxu0 0
    %3017 = vmatprep.subr.bf16.mxu0 0
    %3018 = vmatpush1.bf16.msra.mxu0 0
    %3019 = vmatprep.subr.bf16.mxu0 0
    %3020 = vmatpush1.bf16.msra.mxu0 0
    %3021 = vmatprep.subr.bf16.mxu0 0
    %3022 = vmatpush1.bf16.msra.mxu0 0
    %3023 = vmatprep.mubr.bf16.mxu0 0
    %3024 = vmatmul.mubr.bf16.gmra.mrb[0].mxu0 %v2722
    %v3025 = vpop.f32.mrb[0].mxu0
    %v3026 = vadd.f32 %v2769, %v3025
    %v3027 = vpop.f32.mrb[0].mxu0
    %v3028 = vadd.f32 %v2773, %v3027
    %v3029 = vpop.f32.mrb[0].mxu0
    %v3030 = vadd.f32 %v2769, %v3029
    %v3031 = vpop.f32.mrb[0].mxu0
    %v3032 = vadd.f32 %v2773, %v3031
    %3033 = vmatprep.mubr.bf16.mxu0 0
    %3034 = vmatmul.mubr.bf16.gmra.mrb[0].mxu0 %v2723
    %v3035 = vpop.f32.mrb[0].mxu0
    %v3036 = vadd.f32 %v2769, %v3035
    %v3037 = vpop.f32.mrb[0].mxu0
    %v3038 = vadd.f32 %v2773, %v3037
    %v3039 = vpop.f32.mrb[0].mxu0
    %v3040 = vadd.f32 %v2769, %v3039
    %v3041 = vpop.f32.mrb[0].mxu0
    %v3042 = vadd.f32 %v2773, %v3041
    %3043 = vdwg.mxu0
    %v3044 = vmax.f32 %v2973, 0.0
    %v3045 = vmax.f32 %v2975, 0.0
    %v3046 = vmax.f32 %v3026, 0.0
    %v3047 = vmax.f32 %v3028, 0.0
    %v3048 = vmax.f32 %v2977, 0.0
    %v3049 = vmax.f32 %v2979, 0.0
    %v3050 = vmax.f32 %v3030, 0.0
    %v3051 = vmax.f32 %v3032, 0.0
    %v3052 = vmax.f32 %v2983, 0.0
    %v3053 = vmax.f32 %v2985, 0.0
    %v3054 = vmax.f32 %v3036, 0.0
    %v3055 = vmax.f32 %v3038, 0.0
    %v3056 = vmax.f32 %v2987, 0.0
    %v3057 = vmax.f32 %v2989, 0.0
    %v3058 = vmax.f32 %v3040, 0.0
    %v3059 = vmax.f32 %v3042, 0.0
    %v3060 = vpack.c.bf16 %v3048, %v3044
    %v3061 = vpack.c.bf16 %v3049, %v3045
    %v3062 = vpack.c.bf16 %v3050, %v3046
    %v3063 = vpack.c.bf16 %v3051, %v3047
    %v3064 = vpack.c.bf16 %v3056, %v3052
    %v3065 = vpack.c.bf16 %v3057, %v3053
    %v3066 = vpack.c.bf16 %v3058, %v3054
    %v3067 = vpack.c.bf16 %v3059, %v3055
    %v3068 = vld [vmem:[%s13] sm:$0xf]
    %v3069 = vld [vmem:[%s13 + $0x4] sm:$0xf]
    %v3070 = vld [vmem:[%s13 + $0x8] sm:$0xf]
    %v3071 = vld [vmem:[%s13 + $0xc] sm:$0xf]
    %v3072 = vld [vmem:[%s13 + $0x10] sm:$0xf]
    %v3073 = vld [vmem:[%s13 + $0x14] sm:$0xf]
    %v3074 = vld [vmem:[%s13 + $0x18] sm:$0xf]
    %v3075 = vld [vmem:[%s13 + $0x1c] sm:$0xf]
    %v3076 = vld [vmem:[%s13 + $0x20] sm:$0xf]
    %v3077 = vld [vmem:[%s13 + $0x24] sm:$0xf]
    %v3078 = vld [vmem:[%s13 + $0x28] sm:$0xf]
    %v3079 = vld [vmem:[%s13 + $0x2c] sm:$0xf]
    %v3080 = vld [vmem:[%s13 + $0x30] sm:$0xf]
    %v3081 = vld [vmem:[%s13 + $0x34] sm:$0xf]
    %v3082 = vld [vmem:[%s13 + $0x38] sm:$0xf]
    %v3083 = vld [vmem:[%s13 + $0x3c] sm:$0xf]
    %v3084 = vld [vmem:[%s13 + $0x40] sm:$0xf]
    %v3085 = vld [vmem:[%s13 + $0x44] sm:$0xf]
    %v3086 = vld [vmem:[%s13 + $0x48] sm:$0xf]
    %v3087 = vld [vmem:[%s13 + $0x4c] sm:$0xf]
    %v3088 = vld [vmem:[%s13 + $0x50] sm:$0xf]
    %v3089 = vld [vmem:[%s13 + $0x54] sm:$0xf]
    %v3090 = vld [vmem:[%s13 + $0x58] sm:$0xf]
    %v3091 = vld [vmem:[%s13 + $0x5c] sm:$0xf]
    %v3092 = vld [vmem:[%s13 + $0x60] sm:$0xf]
    %v3093 = vld [vmem:[%s13 + $0x64] sm:$0xf]
    %v3094 = vld [vmem:[%s13 + $0x68] sm:$0xf]
    %v3095 = vld [vmem:[%s13 + $0x6c] sm:$0xf]
    %v3096 = vld [vmem:[%s13 + $0x70] sm:$0xf]
    %v3097 = vld [vmem:[%s13 + $0x74] sm:$0xf]
    %v3098 = vld [vmem:[%s13 + $0x78] sm:$0xf]
    %v3099 = vld [vmem:[%s13 + $0x7c] sm:$0xf]
    %v3100 = vld [vmem:[%s13 + $0x80] sm:$0xf]
    %v3101 = vld [vmem:[%s13 + $0x84] sm:$0xf]
    %v3102 = vld [vmem:[%s13 + $0x88] sm:$0xf]
    %v3103 = vld [vmem:[%s13 + $0x8c] sm:$0xf]
    %v3104 = vld [vmem:[%s13 + $0x90] sm:$0xf]
    %v3105 = vld [vmem:[%s13 + $0x94] sm:$0xf]
    %v3106 = vld [vmem:[%s13 + $0x98] sm:$0xf]
    %v3107 = vld [vmem:[%s13 + $0x9c] sm:$0xf]
    %v3108 = vld [vmem:[%s13 + $0xa0] sm:$0xf]
    %v3109 = vld [vmem:[%s13 + $0xa4] sm:$0xf]
    %v3110 = vld [vmem:[%s13 + $0xa8] sm:$0xf]
    %v3111 = vld [vmem:[%s13 + $0xac] sm:$0xf]
    %v3112 = vld [vmem:[%s13 + $0xb0] sm:$0xf]
    %v3113 = vld [vmem:[%s13 + $0xb4] sm:$0xf]
    %v3114 = vld [vmem:[%s13 + $0xb8] sm:$0xf]
    %v3115 = vld [vmem:[%s13 + $0xbc] sm:$0xf]
    %v3116 = vld [vmem:[%s13 + $0xc0] sm:$0xf]
    %v3117 = vld [vmem:[%s13 + $0xc4] sm:$0xf]
    %v3118 = vld [vmem:[%s13 + $0xc8] sm:$0xf]
    %v3119 = vld [vmem:[%s13 + $0xcc] sm:$0xf]
    %v3120 = vld [vmem:[%s13 + $0xd0] sm:$0xf]
    %v3121 = vld [vmem:[%s13 + $0xd4] sm:$0xf]
    %v3122 = vld [vmem:[%s13 + $0xd8] sm:$0xf]
    %v3123 = vld [vmem:[%s13 + $0xdc] sm:$0xf]
    %v3124 = vld [vmem:[%s13 + $0xe0] sm:$0xf]
    %v3125 = vld [vmem:[%s13 + $0xe4] sm:$0xf]
    %v3126 = vld [vmem:[%s13 + $0xe8] sm:$0xf]
    %v3127 = vld [vmem:[%s13 + $0xec] sm:$0xf]
    %v3128 = vld [vmem:[%s13 + $0xf0] sm:$0xf]
    %v3129 = vld [vmem:[%s13 + $0xf4] sm:$0xf]
    %v3130 = vld [vmem:[%s13 + $0xf8] sm:$0xf]
    %v3131 = vld [vmem:[%s13 + $0xfc] sm:$0xf]
    %v3132 = vld [vmem:[%s14] sm:$0x1]
    %v3133 = vlaneseq
    %v3134 = vshrl.u32 %v3133, 7
    %v3135 = vsub.s32 0, %v3134
    %v3136 = vrot.slane %v3132, %v3135
    %v3201 = vunpack.c.l.b16 %v3068
    %v3202 = vunpack.c.l.b16 %v3069
    %v3203 = vunpack.c.l.b16 %v3070
    %v3204 = vunpack.c.l.b16 %v3071
    %v3205 = vunpack.c.l.b16 %v3072
    %v3206 = vunpack.c.l.b16 %v3073
    %v3207 = vunpack.c.l.b16 %v3074
    %v3208 = vunpack.c.l.b16 %v3075
    %v3209 = vunpack.c.l.b16 %v3076
    %v3210 = vunpack.c.l.b16 %v3077
    %v3211 = vunpack.c.l.b16 %v3078
    %v3212 = vunpack.c.l.b16 %v3079
    %v3213 = vunpack.c.l.b16 %v3080
    %v3214 = vunpack.c.l.b16 %v3081
    %v3215 = vunpack.c.l.b16 %v3082
    %v3216 = vunpack.c.l.b16 %v3083
    %v3217 = vunpack.c.l.b16 %v3084
    %v3218 = vunpack.c.l.b16 %v3085
    %v3219 = vunpack.c.l.b16 %v3086
    %v3220 = vunpack.c.l.b16 %v3087
    %v3221 = vunpack.c.l.b16 %v3088
    %v3222 = vunpack.c.l.b16 %v3089
    %v3223 = vunpack.c.l.b16 %v3090
    %v3224 = vunpack.c.l.b16 %v3091
    %v3225 = vunpack.c.l.b16 %v3092
    %v3226 = vunpack.c.l.b16 %v3093
    %v3227 = vunpack.c.l.b16 %v3094
    %v3228 = vunpack.c.l.b16 %v3095
    %v3229 = vunpack.c.l.b16 %v3096
    %v3230 = vunpack.c.l.b16 %v3097
    %v3231 = vunpack.c.l.b16 %v3098
    %v3232 = vunpack.c.l.b16 %v3099
    %v3233 = vunpack.c.l.b16 %v3100
    %v3234 = vunpack.c.l.b16 %v3101
    %v3235 = vunpack.c.l.b16 %v3102
    %v3236 = vunpack.c.l.b16 %v3103
    %v3237 = vunpack.c.l.b16 %v3104
    %v3238 = vunpack.c.l.b16 %v3105
    %v3239 = vunpack.c.l.b16 %v3106
    %v3240 = vunpack.c.l.b16 %v3107
    %v3241 = vunpack.c.l.b16 %v3108
    %v3242 = vunpack.c.l.b16 %v3109
    %v3243 = vunpack.c.l.b16 %v3110
    %v3244 = vunpack.c.l.b16 %v3111
    %v3245 = vunpack.c.l.b16 %v3112
    %v3246 = vunpack.c.l.b16 %v3113
    %v3247 = vunpack.c.l.b16 %v3114
    %v3248 = vunpack.c.l.b16 %v3115
    %v3249 = vunpack.c.l.b16 %v3116
    %v3250 = vunpack.c.l.b16 %v3117
    %v3251 = vunpack.c.l.b16 %v3118
    %v3252 = vunpack.c.l.b16 %v3119
    %v3253 = vunpack.c.l.b16 %v3120
    %v3254 = vunpack.c.l.b16 %v3121
    %v3255 = vunpack.c.l.b16 %v3122
    %v3256 = vunpack.c.l.b16 %v3123
    %v3257 = vunpack.c.l.b16 %v3124
    %v3258 = vunpack.c.l.b16 %v3125
    %v3259 = vunpack.c.l.b16 %v3126
    %v3260 = vunpack.c.l.b16 %v3127
    %v3261 = vunpack.c.l.b16 %v3128
    %v3262 = vunpack.c.l.b16 %v3129
    %v3263 = vunpack.c.l.b16 %v3130
    %v3264 = vunpack.c.l.b16 %v3131
    %v3265 = vpack.c.b16 %v3202, %v3201
    %v3266 = vpack.c.b16 %v3204, %v3203
    %v3267 = vpack.c.b16 %v3206, %v3205
    %v3268 = vpack.c.b16 %v3208, %v3207
    %v3269 = vpack.c.b16 %v3210, %v3209
    %v3270 = vpack.c.b16 %v3212, %v3211
    %v3271 = vpack.c.b16 %v3214, %v3213
    %v3272 = vpack.c.b16 %v3216, %v3215
    %v3273 = vpack.c.b16 %v3218, %v3217
    %v3274 = vpack.c.b16 %v3220, %v3219
    %v3275 = vpack.c.b16 %v3222, %v3221
    %v3276 = vpack.c.b16 %v3224, %v3223
    %v3277 = vpack.c.b16 %v3226, %v3225
    %v3278 = vpack.c.b16 %v3228, %v3227
    %v3279 = vpack.c.b16 %v3230, %v3229
    %v3280 = vpack.c.b16 %v3232, %v3231
    %v3281 = vpack.c.b16 %v3234, %v3233
    %v3282 = vpack.c.b16 %v3236, %v3235
    %v3283 = vpack.c.b16 %v3238, %v3237
    %v3284 = vpack.c.b16 %v3240, %v3239
    %v3285 = vpack.c.b16 %v3242, %v3241
    %v3286 = vpack.c.b16 %v3244, %v3243
    %v3287 = vpack.c.b16 %v3246, %v3245
    %v3288 = vpack.c.b16 %v3248, %v3247
    %v3289 = vpack.c.b16 %v3250, %v3249
    %v3290 = vpack.c.b16 %v3252, %v3251
    %v3291 = vpack.c.b16 %v3254, %v3253
    %v3292 = vpack.c.b16 %v3256, %v3255
    %v3293 = vpack.c.b16 %v3258, %v3257
    %v3294 = vpack.c.b16 %v3260, %v3259
    %v3295 = vpack.c.b16 %v3262, %v3261
    %v3296 = vpack.c.b16 %v3264, %v3263
    %3329 = vmatprep.subr.bf16.mxu0 0
    %3330 = vmatpush1.bf16.msra.mxu0 %v3265
    %3331 = vmatprep.subr.bf16.mxu0 0
    %3332 = vmatpush1.bf16.msra.mxu0 %v3266
    %3333 = vmatprep.subr.bf16.mxu0 0
    %3334 = vmatpush1.bf16.msra.mxu0 %v3267
    %3335 = vmatprep.subr.bf16.mxu0 0
    %3336 = vmatpush1.bf16.msra.mxu0 %v3268
    %3337 = vmatprep.subr.bf16.mxu0 0
    %3338 = vmatpush1.bf16.msra.mxu0 %v3269
    %3339 = vmatprep.subr.bf16.mxu0 0
    %3340 = vmatpush1.bf16.msra.mxu0 %v3270
    %3341 = vmatprep.subr.bf16.mxu0 0
    %3342 = vmatpush1.bf16.msra.mxu0 %v3271
    %3343 = vmatprep.subr.bf16.mxu0 0
    %3344 = vmatpush1.bf16.msra.mxu0 %v3272
    %3345 = vmatprep.subr.bf16.mxu0 0
    %3346 = vmatpush1.bf16.msra.mxu0 %v3273
    %3347 = vmatprep.subr.bf16.mxu0 0
    %3348 = vmatpush1.bf16.msra.mxu0 %v3274
    %3349 = vmatprep.subr.bf16.mxu0 0
    %3350 = vmatpush1.bf16.msra.mxu0 %v3275
    %3351 = vmatprep.subr.bf16.mxu0 0
    %3352 = vmatpush1.bf16.msra.mxu0 %v3276
    %3353 = vmatprep.subr.bf16.mxu0 0
    %3354 = vmatpush1.bf16.msra.mxu0 %v3277
    %3355 = vmatprep.subr.bf16.mxu0 0
    %3356 = vmatpush1.bf16.msra.mxu0 %v3278
    %3357 = vmatprep.subr.bf16.mxu0 0
    %3358 = vmatpush1.bf16.msra.mxu0 %v3279
    %3359 = vmatprep.subr.bf16.mxu0 0
    %3360 = vmatpush1.bf16.msra.mxu0 %v3280
    %3361 = vmatprep.mubr.bf16.mxu0 %v3061
    %3362 = vmatmul.mubr.bf16.gmra.mrb[0].mxu0 %v3060
    %v3363 = vpop.f32.mrb[0].mxu0
    %v3364 = vadd.f32 %v3136, %v3363
    %v3365 = vpop.f32.mrb[0].mxu0
    %v3366 = vpop.f32.mrb[0].mxu0
    %v3367 = vadd.f32 %v3136, %v3366
    %v3368 = vpop.f32.mrb[0].mxu0
    %3369 = vmatprep.mubr.bf16.mxu0 %v3065
    %3370 = vmatmul.mubr.bf16.gmra.mrb[0].mxu0 %v3064
    %v3371 = vpop.f32.mrb[0].mxu0
    %v3372 = vadd.f32 %v3136, %v3371
    %v3373 = vpop.f32.mrb[0].mxu0
    %v3374 = vpop.f32.mrb[0].mxu0
    %v3375 = vadd.f32 %v3136, %v3374
    %v3376 = vpop.f32.mrb[0].mxu0
    %3377 = vdwg.mxu0
    %3378 = vmatprep.subr.bf16.mxu0 0
    %3379 = vmatpush1.bf16.msra.mxu0 %v3281
    %3380 = vmatprep.subr.bf16.mxu0 0
    %3381 = vmatpush1.bf16.msra.mxu0 %v3282
    %3382 = vmatprep.subr.bf16.mxu0 0
    %3383 = vmatpush1.bf16.msra.mxu0 %v3283
    %3384 = vmatprep.subr.bf16.mxu0 0
    %3385 = vmatpush1.bf16.msra.mxu0 %v3284
    %3386 = vmatprep.subr.bf16.mxu0 0
    %3387 = vmatpush1.bf16.msra.mxu0 %v3285
    %3388 = vmatprep.subr.bf16.mxu0 0
    %3389 = vmatpush1.bf16.msra.mxu0 %v3286
    %3390 = vmatprep.subr.bf16.mxu0 0
    %3391 = vmatpush1.bf16.msra.mxu0 %v3287
    %3392 = vmatprep.subr.bf16.mxu0 0
    %3393 = vmatpush1.bf16.msra.mxu0 %v3288
    %3394 = vmatprep.subr.bf16.mxu0 0
    %3395 = vmatpush1.bf16.msra.mxu0 %v3289
    %3396 = vmatprep.subr.bf16.mxu0 0
    %3397 = vmatpush1.bf16.msra.mxu0 %v3290
    %3398 = vmatprep.subr.bf16.mxu0 0
    %3399 = vmatpush1.bf16.msra.mxu0 %v3291
    %3400 = vmatprep.subr.bf16.mxu0 0
    %3401 = vmatpush1.bf16.msra.mxu0 %v3292
    %3402 = vmatprep.subr.bf16.mxu0 0
    %3403 = vmatpush1.bf16.msra.mxu0 %v3293
    %3404 = vmatprep.subr.bf16.mxu0 0
    %3405 = vmatpush1.bf16.msra.mxu0 %v3294
    %3406 = vmatprep.subr.bf16.mxu0 0
    %3407 = vmatpush1.bf16.msra.mxu0 %v3295
    %3408 = vmatprep.subr.bf16.mxu0 0
    %3409 = vmatpush1.bf16.msra.mxu0 %v3296
    %3410 = vmatprep.mubr.bf16.mxu0 %v3063
    %3411 = vmatmul.mubr.bf16.gmra.mrb[0].mxu0 %v3062
    %v3412 = vpop.f32.mrb[0].mxu0
    %v3413 = vadd.f32 %v3364, %v3412
    %v3414 = vpop.f32.mrb[0].mxu0
    %v3415 = vpop.f32.mrb[0].mxu0
    %v3416 = vadd.f32 %v3367, %v3415
    %v3417 = vpop.f32.mrb[0].mxu0
    %3418 = vmatprep.mubr.bf16.mxu0 %v3067
    %3419 = vmatmul.mubr.bf16.gmra.mrb[0].mxu0 %v3066
    %v3420 = vpop.f32.mrb[0].mxu0
    %v3421 = vadd.f32 %v3372, %v3420
    %v3422 = vpop.f32.mrb[0].mxu0
    %v3423 = vpop.f32.mrb[0].mxu0
    %v3424 = vadd.f32 %v3375, %v3423
    %v3425 = vpop.f32.mrb[0].mxu0
    %3426 = vdwg.mxu0
    %v3427 = vadd.f32 %v2656, %v3413
    %v3428 = vadd.f32 %v2657, %v3416
    %v3429 = vadd.f32 %v2658, %v3421
    %v3430 = vadd.f32 %v2659, %v3424
    %v3431 = vld [vmem:[%s4 + $0x1] sm:$0x1]
    %v3432 = vld [vmem:[%s5 + $0x1] sm:$0x1]
    %3433 = vadd.xlane.f32.xlu0 %v3427
    %v3434 = vpop.xlane.xlu0 %3433
    %3435 = vadd.xlane.f32.xlu0 %v3428
    %v3436 = vpop.xlane.xlu0 %3435
    %3437 = vadd.xlane.f32.xlu0 %v3429
    %v3438 = vpop.xlane.xlu0 %3437
    %3439 = vadd.xlane.f32.xlu0 %v3430
    %v3440 = vpop.xlane.xlu0 %3439
    %v3441 = vmul.f32 %v3434, %v227
    %v3442 = vmul.f32 %v3436, %v227
    %v3443 = vmul.f32 %v3438, %v227
    %v3444 = vmul.f32 %v3440, %v227
    %v3445 = vsub.f32 %v3427, %v3441
    %v3446 = vsub.f32 %v3428, %v3442
    %v3447 = vsub.f32 %v3429, %v3443
    %v3448 = vsub.f32 %v3430, %v3444
    %v3449 = vmul.f32 %v3445, %v3445
    %v3450 = vmul.f32 %v3446, %v3446
    %v3451 = vmul.f32 %v3447, %v3447
    %v3452 = vmul.f32 %v3448, %v3448
    %3453 = vadd.xlane.f32.xlu0 %v3449
    %v3454 = vpop.xlane.xlu0 %3453
    %3455 = vadd.xlane.f32.xlu0 %v3450
    %v3456 = vpop.xlane.xlu0 %3455
    %3457 = vadd.xlane.f32.xlu0 %v3451
    %v3458 = vpop.xlane.xlu0 %3457
    %3459 = vadd.xlane.f32.xlu0 %v3452
    %v3460 = vpop.xlane.xlu0 %3459
    %v3461 = vmul.f32 %v3454, %v227
    %v3462 = vmul.f32 %v3456, %v227
    %v3463 = vmul.f32 %v3458, %v227
    %v3464 = vmul.f32 %v3460, %v227
    %v3465 = vadd.f32 %v3461, 1e-05
    %v3466 = vadd.f32 %v3462, 1e-05
    %v3467 = vadd.f32 %v3463, 1e-05
    %v3468 = vadd.f32 %v3464, 1e-05
    %v3469 = vrsqrt.pop %v3465
    %v3470 = vrsqrt.pop %v3466
    %v3471 = vrsqrt.pop %v3467
    %v3472 = vrsqrt.pop %v3468
    %v3473 = vmul.f32 %v3445, %v3469
    %v3474 = vmul.f32 %v3446, %v3470
    %v3475 = vmul.f32 %v3447, %v3471
    %v3476 = vmul.f32 %v3448, %v3472
    %v3477 = vlaneseq
    %v3478 = vshrl.u32 %v3477, 7
    %v3479 = vsub.s32 0, %v3478
    %v3480 = vrot.slane %v3431, %v3479
    %v3481 = vmul.f32 %v3473, %v3480
    %v3482 = vmul.f32 %v3474, %v3480
    %v3483 = vmul.f32 %v3475, %v3480
    %v3484 = vmul.f32 %v3476, %v3480
    %v3485 = vlaneseq
    %v3486 = vshrl.u32 %v3485, 7
    %v3487 = vsub.s32 0, %v3486
    %v3488 = vrot.slane %v3432, %v3487
    %v3489 = vadd.f32 %v3481, %v3488
    %v3490 = vadd.f32 %v3482, %v3488
    %v3491 = vadd.f32 %v3483, %v3488
    %v3492 = vadd.f32 %v3484, %v3488
    %v3493 = vpack.c.bf16 %v3490, %v3489
    %v3494 = vpack.c.bf16 %v3492, %v3491
    %s3495 = scalar_lea.vmem %s6, 768
    %v3496 = vld [vmem:[%s3495] sm:$0xf]
    %v3497 = vld [vmem:[%s3495 + $0x4] sm:$0xf]
    %v3498 = vld [vmem:[%s3495 + $0x8] sm:$0xf]
    %v3499 = vld [vmem:[%s3495 + $0xc] sm:$0xf]
    %v3500 = vld [vmem:[%s3495 + $0x10] sm:$0xf]
    %v3501 = vld [vmem:[%s3495 + $0x14] sm:$0xf]
    %v3502 = vld [vmem:[%s3495 + $0x18] sm:$0xf]
    %v3503 = vld [vmem:[%s3495 + $0x1c] sm:$0xf]
    %v3504 = vld [vmem:[%s3495 + $0x20] sm:$0xf]
    %v3505 = vld [vmem:[%s3495 + $0x24] sm:$0xf]
    %v3506 = vld [vmem:[%s3495 + $0x28] sm:$0xf]
    %v3507 = vld [vmem:[%s3495 + $0x2c] sm:$0xf]
    %v3508 = vld [vmem:[%s3495 + $0x30] sm:$0xf]
    %v3509 = vld [vmem:[%s3495 + $0x34] sm:$0xf]
    %v3510 = vld [vmem:[%s3495 + $0x38] sm:$0xf]
    %v3511 = vld [vmem:[%s3495 + $0x3c] sm:$0xf]
    %v3512 = vld [vmem:[%s3495 + $0x40] sm:$0xf]
    %v3513 = vld [vmem:[%s3495 + $0x44] sm:$0xf]
    %v3514 = vld [vmem:[%s3495 + $0x48] sm:$0xf]
    %v3515 = vld [vmem:[%s3495 + $0x4c] sm:$0xf]
    %v3516 = vld [vmem:[%s3495 + $0x50] sm:$0xf]
    %v3517 = vld [vmem:[%s3495 + $0x54] sm:$0xf]
    %v3518 = vld [vmem:[%s3495 + $0x58] sm:$0xf]
    %v3519 = vld [vmem:[%s3495 + $0x5c] sm:$0xf]
    %v3520 = vld [vmem:[%s3495 + $0x60] sm:$0xf]
    %v3521 = vld [vmem:[%s3495 + $0x64] sm:$0xf]
    %v3522 = vld [vmem:[%s3495 + $0x68] sm:$0xf]
    %v3523 = vld [vmem:[%s3495 + $0x6c] sm:$0xf]
    %v3524 = vld [vmem:[%s3495 + $0x70] sm:$0xf]
    %v3525 = vld [vmem:[%s3495 + $0x74] sm:$0xf]
    %v3526 = vld [vmem:[%s3495 + $0x78] sm:$0xf]
    %v3527 = vld [vmem:[%s3495 + $0x7c] sm:$0xf]
    %v3528 = vld [vmem:[%s3495 + $0x80] sm:$0xf]
    %v3529 = vld [vmem:[%s3495 + $0x84] sm:$0xf]
    %v3530 = vld [vmem:[%s3495 + $0x88] sm:$0xf]
    %v3531 = vld [vmem:[%s3495 + $0x8c] sm:$0xf]
    %v3532 = vld [vmem:[%s3495 + $0x90] sm:$0xf]
    %v3533 = vld [vmem:[%s3495 + $0x94] sm:$0xf]
    %v3534 = vld [vmem:[%s3495 + $0x98] sm:$0xf]
    %v3535 = vld [vmem:[%s3495 + $0x9c] sm:$0xf]
    %v3536 = vld [vmem:[%s3495 + $0xa0] sm:$0xf]
    %v3537 = vld [vmem:[%s3495 + $0xa4] sm:$0xf]
    %v3538 = vld [vmem:[%s3495 + $0xa8] sm:$0xf]
    %v3539 = vld [vmem:[%s3495 + $0xac] sm:$0xf]
    %v3540 = vld [vmem:[%s3495 + $0xb0] sm:$0xf]
    %v3541 = vld [vmem:[%s3495 + $0xb4] sm:$0xf]
    %v3542 = vld [vmem:[%s3495 + $0xb8] sm:$0xf]
    %v3543 = vld [vmem:[%s3495 + $0xbc] sm:$0xf]
    %v3544 = vld [vmem:[%s3495 + $0xc0] sm:$0xf]
    %v3545 = vld [vmem:[%s3495 + $0xc4] sm:$0xf]
    %v3546 = vld [vmem:[%s3495 + $0xc8] sm:$0xf]
    %v3547 = vld [vmem:[%s3495 + $0xcc] sm:$0xf]
    %v3548 = vld [vmem:[%s3495 + $0xd0] sm:$0xf]
    %v3549 = vld [vmem:[%s3495 + $0xd4] sm:$0xf]
    %v3550 = vld [vmem:[%s3495 + $0xd8] sm:$0xf]
    %v3551 = vld [vmem:[%s3495 + $0xdc] sm:$0xf]
    %v3552 = vld [vmem:[%s3495 + $0xe0] sm:$0xf]
    %v3553 = vld [vmem:[%s3495 + $0xe4] sm:$0xf]
    %v3554 = vld [vmem:[%s3495 + $0xe8] sm:$0xf]
    %v3555 = vld [vmem:[%s3495 + $0xec] sm:$0xf]
    %v3556 = vld [vmem:[%s3495 + $0xf0] sm:$0xf]
    %v3557 = vld [vmem:[%s3495 + $0xf4] sm:$0xf]
    %v3558 = vld [vmem:[%s3495 + $0xf8] sm:$0xf]
    %v3559 = vld [vmem:[%s3495 + $0xfc] sm:$0xf]
    %v3560 = vld [vmem:[%s3495 + $0x100] sm:$0xf]
    %v3561 = vld [vmem:[%s3495 + $0x104] sm:$0xf]
    %v3562 = vld [vmem:[%s3495 + $0x108] sm:$0xf]
    %v3563 = vld [vmem:[%s3495 + $0x10c] sm:$0xf]
    %v3564 = vld [vmem:[%s3495 + $0x110] sm:$0xf]
    %v3565 = vld [vmem:[%s3495 + $0x114] sm:$0xf]
    %v3566 = vld [vmem:[%s3495 + $0x118] sm:$0xf]
    %v3567 = vld [vmem:[%s3495 + $0x11c] sm:$0xf]
    %v3568 = vld [vmem:[%s3495 + $0x120] sm:$0xf]
    %v3569 = vld [vmem:[%s3495 + $0x124] sm:$0xf]
    %v3570 = vld [vmem:[%s3495 + $0x128] sm:$0xf]
    %v3571 = vld [vmem:[%s3495 + $0x12c] sm:$0xf]
    %v3572 = vld [vmem:[%s3495 + $0x130] sm:$0xf]
    %v3573 = vld [vmem:[%s3495 + $0x134] sm:$0xf]
    %v3574 = vld [vmem:[%s3495 + $0x138] sm:$0xf]
    %v3575 = vld [vmem:[%s3495 + $0x13c] sm:$0xf]
    %v3576 = vld [vmem:[%s3495 + $0x140] sm:$0xf]
    %v3577 = vld [vmem:[%s3495 + $0x144] sm:$0xf]
    %v3578 = vld [vmem:[%s3495 + $0x148] sm:$0xf]
    %v3579 = vld [vmem:[%s3495 + $0x14c] sm:$0xf]
    %v3580 = vld [vmem:[%s3495 + $0x150] sm:$0xf]
    %v3581 = vld [vmem:[%s3495 + $0x154] sm:$0xf]
    %v3582 = vld [vmem:[%s3495 + $0x158] sm:$0xf]
    %v3583 = vld [vmem:[%s3495 + $0x15c] sm:$0xf]
    %v3584 = vld [vmem:[%s3495 + $0x160] sm:$0xf]
    %v3585 = vld [vmem:[%s3495 + $0x164] sm:$0xf]
    %v3586 = vld [vmem:[%s3495 + $0x168] sm:$0xf]
    %v3587 = vld [vmem:[%s3495 + $0x16c] sm:$0xf]
    %v3588 = vld [vmem:[%s3495 + $0x170] sm:$0xf]
    %v3589 = vld [vmem:[%s3495 + $0x174] sm:$0xf]
    %v3590 = vld [vmem:[%s3495 + $0x178] sm:$0xf]
    %v3591 = vld [vmem:[%s3495 + $0x17c] sm:$0xf]
    %v3592 = vld [vmem:[%s3495 + $0x180] sm:$0xf]
    %v3593 = vld [vmem:[%s3495 + $0x184] sm:$0xf]
    %v3594 = vld [vmem:[%s3495 + $0x188] sm:$0xf]
    %v3595 = vld [vmem:[%s3495 + $0x18c] sm:$0xf]
    %v3596 = vld [vmem:[%s3495 + $0x190] sm:$0xf]
    %v3597 = vld [vmem:[%s3495 + $0x194] sm:$0xf]
    %v3598 = vld [vmem:[%s3495 + $0x198] sm:$0xf]
    %v3599 = vld [vmem:[%s3495 + $0x19c] sm:$0xf]
    %v3600 = vld [vmem:[%s3495 + $0x1a0] sm:$0xf]
    %v3601 = vld [vmem:[%s3495 + $0x1a4] sm:$0xf]
    %v3602 = vld [vmem:[%s3495 + $0x1a8] sm:$0xf]
    %v3603 = vld [vmem:[%s3495 + $0x1ac] sm:$0xf]
    %v3604 = vld [vmem:[%s3495 + $0x1b0] sm:$0xf]
    %v3605 = vld [vmem:[%s3495 + $0x1b4] sm:$0xf]
    %v3606 = vld [vmem:[%s3495 + $0x1b8] sm:$0xf]
    %v3607 = vld [vmem:[%s3495 + $0x1bc] sm:$0xf]
    %v3608 = vld [vmem:[%s3495 + $0x1c0] sm:$0xf]
    %v3609 = vld [vmem:[%s3495 + $0x1c4] sm:$0xf]
    %v3610 = vld [vmem:[%s3495 + $0x1c8] sm:$0xf]
    %v3611 = vld [vmem:[%s3495 + $0x1cc] sm:$0xf]
    %v3612 = vld [vmem:[%s3495 + $0x1d0] sm:$0xf]
    %v3613 = vld [vmem:[%s3495 + $0x1d4] sm:$0xf]
    %v3614 = vld [vmem:[%s3495 + $0x1d8] sm:$0xf]
    %v3615 = vld [vmem:[%s3495 + $0x1dc] sm:$0xf]
    %v3616 = vld [vmem:[%s3495 + $0x1e0] sm:$0xf]
    %v3617 = vld [vmem:[%s3495 + $0x1e4] sm:$0xf]
    %v3618 = vld [vmem:[%s3495 + $0x1e8] sm:$0xf]
    %v3619 = vld [vmem:[%s3495 + $0x1ec] sm:$0xf]
    %v3620 = vld [vmem:[%s3495 + $0x1f0] sm:$0xf]
    %v3621 = vld [vmem:[%s3495 + $0x1f4] sm:$0xf]
    %v3622 = vld [vmem:[%s3495 + $0x1f8] sm:$0xf]
    %v3623 = vld [vmem:[%s3495 + $0x1fc] sm:$0xf]
    %v3624 = vld [vmem:[%s3495 + $0x200] sm:$0xf]
    %v3625 = vld [vmem:[%s3495 + $0x204] sm:$0xf]
    %v3626 = vld [vmem:[%s3495 + $0x208] sm:$0xf]
    %v3627 = vld [vmem:[%s3495 + $0x20c] sm:$0xf]
    %v3628 = vld [vmem:[%s3495 + $0x210] sm:$0xf]
    %v3629 = vld [vmem:[%s3495 + $0x214] sm:$0xf]
    %v3630 = vld [vmem:[%s3495 + $0x218] sm:$0xf]
    %v3631 = vld [vmem:[%s3495 + $0x21c] sm:$0xf]
    %v3632 = vld [vmem:[%s3495 + $0x220] sm:$0xf]
    %v3633 = vld [vmem:[%s3495 + $0x224] sm:$0xf]
    %v3634 = vld [vmem:[%s3495 + $0x228] sm:$0xf]
    %v3635 = vld [vmem:[%s3495 + $0x22c] sm:$0xf]
    %v3636 = vld [vmem:[%s3495 + $0x230] sm:$0xf]
    %v3637 = vld [vmem:[%s3495 + $0x234] sm:$0xf]
    %v3638 = vld [vmem:[%s3495 + $0x238] sm:$0xf]
    %v3639 = vld [vmem:[%s3495 + $0x23c] sm:$0xf]
    %v3640 = vld [vmem:[%s3495 + $0x240] sm:$0xf]
    %v3641 = vld [vmem:[%s3495 + $0x244] sm:$0xf]
    %v3642 = vld [vmem:[%s3495 + $0x248] sm:$0xf]
    %v3643 = vld [vmem:[%s3495 + $0x24c] sm:$0xf]
    %v3644 = vld [vmem:[%s3495 + $0x250] sm:$0xf]
    %v3645 = vld [vmem:[%s3495 + $0x254] sm:$0xf]
    %v3646 = vld [vmem:[%s3495 + $0x258] sm:$0xf]
    %v3647 = vld [vmem:[%s3495 + $0x25c] sm:$0xf]
    %v3648 = vld [vmem:[%s3495 + $0x260] sm:$0xf]
    %v3649 = vld [vmem:[%s3495 + $0x264] sm:$0xf]
    %v3650 = vld [vmem:[%s3495 + $0x268] sm:$0xf]
    %v3651 = vld [vmem:[%s3495 + $0x26c] sm:$0xf]
    %v3652 = vld [vmem:[%s3495 + $0x270] sm:$0xf]
    %v3653 = vld [vmem:[%s3495 + $0x274] sm:$0xf]
    %v3654 = vld [vmem:[%s3495 + $0x278] sm:$0xf]
    %v3655 = vld [vmem:[%s3495 + $0x27c] sm:$0xf]
    %v3656 = vld [vmem:[%s3495 + $0x280] sm:$0xf]
    %v3657 = vld [vmem:[%s3495 + $0x284] sm:$0xf]
    %v3658 = vld [vmem:[%s3495 + $0x288] sm:$0xf]
    %v3659 = vld [vmem:[%s3495 + $0x28c] sm:$0xf]
    %v3660 = vld [vmem:[%s3495 + $0x290] sm:$0xf]
    %v3661 = vld [vmem:[%s3495 + $0x294] sm:$0xf]
    %v3662 = vld [vmem:[%s3495 + $0x298] sm:$0xf]
    %v3663 = vld [vmem:[%s3495 + $0x29c] sm:$0xf]
    %v3664 = vld [vmem:[%s3495 + $0x2a0] sm:$0xf]
    %v3665 = vld [vmem:[%s3495 + $0x2a4] sm:$0xf]
    %v3666 = vld [vmem:[%s3495 + $0x2a8] sm:$0xf]
    %v3667 = vld [vmem:[%s3495 + $0x2ac] sm:$0xf]
    %v3668 = vld [vmem:[%s3495 + $0x2b0] sm:$0xf]
    %v3669 = vld [vmem:[%s3495 + $0x2b4] sm:$0xf]
    %v3670 = vld [vmem:[%s3495 + $0x2b8] sm:$0xf]
    %v3671 = vld [vmem:[%s3495 + $0x2bc] sm:$0xf]
    %v3672 = vld [vmem:[%s3495 + $0x2c0] sm:$0xf]
    %v3673 = vld [vmem:[%s3495 + $0x2c4] sm:$0xf]
    %v3674 = vld [vmem:[%s3495 + $0x2c8] sm:$0xf]
    %v3675 = vld [vmem:[%s3495 + $0x2cc] sm:$0xf]
    %v3676 = vld [vmem:[%s3495 + $0x2d0] sm:$0xf]
    %v3677 = vld [vmem:[%s3495 + $0x2d4] sm:$0xf]
    %v3678 = vld [vmem:[%s3495 + $0x2d8] sm:$0xf]
    %v3679 = vld [vmem:[%s3495 + $0x2dc] sm:$0xf]
    %v3680 = vld [vmem:[%s3495 + $0x2e0] sm:$0xf]
    %v3681 = vld [vmem:[%s3495 + $0x2e4] sm:$0xf]
    %v3682 = vld [vmem:[%s3495 + $0x2e8] sm:$0xf]
    %v3683 = vld [vmem:[%s3495 + $0x2ec] sm:$0xf]
    %v3684 = vld [vmem:[%s3495 + $0x2f0] sm:$0xf]
    %v3685 = vld [vmem:[%s3495 + $0x2f4] sm:$0xf]
    %v3686 = vld [vmem:[%s3495 + $0x2f8] sm:$0xf]
    %v3687 = vld [vmem:[%s3495 + $0x2fc] sm:$0xf]
    %v3704 = vunpack.c.l.b16 %v3496
    %v3705 = vunpack.c.l.b16 %v3497
    %v3706 = vunpack.c.l.b16 %v3498
    %v3707 = vunpack.c.l.b16 %v3499
    %v3708 = vunpack.c.l.b16 %v3500
    %v3709 = vunpack.c.l.b16 %v3501
    %v3710 = vunpack.c.l.b16 %v3502
    %v3711 = vunpack.c.l.b16 %v3503
    %v3712 = vunpack.c.l.b16 %v3504
    %v3713 = vunpack.c.l.b16 %v3505
    %v3714 = vunpack.c.l.b16 %v3506
    %v3715 = vunpack.c.l.b16 %v3507
    %v3716 = vunpack.c.l.b16 %v3508
    %v3717 = vunpack.c.l.b16 %v3509
    %v3718 = vunpack.c.l.b16 %v3510
    %v3719 = vunpack.c.l.b16 %v3511
    %v3720 = vpack.c.b16 %v3705, %v3704
    %v3721 = vpack.c.b16 %v3707, %v3706
    %v3722 = vpack.c.b16 %v3709, %v3708
    %v3723 = vpack.c.b16 %v3711, %v3710
    %v3724 = vpack.c.b16 %v3713, %v3712
    %v3725 = vpack.c.b16 %v3715, %v3714
    %v3726 = vpack.c.b16 %v3717, %v3716
    %v3727 = vpack.c.b16 %v3719, %v3718
    %3736 = vmatprep.subr.bf16.mxu0 0
    %3737 = vmatpush1.bf16.msra.mxu0 %v3720
    %3738 = vmatprep.subr.bf16.mxu0 0
    %3739 = vmatpush1.bf16.msra.mxu0 %v3721
    %3740 = vmatprep.subr.bf16.mxu0 0
    %3741 = vmatpush1.bf16.msra.mxu0 %v3722
    %3742 = vmatprep.subr.bf16.mxu0 0
    %3743 = vmatpush1.bf16.msra.mxu0 %v3723
    %3744 = vmatprep.subr.bf16.mxu0 0
    %3745 = vmatpush1.bf16.msra.mxu0 %v3724
    %3746 = vmatprep.subr.bf16.mxu0 0
    %3747 = vmatpush1.bf16.msra.mxu0 %v3725
    %3748 = vmatprep.subr.bf16.mxu0 0
    %3749 = vmatpush1.bf16.msra.mxu0 %v3726
    %3750 = vmatprep.subr.bf16.mxu0 0
    %3751 = vmatpush1.bf16.msra.mxu0 %v3727
    %3752 = vmatprep.subr.bf16.mxu0 0
    %3753 = vmatpush1.bf16.msra.mxu0 0
    %3754 = vmatprep.subr.bf16.mxu0 0
    %3755 = vmatpush1.bf16.msra.mxu0 0
    %3756 = vmatprep.subr.bf16.mxu0 0
    %3757 = vmatpush1.bf16.msra.mxu0 0
    %3758 = vmatprep.subr.bf16.mxu0 0
    %3759 = vmatpush1.bf16.msra.mxu0 0
    %3760 = vmatprep.subr.bf16.mxu0 0
    %3761 = vmatpush1.bf16.msra.mxu0 0
    %3762 = vmatprep.subr.bf16.mxu0 0
    %3763 = vmatpush1.bf16.msra.mxu0 0
    %3764 = vmatprep.subr.bf16.mxu0 0
    %3765 = vmatpush1.bf16.msra.mxu0 0
    %3766 = vmatprep.subr.bf16.mxu0 0
    %3767 = vmatpush1.bf16.msra.mxu0 0
    %3768 = vmatprep.mubr.bf16.mxu0 0
    %3769 = vmatmul.mubr.bf16.gmra.mrb[0].mxu0 %v3493
    %v3770 = vpop.f32.mrb[0].mxu0
    %v3771 = vadd.f32 0.0, %v3770
    %v3772 = vpop.f32.mrb[0].mxu0
    %v3773 = vpop.f32.mrb[0].mxu0
    %v3774 = vadd.f32 0.0, %v3773
    %v3775 = vpop.f32.mrb[0].mxu0
    %3776 = vmatprep.mubr.bf16.mxu0 0
    %3777 = vmatmul.mubr.bf16.gmra.mrb[0].mxu0 %v3494
    %v3778 = vpop.f32.mrb[0].mxu0
    %v3779 = vadd.f32 0.0, %v3778
    %v3780 = vpop.f32.mrb[0].mxu0
    %v3781 = vpop.f32.mrb[0].mxu0
    %v3782 = vadd.f32 0.0, %v3781
    %v3783 = vpop.f32.mrb[0].mxu0
    %3784 = vdwg.mxu0
    %v3801 = vunpack.c.l.b16 %v3512
    %v3802 = vunpack.c.l.b16 %v3513
    %v3803 = vunpack.c.l.b16 %v3514
    %v3804 = vunpack.c.l.b16 %v3515
    %v3805 = vunpack.c.l.b16 %v3516
    %v3806 = vunpack.c.l.b16 %v3517
    %v3807 = vunpack.c.l.b16 %v3518
    %v3808 = vunpack.c.l.b16 %v3519
    %v3809 = vunpack.c.l.b16 %v3520
    %v3810 = vunpack.c.l.b16 %v3521
    %v3811 = vunpack.c.l.b16 %v3522
    %v3812 = vunpack.c.l.b16 %v3523
    %v3813 = vunpack.c.l.b16 %v3524
    %v3814 = vunpack.c.l.b16 %v3525
    %v3815 = vunpack.c.l.b16 %v3526
    %v3816 = vunpack.c.l.b16 %v3527
    %v3817 = vpack.c.b16 %v3802, %v3801
    %v3818 = vpack.c.b16 %v3804, %v3803
    %v3819 = vpack.c.b16 %v3806, %v3805
    %v3820 = vpack.c.b16 %v3808, %v3807
    %v3821 = vpack.c.b16 %v3810, %v3809
    %v3822 = vpack.c.b16 %v3812, %v3811
    %v3823 = vpack.c.b16 %v3814, %v3813
    %v3824 = vpack.c.b16 %v3816, %v3815
    %3833 = vmatprep.subr.bf16.mxu0 0
    %3834 = vmatpush1.bf16.msra.mxu0 %v3817
    %3835 = vmatprep.subr.bf16.mxu0 0
    %3836 = vmatpush1.bf16.msra.mxu0 %v3818
    %3837 = vmatprep.subr.bf16.mxu0 0
    %3838 = vmatpush1.bf16.msra.mxu0 %v3819
    %3839 = vmatprep.subr.bf16.mxu0 0
    %3840 = vmatpush1.bf16.msra.mxu0 %v3820
    %3841 = vmatprep.subr.bf16.mxu0 0
    %3842 = vmatpush1.bf16.msra.mxu0 %v3821
    %3843 = vmatprep.subr.bf16.mxu0 0
    %3844 = vmatpush1.bf16.msra.mxu0 %v3822
    %3845 = vmatprep.subr.bf16.mxu0 0
    %3846 = vmatpush1.bf16.msra.mxu0 %v3823
    %3847 = vmatprep.subr.bf16.mxu0 0
    %3848 = vmatpush1.bf16.msra.mxu0 %v3824
    %3849 = vmatprep.subr.bf16.mxu0 0
    %3850 = vmatpush1.bf16.msra.mxu0 0
    %3851 = vmatprep.subr.bf16.mxu0 0
    %3852 = vmatpush1.bf16.msra.mxu0 0
    %3853 = vmatprep.subr.bf16.mxu0 0
    %3854 = vmatpush1.bf16.msra.mxu0 0
    %3855 = vmatprep.subr.bf16.mxu0 0
    %3856 = vmatpush1.bf16.msra.mxu0 0
    %3857 = vmatprep.subr.bf16.mxu0 0
    %3858 = vmatpush1.bf16.msra.mxu0 0
    %3859 = vmatprep.subr.bf16.mxu0 0
    %3860 = vmatpush1.bf16.msra.mxu0 0
    %3861 = vmatprep.subr.bf16.mxu0 0
    %3862 = vmatpush1.bf16.msra.mxu0 0
    %3863 = vmatprep.subr.bf16.mxu0 0
    %3864 = vmatpush1.bf16.msra.mxu0 0
    %3865 = vmatprep.mubr.bf16.mxu0 0
    %3866 = vmatmul.mubr.bf16.gmra.mrb[0].mxu0 %v3493
    %v3867 = vpop.f32.mrb[0].mxu0
    %v3868 = vadd.f32 0.0, %v3867
    %v3869 = vpop.f32.mrb[0].mxu0
    %v3870 = vpop.f32.mrb[0].mxu0
    %v3871 = vadd.f32 0.0, %v3870
    %v3872 = vpop.f32.mrb[0].mxu0
    %3873 = vmatprep.mubr.bf16.mxu0 0
    %3874 = vmatmul.mubr.bf16.gmra.mrb[0].mxu0 %v3494
    %v3875 = vpop.f32.mrb[0].mxu0
    %v3876 = vadd.f32 0.0, %v3875
    %v3877 = vpop.f32.mrb[0].mxu0
    %v3878 = vpop.f32.mrb[0].mxu0
    %v3879 = vadd.f32 0.0, %v3878
    %v3880 = vpop.f32.mrb[0].mxu0
    %3881 = vdwg.mxu0
    %v3898 = vunpack.c.l.b16 %v3528
    %v3899 = vunpack.c.l.b16 %v3529
    %v3900 = vunpack.c.l.b16 %v3530
    %v3901 = vunpack.c.l.b16 %v3531
    %v3902 = vunpack.c.l.b16 %v3532
    %v3903 = vunpack.c.l.b16 %v3533
    %v3904 = vunpack.c.l.b16 %v3534
    %v3905 = vunpack.c.l.b16 %v3535
    %v3906 = vunpack.c.l.b16 %v3536
    %v3907 = vunpack.c.l.b16 %v3537
    %v3908 = vunpack.c.l.b16 %v3538
    %v3909 = vunpack.c.l.b16 %v3539
    %v3910 = vunpack.c.l.b16 %v3540
    %v3911 = vunpack.c.l.b16 %v3541
    %v3912 = vunpack.c.l.b16 %v3542
    %v3913 = vunpack.c.l.b16 %v3543
    %v3914 = vpack.c.b16 %v3899, %v3898
    %v3915 = vpack.c.b16 %v3901, %v3900
    %v3916 = vpack.c.b16 %v3903, %v3902
    %v3917 = vpack.c.b16 %v3905, %v3904
    %v3918 = vpack.c.b16 %v3907, %v3906
    %v3919 = vpack.c.b16 %v3909, %v3908
    %v3920 = vpack.c.b16 %v3911, %v3910
    %v3921 = vpack.c.b16 %v3913, %v3912
    %3930 = vmatprep.subr.bf16.mxu0 0
    %3931 = vmatpush1.bf16.msra.mxu0 %v3914
    %3932 = vmatprep.subr.bf16.mxu0 0
    %3933 = vmatpush1.bf16.msra.mxu0 %v3915
    %3934 = vmatprep.subr.bf16.mxu0 0
    %3935 = vmatpush1.bf16.msra.mxu0 %v3916
    %3936 = vmatprep.subr.bf16.mxu0 0
    %3937 = vmatpush1.bf16.msra.mxu0 %v3917
    %3938 = vmatprep.subr.bf16.mxu0 0
    %3939 = vmatpush1.bf16.msra.mxu0 %v3918
    %3940 = vmatprep.subr.bf16.mxu0 0
    %3941 = vmatpush1.bf16.msra.mxu0 %v3919
    %3942 = vmatprep.subr.bf16.mxu0 0
    %3943 = vmatpush1.bf16.msra.mxu0 %v3920
    %3944 = vmatprep.subr.bf16.mxu0 0
    %3945 = vmatpush1.bf16.msra.mxu0 %v3921
    %3946 = vmatprep.subr.bf16.mxu0 0
    %3947 = vmatpush1.bf16.msra.mxu0 0
    %3948 = vmatprep.subr.bf16.mxu0 0
    %3949 = vmatpush1.bf16.msra.mxu0 0
    %3950 = vmatprep.subr.bf16.mxu0 0
    %3951 = vmatpush1.bf16.msra.mxu0 0
    %3952 = vmatprep.subr.bf16.mxu0 0
    %3953 = vmatpush1.bf16.msra.mxu0 0
    %3954 = vmatprep.subr.bf16.mxu0 0
    %3955 = vmatpush1.bf16.msra.mxu0 0
    %3956 = vmatprep.subr.bf16.mxu0 0
    %3957 = vmatpush1.bf16.msra.mxu0 0
    %3958 = vmatprep.subr.bf16.mxu0 0
    %3959 = vmatpush1.bf16.msra.mxu0 0
    %3960 = vmatprep.subr.bf16.mxu0 0
    %3961 = vmatpush1.bf16.msra.mxu0 0
    %3962 = vmatprep.mubr.bf16.mxu0 0
    %3963 = vmatmul.mubr.bf16.gmra.mrb[0].mxu0 %v3493
    %v3964 = vpop.f32.mrb[0].mxu0
    %v3965 = vadd.f32 0.0, %v3964
    %v3966 = vpop.f32.mrb[0].mxu0
    %v3967 = vpop.f32.mrb[0].mxu0
    %v3968 = vadd.f32 0.0, %v3967
    %v3969 = vpop.f32.mrb[0].mxu0
    %3970 = vmatprep.mubr.bf16.mxu0 0
    %3971 = vmatmul.mubr.bf16.gmra.mrb[0].mxu0 %v3494
    %v3972 = vpop.f32.mrb[0].mxu0
    %v3973 = vadd.f32 0.0, %v3972
    %v3974 = vpop.f32.mrb[0].mxu0
    %v3975 = vpop.f32.mrb[0].mxu0
    %v3976 = vadd.f32 0.0, %v3975
    %v3977 = vpop.f32.mrb[0].mxu0
    %3978 = vdwg.mxu0
    %v3995 = vunpack.c.l.b16 %v3544
    %v3996 = vunpack.c.l.b16 %v3545
    %v3997 = vunpack.c.l.b16 %v3546
    %v3998 = vunpack.c.l.b16 %v3547
    %v3999 = vunpack.c.l.b16 %v3548
    %v4000 = vunpack.c.l.b16 %v3549
    %v4001 = vunpack.c.l.b16 %v3550
    %v4002 = vunpack.c.l.b16 %v3551
    %v4003 = vunpack.c.l.b16 %v3552
    %v4004 = vunpack.c.l.b16 %v3553
    %v4005 = vunpack.c.l.b16 %v3554
    %v4006 = vunpack.c.l.b16 %v3555
    %v4007 = vunpack.c.l.b16 %v3556
    %v4008 = vunpack.c.l.b16 %v3557
    %v4009 = vunpack.c.l.b16 %v3558
    %v4010 = vunpack.c.l.b16 %v3559
    %v4011 = vpack.c.b16 %v3996, %v3995
    %v4012 = vpack.c.b16 %v3998, %v3997
    %v4013 = vpack.c.b16 %v4000, %v3999
    %v4014 = vpack.c.b16 %v4002, %v4001
    %v4015 = vpack.c.b16 %v4004, %v4003
    %v4016 = vpack.c.b16 %v4006, %v4005
    %v4017 = vpack.c.b16 %v4008, %v4007
    %v4018 = vpack.c.b16 %v4010, %v4009
    %4027 = vmatprep.subr.bf16.mxu0 0
    %4028 = vmatpush1.bf16.msra.mxu0 %v4011
    %4029 = vmatprep.subr.bf16.mxu0 0
    %4030 = vmatpush1.bf16.msra.mxu0 %v4012
    %4031 = vmatprep.subr.bf16.mxu0 0
    %4032 = vmatpush1.bf16.msra.mxu0 %v4013
    %4033 = vmatprep.subr.bf16.mxu0 0
    %4034 = vmatpush1.bf16.msra.mxu0 %v4014
    %4035 = vmatprep.subr.bf16.mxu0 0
    %4036 = vmatpush1.bf16.msra.mxu0 %v4015
    %4037 = vmatprep.subr.bf16.mxu0 0
    %4038 = vmatpush1.bf16.msra.mxu0 %v4016
    %4039 = vmatprep.subr.bf16.mxu0 0
    %4040 = vmatpush1.bf16.msra.mxu0 %v4017
    %4041 = vmatprep.subr.bf16.mxu0 0
    %4042 = vmatpush1.bf16.msra.mxu0 %v4018
    %4043 = vmatprep.subr.bf16.mxu0 0
    %4044 = vmatpush1.bf16.msra.mxu0 0
    %4045 = vmatprep.subr.bf16.mxu0 0
    %4046 = vmatpush1.bf16.msra.mxu0 0
    %4047 = vmatprep.subr.bf16.mxu0 0
    %4048 = vmatpush1.bf16.msra.mxu0 0
    %4049 = vmatprep.subr.bf16.mxu0 0
    %4050 = vmatpush1.bf16.msra.mxu0 0
    %4051 = vmatprep.subr.bf16.mxu0 0
    %4052 = vmatpush1.bf16.msra.mxu0 0
    %4053 = vmatprep.subr.bf16.mxu0 0
    %4054 = vmatpush1.bf16.msra.mxu0 0
    %4055 = vmatprep.subr.bf16.mxu0 0
    %4056 = vmatpush1.bf16.msra.mxu0 0
    %4057 = vmatprep.subr.bf16.mxu0 0
    %4058 = vmatpush1.bf16.msra.mxu0 0
    %4059 = vmatprep.mubr.bf16.mxu0 0
    %4060 = vmatmul.mubr.bf16.gmra.mrb[0].mxu0 %v3493
    %v4061 = vpop.f32.mrb[0].mxu0
    %v4062 = vadd.f32 0.0, %v4061
    %v4063 = vpop.f32.mrb[0].mxu0
    %v4064 = vpop.f32.mrb[0].mxu0
    %v4065 = vadd.f32 0.0, %v4064
    %v4066 = vpop.f32.mrb[0].mxu0
    %4067 = vmatprep.mubr.bf16.mxu0 0
    %4068 = vmatmul.mubr.bf16.gmra.mrb[0].mxu0 %v3494
    %v4069 = vpop.f32.mrb[0].mxu0
    %v4070 = vadd.f32 0.0, %v4069
    %v4071 = vpop.f32.mrb[0].mxu0
    %v4072 = vpop.f32.mrb[0].mxu0
    %v4073 = vadd.f32 0.0, %v4072
    %v4074 = vpop.f32.mrb[0].mxu0
    %4075 = vdwg.mxu0
    %v4092 = vunpack.c.l.b16 %v3560
    %v4093 = vunpack.c.l.b16 %v3561
    %v4094 = vunpack.c.l.b16 %v3562
    %v4095 = vunpack.c.l.b16 %v3563
    %v4096 = vunpack.c.l.b16 %v3564
    %v4097 = vunpack.c.l.b16 %v3565
    %v4098 = vunpack.c.l.b16 %v3566
    %v4099 = vunpack.c.l.b16 %v3567
    %v4100 = vunpack.c.l.b16 %v3568
    %v4101 = vunpack.c.l.b16 %v3569
    %v4102 = vunpack.c.l.b16 %v3570
    %v4103 = vunpack.c.l.b16 %v3571
    %v4104 = vunpack.c.l.b16 %v3572
    %v4105 = vunpack.c.l.b16 %v3573
    %v4106 = vunpack.c.l.b16 %v3574
    %v4107 = vunpack.c.l.b16 %v3575
    %v4108 = vpack.c.b16 %v4093, %v4092
    %v4109 = vpack.c.b16 %v4095, %v4094
    %v4110 = vpack.c.b16 %v4097, %v4096
    %v4111 = vpack.c.b16 %v4099, %v4098
    %v4112 = vpack.c.b16 %v4101, %v4100
    %v4113 = vpack.c.b16 %v4103, %v4102
    %v4114 = vpack.c.b16 %v4105, %v4104
    %v4115 = vpack.c.b16 %v4107, %v4106
    %4124 = vmatprep.subr.bf16.mxu0 0
    %4125 = vmatpush1.bf16.msra.mxu0 %v4108
    %4126 = vmatprep.subr.bf16.mxu0 0
    %4127 = vmatpush1.bf16.msra.mxu0 %v4109
    %4128 = vmatprep.subr.bf16.mxu0 0
    %4129 = vmatpush1.bf16.msra.mxu0 %v4110
    %4130 = vmatprep.subr.bf16.mxu0 0
    %4131 = vmatpush1.bf16.msra.mxu0 %v4111
    %4132 = vmatprep.subr.bf16.mxu0 0
    %4133 = vmatpush1.bf16.msra.mxu0 %v4112
    %4134 = vmatprep.subr.bf16.mxu0 0
    %4135 = vmatpush1.bf16.msra.mxu0 %v4113
    %4136 = vmatprep.subr.bf16.mxu0 0
    %4137 = vmatpush1.bf16.msra.mxu0 %v4114
    %4138 = vmatprep.subr.bf16.mxu0 0
    %4139 = vmatpush1.bf16.msra.mxu0 %v4115
    %4140 = vmatprep.subr.bf16.mxu0 0
    %4141 = vmatpush1.bf16.msra.mxu0 0
    %4142 = vmatprep.subr.bf16.mxu0 0
    %4143 = vmatpush1.bf16.msra.mxu0 0
    %4144 = vmatprep.subr.bf16.mxu0 0
    %4145 = vmatpush1.bf16.msra.mxu0 0
    %4146 = vmatprep.subr.bf16.mxu0 0
    %4147 = vmatpush1.bf16.msra.mxu0 0
    %4148 = vmatprep.subr.bf16.mxu0 0
    %4149 = vmatpush1.bf16.msra.mxu0 0
    %4150 = vmatprep.subr.bf16.mxu0 0
    %4151 = vmatpush1.bf16.msra.mxu0 0
    %4152 = vmatprep.subr.bf16.mxu0 0
    %4153 = vmatpush1.bf16.msra.mxu0 0
    %4154 = vmatprep.subr.bf16.mxu0 0
    %4155 = vmatpush1.bf16.msra.mxu0 0
    %4156 = vmatprep.mubr.bf16.mxu0 0
    %4157 = vmatmul.mubr.bf16.gmra.mrb[0].mxu0 %v3493
    %v4158 = vpop.f32.mrb[0].mxu0
    %v4159 = vadd.f32 0.0, %v4158
    %v4160 = vpop.f32.mrb[0].mxu0
    %v4161 = vpop.f32.mrb[0].mxu0
    %v4162 = vadd.f32 0.0, %v4161
    %v4163 = vpop.f32.mrb[0].mxu0
    %4164 = vmatprep.mubr.bf16.mxu0 0
    %4165 = vmatmul.mubr.bf16.gmra.mrb[0].mxu0 %v3494
    %v4166 = vpop.f32.mrb[0].mxu0
    %v4167 = vadd.f32 0.0, %v4166
    %v4168 = vpop.f32.mrb[0].mxu0
    %v4169 = vpop.f32.mrb[0].mxu0
    %v4170 = vadd.f32 0.0, %v4169
    %v4171 = vpop.f32.mrb[0].mxu0
    %4172 = vdwg.mxu0
    %v4189 = vunpack.c.l.b16 %v3576
    %v4190 = vunpack.c.l.b16 %v3577
    %v4191 = vunpack.c.l.b16 %v3578
    %v4192 = vunpack.c.l.b16 %v3579
    %v4193 = vunpack.c.l.b16 %v3580
    %v4194 = vunpack.c.l.b16 %v3581
    %v4195 = vunpack.c.l.b16 %v3582
    %v4196 = vunpack.c.l.b16 %v3583
    %v4197 = vunpack.c.l.b16 %v3584
    %v4198 = vunpack.c.l.b16 %v3585
    %v4199 = vunpack.c.l.b16 %v3586
    %v4200 = vunpack.c.l.b16 %v3587
    %v4201 = vunpack.c.l.b16 %v3588
    %v4202 = vunpack.c.l.b16 %v3589
    %v4203 = vunpack.c.l.b16 %v3590
    %v4204 = vunpack.c.l.b16 %v3591
    %v4205 = vpack.c.b16 %v4190, %v4189
    %v4206 = vpack.c.b16 %v4192, %v4191
    %v4207 = vpack.c.b16 %v4194, %v4193
    %v4208 = vpack.c.b16 %v4196, %v4195
    %v4209 = vpack.c.b16 %v4198, %v4197
    %v4210 = vpack.c.b16 %v4200, %v4199
    %v4211 = vpack.c.b16 %v4202, %v4201
    %v4212 = vpack.c.b16 %v4204, %v4203
    %4221 = vmatprep.subr.bf16.mxu0 0
    %4222 = vmatpush1.bf16.msra.mxu0 %v4205
    %4223 = vmatprep.subr.bf16.mxu0 0
    %4224 = vmatpush1.bf16.msra.mxu0 %v4206
    %4225 = vmatprep.subr.bf16.mxu0 0
    %4226 = vmatpush1.bf16.msra.mxu0 %v4207
    %4227 = vmatprep.subr.bf16.mxu0 0
    %4228 = vmatpush1.bf16.msra.mxu0 %v4208
    %4229 = vmatprep.subr.bf16.mxu0 0
    %4230 = vmatpush1.bf16.msra.mxu0 %v4209
    %4231 = vmatprep.subr.bf16.mxu0 0
    %4232 = vmatpush1.bf16.msra.mxu0 %v4210
    %4233 = vmatprep.subr.bf16.mxu0 0
    %4234 = vmatpush1.bf16.msra.mxu0 %v4211
    %4235 = vmatprep.subr.bf16.mxu0 0
    %4236 = vmatpush1.bf16.msra.mxu0 %v4212
    %4237 = vmatprep.subr.bf16.mxu0 0
    %4238 = vmatpush1.bf16.msra.mxu0 0
    %4239 = vmatprep.subr.bf16.mxu0 0
    %4240 = vmatpush1.bf16.msra.mxu0 0
    %4241 = vmatprep.subr.bf16.mxu0 0
    %4242 = vmatpush1.bf16.msra.mxu0 0
    %4243 = vmatprep.subr.bf16.mxu0 0
    %4244 = vmatpush1.bf16.msra.mxu0 0
    %4245 = vmatprep.subr.bf16.mxu0 0
    %4246 = vmatpush1.bf16.msra.mxu0 0
    %4247 = vmatprep.subr.bf16.mxu0 0
    %4248 = vmatpush1.bf16.msra.mxu0 0
    %4249 = vmatprep.subr.bf16.mxu0 0
    %4250 = vmatpush1.bf16.msra.mxu0 0
    %4251 = vmatprep.subr.bf16.mxu0 0
    %4252 = vmatpush1.bf16.msra.mxu0 0
    %4253 = vmatprep.mubr.bf16.mxu0 0
    %4254 = vmatmul.mubr.bf16.gmra.mrb[0].mxu0 %v3493
    %v4255 = vpop.f32.mrb[0].mxu0
    %v4256 = vadd.f32 0.0, %v4255
    %v4257 = vpop.f32.mrb[0].mxu0
    %v4258 = vpop.f32.mrb[0].mxu0
    %v4259 = vadd.f32 0.0, %v4258
    %v4260 = vpop.f32.mrb[0].mxu0
    %4261 = vmatprep.mubr.bf16.mxu0 0
    %4262 = vmatmul.mubr.bf16.gmra.mrb[0].mxu0 %v3494
    %v4263 = vpop.f32.mrb[0].mxu0
    %v4264 = vadd.f32 0.0, %v4263
    %v4265 = vpop.f32.mrb[0].mxu0
    %v4266 = vpop.f32.mrb[0].mxu0
    %v4267 = vadd.f32 0.0, %v4266
    %v4268 = vpop.f32.mrb[0].mxu0
    %4269 = vdwg.mxu0
    %v4286 = vunpack.c.l.b16 %v3592
    %v4287 = vunpack.c.l.b16 %v3593
    %v4288 = vunpack.c.l.b16 %v3594
    %v4289 = vunpack.c.l.b16 %v3595
    %v4290 = vunpack.c.l.b16 %v3596
    %v4291 = vunpack.c.l.b16 %v3597
    %v4292 = vunpack.c.l.b16 %v3598
    %v4293 = vunpack.c.l.b16 %v3599
    %v4294 = vunpack.c.l.b16 %v3600
    %v4295 = vunpack.c.l.b16 %v3601
    %v4296 = vunpack.c.l.b16 %v3602
    %v4297 = vunpack.c.l.b16 %v3603
    %v4298 = vunpack.c.l.b16 %v3604
    %v4299 = vunpack.c.l.b16 %v3605
    %v4300 = vunpack.c.l.b16 %v3606
    %v4301 = vunpack.c.l.b16 %v3607
    %v4302 = vpack.c.b16 %v4287, %v4286
    %v4303 = vpack.c.b16 %v4289, %v4288
    %v4304 = vpack.c.b16 %v4291, %v4290
    %v4305 = vpack.c.b16 %v4293, %v4292
    %v4306 = vpack.c.b16 %v4295, %v4294
    %v4307 = vpack.c.b16 %v4297, %v4296
    %v4308 = vpack.c.b16 %v4299, %v4298
    %v4309 = vpack.c.b16 %v4301, %v4300
    %4318 = vmatprep.subr.bf16.mxu0 0
    %4319 = vmatpush1.bf16.msra.mxu0 %v4302
    %4320 = vmatprep.subr.bf16.mxu0 0
    %4321 = vmatpush1.bf16.msra.mxu0 %v4303
    %4322 = vmatprep.subr.bf16.mxu0 0
    %4323 = vmatpush1.bf16.msra.mxu0 %v4304
    %4324 = vmatprep.subr.bf16.mxu0 0
    %4325 = vmatpush1.bf16.msra.mxu0 %v4305
    %4326 = vmatprep.subr.bf16.mxu0 0
    %4327 = vmatpush1.bf16.msra.mxu0 %v4306
    %4328 = vmatprep.subr.bf16.mxu0 0
    %4329 = vmatpush1.bf16.msra.mxu0 %v4307
    %4330 = vmatprep.subr.bf16.mxu0 0
    %4331 = vmatpush1.bf16.msra.mxu0 %v4308
    %4332 = vmatprep.subr.bf16.mxu0 0
    %4333 = vmatpush1.bf16.msra.mxu0 %v4309
    %4334 = vmatprep.subr.bf16.mxu0 0
    %4335 = vmatpush1.bf16.msra.mxu0 0
    %4336 = vmatprep.subr.bf16.mxu0 0
    %4337 = vmatpush1.bf16.msra.mxu0 0
    %4338 = vmatprep.subr.bf16.mxu0 0
    %4339 = vmatpush1.bf16.msra.mxu0 0
    %4340 = vmatprep.subr.bf16.mxu0 0
    %4341 = vmatpush1.bf16.msra.mxu0 0
    %4342 = vmatprep.subr.bf16.mxu0 0
    %4343 = vmatpush1.bf16.msra.mxu0 0
    %4344 = vmatprep.subr.bf16.mxu0 0
    %4345 = vmatpush1.bf16.msra.mxu0 0
    %4346 = vmatprep.subr.bf16.mxu0 0
    %4347 = vmatpush1.bf16.msra.mxu0 0
    %4348 = vmatprep.subr.bf16.mxu0 0
    %4349 = vmatpush1.bf16.msra.mxu0 0
    %4350 = vmatprep.mubr.bf16.mxu0 0
    %4351 = vmatmul.mubr.bf16.gmra.mrb[0].mxu0 %v3493
    %v4352 = vpop.f32.mrb[0].mxu0
    %v4353 = vadd.f32 0.0, %v4352
    %v4354 = vpop.f32.mrb[0].mxu0
    %v4355 = vpop.f32.mrb[0].mxu0
    %v4356 = vadd.f32 0.0, %v4355
    %v4357 = vpop.f32.mrb[0].mxu0
    %4358 = vmatprep.mubr.bf16.mxu0 0
    %4359 = vmatmul.mubr.bf16.gmra.mrb[0].mxu0 %v3494
    %v4360 = vpop.f32.mrb[0].mxu0
    %v4361 = vadd.f32 0.0, %v4360
    %v4362 = vpop.f32.mrb[0].mxu0
    %v4363 = vpop.f32.mrb[0].mxu0
    %v4364 = vadd.f32 0.0, %v4363
    %v4365 = vpop.f32.mrb[0].mxu0
    %4366 = vdwg.mxu0
    %v4383 = vunpack.c.l.b16 %v3608
    %v4384 = vunpack.c.l.b16 %v3609
    %v4385 = vunpack.c.l.b16 %v3610
    %v4386 = vunpack.c.l.b16 %v3611
    %v4387 = vunpack.c.l.b16 %v3612
    %v4388 = vunpack.c.l.b16 %v3613
    %v4389 = vunpack.c.l.b16 %v3614
    %v4390 = vunpack.c.l.b16 %v3615
    %v4391 = vunpack.c.l.b16 %v3616
    %v4392 = vunpack.c.l.b16 %v3617
    %v4393 = vunpack.c.l.b16 %v3618
    %v4394 = vunpack.c.l.b16 %v3619
    %v4395 = vunpack.c.l.b16 %v3620
    %v4396 = vunpack.c.l.b16 %v3621
    %v4397 = vunpack.c.l.b16 %v3622
    %v4398 = vunpack.c.l.b16 %v3623
    %v4399 = vpack.c.b16 %v4384, %v4383
    %v4400 = vpack.c.b16 %v4386, %v4385
    %v4401 = vpack.c.b16 %v4388, %v4387
    %v4402 = vpack.c.b16 %v4390, %v4389
    %v4403 = vpack.c.b16 %v4392, %v4391
    %v4404 = vpack.c.b16 %v4394, %v4393
    %v4405 = vpack.c.b16 %v4396, %v4395
    %v4406 = vpack.c.b16 %v4398, %v4397
    %4415 = vmatprep.subr.bf16.mxu0 0
    %4416 = vmatpush1.bf16.msra.mxu0 %v4399
    %4417 = vmatprep.subr.bf16.mxu0 0
    %4418 = vmatpush1.bf16.msra.mxu0 %v4400
    %4419 = vmatprep.subr.bf16.mxu0 0
    %4420 = vmatpush1.bf16.msra.mxu0 %v4401
    %4421 = vmatprep.subr.bf16.mxu0 0
    %4422 = vmatpush1.bf16.msra.mxu0 %v4402
    %4423 = vmatprep.subr.bf16.mxu0 0
    %4424 = vmatpush1.bf16.msra.mxu0 %v4403
    %4425 = vmatprep.subr.bf16.mxu0 0
    %4426 = vmatpush1.bf16.msra.mxu0 %v4404
    %4427 = vmatprep.subr.bf16.mxu0 0
    %4428 = vmatpush1.bf16.msra.mxu0 %v4405
    %4429 = vmatprep.subr.bf16.mxu0 0
    %4430 = vmatpush1.bf16.msra.mxu0 %v4406
    %4431 = vmatprep.subr.bf16.mxu0 0
    %4432 = vmatpush1.bf16.msra.mxu0 0
    %4433 = vmatprep.subr.bf16.mxu0 0
    %4434 = vmatpush1.bf16.msra.mxu0 0
    %4435 = vmatprep.subr.bf16.mxu0 0
    %4436 = vmatpush1.bf16.msra.mxu0 0
    %4437 = vmatprep.subr.bf16.mxu0 0
    %4438 = vmatpush1.bf16.msra.mxu0 0
    %4439 = vmatprep.subr.bf16.mxu0 0
    %4440 = vmatpush1.bf16.msra.mxu0 0
    %4441 = vmatprep.subr.bf16.mxu0 0
    %4442 = vmatpush1.bf16.msra.mxu0 0
    %4443 = vmatprep.subr.bf16.mxu0 0
    %4444 = vmatpush1.bf16.msra.mxu0 0
    %4445 = vmatprep.subr.bf16.mxu0 0
    %4446 = vmatpush1.bf16.msra.mxu0 0
    %4447 = vmatprep.mubr.bf16.mxu0 0
    %4448 = vmatmul.mubr.bf16.gmra.mrb[0].mxu0 %v3493
    %v4449 = vpop.f32.mrb[0].mxu0
    %v4450 = vadd.f32 0.0, %v4449
    %v4451 = vpop.f32.mrb[0].mxu0
    %v4452 = vpop.f32.mrb[0].mxu0
    %v4453 = vadd.f32 0.0, %v4452
    %v4454 = vpop.f32.mrb[0].mxu0
    %4455 = vmatprep.mubr.bf16.mxu0 0
    %4456 = vmatmul.mubr.bf16.gmra.mrb[0].mxu0 %v3494
    %v4457 = vpop.f32.mrb[0].mxu0
    %v4458 = vadd.f32 0.0, %v4457
    %v4459 = vpop.f32.mrb[0].mxu0
    %v4460 = vpop.f32.mrb[0].mxu0
    %v4461 = vadd.f32 0.0, %v4460
    %v4462 = vpop.f32.mrb[0].mxu0
    %4463 = vdwg.mxu0
    %v4480 = vunpack.c.l.b16 %v3624
    %v4481 = vunpack.c.l.b16 %v3625
    %v4482 = vunpack.c.l.b16 %v3626
    %v4483 = vunpack.c.l.b16 %v3627
    %v4484 = vunpack.c.l.b16 %v3628
    %v4485 = vunpack.c.l.b16 %v3629
    %v4486 = vunpack.c.l.b16 %v3630
    %v4487 = vunpack.c.l.b16 %v3631
    %v4488 = vunpack.c.l.b16 %v3632
    %v4489 = vunpack.c.l.b16 %v3633
    %v4490 = vunpack.c.l.b16 %v3634
    %v4491 = vunpack.c.l.b16 %v3635
    %v4492 = vunpack.c.l.b16 %v3636
    %v4493 = vunpack.c.l.b16 %v3637
    %v4494 = vunpack.c.l.b16 %v3638
    %v4495 = vunpack.c.l.b16 %v3639
    %v4496 = vpack.c.b16 %v4481, %v4480
    %v4497 = vpack.c.b16 %v4483, %v4482
    %v4498 = vpack.c.b16 %v4485, %v4484
    %v4499 = vpack.c.b16 %v4487, %v4486
    %v4500 = vpack.c.b16 %v4489, %v4488
    %v4501 = vpack.c.b16 %v4491, %v4490
    %v4502 = vpack.c.b16 %v4493, %v4492
    %v4503 = vpack.c.b16 %v4495, %v4494
    %4512 = vmatprep.subr.bf16.mxu0 0
    %4513 = vmatpush1.bf16.msra.mxu0 %v4496
    %4514 = vmatprep.subr.bf16.mxu0 0
    %4515 = vmatpush1.bf16.msra.mxu0 %v4497
    %4516 = vmatprep.subr.bf16.mxu0 0
    %4517 = vmatpush1.bf16.msra.mxu0 %v4498
    %4518 = vmatprep.subr.bf16.mxu0 0
    %4519 = vmatpush1.bf16.msra.mxu0 %v4499
    %4520 = vmatprep.subr.bf16.mxu0 0
    %4521 = vmatpush1.bf16.msra.mxu0 %v4500
    %4522 = vmatprep.subr.bf16.mxu0 0
    %4523 = vmatpush1.bf16.msra.mxu0 %v4501
    %4524 = vmatprep.subr.bf16.mxu0 0
    %4525 = vmatpush1.bf16.msra.mxu0 %v4502
    %4526 = vmatprep.subr.bf16.mxu0 0
    %4527 = vmatpush1.bf16.msra.mxu0 %v4503
    %4528 = vmatprep.subr.bf16.mxu0 0
    %4529 = vmatpush1.bf16.msra.mxu0 0
    %4530 = vmatprep.subr.bf16.mxu0 0
    %4531 = vmatpush1.bf16.msra.mxu0 0
    %4532 = vmatprep.subr.bf16.mxu0 0
    %4533 = vmatpush1.bf16.msra.mxu0 0
    %4534 = vmatprep.subr.bf16.mxu0 0
    %4535 = vmatpush1.bf16.msra.mxu0 0
    %4536 = vmatprep.subr.bf16.mxu0 0
    %4537 = vmatpush1.bf16.msra.mxu0 0
    %4538 = vmatprep.subr.bf16.mxu0 0
    %4539 = vmatpush1.bf16.msra.mxu0 0
    %4540 = vmatprep.subr.bf16.mxu0 0
    %4541 = vmatpush1.bf16.msra.mxu0 0
    %4542 = vmatprep.subr.bf16.mxu0 0
    %4543 = vmatpush1.bf16.msra.mxu0 0
    %4544 = vmatprep.mubr.bf16.mxu0 0
    %4545 = vmatmul.mubr.bf16.gmra.mrb[0].mxu0 %v3493
    %v4546 = vpop.f32.mrb[0].mxu0
    %v4547 = vadd.f32 0.0, %v4546
    %v4548 = vpop.f32.mrb[0].mxu0
    %v4549 = vpop.f32.mrb[0].mxu0
    %v4550 = vadd.f32 0.0, %v4549
    %v4551 = vpop.f32.mrb[0].mxu0
    %4552 = vmatprep.mubr.bf16.mxu0 0
    %4553 = vmatmul.mubr.bf16.gmra.mrb[0].mxu0 %v3494
    %v4554 = vpop.f32.mrb[0].mxu0
    %v4555 = vadd.f32 0.0, %v4554
    %v4556 = vpop.f32.mrb[0].mxu0
    %v4557 = vpop.f32.mrb[0].mxu0
    %v4558 = vadd.f32 0.0, %v4557
    %v4559 = vpop.f32.mrb[0].mxu0
    %4560 = vdwg.mxu0
    %v4577 = vunpack.c.l.b16 %v3640
    %v4578 = vunpack.c.l.b16 %v3641
    %v4579 = vunpack.c.l.b16 %v3642
    %v4580 = vunpack.c.l.b16 %v3643
    %v4581 = vunpack.c.l.b16 %v3644
    %v4582 = vunpack.c.l.b16 %v3645
    %v4583 = vunpack.c.l.b16 %v3646
    %v4584 = vunpack.c.l.b16 %v3647
    %v4585 = vunpack.c.l.b16 %v3648
    %v4586 = vunpack.c.l.b16 %v3649
    %v4587 = vunpack.c.l.b16 %v3650
    %v4588 = vunpack.c.l.b16 %v3651
    %v4589 = vunpack.c.l.b16 %v3652
    %v4590 = vunpack.c.l.b16 %v3653
    %v4591 = vunpack.c.l.b16 %v3654
    %v4592 = vunpack.c.l.b16 %v3655
    %v4593 = vpack.c.b16 %v4578, %v4577
    %v4594 = vpack.c.b16 %v4580, %v4579
    %v4595 = vpack.c.b16 %v4582, %v4581
    %v4596 = vpack.c.b16 %v4584, %v4583
    %v4597 = vpack.c.b16 %v4586, %v4585
    %v4598 = vpack.c.b16 %v4588, %v4587
    %v4599 = vpack.c.b16 %v4590, %v4589
    %v4600 = vpack.c.b16 %v4592, %v4591
    %4609 = vmatprep.subr.bf16.mxu0 0
    %4610 = vmatpush1.bf16.msra.mxu0 %v4593
    %4611 = vmatprep.subr.bf16.mxu0 0
    %4612 = vmatpush1.bf16.msra.mxu0 %v4594
    %4613 = vmatprep.subr.bf16.mxu0 0
    %4614 = vmatpush1.bf16.msra.mxu0 %v4595
    %4615 = vmatprep.subr.bf16.mxu0 0
    %4616 = vmatpush1.bf16.msra.mxu0 %v4596
    %4617 = vmatprep.subr.bf16.mxu0 0
    %4618 = vmatpush1.bf16.msra.mxu0 %v4597
    %4619 = vmatprep.subr.bf16.mxu0 0
    %4620 = vmatpush1.bf16.msra.mxu0 %v4598
    %4621 = vmatprep.subr.bf16.mxu0 0
    %4622 = vmatpush1.bf16.msra.mxu0 %v4599
    %4623 = vmatprep.subr.bf16.mxu0 0
    %4624 = vmatpush1.bf16.msra.mxu0 %v4600
    %4625 = vmatprep.subr.bf16.mxu0 0
    %4626 = vmatpush1.bf16.msra.mxu0 0
    %4627 = vmatprep.subr.bf16.mxu0 0
    %4628 = vmatpush1.bf16.msra.mxu0 0
    %4629 = vmatprep.subr.bf16.mxu0 0
    %4630 = vmatpush1.bf16.msra.mxu0 0
    %4631 = vmatprep.subr.bf16.mxu0 0
    %4632 = vmatpush1.bf16.msra.mxu0 0
    %4633 = vmatprep.subr.bf16.mxu0 0
    %4634 = vmatpush1.bf16.msra.mxu0 0
    %4635 = vmatprep.subr.bf16.mxu0 0
    %4636 = vmatpush1.bf16.msra.mxu0 0
    %4637 = vmatprep.subr.bf16.mxu0 0
    %4638 = vmatpush1.bf16.msra.mxu0 0
    %4639 = vmatprep.subr.bf16.mxu0 0
    %4640 = vmatpush1.bf16.msra.mxu0 0
    %4641 = vmatprep.mubr.bf16.mxu0 0
    %4642 = vmatmul.mubr.bf16.gmra.mrb[0].mxu0 %v3493
    %v4643 = vpop.f32.mrb[0].mxu0
    %v4644 = vadd.f32 0.0, %v4643
    %v4645 = vpop.f32.mrb[0].mxu0
    %v4646 = vpop.f32.mrb[0].mxu0
    %v4647 = vadd.f32 0.0, %v4646
    %v4648 = vpop.f32.mrb[0].mxu0
    %4649 = vmatprep.mubr.bf16.mxu0 0
    %4650 = vmatmul.mubr.bf16.gmra.mrb[0].mxu0 %v3494
    %v4651 = vpop.f32.mrb[0].mxu0
    %v4652 = vadd.f32 0.0, %v4651
    %v4653 = vpop.f32.mrb[0].mxu0
    %v4654 = vpop.f32.mrb[0].mxu0
    %v4655 = vadd.f32 0.0, %v4654
    %v4656 = vpop.f32.mrb[0].mxu0
    %4657 = vdwg.mxu0
    %v4674 = vunpack.c.l.b16 %v3656
    %v4675 = vunpack.c.l.b16 %v3657
    %v4676 = vunpack.c.l.b16 %v3658
    %v4677 = vunpack.c.l.b16 %v3659
    %v4678 = vunpack.c.l.b16 %v3660
    %v4679 = vunpack.c.l.b16 %v3661
    %v4680 = vunpack.c.l.b16 %v3662
    %v4681 = vunpack.c.l.b16 %v3663
    %v4682 = vunpack.c.l.b16 %v3664
    %v4683 = vunpack.c.l.b16 %v3665
    %v4684 = vunpack.c.l.b16 %v3666
    %v4685 = vunpack.c.l.b16 %v3667
    %v4686 = vunpack.c.l.b16 %v3668
    %v4687 = vunpack.c.l.b16 %v3669
    %v4688 = vunpack.c.l.b16 %v3670
    %v4689 = vunpack.c.l.b16 %v3671
    %v4690 = vpack.c.b16 %v4675, %v4674
    %v4691 = vpack.c.b16 %v4677, %v4676
    %v4692 = vpack.c.b16 %v4679, %v4678
    %v4693 = vpack.c.b16 %v4681, %v4680
    %v4694 = vpack.c.b16 %v4683, %v4682
    %v4695 = vpack.c.b16 %v4685, %v4684
    %v4696 = vpack.c.b16 %v4687, %v4686
    %v4697 = vpack.c.b16 %v4689, %v4688
    %4706 = vmatprep.subr.bf16.mxu0 0
    %4707 = vmatpush1.bf16.msra.mxu0 %v4690
    %4708 = vmatprep.subr.bf16.mxu0 0
    %4709 = vmatpush1.bf16.msra.mxu0 %v4691
    %4710 = vmatprep.subr.bf16.mxu0 0
    %4711 = vmatpush1.bf16.msra.mxu0 %v4692
    %4712 = vmatprep.subr.bf16.mxu0 0
    %4713 = vmatpush1.bf16.msra.mxu0 %v4693
    %4714 = vmatprep.subr.bf16.mxu0 0
    %4715 = vmatpush1.bf16.msra.mxu0 %v4694
    %4716 = vmatprep.subr.bf16.mxu0 0
    %4717 = vmatpush1.bf16.msra.mxu0 %v4695
    %4718 = vmatprep.subr.bf16.mxu0 0
    %4719 = vmatpush1.bf16.msra.mxu0 %v4696
    %4720 = vmatprep.subr.bf16.mxu0 0
    %4721 = vmatpush1.bf16.msra.mxu0 %v4697
    %4722 = vmatprep.subr.bf16.mxu0 0
    %4723 = vmatpush1.bf16.msra.mxu0 0
    %4724 = vmatprep.subr.bf16.mxu0 0
    %4725 = vmatpush1.bf16.msra.mxu0 0
    %4726 = vmatprep.subr.bf16.mxu0 0
    %4727 = vmatpush1.bf16.msra.mxu0 0
    %4728 = vmatprep.subr.bf16.mxu0 0
    %4729 = vmatpush1.bf16.msra.mxu0 0
    %4730 = vmatprep.subr.bf16.mxu0 0
    %4731 = vmatpush1.bf16.msra.mxu0 0
    %4732 = vmatprep.subr.bf16.mxu0 0
    %4733 = vmatpush1.bf16.msra.mxu0 0
    %4734 = vmatprep.subr.bf16.mxu0 0
    %4735 = vmatpush1.bf16.msra.mxu0 0
    %4736 = vmatprep.subr.bf16.mxu0 0
    %4737 = vmatpush1.bf16.msra.mxu0 0
    %4738 = vmatprep.mubr.bf16.mxu0 0
    %4739 = vmatmul.mubr.bf16.gmra.mrb[0].mxu0 %v3493
    %v4740 = vpop.f32.mrb[0].mxu0
    %v4741 = vadd.f32 0.0, %v4740
    %v4742 = vpop.f32.mrb[0].mxu0
    %v4743 = vpop.f32.mrb[0].mxu0
    %v4744 = vadd.f32 0.0, %v4743
    %v4745 = vpop.f32.mrb[0].mxu0
    %4746 = vmatprep.mubr.bf16.mxu0 0
    %4747 = vmatmul.mubr.bf16.gmra.mrb[0].mxu0 %v3494
    %v4748 = vpop.f32.mrb[0].mxu0
    %v4749 = vadd.f32 0.0, %v4748
    %v4750 = vpop.f32.mrb[0].mxu0
    %v4751 = vpop.f32.mrb[0].mxu0
    %v4752 = vadd.f32 0.0, %v4751
    %v4753 = vpop.f32.mrb[0].mxu0
    %4754 = vdwg.mxu0
    %v4771 = vunpack.c.l.b16 %v3672
    %v4772 = vunpack.c.l.b16 %v3673
    %v4773 = vunpack.c.l.b16 %v3674
    %v4774 = vunpack.c.l.b16 %v3675
    %v4775 = vunpack.c.l.b16 %v3676
    %v4776 = vunpack.c.l.b16 %v3677
    %v4777 = vunpack.c.l.b16 %v3678
    %v4778 = vunpack.c.l.b16 %v3679
    %v4779 = vunpack.c.l.b16 %v3680
    %v4780 = vunpack.c.l.b16 %v3681
    %v4781 = vunpack.c.l.b16 %v3682
    %v4782 = vunpack.c.l.b16 %v3683
    %v4783 = vunpack.c.l.b16 %v3684
    %v4784 = vunpack.c.l.b16 %v3685
    %v4785 = vunpack.c.l.b16 %v3686
    %v4786 = vunpack.c.l.b16 %v3687
    %v4787 = vpack.c.b16 %v4772, %v4771
    %v4788 = vpack.c.b16 %v4774, %v4773
    %v4789 = vpack.c.b16 %v4776, %v4775
    %v4790 = vpack.c.b16 %v4778, %v4777
    %v4791 = vpack.c.b16 %v4780, %v4779
    %v4792 = vpack.c.b16 %v4782, %v4781
    %v4793 = vpack.c.b16 %v4784, %v4783
    %v4794 = vpack.c.b16 %v4786, %v4785
    %4803 = vmatprep.subr.bf16.mxu0 0
    %4804 = vmatpush1.bf16.msra.mxu0 %v4787
    %4805 = vmatprep.subr.bf16.mxu0 0
    %4806 = vmatpush1.bf16.msra.mxu0 %v4788
    %4807 = vmatprep.subr.bf16.mxu0 0
    %4808 = vmatpush1.bf16.msra.mxu0 %v4789
    %4809 = vmatprep.subr.bf16.mxu0 0
    %4810 = vmatpush1.bf16.msra.mxu0 %v4790
    %4811 = vmatprep.subr.bf16.mxu0 0
    %4812 = vmatpush1.bf16.msra.mxu0 %v4791
    %4813 = vmatprep.subr.bf16.mxu0 0
    %4814 = vmatpush1.bf16.msra.mxu0 %v4792
    %4815 = vmatprep.subr.bf16.mxu0 0
    %4816 = vmatpush1.bf16.msra.mxu0 %v4793
    %4817 = vmatprep.subr.bf16.mxu0 0
    %4818 = vmatpush1.bf16.msra.mxu0 %v4794
    %4819 = vmatprep.subr.bf16.mxu0 0
    %4820 = vmatpush1.bf16.msra.mxu0 0
    %4821 = vmatprep.subr.bf16.mxu0 0
    %4822 = vmatpush1.bf16.msra.mxu0 0
    %4823 = vmatprep.subr.bf16.mxu0 0
    %4824 = vmatpush1.bf16.msra.mxu0 0
    %4825 = vmatprep.subr.bf16.mxu0 0
    %4826 = vmatpush1.bf16.msra.mxu0 0
    %4827 = vmatprep.subr.bf16.mxu0 0
    %4828 = vmatpush1.bf16.msra.mxu0 0
    %4829 = vmatprep.subr.bf16.mxu0 0
    %4830 = vmatpush1.bf16.msra.mxu0 0
    %4831 = vmatprep.subr.bf16.mxu0 0
    %4832 = vmatpush1.bf16.msra.mxu0 0
    %4833 = vmatprep.subr.bf16.mxu0 0
    %4834 = vmatpush1.bf16.msra.mxu0 0
    %4835 = vmatprep.mubr.bf16.mxu0 0
    %4836 = vmatmul.mubr.bf16.gmra.mrb[0].mxu0 %v3493
    %v4837 = vpop.f32.mrb[0].mxu0
    %v4838 = vadd.f32 0.0, %v4837
    %v4839 = vpop.f32.mrb[0].mxu0
    %v4840 = vpop.f32.mrb[0].mxu0
    %v4841 = vadd.f32 0.0, %v4840
    %v4842 = vpop.f32.mrb[0].mxu0
    %4843 = vmatprep.mubr.bf16.mxu0 0
    %4844 = vmatmul.mubr.bf16.gmra.mrb[0].mxu0 %v3494
    %v4845 = vpop.f32.mrb[0].mxu0
    %v4846 = vadd.f32 0.0, %v4845
    %v4847 = vpop.f32.mrb[0].mxu0
    %v4848 = vpop.f32.mrb[0].mxu0
    %v4849 = vadd.f32 0.0, %v4848
    %v4850 = vpop.f32.mrb[0].mxu0
    %4851 = vdwg.mxu0
    %v4852 = vpack.c.bf16 %v3774, %v3771
    %v4853 = vpack.c.bf16 %v3782, %v3779
    %v4854 = vpack.c.bf16 %v3871, %v3868
    %v4855 = vpack.c.bf16 %v3879, %v3876
    %v4856 = vpack.c.bf16 %v3968, %v3965
    %v4857 = vpack.c.bf16 %v3976, %v3973
    %v4858 = vpack.c.bf16 %v4065, %v4062
    %v4859 = vpack.c.bf16 %v4073, %v4070
    %v4860 = vpack.c.bf16 %v4162, %v4159
    %v4861 = vpack.c.bf16 %v4170, %v4167
    %v4862 = vpack.c.bf16 %v4259, %v4256
    %v4863 = vpack.c.bf16 %v4267, %v4264
    %v4864 = vpack.c.bf16 %v4356, %v4353
    %v4865 = vpack.c.bf16 %v4364, %v4361
    %v4866 = vpack.c.bf16 %v4453, %v4450
    %v4867 = vpack.c.bf16 %v4461, %v4458
    %v4869 = vsel %vm1654, %v4852, 0
    %v4872 = vsel %vm1654, %v4853, 0
    %v4875 = vsel %vm1654, %v4860, 0
    %v4878 = vsel %vm1654, %v4861, 0
    %4880 = vmatprep.subr.bf16.mxu0 0
    %4881 = vmatpush1.bf16.xpose.msra.mxu0 %v4875
    %4882 = vmatprep.subr.bf16.mxu0 0
    %4883 = vmatpush1.bf16.xpose.msra.mxu0 %v4878
    %4884 = vmatprep.subr.bf16.mxu0 0
    %4885 = vmatpush1.bf16.xpose.msra.mxu0 0
    %4886 = vmatprep.subr.bf16.mxu0 0
    %4887 = vmatpush1.bf16.xpose.msra.mxu0 0
    %4888 = vmatprep.subr.bf16.mxu0 0
    %4889 = vmatpush1.bf16.xpose.msra.mxu0 0
    %4890 = vmatprep.subr.bf16.mxu0 0
    %4891 = vmatpush1.bf16.xpose.msra.mxu0 0
    %4892 = vmatprep.subr.bf16.mxu0 0
    %4893 = vmatpush1.bf16.xpose.msra.mxu0 0
    %4894 = vmatprep.subr.bf16.mxu0 0
    %4895 = vmatpush1.bf16.xpose.msra.mxu0 0
    %4896 = vmatprep.subr.bf16.mxu0 0
    %4897 = vmatpush1.bf16.xpose.msra.mxu0 0
    %4898 = vmatprep.subr.bf16.mxu0 0
    %4899 = vmatpush1.bf16.xpose.msra.mxu0 0
    %4900 = vmatprep.subr.bf16.mxu0 0
    %4901 = vmatpush1.bf16.xpose.msra.mxu0 0
    %4902 = vmatprep.subr.bf16.mxu0 0
    %4903 = vmatpush1.bf16.xpose.msra.mxu0 0
    %4904 = vmatprep.subr.bf16.mxu0 0
    %4905 = vmatpush1.bf16.xpose.msra.mxu0 0
    %4906 = vmatprep.subr.bf16.mxu0 0
    %4907 = vmatpush1.bf16.xpose.msra.mxu0 0
    %4908 = vmatprep.subr.bf16.mxu0 0
    %4909 = vmatpush1.bf16.xpose.msra.mxu0 0
    %4910 = vmatprep.subr.bf16.mxu0 0
    %4911 = vmatpush1.bf16.xpose.msra.mxu0 0
    %4912 = vmatprep.mubr.bf16.mxu0 0
    %4913 = vmatmul.mubr.bf16.gmra.mrb[0].mxu0 %v4869
    %v4914 = vpop.f32.mrb[0].mxu0
    %v4915 = vadd.f32 0.0, %v4914
    %v4916 = vpop.f32.mrb[0].mxu0
    %v4917 = vpop.f32.mrb[0].mxu0
    %v4918 = vadd.f32 0.0, %v4917
    %v4919 = vpop.f32.mrb[0].mxu0
    %4920 = vmatprep.mubr.bf16.mxu0 0
    %4921 = vmatmul.mubr.bf16.gmra.mrb[0].mxu0 %v4872
    %v4922 = vpop.f32.mrb[0].mxu0
    %v4923 = vadd.f32 0.0, %v4922
    %v4924 = vpop.f32.mrb[0].mxu0
    %v4925 = vpop.f32.mrb[0].mxu0
    %v4926 = vadd.f32 0.0, %v4925
    %v4927 = vpop.f32.mrb[0].mxu0
    %4928 = vdwg.mxu0
    %v4930 = vsel %vm1654, %v4854, 0
    %v4933 = vsel %vm1654, %v4855, 0
    %v4936 = vsel %vm1654, %v4862, 0
    %v4939 = vsel %vm1654, %v4863, 0
    %4941 = vmatprep.subr.bf16.mxu0 0
    %4942 = vmatpush1.bf16.xpose.msra.mxu0 %v4936
    %4943 = vmatprep.subr.bf16.mxu0 0
    %4944 = vmatpush1.bf16.xpose.msra.mxu0 %v4939
    %4945 = vmatprep.subr.bf16.mxu0 0
    %4946 = vmatpush1.bf16.xpose.msra.mxu0 0
    %4947 = vmatprep.subr.bf16.mxu0 0
    %4948 = vmatpush1.bf16.xpose.msra.mxu0 0
    %4949 = vmatprep.subr.bf16.mxu0 0
    %4950 = vmatpush1.bf16.xpose.msra.mxu0 0
    %4951 = vmatprep.subr.bf16.mxu0 0
    %4952 = vmatpush1.bf16.xpose.msra.mxu0 0
    %4953 = vmatprep.subr.bf16.mxu0 0
    %4954 = vmatpush1.bf16.xpose.msra.mxu0 0
    %4955 = vmatprep.subr.bf16.mxu0 0
    %4956 = vmatpush1.bf16.xpose.msra.mxu0 0
    %4957 = vmatprep.subr.bf16.mxu0 0
    %4958 = vmatpush1.bf16.xpose.msra.mxu0 0
    %4959 = vmatprep.subr.bf16.mxu0 0
    %4960 = vmatpush1.bf16.xpose.msra.mxu0 0
    %4961 = vmatprep.subr.bf16.mxu0 0
    %4962 = vmatpush1.bf16.xpose.msra.mxu0 0
    %4963 = vmatprep.subr.bf16.mxu0 0
    %4964 = vmatpush1.bf16.xpose.msra.mxu0 0
    %4965 = vmatprep.subr.bf16.mxu0 0
    %4966 = vmatpush1.bf16.xpose.msra.mxu0 0
    %4967 = vmatprep.subr.bf16.mxu0 0
    %4968 = vmatpush1.bf16.xpose.msra.mxu0 0
    %4969 = vmatprep.subr.bf16.mxu0 0
    %4970 = vmatpush1.bf16.xpose.msra.mxu0 0
    %4971 = vmatprep.subr.bf16.mxu0 0
    %4972 = vmatpush1.bf16.xpose.msra.mxu0 0
    %4973 = vmatprep.mubr.bf16.mxu0 0
    %4974 = vmatmul.mubr.bf16.gmra.mrb[0].mxu0 %v4930
    %v4975 = vpop.f32.mrb[0].mxu0
    %v4976 = vadd.f32 0.0, %v4975
    %v4977 = vpop.f32.mrb[0].mxu0
    %v4978 = vpop.f32.mrb[0].mxu0
    %v4979 = vadd.f32 0.0, %v4978
    %v4980 = vpop.f32.mrb[0].mxu0
    %4981 = vmatprep.mubr.bf16.mxu0 0
    %4982 = vmatmul.mubr.bf16.gmra.mrb[0].mxu0 %v4933
    %v4983 = vpop.f32.mrb[0].mxu0
    %v4984 = vadd.f32 0.0, %v4983
    %v4985 = vpop.f32.mrb[0].mxu0
    %v4986 = vpop.f32.mrb[0].mxu0
    %v4987 = vadd.f32 0.0, %v4986
    %v4988 = vpop.f32.mrb[0].mxu0
    %4989 = vdwg.mxu0
    %v4991 = vsel %vm1654, %v4856, 0
    %v4994 = vsel %vm1654, %v4857, 0
    %v4997 = vsel %vm1654, %v4864, 0
    %v5000 = vsel %vm1654, %v4865, 0
    %5002 = vmatprep.subr.bf16.mxu0 0
    %5003 = vmatpush1.bf16.xpose.msra.mxu0 %v4997
    %5004 = vmatprep.subr.bf16.mxu0 0
    %5005 = vmatpush1.bf16.xpose.msra.mxu0 %v5000
    %5006 = vmatprep.subr.bf16.mxu0 0
    %5007 = vmatpush1.bf16.xpose.msra.mxu0 0
    %5008 = vmatprep.subr.bf16.mxu0 0
    %5009 = vmatpush1.bf16.xpose.msra.mxu0 0
    %5010 = vmatprep.subr.bf16.mxu0 0
    %5011 = vmatpush1.bf16.xpose.msra.mxu0 0
    %5012 = vmatprep.subr.bf16.mxu0 0
    %5013 = vmatpush1.bf16.xpose.msra.mxu0 0
    %5014 = vmatprep.subr.bf16.mxu0 0
    %5015 = vmatpush1.bf16.xpose.msra.mxu0 0
    %5016 = vmatprep.subr.bf16.mxu0 0
    %5017 = vmatpush1.bf16.xpose.msra.mxu0 0
    %5018 = vmatprep.subr.bf16.mxu0 0
    %5019 = vmatpush1.bf16.xpose.msra.mxu0 0
    %5020 = vmatprep.subr.bf16.mxu0 0
    %5021 = vmatpush1.bf16.xpose.msra.mxu0 0
    %5022 = vmatprep.subr.bf16.mxu0 0
    %5023 = vmatpush1.bf16.xpose.msra.mxu0 0
    %5024 = vmatprep.subr.bf16.mxu0 0
    %5025 = vmatpush1.bf16.xpose.msra.mxu0 0
    %5026 = vmatprep.subr.bf16.mxu0 0
    %5027 = vmatpush1.bf16.xpose.msra.mxu0 0
    %5028 = vmatprep.subr.bf16.mxu0 0
    %5029 = vmatpush1.bf16.xpose.msra.mxu0 0
    %5030 = vmatprep.subr.bf16.mxu0 0
    %5031 = vmatpush1.bf16.xpose.msra.mxu0 0
    %5032 = vmatprep.subr.bf16.mxu0 0
    %5033 = vmatpush1.bf16.xpose.msra.mxu0 0
    %5034 = vmatprep.mubr.bf16.mxu0 0
    %5035 = vmatmul.mubr.bf16.gmra.mrb[0].mxu0 %v4991
    %v5036 = vpop.f32.mrb[0].mxu0
    %v5037 = vadd.f32 0.0, %v5036
    %v5038 = vpop.f32.mrb[0].mxu0
    %v5039 = vpop.f32.mrb[0].mxu0
    %v5040 = vadd.f32 0.0, %v5039
    %v5041 = vpop.f32.mrb[0].mxu0
    %5042 = vmatprep.mubr.bf16.mxu0 0
    %5043 = vmatmul.mubr.bf16.gmra.mrb[0].mxu0 %v4994
    %v5044 = vpop.f32.mrb[0].mxu0
    %v5045 = vadd.f32 0.0, %v5044
    %v5046 = vpop.f32.mrb[0].mxu0
    %v5047 = vpop.f32.mrb[0].mxu0
    %v5048 = vadd.f32 0.0, %v5047
    %v5049 = vpop.f32.mrb[0].mxu0
    %5050 = vdwg.mxu0
    %v5052 = vsel %vm1654, %v4858, 0
    %v5055 = vsel %vm1654, %v4859, 0
    %v5058 = vsel %vm1654, %v4866, 0
    %v5061 = vsel %vm1654, %v4867, 0
    %5063 = vmatprep.subr.bf16.mxu0 0
    %5064 = vmatpush1.bf16.xpose.msra.mxu0 %v5058
    %5065 = vmatprep.subr.bf16.mxu0 0
    %5066 = vmatpush1.bf16.xpose.msra.mxu0 %v5061
    %5067 = vmatprep.subr.bf16.mxu0 0
    %5068 = vmatpush1.bf16.xpose.msra.mxu0 0
    %5069 = vmatprep.subr.bf16.mxu0 0
    %5070 = vmatpush1.bf16.xpose.msra.mxu0 0
    %5071 = vmatprep.subr.bf16.mxu0 0
    %5072 = vmatpush1.bf16.xpose.msra.mxu0 0
    %5073 = vmatprep.subr.bf16.mxu0 0
    %5074 = vmatpush1.bf16.xpose.msra.mxu0 0
    %5075 = vmatprep.subr.bf16.mxu0 0
    %5076 = vmatpush1.bf16.xpose.msra.mxu0 0
    %5077 = vmatprep.subr.bf16.mxu0 0
    %5078 = vmatpush1.bf16.xpose.msra.mxu0 0
    %5079 = vmatprep.subr.bf16.mxu0 0
    %5080 = vmatpush1.bf16.xpose.msra.mxu0 0
    %5081 = vmatprep.subr.bf16.mxu0 0
    %5082 = vmatpush1.bf16.xpose.msra.mxu0 0
    %5083 = vmatprep.subr.bf16.mxu0 0
    %5084 = vmatpush1.bf16.xpose.msra.mxu0 0
    %5085 = vmatprep.subr.bf16.mxu0 0
    %5086 = vmatpush1.bf16.xpose.msra.mxu0 0
    %5087 = vmatprep.subr.bf16.mxu0 0
    %5088 = vmatpush1.bf16.xpose.msra.mxu0 0
    %5089 = vmatprep.subr.bf16.mxu0 0
    %5090 = vmatpush1.bf16.xpose.msra.mxu0 0
    %5091 = vmatprep.subr.bf16.mxu0 0
    %5092 = vmatpush1.bf16.xpose.msra.mxu0 0
    %5093 = vmatprep.subr.bf16.mxu0 0
    %5094 = vmatpush1.bf16.xpose.msra.mxu0 0
    %5095 = vmatprep.mubr.bf16.mxu0 0
    %5096 = vmatmul.mubr.bf16.gmra.mrb[0].mxu0 %v5052
    %v5097 = vpop.f32.mrb[0].mxu0
    %v5098 = vadd.f32 0.0, %v5097
    %v5099 = vpop.f32.mrb[0].mxu0
    %v5100 = vpop.f32.mrb[0].mxu0
    %v5101 = vadd.f32 0.0, %v5100
    %v5102 = vpop.f32.mrb[0].mxu0
    %5103 = vmatprep.mubr.bf16.mxu0 0
    %5104 = vmatmul.mubr.bf16.gmra.mrb[0].mxu0 %v5055
    %v5105 = vpop.f32.mrb[0].mxu0
    %v5106 = vadd.f32 0.0, %v5105
    %v5107 = vpop.f32.mrb[0].mxu0
    %v5108 = vpop.f32.mrb[0].mxu0
    %v5109 = vadd.f32 0.0, %v5108
    %v5110 = vpop.f32.mrb[0].mxu0
    %5111 = vdwg.mxu0
    %v5112 = vmul.f32 %v4915, 0.17677669
    %v5113 = vmul.f32 %v4918, 0.17677669
    %v5114 = vmul.f32 %v4923, 0.17677669
    %v5115 = vmul.f32 %v4926, 0.17677669
    %v5116 = vmul.f32 %v4976, 0.17677669
    %v5117 = vmul.f32 %v4979, 0.17677669
    %v5118 = vmul.f32 %v4984, 0.17677669
    %v5119 = vmul.f32 %v4987, 0.17677669
    %v5120 = vmul.f32 %v5037, 0.17677669
    %v5121 = vmul.f32 %v5040, 0.17677669
    %v5122 = vmul.f32 %v5045, 0.17677669
    %v5123 = vmul.f32 %v5048, 0.17677669
    %v5124 = vmul.f32 %v5098, 0.17677669
    %v5125 = vmul.f32 %v5101, 0.17677669
    %v5126 = vmul.f32 %v5106, 0.17677669
    %v5127 = vmul.f32 %v5109, 0.17677669
    %v5128 = vadd.f32 %v5112, %v213
    %v5129 = vadd.f32 %v5113, %v214
    %v5130 = vadd.f32 %v5114, %v215
    %v5131 = vadd.f32 %v5115, %v216
    %v5132 = vadd.f32 %v5116, %v213
    %v5133 = vadd.f32 %v5117, %v214
    %v5134 = vadd.f32 %v5118, %v215
    %v5135 = vadd.f32 %v5119, %v216
    %v5136 = vadd.f32 %v5120, %v213
    %v5137 = vadd.f32 %v5121, %v214
    %v5138 = vadd.f32 %v5122, %v215
    %v5139 = vadd.f32 %v5123, %v216
    %v5140 = vadd.f32 %v5124, %v213
    %v5141 = vadd.f32 %v5125, %v214
    %v5142 = vadd.f32 %v5126, %v215
    %v5143 = vadd.f32 %v5127, %v216
    %v5144 = vsel %vm1654, %v5128, -inf
    %5145 = vmax.xlane.f32.xlu0 %v5144
    %v5146 = vpop.xlane.xlu0 %5145
    %v5147 = vsel %vm1654, %v5129, -inf
    %5148 = vmax.xlane.f32.xlu0 %v5147
    %v5149 = vpop.xlane.xlu0 %5148
    %v5150 = vsel %vm1654, %v5130, -inf
    %5151 = vmax.xlane.f32.xlu0 %v5150
    %v5152 = vpop.xlane.xlu0 %5151
    %v5153 = vsel %vm1654, %v5131, -inf
    %5154 = vmax.xlane.f32.xlu0 %v5153
    %v5155 = vpop.xlane.xlu0 %5154
    %v5156 = vsel %vm1654, %v5132, -inf
    %5157 = vmax.xlane.f32.xlu0 %v5156
    %v5158 = vpop.xlane.xlu0 %5157
    %v5159 = vsel %vm1654, %v5133, -inf
    %5160 = vmax.xlane.f32.xlu0 %v5159
    %v5161 = vpop.xlane.xlu0 %5160
    %v5162 = vsel %vm1654, %v5134, -inf
    %5163 = vmax.xlane.f32.xlu0 %v5162
    %v5164 = vpop.xlane.xlu0 %5163
    %v5165 = vsel %vm1654, %v5135, -inf
    %5166 = vmax.xlane.f32.xlu0 %v5165
    %v5167 = vpop.xlane.xlu0 %5166
    %v5168 = vsel %vm1654, %v5136, -inf
    %5169 = vmax.xlane.f32.xlu0 %v5168
    %v5170 = vpop.xlane.xlu0 %5169
    %v5171 = vsel %vm1654, %v5137, -inf
    %5172 = vmax.xlane.f32.xlu0 %v5171
    %v5173 = vpop.xlane.xlu0 %5172
    %v5174 = vsel %vm1654, %v5138, -inf
    %5175 = vmax.xlane.f32.xlu0 %v5174
    %v5176 = vpop.xlane.xlu0 %5175
    %v5177 = vsel %vm1654, %v5139, -inf
    %5178 = vmax.xlane.f32.xlu0 %v5177
    %v5179 = vpop.xlane.xlu0 %5178
    %v5180 = vsel %vm1654, %v5140, -inf
    %5181 = vmax.xlane.f32.xlu0 %v5180
    %v5182 = vpop.xlane.xlu0 %5181
    %v5183 = vsel %vm1654, %v5141, -inf
    %5184 = vmax.xlane.f32.xlu0 %v5183
    %v5185 = vpop.xlane.xlu0 %5184
    %v5186 = vsel %vm1654, %v5142, -inf
    %5187 = vmax.xlane.f32.xlu0 %v5186
    %v5188 = vpop.xlane.xlu0 %5187
    %v5189 = vsel %vm1654, %v5143, -inf
    %5190 = vmax.xlane.f32.xlu0 %v5189
    %v5191 = vpop.xlane.xlu0 %5190
    %v5192 = vsub.f32 %v5128, %v5146
    %v5193 = vsub.f32 %v5129, %v5149
    %v5194 = vsub.f32 %v5130, %v5152
    %v5195 = vsub.f32 %v5131, %v5155
    %v5196 = vsub.f32 %v5132, %v5158
    %v5197 = vsub.f32 %v5133, %v5161
    %v5198 = vsub.f32 %v5134, %v5164
    %v5199 = vsub.f32 %v5135, %v5167
    %v5200 = vsub.f32 %v5136, %v5170
    %v5201 = vsub.f32 %v5137, %v5173
    %v5202 = vsub.f32 %v5138, %v5176
    %v5203 = vsub.f32 %v5139, %v5179
    %v5204 = vsub.f32 %v5140, %v5182
    %v5205 = vsub.f32 %v5141, %v5185
    %v5206 = vsub.f32 %v5142, %v5188
    %v5207 = vsub.f32 %v5143, %v5191
    %v5208 = vmul.f32 %v5192, 1.442695
    %v5209 = vpow.pop %v5208
    %v5210 = vmul.f32 %v5193, 1.442695
    %v5211 = vpow.pop %v5210
    %v5212 = vmul.f32 %v5194, 1.442695
    %v5213 = vpow.pop %v5212
    %v5214 = vmul.f32 %v5195, 1.442695
    %v5215 = vpow.pop %v5214
    %v5216 = vmul.f32 %v5196, 1.442695
    %v5217 = vpow.pop %v5216
    %v5218 = vmul.f32 %v5197, 1.442695
    %v5219 = vpow.pop %v5218
    %v5220 = vmul.f32 %v5198, 1.442695
    %v5221 = vpow.pop %v5220
    %v5222 = vmul.f32 %v5199, 1.442695
    %v5223 = vpow.pop %v5222
    %v5224 = vmul.f32 %v5200, 1.442695
    %v5225 = vpow.pop %v5224
    %v5226 = vmul.f32 %v5201, 1.442695
    %v5227 = vpow.pop %v5226
    %v5228 = vmul.f32 %v5202, 1.442695
    %v5229 = vpow.pop %v5228
    %v5230 = vmul.f32 %v5203, 1.442695
    %v5231 = vpow.pop %v5230
    %v5232 = vmul.f32 %v5204, 1.442695
    %v5233 = vpow.pop %v5232
    %v5234 = vmul.f32 %v5205, 1.442695
    %v5235 = vpow.pop %v5234
    %v5236 = vmul.f32 %v5206, 1.442695
    %v5237 = vpow.pop %v5236
    %v5238 = vmul.f32 %v5207, 1.442695
    %v5239 = vpow.pop %v5238
    %v5240 = vsel %vm1654, %v5209, 0.0
    %5241 = vadd.xlane.f32.xlu0 %v5240
    %v5242 = vpop.xlane.xlu0 %5241
    %v5243 = vsel %vm1654, %v5211, 0.0
    %5244 = vadd.xlane.f32.xlu0 %v5243
    %v5245 = vpop.xlane.xlu0 %5244
    %v5246 = vsel %vm1654, %v5213, 0.0
    %5247 = vadd.xlane.f32.xlu0 %v5246
    %v5248 = vpop.xlane.xlu0 %5247
    %v5249 = vsel %vm1654, %v5215, 0.0
    %5250 = vadd.xlane.f32.xlu0 %v5249
    %v5251 = vpop.xlane.xlu0 %5250
    %v5252 = vsel %vm1654, %v5217, 0.0
    %5253 = vadd.xlane.f32.xlu0 %v5252
    %v5254 = vpop.xlane.xlu0 %5253
    %v5255 = vsel %vm1654, %v5219, 0.0
    %5256 = vadd.xlane.f32.xlu0 %v5255
    %v5257 = vpop.xlane.xlu0 %5256
    %v5258 = vsel %vm1654, %v5221, 0.0
    %5259 = vadd.xlane.f32.xlu0 %v5258
    %v5260 = vpop.xlane.xlu0 %5259
    %v5261 = vsel %vm1654, %v5223, 0.0
    %5262 = vadd.xlane.f32.xlu0 %v5261
    %v5263 = vpop.xlane.xlu0 %5262
    %v5264 = vsel %vm1654, %v5225, 0.0
    %5265 = vadd.xlane.f32.xlu0 %v5264
    %v5266 = vpop.xlane.xlu0 %5265
    %v5267 = vsel %vm1654, %v5227, 0.0
    %5268 = vadd.xlane.f32.xlu0 %v5267
    %v5269 = vpop.xlane.xlu0 %5268
    %v5270 = vsel %vm1654, %v5229, 0.0
    %5271 = vadd.xlane.f32.xlu0 %v5270
    %v5272 = vpop.xlane.xlu0 %5271
    %v5273 = vsel %vm1654, %v5231, 0.0
    %5274 = vadd.xlane.f32.xlu0 %v5273
    %v5275 = vpop.xlane.xlu0 %5274
    %v5276 = vsel %vm1654, %v5233, 0.0
    %5277 = vadd.xlane.f32.xlu0 %v5276
    %v5278 = vpop.xlane.xlu0 %5277
    %v5279 = vsel %vm1654, %v5235, 0.0
    %5280 = vadd.xlane.f32.xlu0 %v5279
    %v5281 = vpop.xlane.xlu0 %5280
    %v5282 = vsel %vm1654, %v5237, 0.0
    %5283 = vadd.xlane.f32.xlu0 %v5282
    %v5284 = vpop.xlane.xlu0 %5283
    %v5285 = vsel %vm1654, %v5239, 0.0
    %5286 = vadd.xlane.f32.xlu0 %v5285
    %v5287 = vpop.xlane.xlu0 %5286
    %v5288 = vrcp.pop %v5242
    %v5289 = vrcp.pop %v5245
    %v5290 = vrcp.pop %v5248
    %v5291 = vrcp.pop %v5251
    %v5292 = vrcp.pop %v5254
    %v5293 = vrcp.pop %v5257
    %v5294 = vrcp.pop %v5260
    %v5295 = vrcp.pop %v5263
    %v5296 = vrcp.pop %v5266
    %v5297 = vrcp.pop %v5269
    %v5298 = vrcp.pop %v5272
    %v5299 = vrcp.pop %v5275
    %v5300 = vrcp.pop %v5278
    %v5301 = vrcp.pop %v5281
    %v5302 = vrcp.pop %v5284
    %v5303 = vrcp.pop %v5287
    %v5304 = vmul.f32 %v5209, %v5288
    %v5305 = vmul.f32 %v5211, %v5289
    %v5306 = vmul.f32 %v5213, %v5290
    %v5307 = vmul.f32 %v5215, %v5291
    %v5308 = vmul.f32 %v5217, %v5292
    %v5309 = vmul.f32 %v5219, %v5293
    %v5310 = vmul.f32 %v5221, %v5294
    %v5311 = vmul.f32 %v5223, %v5295
    %v5312 = vmul.f32 %v5225, %v5296
    %v5313 = vmul.f32 %v5227, %v5297
    %v5314 = vmul.f32 %v5229, %v5298
    %v5315 = vmul.f32 %v5231, %v5299
    %v5316 = vmul.f32 %v5233, %v5300
    %v5317 = vmul.f32 %v5235, %v5301
    %v5318 = vmul.f32 %v5237, %v5302
    %v5319 = vmul.f32 %v5239, %v5303
    %v5320 = vpack.c.bf16 %v5305, %v5304
    %v5321 = vpack.c.bf16 %v5307, %v5306
    %v5322 = vpack.c.bf16 %v5309, %v5308
    %v5323 = vpack.c.bf16 %v5311, %v5310
    %v5324 = vpack.c.bf16 %v5313, %v5312
    %v5325 = vpack.c.bf16 %v5315, %v5314
    %v5326 = vpack.c.bf16 %v5317, %v5316
    %v5327 = vpack.c.bf16 %v5319, %v5318
    %v5328 = vpack.c.bf16 %v4550, %v4547
    %v5329 = vpack.c.bf16 %v4558, %v4555
    %v5330 = vpack.c.bf16 %v4647, %v4644
    %v5331 = vpack.c.bf16 %v4655, %v4652
    %v5332 = vpack.c.bf16 %v4744, %v4741
    %v5333 = vpack.c.bf16 %v4752, %v4749
    %v5334 = vpack.c.bf16 %v4841, %v4838
    %v5335 = vpack.c.bf16 %v4849, %v4846
    %v5337 = vsel %vm1654, %v5320, 0
    %v5340 = vsel %vm1654, %v5321, 0
    %5342 = vmatprep.subr.bf16.mxu0 0
    %5343 = vmatpush1.bf16.msra.mxu0 %v5328
    %5344 = vmatprep.subr.bf16.mxu0 0
    %5345 = vmatpush1.bf16.msra.mxu0 %v5329
    %5346 = vmatprep.subr.bf16.mxu0 0
    %5347 = vmatpush1.bf16.msra.mxu0 0
    %5348 = vmatprep.subr.bf16.mxu0 0
    %5349 = vmatpush1.bf16.msra.mxu0 0
    %5350 = vmatprep.subr.bf16.mxu0 0
    %5351 = vmatpush1.bf16.msra.mxu0 0
    %5352 = vmatprep.subr.bf16.mxu0 0
    %5353 = vmatpush1.bf16.msra.mxu0 0
    %5354 = vmatprep.subr.bf16.mxu0 0
    %5355 = vmatpush1.bf16.msra.mxu0 0
    %5356 = vmatprep.subr.bf16.mxu0 0
    %5357 = vmatpush1.bf16.msra.mxu0 0
    %5358 = vmatprep.subr.bf16.mxu0 0
    %5359 = vmatpush1.bf16.msra.mxu0 0
    %5360 = vmatprep.subr.bf16.mxu0 0
    %5361 = vmatpush1.bf16.msra.mxu0 0
    %5362 = vmatprep.subr.bf16.mxu0 0
    %5363 = vmatpush1.bf16.msra.mxu0 0
    %5364 = vmatprep.subr.bf16.mxu0 0
    %5365 = vmatpush1.bf16.msra.mxu0 0
    %5366 = vmatprep.subr.bf16.mxu0 0
    %5367 = vmatpush1.bf16.msra.mxu0 0
    %5368 = vmatprep.subr.bf16.mxu0 0
    %5369 = vmatpush1.bf16.msra.mxu0 0
    %5370 = vmatprep.subr.bf16.mxu0 0
    %5371 = vmatpush1.bf16.msra.mxu0 0
    %5372 = vmatprep.subr.bf16.mxu0 0
    %5373 = vmatpush1.bf16.msra.mxu0 0
    %5374 = vmatprep.mubr.bf16.mxu0 0
    %5375 = vmatmul.mubr.bf16.gmra.mrb[0].mxu0 %v5337
    %v5376 = vpop.f32.mrb[0].mxu0
    %v5377 = vadd.f32 0.0, %v5376
    %v5378 = vpop.f32.mrb[0].mxu0
    %v5379 = vpop.f32.mrb[0].mxu0
    %v5380 = vadd.f32 0.0, %v5379
    %v5381 = vpop.f32.mrb[0].mxu0
    %5382 = vmatprep.mubr.bf16.mxu0 0
    %5383 = vmatmul.mubr.bf16.gmra.mrb[0].mxu0 %v5340
    %v5384 = vpop.f32.mrb[0].mxu0
    %v5385 = vadd.f32 0.0, %v5384
    %v5386 = vpop.f32.mrb[0].mxu0
    %v5387 = vpop.f32.mrb[0].mxu0
    %v5388 = vadd.f32 0.0, %v5387
    %v5389 = vpop.f32.mrb[0].mxu0
    %5390 = vdwg.mxu0
    %v5392 = vsel %vm1654, %v5322, 0
    %v5395 = vsel %vm1654, %v5323, 0
    %5397 = vmatprep.subr.bf16.mxu0 0
    %5398 = vmatpush1.bf16.msra.mxu0 %v5330
    %5399 = vmatprep.subr.bf16.mxu0 0
    %5400 = vmatpush1.bf16.msra.mxu0 %v5331
    %5401 = vmatprep.subr.bf16.mxu0 0
    %5402 = vmatpush1.bf16.msra.mxu0 0
    %5403 = vmatprep.subr.bf16.mxu0 0
    %5404 = vmatpush1.bf16.msra.mxu0 0
    %5405 = vmatprep.subr.bf16.mxu0 0
    %5406 = vmatpush1.bf16.msra.mxu0 0
    %5407 = vmatprep.subr.bf16.mxu0 0
    %5408 = vmatpush1.bf16.msra.mxu0 0
    %5409 = vmatprep.subr.bf16.mxu0 0
    %5410 = vmatpush1.bf16.msra.mxu0 0
    %5411 = vmatprep.subr.bf16.mxu0 0
    %5412 = vmatpush1.bf16.msra.mxu0 0
    %5413 = vmatprep.subr.bf16.mxu0 0
    %5414 = vmatpush1.bf16.msra.mxu0 0
    %5415 = vmatprep.subr.bf16.mxu0 0
    %5416 = vmatpush1.bf16.msra.mxu0 0
    %5417 = vmatprep.subr.bf16.mxu0 0
    %5418 = vmatpush1.bf16.msra.mxu0 0
    %5419 = vmatprep.subr.bf16.mxu0 0
    %5420 = vmatpush1.bf16.msra.mxu0 0
    %5421 = vmatprep.subr.bf16.mxu0 0
    %5422 = vmatpush1.bf16.msra.mxu0 0
    %5423 = vmatprep.subr.bf16.mxu0 0
    %5424 = vmatpush1.bf16.msra.mxu0 0
    %5425 = vmatprep.subr.bf16.mxu0 0
    %5426 = vmatpush1.bf16.msra.mxu0 0
    %5427 = vmatprep.subr.bf16.mxu0 0
    %5428 = vmatpush1.bf16.msra.mxu0 0
    %5429 = vmatprep.mubr.bf16.mxu0 0
    %5430 = vmatmul.mubr.bf16.gmra.mrb[0].mxu0 %v5392
    %v5431 = vpop.f32.mrb[0].mxu0
    %v5432 = vadd.f32 0.0, %v5431
    %v5433 = vpop.f32.mrb[0].mxu0
    %v5434 = vpop.f32.mrb[0].mxu0
    %v5435 = vadd.f32 0.0, %v5434
    %v5436 = vpop.f32.mrb[0].mxu0
    %5437 = vmatprep.mubr.bf16.mxu0 0
    %5438 = vmatmul.mubr.bf16.gmra.mrb[0].mxu0 %v5395
    %v5439 = vpop.f32.mrb[0].mxu0
    %v5440 = vadd.f32 0.0, %v5439
    %v5441 = vpop.f32.mrb[0].mxu0
    %v5442 = vpop.f32.mrb[0].mxu0
    %v5443 = vadd.f32 0.0, %v5442
    %v5444 = vpop.f32.mrb[0].mxu0
    %5445 = vdwg.mxu0
    %v5447 = vsel %vm1654, %v5324, 0
    %v5450 = vsel %vm1654, %v5325, 0
    %5452 = vmatprep.subr.bf16.mxu0 0
    %5453 = vmatpush1.bf16.msra.mxu0 %v5332
    %5454 = vmatprep.subr.bf16.mxu0 0
    %5455 = vmatpush1.bf16.msra.mxu0 %v5333
    %5456 = vmatprep.subr.bf16.mxu0 0
    %5457 = vmatpush1.bf16.msra.mxu0 0
    %5458 = vmatprep.subr.bf16.mxu0 0
    %5459 = vmatpush1.bf16.msra.mxu0 0
    %5460 = vmatprep.subr.bf16.mxu0 0
    %5461 = vmatpush1.bf16.msra.mxu0 0
    %5462 = vmatprep.subr.bf16.mxu0 0
    %5463 = vmatpush1.bf16.msra.mxu0 0
    %5464 = vmatprep.subr.bf16.mxu0 0
    %5465 = vmatpush1.bf16.msra.mxu0 0
    %5466 = vmatprep.subr.bf16.mxu0 0
    %5467 = vmatpush1.bf16.msra.mxu0 0
    %5468 = vmatprep.subr.bf16.mxu0 0
    %5469 = vmatpush1.bf16.msra.mxu0 0
    %5470 = vmatprep.subr.bf16.mxu0 0
    %5471 = vmatpush1.bf16.msra.mxu0 0
    %5472 = vmatprep.subr.bf16.mxu0 0
    %5473 = vmatpush1.bf16.msra.mxu0 0
    %5474 = vmatprep.subr.bf16.mxu0 0
    %5475 = vmatpush1.bf16.msra.mxu0 0
    %5476 = vmatprep.subr.bf16.mxu0 0
    %5477 = vmatpush1.bf16.msra.mxu0 0
    %5478 = vmatprep.subr.bf16.mxu0 0
    %5479 = vmatpush1.bf16.msra.mxu0 0
    %5480 = vmatprep.subr.bf16.mxu0 0
    %5481 = vmatpush1.bf16.msra.mxu0 0
    %5482 = vmatprep.subr.bf16.mxu0 0
    %5483 = vmatpush1.bf16.msra.mxu0 0
    %5484 = vmatprep.mubr.bf16.mxu0 0
    %5485 = vmatmul.mubr.bf16.gmra.mrb[0].mxu0 %v5447
    %v5486 = vpop.f32.mrb[0].mxu0
    %v5487 = vadd.f32 0.0, %v5486
    %v5488 = vpop.f32.mrb[0].mxu0
    %v5489 = vpop.f32.mrb[0].mxu0
    %v5490 = vadd.f32 0.0, %v5489
    %v5491 = vpop.f32.mrb[0].mxu0
    %5492 = vmatprep.mubr.bf16.mxu0 0
    %5493 = vmatmul.mubr.bf16.gmra.mrb[0].mxu0 %v5450
    %v5494 = vpop.f32.mrb[0].mxu0
    %v5495 = vadd.f32 0.0, %v5494
    %v5496 = vpop.f32.mrb[0].mxu0
    %v5497 = vpop.f32.mrb[0].mxu0
    %v5498 = vadd.f32 0.0, %v5497
    %v5499 = vpop.f32.mrb[0].mxu0
    %5500 = vdwg.mxu0
    %v5502 = vsel %vm1654, %v5326, 0
    %v5505 = vsel %vm1654, %v5327, 0
    %5507 = vmatprep.subr.bf16.mxu0 0
    %5508 = vmatpush1.bf16.msra.mxu0 %v5334
    %5509 = vmatprep.subr.bf16.mxu0 0
    %5510 = vmatpush1.bf16.msra.mxu0 %v5335
    %5511 = vmatprep.subr.bf16.mxu0 0
    %5512 = vmatpush1.bf16.msra.mxu0 0
    %5513 = vmatprep.subr.bf16.mxu0 0
    %5514 = vmatpush1.bf16.msra.mxu0 0
    %5515 = vmatprep.subr.bf16.mxu0 0
    %5516 = vmatpush1.bf16.msra.mxu0 0
    %5517 = vmatprep.subr.bf16.mxu0 0
    %5518 = vmatpush1.bf16.msra.mxu0 0
    %5519 = vmatprep.subr.bf16.mxu0 0
    %5520 = vmatpush1.bf16.msra.mxu0 0
    %5521 = vmatprep.subr.bf16.mxu0 0
    %5522 = vmatpush1.bf16.msra.mxu0 0
    %5523 = vmatprep.subr.bf16.mxu0 0
    %5524 = vmatpush1.bf16.msra.mxu0 0
    %5525 = vmatprep.subr.bf16.mxu0 0
    %5526 = vmatpush1.bf16.msra.mxu0 0
    %5527 = vmatprep.subr.bf16.mxu0 0
    %5528 = vmatpush1.bf16.msra.mxu0 0
    %5529 = vmatprep.subr.bf16.mxu0 0
    %5530 = vmatpush1.bf16.msra.mxu0 0
    %5531 = vmatprep.subr.bf16.mxu0 0
    %5532 = vmatpush1.bf16.msra.mxu0 0
    %5533 = vmatprep.subr.bf16.mxu0 0
    %5534 = vmatpush1.bf16.msra.mxu0 0
    %5535 = vmatprep.subr.bf16.mxu0 0
    %5536 = vmatpush1.bf16.msra.mxu0 0
    %5537 = vmatprep.subr.bf16.mxu0 0
    %5538 = vmatpush1.bf16.msra.mxu0 0
    %5539 = vmatprep.mubr.bf16.mxu0 0
    %5540 = vmatmul.mubr.bf16.gmra.mrb[0].mxu0 %v5502
    %v5541 = vpop.f32.mrb[0].mxu0
    %v5542 = vadd.f32 0.0, %v5541
    %v5543 = vpop.f32.mrb[0].mxu0
    %v5544 = vpop.f32.mrb[0].mxu0
    %v5545 = vadd.f32 0.0, %v5544
    %v5546 = vpop.f32.mrb[0].mxu0
    %5547 = vmatprep.mubr.bf16.mxu0 0
    %5548 = vmatmul.mubr.bf16.gmra.mrb[0].mxu0 %v5505
    %v5549 = vpop.f32.mrb[0].mxu0
    %v5550 = vadd.f32 0.0, %v5549
    %v5551 = vpop.f32.mrb[0].mxu0
    %v5552 = vpop.f32.mrb[0].mxu0
    %v5553 = vadd.f32 0.0, %v5552
    %v5554 = vpop.f32.mrb[0].mxu0
    %5555 = vdwg.mxu0
    %v5556 = vpack.c.bf16 %v5380, %v5377
    %v5557 = vpack.c.bf16 %v5388, %v5385
    %v5558 = vpack.c.bf16 %v5435, %v5432
    %v5559 = vpack.c.bf16 %v5443, %v5440
    %v5560 = vpack.c.bf16 %v5490, %v5487
    %v5561 = vpack.c.bf16 %v5498, %v5495
    %v5562 = vpack.c.bf16 %v5545, %v5542
    %v5563 = vpack.c.bf16 %v5553, %v5550
    %s5564 = scalar_lea.vmem %s7, 64
    %v5565 = vld [vmem:[%s5564] sm:$0xf]
    %v5566 = vld [vmem:[%s5564 + $0x4] sm:$0xf]
    %v5567 = vld [vmem:[%s5564 + $0x8] sm:$0xf]
    %v5568 = vld [vmem:[%s5564 + $0xc] sm:$0xf]
    %v5569 = vld [vmem:[%s5564 + $0x10] sm:$0xf]
    %v5570 = vld [vmem:[%s5564 + $0x14] sm:$0xf]
    %v5571 = vld [vmem:[%s5564 + $0x18] sm:$0xf]
    %v5572 = vld [vmem:[%s5564 + $0x1c] sm:$0xf]
    %v5573 = vld [vmem:[%s5564 + $0x20] sm:$0xf]
    %v5574 = vld [vmem:[%s5564 + $0x24] sm:$0xf]
    %v5575 = vld [vmem:[%s5564 + $0x28] sm:$0xf]
    %v5576 = vld [vmem:[%s5564 + $0x2c] sm:$0xf]
    %v5577 = vld [vmem:[%s5564 + $0x30] sm:$0xf]
    %v5578 = vld [vmem:[%s5564 + $0x34] sm:$0xf]
    %v5579 = vld [vmem:[%s5564 + $0x38] sm:$0xf]
    %v5580 = vld [vmem:[%s5564 + $0x3c] sm:$0xf]
    %v5585 = vunpack.c.l.b16 %v5565
    %v5586 = vunpack.c.l.b16 %v5566
    %v5587 = vunpack.c.l.b16 %v5567
    %v5588 = vunpack.c.l.b16 %v5568
    %v5589 = vpack.c.b16 %v5586, %v5585
    %v5590 = vpack.c.b16 %v5588, %v5587
    %v5594 = vsel %vm1654, %v5556, 0
    %v5597 = vsel %vm1654, %v5557, 0
    %5599 = vmatprep.subr.bf16.mxu0 0
    %5600 = vmatpush1.bf16.msra.mxu0 %v5589
    %5601 = vmatprep.subr.bf16.mxu0 0
    %5602 = vmatpush1.bf16.msra.mxu0 %v5590
    %5603 = vmatprep.subr.bf16.mxu0 0
    %5604 = vmatpush1.bf16.msra.mxu0 0
    %5605 = vmatprep.subr.bf16.mxu0 0
    %5606 = vmatpush1.bf16.msra.mxu0 0
    %5607 = vmatprep.subr.bf16.mxu0 0
    %5608 = vmatpush1.bf16.msra.mxu0 0
    %5609 = vmatprep.subr.bf16.mxu0 0
    %5610 = vmatpush1.bf16.msra.mxu0 0
    %5611 = vmatprep.subr.bf16.mxu0 0
    %5612 = vmatpush1.bf16.msra.mxu0 0
    %5613 = vmatprep.subr.bf16.mxu0 0
    %5614 = vmatpush1.bf16.msra.mxu0 0
    %5615 = vmatprep.subr.bf16.mxu0 0
    %5616 = vmatpush1.bf16.msra.mxu0 0
    %5617 = vmatprep.subr.bf16.mxu0 0
    %5618 = vmatpush1.bf16.msra.mxu0 0
    %5619 = vmatprep.subr.bf16.mxu0 0
    %5620 = vmatpush1.bf16.msra.mxu0 0
    %5621 = vmatprep.subr.bf16.mxu0 0
    %5622 = vmatpush1.bf16.msra.mxu0 0
    %5623 = vmatprep.subr.bf16.mxu0 0
    %5624 = vmatpush1.bf16.msra.mxu0 0
    %5625 = vmatprep.subr.bf16.mxu0 0
    %5626 = vmatpush1.bf16.msra.mxu0 0
    %5627 = vmatprep.subr.bf16.mxu0 0
    %5628 = vmatpush1.bf16.msra.mxu0 0
    %5629 = vmatprep.subr.bf16.mxu0 0
    %5630 = vmatpush1.bf16.msra.mxu0 0
    %5631 = vmatprep.mubr.bf16.mxu0 0
    %5632 = vmatmul.mubr.bf16.gmra.mrb[0].mxu0 %v5594
    %v5633 = vpop.f32.mrb[0].mxu0
    %v5634 = vadd.f32 0.0, %v5633
    %v5635 = vpop.f32.mrb[0].mxu0
    %v5636 = vpop.f32.mrb[0].mxu0
    %v5637 = vadd.f32 0.0, %v5636
    %v5638 = vpop.f32.mrb[0].mxu0
    %5639 = vmatprep.mubr.bf16.mxu0 0
    %5640 = vmatmul.mubr.bf16.gmra.mrb[0].mxu0 %v5597
    %v5641 = vpop.f32.mrb[0].mxu0
    %v5642 = vadd.f32 0.0, %v5641
    %v5643 = vpop.f32.mrb[0].mxu0
    %v5644 = vpop.f32.mrb[0].mxu0
    %v5645 = vadd.f32 0.0, %v5644
    %v5646 = vpop.f32.mrb[0].mxu0
    %5647 = vdwg.mxu0
    %v5652 = vunpack.c.l.b16 %v5569
    %v5653 = vunpack.c.l.b16 %v5570
    %v5654 = vunpack.c.l.b16 %v5571
    %v5655 = vunpack.c.l.b16 %v5572
    %v5656 = vpack.c.b16 %v5653, %v5652
    %v5657 = vpack.c.b16 %v5655, %v5654
    %v5661 = vsel %vm1654, %v5558, 0
    %v5664 = vsel %vm1654, %v5559, 0
    %5666 = vmatprep.subr.bf16.mxu0 0
    %5667 = vmatpush1.bf16.msra.mxu0 %v5656
    %5668 = vmatprep.subr.bf16.mxu0 0
    %5669 = vmatpush1.bf16.msra.mxu0 %v5657
    %5670 = vmatprep.subr.bf16.mxu0 0
    %5671 = vmatpush1.bf16.msra.mxu0 0
    %5672 = vmatprep.subr.bf16.mxu0 0
    %5673 = vmatpush1.bf16.msra.mxu0 0
    %5674 = vmatprep.subr.bf16.mxu0 0
    %5675 = vmatpush1.bf16.msra.mxu0 0
    %5676 = vmatprep.subr.bf16.mxu0 0
    %5677 = vmatpush1.bf16.msra.mxu0 0
    %5678 = vmatprep.subr.bf16.mxu0 0
    %5679 = vmatpush1.bf16.msra.mxu0 0
    %5680 = vmatprep.subr.bf16.mxu0 0
    %5681 = vmatpush1.bf16.msra.mxu0 0
    %5682 = vmatprep.subr.bf16.mxu0 0
    %5683 = vmatpush1.bf16.msra.mxu0 0
    %5684 = vmatprep.subr.bf16.mxu0 0
    %5685 = vmatpush1.bf16.msra.mxu0 0
    %5686 = vmatprep.subr.bf16.mxu0 0
    %5687 = vmatpush1.bf16.msra.mxu0 0
    %5688 = vmatprep.subr.bf16.mxu0 0
    %5689 = vmatpush1.bf16.msra.mxu0 0
    %5690 = vmatprep.subr.bf16.mxu0 0
    %5691 = vmatpush1.bf16.msra.mxu0 0
    %5692 = vmatprep.subr.bf16.mxu0 0
    %5693 = vmatpush1.bf16.msra.mxu0 0
    %5694 = vmatprep.subr.bf16.mxu0 0
    %5695 = vmatpush1.bf16.msra.mxu0 0
    %5696 = vmatprep.subr.bf16.mxu0 0
    %5697 = vmatpush1.bf16.msra.mxu0 0
    %5698 = vmatprep.mubr.bf16.mxu0 0
    %5699 = vmatmul.mubr.bf16.gmra.mrb[0].mxu0 %v5661
    %v5700 = vpop.f32.mrb[0].mxu0
    %v5701 = vadd.f32 0.0, %v5700
    %v5702 = vpop.f32.mrb[0].mxu0
    %v5703 = vpop.f32.mrb[0].mxu0
    %v5704 = vadd.f32 0.0, %v5703
    %v5705 = vpop.f32.mrb[0].mxu0
    %5706 = vmatprep.mubr.bf16.mxu0 0
    %5707 = vmatmul.mubr.bf16.gmra.mrb[0].mxu0 %v5664
    %v5708 = vpop.f32.mrb[0].mxu0
    %v5709 = vadd.f32 0.0, %v5708
    %v5710 = vpop.f32.mrb[0].mxu0
    %v5711 = vpop.f32.mrb[0].mxu0
    %v5712 = vadd.f32 0.0, %v5711
    %v5713 = vpop.f32.mrb[0].mxu0
    %5714 = vdwg.mxu0
    %v5719 = vunpack.c.l.b16 %v5573
    %v5720 = vunpack.c.l.b16 %v5574
    %v5721 = vunpack.c.l.b16 %v5575
    %v5722 = vunpack.c.l.b16 %v5576
    %v5723 = vpack.c.b16 %v5720, %v5719
    %v5724 = vpack.c.b16 %v5722, %v5721
    %v5728 = vsel %vm1654, %v5560, 0
    %v5731 = vsel %vm1654, %v5561, 0
    %5733 = vmatprep.subr.bf16.mxu0 0
    %5734 = vmatpush1.bf16.msra.mxu0 %v5723
    %5735 = vmatprep.subr.bf16.mxu0 0
    %5736 = vmatpush1.bf16.msra.mxu0 %v5724
    %5737 = vmatprep.subr.bf16.mxu0 0
    %5738 = vmatpush1.bf16.msra.mxu0 0
    %5739 = vmatprep.subr.bf16.mxu0 0
    %5740 = vmatpush1.bf16.msra.mxu0 0
    %5741 = vmatprep.subr.bf16.mxu0 0
    %5742 = vmatpush1.bf16.msra.mxu0 0
    %5743 = vmatprep.subr.bf16.mxu0 0
    %5744 = vmatpush1.bf16.msra.mxu0 0
    %5745 = vmatprep.subr.bf16.mxu0 0
    %5746 = vmatpush1.bf16.msra.mxu0 0
    %5747 = vmatprep.subr.bf16.mxu0 0
    %5748 = vmatpush1.bf16.msra.mxu0 0
    %5749 = vmatprep.subr.bf16.mxu0 0
    %5750 = vmatpush1.bf16.msra.mxu0 0
    %5751 = vmatprep.subr.bf16.mxu0 0
    %5752 = vmatpush1.bf16.msra.mxu0 0
    %5753 = vmatprep.subr.bf16.mxu0 0
    %5754 = vmatpush1.bf16.msra.mxu0 0
    %5755 = vmatprep.subr.bf16.mxu0 0
    %5756 = vmatpush1.bf16.msra.mxu0 0
    %5757 = vmatprep.subr.bf16.mxu0 0
    %5758 = vmatpush1.bf16.msra.mxu0 0
    %5759 = vmatprep.subr.bf16.mxu0 0
    %5760 = vmatpush1.bf16.msra.mxu0 0
    %5761 = vmatprep.subr.bf16.mxu0 0
    %5762 = vmatpush1.bf16.msra.mxu0 0
    %5763 = vmatprep.subr.bf16.mxu0 0
    %5764 = vmatpush1.bf16.msra.mxu0 0
    %5765 = vmatprep.mubr.bf16.mxu0 0
    %5766 = vmatmul.mubr.bf16.gmra.mrb[0].mxu0 %v5728
    %v5767 = vpop.f32.mrb[0].mxu0
    %v5768 = vadd.f32 0.0, %v5767
    %v5769 = vpop.f32.mrb[0].mxu0
    %v5770 = vpop.f32.mrb[0].mxu0
    %v5771 = vadd.f32 0.0, %v5770
    %v5772 = vpop.f32.mrb[0].mxu0
    %5773 = vmatprep.mubr.bf16.mxu0 0
    %5774 = vmatmul.mubr.bf16.gmra.mrb[0].mxu0 %v5731
    %v5775 = vpop.f32.mrb[0].mxu0
    %v5776 = vadd.f32 0.0, %v5775
    %v5777 = vpop.f32.mrb[0].mxu0
    %v5778 = vpop.f32.mrb[0].mxu0
    %v5779 = vadd.f32 0.0, %v5778
    %v5780 = vpop.f32.mrb[0].mxu0
    %5781 = vdwg.mxu0
    %v5786 = vunpack.c.l.b16 %v5577
    %v5787 = vunpack.c.l.b16 %v5578
    %v5788 = vunpack.c.l.b16 %v5579
    %v5789 = vunpack.c.l.b16 %v5580
    %v5790 = vpack.c.b16 %v5787, %v5786
    %v5791 = vpack.c.b16 %v5789, %v5788
    %v5795 = vsel %vm1654, %v5562, 0
    %v5798 = vsel %vm1654, %v5563, 0
    %5800 = vmatprep.subr.bf16.mxu0 0
    %5801 = vmatpush1.bf16.msra.mxu0 %v5790
    %5802 = vmatprep.subr.bf16.mxu0 0
    %5803 = vmatpush1.bf16.msra.mxu0 %v5791
    %5804 = vmatprep.subr.bf16.mxu0 0
    %5805 = vmatpush1.bf16.msra.mxu0 0
    %5806 = vmatprep.subr.bf16.mxu0 0
    %5807 = vmatpush1.bf16.msra.mxu0 0
    %5808 = vmatprep.subr.bf16.mxu0 0
    %5809 = vmatpush1.bf16.msra.mxu0 0
    %5810 = vmatprep.subr.bf16.mxu0 0
    %5811 = vmatpush1.bf16.msra.mxu0 0
    %5812 = vmatprep.subr.bf16.mxu0 0
    %5813 = vmatpush1.bf16.msra.mxu0 0
    %5814 = vmatprep.subr.bf16.mxu0 0
    %5815 = vmatpush1.bf16.msra.mxu0 0
    %5816 = vmatprep.subr.bf16.mxu0 0
    %5817 = vmatpush1.bf16.msra.mxu0 0
    %5818 = vmatprep.subr.bf16.mxu0 0
    %5819 = vmatpush1.bf16.msra.mxu0 0
    %5820 = vmatprep.subr.bf16.mxu0 0
    %5821 = vmatpush1.bf16.msra.mxu0 0
    %5822 = vmatprep.subr.bf16.mxu0 0
    %5823 = vmatpush1.bf16.msra.mxu0 0
    %5824 = vmatprep.subr.bf16.mxu0 0
    %5825 = vmatpush1.bf16.msra.mxu0 0
    %5826 = vmatprep.subr.bf16.mxu0 0
    %5827 = vmatpush1.bf16.msra.mxu0 0
    %5828 = vmatprep.subr.bf16.mxu0 0
    %5829 = vmatpush1.bf16.msra.mxu0 0
    %5830 = vmatprep.subr.bf16.mxu0 0
    %5831 = vmatpush1.bf16.msra.mxu0 0
    %5832 = vmatprep.mubr.bf16.mxu0 0
    %5833 = vmatmul.mubr.bf16.gmra.mrb[0].mxu0 %v5795
    %v5834 = vpop.f32.mrb[0].mxu0
    %v5835 = vadd.f32 0.0, %v5834
    %v5836 = vpop.f32.mrb[0].mxu0
    %v5837 = vpop.f32.mrb[0].mxu0
    %v5838 = vadd.f32 0.0, %v5837
    %v5839 = vpop.f32.mrb[0].mxu0
    %5840 = vmatprep.mubr.bf16.mxu0 0
    %5841 = vmatmul.mubr.bf16.gmra.mrb[0].mxu0 %v5798
    %v5842 = vpop.f32.mrb[0].mxu0
    %v5843 = vadd.f32 0.0, %v5842
    %v5844 = vpop.f32.mrb[0].mxu0
    %v5845 = vpop.f32.mrb[0].mxu0
    %v5846 = vadd.f32 0.0, %v5845
    %v5847 = vpop.f32.mrb[0].mxu0
    %5848 = vdwg.mxu0
    %v5849 = vadd.f32 %v5634, %v5701
    %v5850 = vadd.f32 %v5849, %v5768
    %v5851 = vadd.f32 %v5850, %v5835
    %v5852 = vadd.f32 %v5637, %v5704
    %v5853 = vadd.f32 %v5852, %v5771
    %v5854 = vadd.f32 %v5853, %v5838
    %v5855 = vadd.f32 %v5642, %v5709
    %v5856 = vadd.f32 %v5855, %v5776
    %v5857 = vadd.f32 %v5856, %v5843
    %v5858 = vadd.f32 %v5645, %v5712
    %v5859 = vadd.f32 %v5858, %v5779
    %v5860 = vadd.f32 %v5859, %v5846
    %v5861 = vadd.f32 %v3427, %v5851
    %v5862 = vadd.f32 %v3428, %v5854
    %v5863 = vadd.f32 %v3429, %v5857
    %v5864 = vadd.f32 %v3430, %v5860
    %v5865 = vld [vmem:[%s8 + $0x1] sm:$0x1]
    %v5866 = vlaneseq
    %v5867 = vshrl.u32 %v5866, 7
    %v5868 = vsub.s32 0, %v5867
    %v5869 = vrot.slane %v5865, %v5868
    %v5870 = vadd.f32 %v5861, %v5869
    %v5871 = vadd.f32 %v5862, %v5869
    %v5872 = vadd.f32 %v5863, %v5869
    %v5873 = vadd.f32 %v5864, %v5869
    %v5874 = vld [vmem:[%s9 + $0x1] sm:$0x1]
    %v5875 = vld [vmem:[%s10 + $0x1] sm:$0x1]
    %5876 = vadd.xlane.f32.xlu0 %v5870
    %v5877 = vpop.xlane.xlu0 %5876
    %5878 = vadd.xlane.f32.xlu0 %v5871
    %v5879 = vpop.xlane.xlu0 %5878
    %5880 = vadd.xlane.f32.xlu0 %v5872
    %v5881 = vpop.xlane.xlu0 %5880
    %5882 = vadd.xlane.f32.xlu0 %v5873
    %v5883 = vpop.xlane.xlu0 %5882
    %v5884 = vmul.f32 %v5877, %v227
    %v5885 = vmul.f32 %v5879, %v227
    %v5886 = vmul.f32 %v5881, %v227
    %v5887 = vmul.f32 %v5883, %v227
    %v5888 = vsub.f32 %v5870, %v5884
    %v5889 = vsub.f32 %v5871, %v5885
    %v5890 = vsub.f32 %v5872, %v5886
    %v5891 = vsub.f32 %v5873, %v5887
    %v5892 = vmul.f32 %v5888, %v5888
    %v5893 = vmul.f32 %v5889, %v5889
    %v5894 = vmul.f32 %v5890, %v5890
    %v5895 = vmul.f32 %v5891, %v5891
    %5896 = vadd.xlane.f32.xlu0 %v5892
    %v5897 = vpop.xlane.xlu0 %5896
    %5898 = vadd.xlane.f32.xlu0 %v5893
    %v5899 = vpop.xlane.xlu0 %5898
    %5900 = vadd.xlane.f32.xlu0 %v5894
    %v5901 = vpop.xlane.xlu0 %5900
    %5902 = vadd.xlane.f32.xlu0 %v5895
    %v5903 = vpop.xlane.xlu0 %5902
    %v5904 = vmul.f32 %v5897, %v227
    %v5905 = vmul.f32 %v5899, %v227
    %v5906 = vmul.f32 %v5901, %v227
    %v5907 = vmul.f32 %v5903, %v227
    %v5908 = vadd.f32 %v5904, 1e-05
    %v5909 = vadd.f32 %v5905, 1e-05
    %v5910 = vadd.f32 %v5906, 1e-05
    %v5911 = vadd.f32 %v5907, 1e-05
    %v5912 = vrsqrt.pop %v5908
    %v5913 = vrsqrt.pop %v5909
    %v5914 = vrsqrt.pop %v5910
    %v5915 = vrsqrt.pop %v5911
    %v5916 = vmul.f32 %v5888, %v5912
    %v5917 = vmul.f32 %v5889, %v5913
    %v5918 = vmul.f32 %v5890, %v5914
    %v5919 = vmul.f32 %v5891, %v5915
    %v5920 = vlaneseq
    %v5921 = vshrl.u32 %v5920, 7
    %v5922 = vsub.s32 0, %v5921
    %v5923 = vrot.slane %v5874, %v5922
    %v5924 = vmul.f32 %v5916, %v5923
    %v5925 = vmul.f32 %v5917, %v5923
    %v5926 = vmul.f32 %v5918, %v5923
    %v5927 = vmul.f32 %v5919, %v5923
    %v5928 = vlaneseq
    %v5929 = vshrl.u32 %v5928, 7
    %v5930 = vsub.s32 0, %v5929
    %v5931 = vrot.slane %v5875, %v5930
    %v5932 = vadd.f32 %v5924, %v5931
    %v5933 = vadd.f32 %v5925, %v5931
    %v5934 = vadd.f32 %v5926, %v5931
    %v5935 = vadd.f32 %v5927, %v5931
    %v5936 = vpack.c.bf16 %v5933, %v5932
    %v5937 = vpack.c.bf16 %v5935, %v5934
    %s5938 = scalar_lea.vmem %s11, 256
    %v5939 = vld [vmem:[%s5938] sm:$0xff]
    %v5940 = vld [vmem:[%s5938 + $0x8] sm:$0xff]
    %v5941 = vld [vmem:[%s5938 + $0x10] sm:$0xff]
    %v5942 = vld [vmem:[%s5938 + $0x18] sm:$0xff]
    %v5943 = vld [vmem:[%s5938 + $0x20] sm:$0xff]
    %v5944 = vld [vmem:[%s5938 + $0x28] sm:$0xff]
    %v5945 = vld [vmem:[%s5938 + $0x30] sm:$0xff]
    %v5946 = vld [vmem:[%s5938 + $0x38] sm:$0xff]
    %v5947 = vld [vmem:[%s5938 + $0x40] sm:$0xff]
    %v5948 = vld [vmem:[%s5938 + $0x48] sm:$0xff]
    %v5949 = vld [vmem:[%s5938 + $0x50] sm:$0xff]
    %v5950 = vld [vmem:[%s5938 + $0x58] sm:$0xff]
    %v5951 = vld [vmem:[%s5938 + $0x60] sm:$0xff]
    %v5952 = vld [vmem:[%s5938 + $0x68] sm:$0xff]
    %v5953 = vld [vmem:[%s5938 + $0x70] sm:$0xff]
    %v5954 = vld [vmem:[%s5938 + $0x78] sm:$0xff]
    %v5955 = vld [vmem:[%s5938 + $0x80] sm:$0xff]
    %v5956 = vld [vmem:[%s5938 + $0x88] sm:$0xff]
    %v5957 = vld [vmem:[%s5938 + $0x90] sm:$0xff]
    %v5958 = vld [vmem:[%s5938 + $0x98] sm:$0xff]
    %v5959 = vld [vmem:[%s5938 + $0xa0] sm:$0xff]
    %v5960 = vld [vmem:[%s5938 + $0xa8] sm:$0xff]
    %v5961 = vld [vmem:[%s5938 + $0xb0] sm:$0xff]
    %v5962 = vld [vmem:[%s5938 + $0xb8] sm:$0xff]
    %v5963 = vld [vmem:[%s5938 + $0xc0] sm:$0xff]
    %v5964 = vld [vmem:[%s5938 + $0xc8] sm:$0xff]
    %v5965 = vld [vmem:[%s5938 + $0xd0] sm:$0xff]
    %v5966 = vld [vmem:[%s5938 + $0xd8] sm:$0xff]
    %v5967 = vld [vmem:[%s5938 + $0xe0] sm:$0xff]
    %v5968 = vld [vmem:[%s5938 + $0xe8] sm:$0xff]
    %v5969 = vld [vmem:[%s5938 + $0xf0] sm:$0xff]
    %v5970 = vld [vmem:[%s5938 + $0xf8] sm:$0xff]
    %s5971 = scalar_lea.vmem %s12, 1
    %v5972 = vld [vmem:[%s5971] ss:$2 sm:$0xf]
    %v5974 = vlaneseq
    %v5975 = vshrl.u32 %v5974, 7
    %v5976 = vsub.s32 0, %v5975
    %v5977 = vrot.slane %v5972, %v5976
    %v5978 = vlaneseq
    %v5979 = vshrl.u32 %v5978, 7
    %v5980 = vsub.s32 1, %v5979
    %v5981 = vrot.slane %v5972, %v5980
    %v5982 = vlaneseq
    %v5983 = vshrl.u32 %v5982, 7
    %v5984 = vsub.s32 2, %v5983
    %v5985 = vrot.slane %v5972, %v5984
    %v5986 = vlaneseq
    %v5987 = vshrl.u32 %v5986, 7
    %v5988 = vsub.s32 3, %v5987
    %v5989 = vrot.slane %v5972, %v5988
    %v6026 = vunpack.c.l.b16 %v5939
    %v6027 = vunpack.c.h.b16 %v5939
    %v6028 = vunpack.c.l.b16 %v5940
    %v6029 = vunpack.c.h.b16 %v5940
    %v6030 = vunpack.c.l.b16 %v5941
    %v6031 = vunpack.c.h.b16 %v5941
    %v6032 = vunpack.c.l.b16 %v5942
    %v6033 = vunpack.c.h.b16 %v5942
    %v6034 = vunpack.c.l.b16 %v5943
    %v6035 = vunpack.c.h.b16 %v5943
    %v6036 = vunpack.c.l.b16 %v5944
    %v6037 = vunpack.c.h.b16 %v5944
    %v6038 = vunpack.c.l.b16 %v5945
    %v6039 = vunpack.c.h.b16 %v5945
    %v6040 = vunpack.c.l.b16 %v5946
    %v6041 = vunpack.c.h.b16 %v5946
    %v6042 = vunpack.c.l.b16 %v5947
    %v6043 = vunpack.c.h.b16 %v5947
    %v6044 = vunpack.c.l.b16 %v5948
    %v6045 = vunpack.c.h.b16 %v5948
    %v6046 = vunpack.c.l.b16 %v5949
    %v6047 = vunpack.c.h.b16 %v5949
    %v6048 = vunpack.c.l.b16 %v5950
    %v6049 = vunpack.c.h.b16 %v5950
    %v6050 = vunpack.c.l.b16 %v5951
    %v6051 = vunpack.c.h.b16 %v5951
    %v6052 = vunpack.c.l.b16 %v5952
    %v6053 = vunpack.c.h.b16 %v5952
    %v6054 = vunpack.c.l.b16 %v5953
    %v6055 = vunpack.c.h.b16 %v5953
    %v6056 = vunpack.c.l.b16 %v5954
    %v6057 = vunpack.c.h.b16 %v5954
    %v6058 = vunpack.c.l.b16 %v5955
    %v6059 = vunpack.c.h.b16 %v5955
    %v6060 = vunpack.c.l.b16 %v5956
    %v6061 = vunpack.c.h.b16 %v5956
    %v6062 = vunpack.c.l.b16 %v5957
    %v6063 = vunpack.c.h.b16 %v5957
    %v6064 = vunpack.c.l.b16 %v5958
    %v6065 = vunpack.c.h.b16 %v5958
    %v6066 = vunpack.c.l.b16 %v5959
    %v6067 = vunpack.c.h.b16 %v5959
    %v6068 = vunpack.c.l.b16 %v5960
    %v6069 = vunpack.c.h.b16 %v5960
    %v6070 = vunpack.c.l.b16 %v5961
    %v6071 = vunpack.c.h.b16 %v5961
    %v6072 = vunpack.c.l.b16 %v5962
    %v6073 = vunpack.c.h.b16 %v5962
    %v6074 = vunpack.c.l.b16 %v5963
    %v6075 = vunpack.c.h.b16 %v5963
    %v6076 = vunpack.c.l.b16 %v5964
    %v6077 = vunpack.c.h.b16 %v5964
    %v6078 = vunpack.c.l.b16 %v5965
    %v6079 = vunpack.c.h.b16 %v5965
    %v6080 = vunpack.c.l.b16 %v5966
    %v6081 = vunpack.c.h.b16 %v5966
    %v6082 = vunpack.c.l.b16 %v5967
    %v6083 = vunpack.c.h.b16 %v5967
    %v6084 = vunpack.c.l.b16 %v5968
    %v6085 = vunpack.c.h.b16 %v5968
    %v6086 = vunpack.c.l.b16 %v5969
    %v6087 = vunpack.c.h.b16 %v5969
    %v6088 = vunpack.c.l.b16 %v5970
    %v6089 = vunpack.c.h.b16 %v5970
    %v6090 = vpack.c.b16 %v6030, %v6026
    %v6091 = vpack.c.b16 %v6031, %v6027
    %v6092 = vpack.c.b16 %v6032, %v6028
    %v6093 = vpack.c.b16 %v6033, %v6029
    %v6094 = vpack.c.b16 %v6038, %v6034
    %v6095 = vpack.c.b16 %v6039, %v6035
    %v6096 = vpack.c.b16 %v6040, %v6036
    %v6097 = vpack.c.b16 %v6041, %v6037
    %v6098 = vpack.c.b16 %v6046, %v6042
    %v6099 = vpack.c.b16 %v6047, %v6043
    %v6100 = vpack.c.b16 %v6048, %v6044
    %v6101 = vpack.c.b16 %v6049, %v6045
    %v6102 = vpack.c.b16 %v6054, %v6050
    %v6103 = vpack.c.b16 %v6055, %v6051
    %v6104 = vpack.c.b16 %v6056, %v6052
    %v6105 = vpack.c.b16 %v6057, %v6053
    %v6106 = vpack.c.b16 %v6062, %v6058
    %v6107 = vpack.c.b16 %v6063, %v6059
    %v6108 = vpack.c.b16 %v6064, %v6060
    %v6109 = vpack.c.b16 %v6065, %v6061
    %v6110 = vpack.c.b16 %v6070, %v6066
    %v6111 = vpack.c.b16 %v6071, %v6067
    %v6112 = vpack.c.b16 %v6072, %v6068
    %v6113 = vpack.c.b16 %v6073, %v6069
    %v6114 = vpack.c.b16 %v6078, %v6074
    %v6115 = vpack.c.b16 %v6079, %v6075
    %v6116 = vpack.c.b16 %v6080, %v6076
    %v6117 = vpack.c.b16 %v6081, %v6077
    %v6118 = vpack.c.b16 %v6086, %v6082
    %v6119 = vpack.c.b16 %v6087, %v6083
    %v6120 = vpack.c.b16 %v6088, %v6084
    %v6121 = vpack.c.b16 %v6089, %v6085
    %6154 = vmatprep.subr.bf16.mxu0 %v6091
    %6155 = vmatpush1.bf16.msra.mxu0 %v6090
    %6156 = vmatprep.subr.bf16.mxu0 %v6095
    %6157 = vmatpush1.bf16.msra.mxu0 %v6094
    %6158 = vmatprep.subr.bf16.mxu0 %v6099
    %6159 = vmatpush1.bf16.msra.mxu0 %v6098
    %6160 = vmatprep.subr.bf16.mxu0 %v6103
    %6161 = vmatpush1.bf16.msra.mxu0 %v6102
    %6162 = vmatprep.subr.bf16.mxu0 %v6107
    %6163 = vmatpush1.bf16.msra.mxu0 %v6106
    %6164 = vmatprep.subr.bf16.mxu0 %v6111
    %6165 = vmatpush1.bf16.msra.mxu0 %v6110
    %6166 = vmatprep.subr.bf16.mxu0 %v6115
    %6167 = vmatpush1.bf16.msra.mxu0 %v6114
    %6168 = vmatprep.subr.bf16.mxu0 %v6119
    %6169 = vmatpush1.bf16.msra.mxu0 %v6118
    %6170 = vmatprep.subr.bf16.mxu0 0
    %6171 = vmatpush1.bf16.msra.mxu0 0
    %6172 = vmatprep.subr.bf16.mxu0 0
    %6173 = vmatpush1.bf16.msra.mxu0 0
    %6174 = vmatprep.subr.bf16.mxu0 0
    %6175 = vmatpush1.bf16.msra.mxu0 0
    %6176 = vmatprep.subr.bf16.mxu0 0
    %6177 = vmatpush1.bf16.msra.mxu0 0
    %6178 = vmatprep.subr.bf16.mxu0 0
    %6179 = vmatpush1.bf16.msra.mxu0 0
    %6180 = vmatprep.subr.bf16.mxu0 0
    %6181 = vmatpush1.bf16.msra.mxu0 0
    %6182 = vmatprep.subr.bf16.mxu0 0
    %6183 = vmatpush1.bf16.msra.mxu0 0
    %6184 = vmatprep.subr.bf16.mxu0 0
    %6185 = vmatpush1.bf16.msra.mxu0 0
    %6186 = vmatprep.mubr.bf16.mxu0 0
    %6187 = vmatmul.mubr.bf16.gmra.mrb[0].mxu0 %v5936
    %v6188 = vpop.f32.mrb[0].mxu0
    %v6189 = vadd.f32 %v5977, %v6188
    %v6190 = vpop.f32.mrb[0].mxu0
    %v6191 = vadd.f32 %v5981, %v6190
    %v6192 = vpop.f32.mrb[0].mxu0
    %v6193 = vadd.f32 %v5977, %v6192
    %v6194 = vpop.f32.mrb[0].mxu0
    %v6195 = vadd.f32 %v5981, %v6194
    %6196 = vmatprep.mubr.bf16.mxu0 0
    %6197 = vmatmul.mubr.bf16.gmra.mrb[0].mxu0 %v5937
    %v6198 = vpop.f32.mrb[0].mxu0
    %v6199 = vadd.f32 %v5977, %v6198
    %v6200 = vpop.f32.mrb[0].mxu0
    %v6201 = vadd.f32 %v5981, %v6200
    %v6202 = vpop.f32.mrb[0].mxu0
    %v6203 = vadd.f32 %v5977, %v6202
    %v6204 = vpop.f32.mrb[0].mxu0
    %v6205 = vadd.f32 %v5981, %v6204
    %6206 = vdwg.mxu0
    %6207 = vmatprep.subr.bf16.mxu0 %v6093
    %6208 = vmatpush1.bf16.msra.mxu0 %v6092
    %6209 = vmatprep.subr.bf16.mxu0 %v6097
    %6210 = vmatpush1.bf16.msra.mxu0 %v6096
    %6211 = vmatprep.subr.bf16.mxu0 %v6101
    %6212 = vmatpush1.bf16.msra.mxu0 %v6100
    %6213 = vmatprep.subr.bf16.mxu0 %v6105
    %6214 = vmatpush1.bf16.msra.mxu0 %v6104
    %6215 = vmatprep.subr.bf16.mxu0 %v6109
    %6216 = vmatpush1.bf16.msra.mxu0 %v6108
    %6217 = vmatprep.subr.bf16.mxu0 %v6113
    %6218 = vmatpush1.bf16.msra.mxu0 %v6112
    %6219 = vmatprep.subr.bf16.mxu0 %v6117
    %6220 = vmatpush1.bf16.msra.mxu0 %v6116
    %6221 = vmatprep.subr.bf16.mxu0 %v6121
    %6222 = vmatpush1.bf16.msra.mxu0 %v6120
    %6223 = vmatprep.subr.bf16.mxu0 0
    %6224 = vmatpush1.bf16.msra.mxu0 0
    %6225 = vmatprep.subr.bf16.mxu0 0
    %6226 = vmatpush1.bf16.msra.mxu0 0
    %6227 = vmatprep.subr.bf16.mxu0 0
    %6228 = vmatpush1.bf16.msra.mxu0 0
    %6229 = vmatprep.subr.bf16.mxu0 0
    %6230 = vmatpush1.bf16.msra.mxu0 0
    %6231 = vmatprep.subr.bf16.mxu0 0
    %6232 = vmatpush1.bf16.msra.mxu0 0
    %6233 = vmatprep.subr.bf16.mxu0 0
    %6234 = vmatpush1.bf16.msra.mxu0 0
    %6235 = vmatprep.subr.bf16.mxu0 0
    %6236 = vmatpush1.bf16.msra.mxu0 0
    %6237 = vmatprep.subr.bf16.mxu0 0
    %6238 = vmatpush1.bf16.msra.mxu0 0
    %6239 = vmatprep.mubr.bf16.mxu0 0
    %6240 = vmatmul.mubr.bf16.gmra.mrb[0].mxu0 %v5936
    %v6241 = vpop.f32.mrb[0].mxu0
    %v6242 = vadd.f32 %v5985, %v6241
    %v6243 = vpop.f32.mrb[0].mxu0
    %v6244 = vadd.f32 %v5989, %v6243
    %v6245 = vpop.f32.mrb[0].mxu0
    %v6246 = vadd.f32 %v5985, %v6245
    %v6247 = vpop.f32.mrb[0].mxu0
    %v6248 = vadd.f32 %v5989, %v6247
    %6249 = vmatprep.mubr.bf16.mxu0 0
    %6250 = vmatmul.mubr.bf16.gmra.mrb[0].mxu0 %v5937
    %v6251 = vpop.f32.mrb[0].mxu0
    %v6252 = vadd.f32 %v5985, %v6251
    %v6253 = vpop.f32.mrb[0].mxu0
    %v6254 = vadd.f32 %v5989, %v6253
    %v6255 = vpop.f32.mrb[0].mxu0
    %v6256 = vadd.f32 %v5985, %v6255
    %v6257 = vpop.f32.mrb[0].mxu0
    %v6258 = vadd.f32 %v5989, %v6257
    %6259 = vdwg.mxu0
    %v6260 = vmax.f32 %v6189, 0.0
    %v6261 = vmax.f32 %v6191, 0.0
    %v6262 = vmax.f32 %v6242, 0.0
    %v6263 = vmax.f32 %v6244, 0.0
    %v6264 = vmax.f32 %v6193, 0.0
    %v6265 = vmax.f32 %v6195, 0.0
    %v6266 = vmax.f32 %v6246, 0.0
    %v6267 = vmax.f32 %v6248, 0.0
    %v6268 = vmax.f32 %v6199, 0.0
    %v6269 = vmax.f32 %v6201, 0.0
    %v6270 = vmax.f32 %v6252, 0.0
    %v6271 = vmax.f32 %v6254, 0.0
    %v6272 = vmax.f32 %v6203, 0.0
    %v6273 = vmax.f32 %v6205, 0.0
    %v6274 = vmax.f32 %v6256, 0.0
    %v6275 = vmax.f32 %v6258, 0.0
    %v6276 = vpack.c.bf16 %v6264, %v6260
    %v6277 = vpack.c.bf16 %v6265, %v6261
    %v6278 = vpack.c.bf16 %v6266, %v6262
    %v6279 = vpack.c.bf16 %v6267, %v6263
    %v6280 = vpack.c.bf16 %v6272, %v6268
    %v6281 = vpack.c.bf16 %v6273, %v6269
    %v6282 = vpack.c.bf16 %v6274, %v6270
    %v6283 = vpack.c.bf16 %v6275, %v6271
    %s6284 = scalar_lea.vmem %s13, 256
    %v6285 = vld [vmem:[%s6284] sm:$0xf]
    %v6286 = vld [vmem:[%s6284 + $0x4] sm:$0xf]
    %v6287 = vld [vmem:[%s6284 + $0x8] sm:$0xf]
    %v6288 = vld [vmem:[%s6284 + $0xc] sm:$0xf]
    %v6289 = vld [vmem:[%s6284 + $0x10] sm:$0xf]
    %v6290 = vld [vmem:[%s6284 + $0x14] sm:$0xf]
    %v6291 = vld [vmem:[%s6284 + $0x18] sm:$0xf]
    %v6292 = vld [vmem:[%s6284 + $0x1c] sm:$0xf]
    %v6293 = vld [vmem:[%s6284 + $0x20] sm:$0xf]
    %v6294 = vld [vmem:[%s6284 + $0x24] sm:$0xf]
    %v6295 = vld [vmem:[%s6284 + $0x28] sm:$0xf]
    %v6296 = vld [vmem:[%s6284 + $0x2c] sm:$0xf]
    %v6297 = vld [vmem:[%s6284 + $0x30] sm:$0xf]
    %v6298 = vld [vmem:[%s6284 + $0x34] sm:$0xf]
    %v6299 = vld [vmem:[%s6284 + $0x38] sm:$0xf]
    %v6300 = vld [vmem:[%s6284 + $0x3c] sm:$0xf]
    %v6301 = vld [vmem:[%s6284 + $0x40] sm:$0xf]
    %v6302 = vld [vmem:[%s6284 + $0x44] sm:$0xf]
    %v6303 = vld [vmem:[%s6284 + $0x48] sm:$0xf]
    %v6304 = vld [vmem:[%s6284 + $0x4c] sm:$0xf]
    %v6305 = vld [vmem:[%s6284 + $0x50] sm:$0xf]
    %v6306 = vld [vmem:[%s6284 + $0x54] sm:$0xf]
    %v6307 = vld [vmem:[%s6284 + $0x58] sm:$0xf]
    %v6308 = vld [vmem:[%s6284 + $0x5c] sm:$0xf]
    %v6309 = vld [vmem:[%s6284 + $0x60] sm:$0xf]
    %v6310 = vld [vmem:[%s6284 + $0x64] sm:$0xf]
    %v6311 = vld [vmem:[%s6284 + $0x68] sm:$0xf]
    %v6312 = vld [vmem:[%s6284 + $0x6c] sm:$0xf]
    %v6313 = vld [vmem:[%s6284 + $0x70] sm:$0xf]
    %v6314 = vld [vmem:[%s6284 + $0x74] sm:$0xf]
    %v6315 = vld [vmem:[%s6284 + $0x78] sm:$0xf]
    %v6316 = vld [vmem:[%s6284 + $0x7c] sm:$0xf]
    %v6317 = vld [vmem:[%s6284 + $0x80] sm:$0xf]
    %v6318 = vld [vmem:[%s6284 + $0x84] sm:$0xf]
    %v6319 = vld [vmem:[%s6284 + $0x88] sm:$0xf]
    %v6320 = vld [vmem:[%s6284 + $0x8c] sm:$0xf]
    %v6321 = vld [vmem:[%s6284 + $0x90] sm:$0xf]
    %v6322 = vld [vmem:[%s6284 + $0x94] sm:$0xf]
    %v6323 = vld [vmem:[%s6284 + $0x98] sm:$0xf]
    %v6324 = vld [vmem:[%s6284 + $0x9c] sm:$0xf]
    %v6325 = vld [vmem:[%s6284 + $0xa0] sm:$0xf]
    %v6326 = vld [vmem:[%s6284 + $0xa4] sm:$0xf]
    %v6327 = vld [vmem:[%s6284 + $0xa8] sm:$0xf]
    %v6328 = vld [vmem:[%s6284 + $0xac] sm:$0xf]
    %v6329 = vld [vmem:[%s6284 + $0xb0] sm:$0xf]
    %v6330 = vld [vmem:[%s6284 + $0xb4] sm:$0xf]
    %v6331 = vld [vmem:[%s6284 + $0xb8] sm:$0xf]
    %v6332 = vld [vmem:[%s6284 + $0xbc] sm:$0xf]
    %v6333 = vld [vmem:[%s6284 + $0xc0] sm:$0xf]
    %v6334 = vld [vmem:[%s6284 + $0xc4] sm:$0xf]
    %v6335 = vld [vmem:[%s6284 + $0xc8] sm:$0xf]
    %v6336 = vld [vmem:[%s6284 + $0xcc] sm:$0xf]
    %v6337 = vld [vmem:[%s6284 + $0xd0] sm:$0xf]
    %v6338 = vld [vmem:[%s6284 + $0xd4] sm:$0xf]
    %v6339 = vld [vmem:[%s6284 + $0xd8] sm:$0xf]
    %v6340 = vld [vmem:[%s6284 + $0xdc] sm:$0xf]
    %v6341 = vld [vmem:[%s6284 + $0xe0] sm:$0xf]
    %v6342 = vld [vmem:[%s6284 + $0xe4] sm:$0xf]
    %v6343 = vld [vmem:[%s6284 + $0xe8] sm:$0xf]
    %v6344 = vld [vmem:[%s6284 + $0xec] sm:$0xf]
    %v6345 = vld [vmem:[%s6284 + $0xf0] sm:$0xf]
    %v6346 = vld [vmem:[%s6284 + $0xf4] sm:$0xf]
    %v6347 = vld [vmem:[%s6284 + $0xf8] sm:$0xf]
    %v6348 = vld [vmem:[%s6284 + $0xfc] sm:$0xf]
    %v6349 = vld [vmem:[%s14 + $0x1] sm:$0x1]
    %v6350 = vlaneseq
    %v6351 = vshrl.u32 %v6350, 7
    %v6352 = vsub.s32 0, %v6351
    %v6353 = vrot.slane %v6349, %v6352
    %v6418 = vunpack.c.l.b16 %v6285
    %v6419 = vunpack.c.l.b16 %v6286
    %v6420 = vunpack.c.l.b16 %v6287
    %v6421 = vunpack.c.l.b16 %v6288
    %v6422 = vunpack.c.l.b16 %v6289
    %v6423 = vunpack.c.l.b16 %v6290
    %v6424 = vunpack.c.l.b16 %v6291
    %v6425 = vunpack.c.l.b16 %v6292
    %v6426 = vunpack.c.l.b16 %v6293
    %v6427 = vunpack.c.l.b16 %v6294
    %v6428 = vunpack.c.l.b16 %v6295
    %v6429 = vunpack.c.l.b16 %v6296
    %v6430 = vunpack.c.l.b16 %v6297
    %v6431 = vunpack.c.l.b16 %v6298
    %v6432 = vunpack.c.l.b16 %v6299
    %v6433 = vunpack.c.l.b16 %v6300
    %v6434 = vunpack.c.l.b16 %v6301
    %v6435 = vunpack.c.l.b16 %v6302
    %v6436 = vunpack.c.l.b16 %v6303
    %v6437 = vunpack.c.l.b16 %v6304
    %v6438 = vunpack.c.l.b16 %v6305
    %v6439 = vunpack.c.l.b16 %v6306
    %v6440 = vunpack.c.l.b16 %v6307
    %v6441 = vunpack.c.l.b16 %v6308
    %v6442 = vunpack.c.l.b16 %v6309
    %v6443 = vunpack.c.l.b16 %v6310
    %v6444 = vunpack.c.l.b16 %v6311
    %v6445 = vunpack.c.l.b16 %v6312
    %v6446 = vunpack.c.l.b16 %v6313
    %v6447 = vunpack.c.l.b16 %v6314
    %v6448 = vunpack.c.l.b16 %v6315
    %v6449 = vunpack.c.l.b16 %v6316
    %v6450 = vunpack.c.l.b16 %v6317
    %v6451 = vunpack.c.l.b16 %v6318
    %v6452 = vunpack.c.l.b16 %v6319
    %v6453 = vunpack.c.l.b16 %v6320
    %v6454 = vunpack.c.l.b16 %v6321
    %v6455 = vunpack.c.l.b16 %v6322
    %v6456 = vunpack.c.l.b16 %v6323
    %v6457 = vunpack.c.l.b16 %v6324
    %v6458 = vunpack.c.l.b16 %v6325
    %v6459 = vunpack.c.l.b16 %v6326
    %v6460 = vunpack.c.l.b16 %v6327
    %v6461 = vunpack.c.l.b16 %v6328
    %v6462 = vunpack.c.l.b16 %v6329
    %v6463 = vunpack.c.l.b16 %v6330
    %v6464 = vunpack.c.l.b16 %v6331
    %v6465 = vunpack.c.l.b16 %v6332
    %v6466 = vunpack.c.l.b16 %v6333
    %v6467 = vunpack.c.l.b16 %v6334
    %v6468 = vunpack.c.l.b16 %v6335
    %v6469 = vunpack.c.l.b16 %v6336
    %v6470 = vunpack.c.l.b16 %v6337
    %v6471 = vunpack.c.l.b16 %v6338
    %v6472 = vunpack.c.l.b16 %v6339
    %v6473 = vunpack.c.l.b16 %v6340
    %v6474 = vunpack.c.l.b16 %v6341
    %v6475 = vunpack.c.l.b16 %v6342
    %v6476 = vunpack.c.l.b16 %v6343
    %v6477 = vunpack.c.l.b16 %v6344
    %v6478 = vunpack.c.l.b16 %v6345
    %v6479 = vunpack.c.l.b16 %v6346
    %v6480 = vunpack.c.l.b16 %v6347
    %v6481 = vunpack.c.l.b16 %v6348
    %v6482 = vpack.c.b16 %v6419, %v6418
    %v6483 = vpack.c.b16 %v6421, %v6420
    %v6484 = vpack.c.b16 %v6423, %v6422
    %v6485 = vpack.c.b16 %v6425, %v6424
    %v6486 = vpack.c.b16 %v6427, %v6426
    %v6487 = vpack.c.b16 %v6429, %v6428
    %v6488 = vpack.c.b16 %v6431, %v6430
    %v6489 = vpack.c.b16 %v6433, %v6432
    %v6490 = vpack.c.b16 %v6435, %v6434
    %v6491 = vpack.c.b16 %v6437, %v6436
    %v6492 = vpack.c.b16 %v6439, %v6438
    %v6493 = vpack.c.b16 %v6441, %v6440
    %v6494 = vpack.c.b16 %v6443, %v6442
    %v6495 = vpack.c.b16 %v6445, %v6444
    %v6496 = vpack.c.b16 %v6447, %v6446
    %v6497 = vpack.c.b16 %v6449, %v6448
    %v6498 = vpack.c.b16 %v6451, %v6450
    %v6499 = vpack.c.b16 %v6453, %v6452
    %v6500 = vpack.c.b16 %v6455, %v6454
    %v6501 = vpack.c.b16 %v6457, %v6456
    %v6502 = vpack.c.b16 %v6459, %v6458
    %v6503 = vpack.c.b16 %v6461, %v6460
    %v6504 = vpack.c.b16 %v6463, %v6462
    %v6505 = vpack.c.b16 %v6465, %v6464
    %v6506 = vpack.c.b16 %v6467, %v6466
    %v6507 = vpack.c.b16 %v6469, %v6468
    %v6508 = vpack.c.b16 %v6471, %v6470
    %v6509 = vpack.c.b16 %v6473, %v6472
    %v6510 = vpack.c.b16 %v6475, %v6474
    %v6511 = vpack.c.b16 %v6477, %v6476
    %v6512 = vpack.c.b16 %v6479, %v6478
    %v6513 = vpack.c.b16 %v6481, %v6480
    %6546 = vmatprep.subr.bf16.mxu0 0
    %6547 = vmatpush1.bf16.msra.mxu0 %v6482
    %6548 = vmatprep.subr.bf16.mxu0 0
    %6549 = vmatpush1.bf16.msra.mxu0 %v6483
    %6550 = vmatprep.subr.bf16.mxu0 0
    %6551 = vmatpush1.bf16.msra.mxu0 %v6484
    %6552 = vmatprep.subr.bf16.mxu0 0
    %6553 = vmatpush1.bf16.msra.mxu0 %v6485
    %6554 = vmatprep.subr.bf16.mxu0 0
    %6555 = vmatpush1.bf16.msra.mxu0 %v6486
    %6556 = vmatprep.subr.bf16.mxu0 0
    %6557 = vmatpush1.bf16.msra.mxu0 %v6487
    %6558 = vmatprep.subr.bf16.mxu0 0
    %6559 = vmatpush1.bf16.msra.mxu0 %v6488
    %6560 = vmatprep.subr.bf16.mxu0 0
    %6561 = vmatpush1.bf16.msra.mxu0 %v6489
    %6562 = vmatprep.subr.bf16.mxu0 0
    %6563 = vmatpush1.bf16.msra.mxu0 %v6490
    %6564 = vmatprep.subr.bf16.mxu0 0
    %6565 = vmatpush1.bf16.msra.mxu0 %v6491
    %6566 = vmatprep.subr.bf16.mxu0 0
    %6567 = vmatpush1.bf16.msra.mxu0 %v6492
    %6568 = vmatprep.subr.bf16.mxu0 0
    %6569 = vmatpush1.bf16.msra.mxu0 %v6493
    %6570 = vmatprep.subr.bf16.mxu0 0
    %6571 = vmatpush1.bf16.msra.mxu0 %v6494
    %6572 = vmatprep.subr.bf16.mxu0 0
    %6573 = vmatpush1.bf16.msra.mxu0 %v6495
    %6574 = vmatprep.subr.bf16.mxu0 0
    %6575 = vmatpush1.bf16.msra.mxu0 %v6496
    %6576 = vmatprep.subr.bf16.mxu0 0
    %6577 = vmatpush1.bf16.msra.mxu0 %v6497
    %6578 = vmatprep.mubr.bf16.mxu0 %v6277
    %6579 = vmatmul.mubr.bf16.gmra.mrb[0].mxu0 %v6276
    %v6580 = vpop.f32.mrb[0].mxu0
    %v6581 = vadd.f32 %v6353, %v6580
    %v6582 = vpop.f32.mrb[0].mxu0
    %v6583 = vpop.f32.mrb[0].mxu0
    %v6584 = vadd.f32 %v6353, %v6583
    %v6585 = vpop.f32.mrb[0].mxu0
    %6586 = vmatprep.mubr.bf16.mxu0 %v6281
    %6587 = vmatmul.mubr.bf16.gmra.mrb[0].mxu0 %v6280
    %v6588 = vpop.f32.mrb[0].mxu0
    %v6589 = vadd.f32 %v6353, %v6588
    %v6590 = vpop.f32.mrb[0].mxu0
    %v6591 = vpop.f32.mrb[0].mxu0
    %v6592 = vadd.f32 %v6353, %v6591
    %v6593 = vpop.f32.mrb[0].mxu0
    %6594 = vdwg.mxu0
    %6595 = vmatprep.subr.bf16.mxu0 0
    %6596 = vmatpush1.bf16.msra.mxu0 %v6498
    %6597 = vmatprep.subr.bf16.mxu0 0
    %6598 = vmatpush1.bf16.msra.mxu0 %v6499
    %6599 = vmatprep.subr.bf16.mxu0 0
    %6600 = vmatpush1.bf16.msra.mxu0 %v6500
    %6601 = vmatprep.subr.bf16.mxu0 0
    %6602 = vmatpush1.bf16.msra.mxu0 %v6501
    %6603 = vmatprep.subr.bf16.mxu0 0
    %6604 = vmatpush1.bf16.msra.mxu0 %v6502
    %6605 = vmatprep.subr.bf16.mxu0 0
    %6606 = vmatpush1.bf16.msra.mxu0 %v6503
    %6607 = vmatprep.subr.bf16.mxu0 0
    %6608 = vmatpush1.bf16.msra.mxu0 %v6504
    %6609 = vmatprep.subr.bf16.mxu0 0
    %6610 = vmatpush1.bf16.msra.mxu0 %v6505
    %6611 = vmatprep.subr.bf16.mxu0 0
    %6612 = vmatpush1.bf16.msra.mxu0 %v6506
    %6613 = vmatprep.subr.bf16.mxu0 0
    %6614 = vmatpush1.bf16.msra.mxu0 %v6507
    %6615 = vmatprep.subr.bf16.mxu0 0
    %6616 = vmatpush1.bf16.msra.mxu0 %v6508
    %6617 = vmatprep.subr.bf16.mxu0 0
    %6618 = vmatpush1.bf16.msra.mxu0 %v6509
    %6619 = vmatprep.subr.bf16.mxu0 0
    %6620 = vmatpush1.bf16.msra.mxu0 %v6510
    %6621 = vmatprep.subr.bf16.mxu0 0
    %6622 = vmatpush1.bf16.msra.mxu0 %v6511
    %6623 = vmatprep.subr.bf16.mxu0 0
    %6624 = vmatpush1.bf16.msra.mxu0 %v6512
    %6625 = vmatprep.subr.bf16.mxu0 0
    %6626 = vmatpush1.bf16.msra.mxu0 %v6513
    %6627 = vmatprep.mubr.bf16.mxu0 %v6279
    %6628 = vmatmul.mubr.bf16.gmra.mrb[0].mxu0 %v6278
    %v6629 = vpop.f32.mrb[0].mxu0
    %v6630 = vadd.f32 %v6581, %v6629
    %v6631 = vpop.f32.mrb[0].mxu0
    %v6632 = vpop.f32.mrb[0].mxu0
    %v6633 = vadd.f32 %v6584, %v6632
    %v6634 = vpop.f32.mrb[0].mxu0
    %6635 = vmatprep.mubr.bf16.mxu0 %v6283
    %6636 = vmatmul.mubr.bf16.gmra.mrb[0].mxu0 %v6282
    %v6637 = vpop.f32.mrb[0].mxu0
    %v6638 = vadd.f32 %v6589, %v6637
    %v6639 = vpop.f32.mrb[0].mxu0
    %v6640 = vpop.f32.mrb[0].mxu0
    %v6641 = vadd.f32 %v6592, %v6640
    %v6642 = vpop.f32.mrb[0].mxu0
    %6643 = vdwg.mxu0
    %v6644 = vadd.f32 %v5870, %v6630
    %v6645 = vadd.f32 %v5871, %v6633
    %v6646 = vadd.f32 %v5872, %v6638
    %v6647 = vadd.f32 %v5873, %v6641
    %v6648 = vld [vmem:[%s15] sm:$0x1]
    %v6649 = vld [vmem:[%s16] sm:$0x1]
    %6650 = vadd.xlane.f32.xlu0 %v6644
    %v6651 = vpop.xlane.xlu0 %6650
    %6652 = vadd.xlane.f32.xlu0 %v6645
    %v6653 = vpop.xlane.xlu0 %6652
    %6654 = vadd.xlane.f32.xlu0 %v6646
    %v6655 = vpop.xlane.xlu0 %6654
    %6656 = vadd.xlane.f32.xlu0 %v6647
    %v6657 = vpop.xlane.xlu0 %6656
    %v6658 = vmul.f32 %v6651, %v227
    %v6659 = vmul.f32 %v6653, %v227
    %v6660 = vmul.f32 %v6655, %v227
    %v6661 = vmul.f32 %v6657, %v227
    %v6662 = vsub.f32 %v6644, %v6658
    %v6663 = vsub.f32 %v6645, %v6659
    %v6664 = vsub.f32 %v6646, %v6660
    %v6665 = vsub.f32 %v6647, %v6661
    %v6666 = vmul.f32 %v6662, %v6662
    %v6667 = vmul.f32 %v6663, %v6663
    %v6668 = vmul.f32 %v6664, %v6664
    %v6669 = vmul.f32 %v6665, %v6665
    %6670 = vadd.xlane.f32.xlu0 %v6666
    %v6671 = vpop.xlane.xlu0 %6670
    %6672 = vadd.xlane.f32.xlu0 %v6667
    %v6673 = vpop.xlane.xlu0 %6672
    %6674 = vadd.xlane.f32.xlu0 %v6668
    %v6675 = vpop.xlane.xlu0 %6674
    %6676 = vadd.xlane.f32.xlu0 %v6669
    %v6677 = vpop.xlane.xlu0 %6676
    %v6678 = vmul.f32 %v6671, %v227
    %v6679 = vmul.f32 %v6673, %v227
    %v6680 = vmul.f32 %v6675, %v227
    %v6681 = vmul.f32 %v6677, %v227
    %v6682 = vadd.f32 %v6678, 1e-05
    %v6683 = vadd.f32 %v6679, 1e-05
    %v6684 = vadd.f32 %v6680, 1e-05
    %v6685 = vadd.f32 %v6681, 1e-05
    %v6686 = vrsqrt.pop %v6682
    %v6687 = vrsqrt.pop %v6683
    %v6688 = vrsqrt.pop %v6684
    %v6689 = vrsqrt.pop %v6685
    %v6690 = vmul.f32 %v6662, %v6686
    %v6691 = vmul.f32 %v6663, %v6687
    %v6692 = vmul.f32 %v6664, %v6688
    %v6693 = vmul.f32 %v6665, %v6689
    %v6695 = vlaneseq
    %v6696 = vshrl.u32 %v6695, 7
    %v6697 = vsub.s32 0, %v6696
    %v6698 = vrot.slane %v6648, %v6697
    %v6700 = vmul.f32 %v6690, %v6698
    %v6701 = vmul.f32 %v6691, %v6698
    %v6702 = vmul.f32 %v6692, %v6698
    %v6703 = vmul.f32 %v6693, %v6698
    %v6705 = vlaneseq
    %v6706 = vshrl.u32 %v6705, 7
    %v6707 = vsub.s32 0, %v6706
    %v6708 = vrot.slane %v6649, %v6707
    %v6710 = vadd.f32 %v6700, %v6708
    %v6711 = vadd.f32 %v6701, %v6708
    %v6712 = vadd.f32 %v6702, %v6708
    %v6713 = vadd.f32 %v6703, %v6708
    %v6714 = vpack.c.bf16 %v6711, %v6710
    %v6715 = vpack.c.bf16 %v6713, %v6712
    %v6716 = vld [vmem:[%s17] sm:$0xf]
    %v6717 = vld [vmem:[%s17 + $0x4] sm:$0xf]
    %v6718 = vld [vmem:[%s17 + $0x8] sm:$0xf]
    %v6719 = vld [vmem:[%s17 + $0xc] sm:$0xf]
    %v6720 = vld [vmem:[%s17 + $0x10] sm:$0xf]
    %v6721 = vld [vmem:[%s17 + $0x14] sm:$0xf]
    %v6722 = vld [vmem:[%s17 + $0x18] sm:$0xf]
    %v6723 = vld [vmem:[%s17 + $0x1c] sm:$0xf]
    %v6724 = vld [vmem:[%s17 + $0x20] sm:$0xf]
    %v6725 = vld [vmem:[%s17 + $0x24] sm:$0xf]
    %v6726 = vld [vmem:[%s17 + $0x28] sm:$0xf]
    %v6727 = vld [vmem:[%s17 + $0x2c] sm:$0xf]
    %v6728 = vld [vmem:[%s17 + $0x30] sm:$0xf]
    %v6729 = vld [vmem:[%s17 + $0x34] sm:$0xf]
    %v6730 = vld [vmem:[%s17 + $0x38] sm:$0xf]
    %v6731 = vld [vmem:[%s17 + $0x3c] sm:$0xf]
    %v6732 = vld [vmem:[%s18] sm:$0x1]
    %v6734 = vlaneseq
    %v6735 = vshrl.u32 %v6734, 7
    %v6736 = vsub.s32 0, %v6735
    %v6737 = vrot.slane %v6732, %v6736
    %v6755 = vunpack.c.l.b16 %v6716
    %v6756 = vunpack.c.l.b16 %v6717
    %v6757 = vunpack.c.l.b16 %v6718
    %v6758 = vunpack.c.l.b16 %v6719
    %v6759 = vunpack.c.l.b16 %v6720
    %v6760 = vunpack.c.l.b16 %v6721
    %v6761 = vunpack.c.l.b16 %v6722
    %v6762 = vunpack.c.l.b16 %v6723
    %v6763 = vunpack.c.l.b16 %v6724
    %v6764 = vunpack.c.l.b16 %v6725
    %v6765 = vunpack.c.l.b16 %v6726
    %v6766 = vunpack.c.l.b16 %v6727
    %v6767 = vunpack.c.l.b16 %v6728
    %v6768 = vunpack.c.l.b16 %v6729
    %v6769 = vunpack.c.l.b16 %v6730
    %v6770 = vunpack.c.l.b16 %v6731
    %v6771 = vpack.c.b16 %v6756, %v6755
    %v6772 = vpack.c.b16 %v6758, %v6757
    %v6773 = vpack.c.b16 %v6760, %v6759
    %v6774 = vpack.c.b16 %v6762, %v6761
    %v6775 = vpack.c.b16 %v6764, %v6763
    %v6776 = vpack.c.b16 %v6766, %v6765
    %v6777 = vpack.c.b16 %v6768, %v6767
    %v6778 = vpack.c.b16 %v6770, %v6769
    %6787 = vmatprep.subr.bf16.mxu0 0
    %6788 = vmatpush1.bf16.msra.mxu0 %v6771
    %6789 = vmatprep.subr.bf16.mxu0 0
    %6790 = vmatpush1.bf16.msra.mxu0 %v6772
    %6791 = vmatprep.subr.bf16.mxu0 0
    %6792 = vmatpush1.bf16.msra.mxu0 %v6773
    %6793 = vmatprep.subr.bf16.mxu0 0
    %6794 = vmatpush1.bf16.msra.mxu0 %v6774
    %6795 = vmatprep.subr.bf16.mxu0 0
    %6796 = vmatpush1.bf16.msra.mxu0 %v6775
    %6797 = vmatprep.subr.bf16.mxu0 0
    %6798 = vmatpush1.bf16.msra.mxu0 %v6776
    %6799 = vmatprep.subr.bf16.mxu0 0
    %6800 = vmatpush1.bf16.msra.mxu0 %v6777
    %6801 = vmatprep.subr.bf16.mxu0 0
    %6802 = vmatpush1.bf16.msra.mxu0 %v6778
    %6803 = vmatprep.subr.bf16.mxu0 0
    %6804 = vmatpush1.bf16.msra.mxu0 0
    %6805 = vmatprep.subr.bf16.mxu0 0
    %6806 = vmatpush1.bf16.msra.mxu0 0
    %6807 = vmatprep.subr.bf16.mxu0 0
    %6808 = vmatpush1.bf16.msra.mxu0 0
    %6809 = vmatprep.subr.bf16.mxu0 0
    %6810 = vmatpush1.bf16.msra.mxu0 0
    %6811 = vmatprep.subr.bf16.mxu0 0
    %6812 = vmatpush1.bf16.msra.mxu0 0
    %6813 = vmatprep.subr.bf16.mxu0 0
    %6814 = vmatpush1.bf16.msra.mxu0 0
    %6815 = vmatprep.subr.bf16.mxu0 0
    %6816 = vmatpush1.bf16.msra.mxu0 0
    %6817 = vmatprep.subr.bf16.mxu0 0
    %6818 = vmatpush1.bf16.msra.mxu0 0
    %6819 = vmatprep.mubr.bf16.mxu0 0
    %6820 = vmatmul.mubr.bf16.gmra.mrb[0].mxu0 %v6714
    %v6821 = vpop.f32.mrb[0].mxu0
    %v6822 = vadd.f32 %v6737, %v6821
    %v6823 = vpop.f32.mrb[0].mxu0
    %v6824 = vpop.f32.mrb[0].mxu0
    %v6825 = vadd.f32 %v6737, %v6824
    %v6826 = vpop.f32.mrb[0].mxu0
    %6827 = vmatprep.mubr.bf16.mxu0 0
    %6828 = vmatmul.mubr.bf16.gmra.mrb[0].mxu0 %v6715
    %v6829 = vpop.f32.mrb[0].mxu0
    %v6830 = vadd.f32 %v6737, %v6829
    %v6831 = vpop.f32.mrb[0].mxu0
    %v6832 = vpop.f32.mrb[0].mxu0
    %v6833 = vadd.f32 %v6737, %v6832
    %v6834 = vpop.f32.mrb[0].mxu0
    %6835 = vdwg.mxu0
    %6836 = vst [vmem:[#allocation2] sm:$0xff] %v6822
    %6837 = vst [vmem:[#allocation2 + $0x8] sm:$0xff] %v6825
    %6838 = vst [vmem:[#allocation2 + $0x10] sm:$0xff] %v6830
    %6839 = vst [vmem:[#allocation2 + $0x18] sm:$0xff] %v6833
    // Predicated region
    $region78: #{gpt_forward.1} parent=1 // pred_check
      _
    $region79: #{gpt_forward.1} parent=1 // pred_check_branch
      %6841 = sbr.rel (0) target = $region81
    $region80: #{gpt_forward.1} parent=1 // pred_region
      %s6843 = ssub.s32 512, 512
      %6844 = vsyncadd [#allocation3], %s6843
      %s6845 = sshll.u32 [#allocation2], 4
      %s6846 = int_to_ptr.vmem [resolvable:$true] %s6845
      %6851 = dma.vmem_to_hbm [thread:$0]  %s6846, 512, %s19, [#allocation3], 128, 128, 8
    $region81: #{gpt_forward.1} parent=1 // pred_fallthru
      _
    // Predicated region
    $region82: #{gpt_forward.1} parent=1 // pred_check
      _
    $region83: #{gpt_forward.1} parent=1 // pred_check_branch
      %6853 = sbr.rel (0) target = $region85
    $region84: #{gpt_forward.1} parent=1 // pred_region
      %6854 = dma.done [#allocation3], 512
    $region85: #{gpt_forward.1} parent=1 // pred_fallthru
      _
    %6855 = vsyncpa [#allocation3], 1

</llo_original>
